<compile_context>
chip_gen: v7x
topology: tpu7x:2x2x1
jax: 0.10.0
libtpu: 0.0.40
codegen_flags: <defaults>
</compile_context>

<pallas_src>
import math
import numpy as np

import jax
import jax.numpy as jnp
from jax.experimental import pallas as pl
from jax.experimental.pallas import tpu as pltpu

# ----------------------------- configuration --------------------------------
EMB = 32            # embedding_size
HIDDEN = 32         # hidden_size
NUM_LAYERS = 2      # num_layers
NUM_HEADS = 4
KEY_DEPTH = 32      # total_key_depth
VALUE_DEPTH = 32    # total_value_depth
FILTER = 64         # filter_size
VOCAB = 50          # vocab_size
MAX_LENGTH = 32     # max_length (timing signal / masks)
NUM_VAR_LAYERS = 1  # config.num_var_layers
NUM_DEC_LAYERS = NUM_LAYERS - NUM_VAR_LAYERS

B = 2
L_TRG = 8
L_SRC = 8
LN_EPS = 1e-6
NEG_INF = np.float32(-1e18)
SLAB_W = 128        # lane width of the packed weight / data slabs


# ----------------------------- constant signals -------------------------------
def gen_timing_signal(length, channels, min_timescale=1.0, max_timescale=1.0e4):
    position = np.arange(length, dtype=np.float64)
    num_timescales = channels // 2
    log_inc = (math.log(float(max_timescale) / float(min_timescale))
               / max(float(num_timescales) - 1, 1.0))
    inv_timescales = min_timescale * np.exp(
        np.arange(num_timescales, dtype=np.float64) * -log_inc)
    scaled_time = position[:, None] * inv_timescales[None, :]
    signal = np.concatenate([np.sin(scaled_time), np.cos(scaled_time)], axis=1)
    signal = np.pad(signal, [[0, 0], [0, channels % 2]], mode="constant")
    return signal.astype(np.float32)                       # (length, channels)


TIMING_SIGNAL = gen_timing_signal(MAX_LENGTH, HIDDEN)
SUBSEQ_MASK = np.triu(np.ones((MAX_LENGTH, MAX_LENGTH), dtype=np.uint8), k=1)


# ----------------------------- slab layouts -----------------------------------
def _data_layout(num_var):
    cols, off = {}, 0
    cols["x"] = off;   off += EMB
    cols["eps"] = off; off += num_var * HIDDEN
    cols["sb"] = off;  off += L_TRG
    cols["cb"] = off;  off += L_SRC
    cols["m1"] = off;  off += 1
    cols["m2"] = off;  off += 1
    width = -(-off // SLAB_W) * SLAB_W
    return cols, width


def _out_layout(num_var):
    cols, off = {}, 0
    cols["y"] = off;    off += HIDDEN
    cols["attn"] = off; off += L_SRC
    cols["mean"], cols["lv"], cols["prob"] = [], [], []
    for _ in range(num_var):
        cols["mean"].append(off); off += HIDDEN
        cols["lv"].append(off);   off += HIDDEN
        cols["prob"].append(off); off += VOCAB
    width = -(-off // SLAB_W) * SLAB_W
    return cols, width


# ----------------------------- weight slab packing ----------------------------
def _pack_weights(params):
    """Pack every parameter into one (rows, 128) f32 slab; each entry starts on an 8-row
    boundary so all in-kernel ref slices are sublane aligned."""
    entries = []

    def add(name, arr):
        a = np.asarray(arr, np.float32)
        if a.ndim == 1:
            a = a[None, :]
        assert a.ndim == 2 and a.shape[1] <= SLAB_W, (name, a.shape)
        entries.append((name, a))

    def add_ln(name, p):
        add(name, np.stack([np.asarray(p["g"]), np.asarray(p["b"])], axis=0))

    scale = np.float32((KEY_DEPTH // NUM_HEADS) ** -0.5)

    add("emb_w", params["embedding_proj"])
    add("timing", TIMING_SIGNAL[:L_TRG, :HIDDEN])
    add_ln("ln1", params["ln1"])
    add_ln("ln2", params["ln2"])

    def add_attn(pref, p):
        add_ln(pref + "ln_dec", p["ln_dec"])
        add(pref + "wqkv", np.concatenate(
            [np.asarray(p["mha_dec"]["wq"]) * scale,        # fold 1/sqrt(dk) into q
             np.asarray(p["mha_dec"]["wk"]),
             np.asarray(p["mha_dec"]["wv"])], axis=1))
        add(pref + "wo", p["mha_dec"]["wo"])
        add_ln(pref + "ln_enc", p["ln_enc"])
        add(pref + "cwq", np.asarray(p["mha_enc_dec"]["wq"]) * scale)
        add(pref + "cwkv", np.concatenate(
            [np.asarray(p["mha_enc_dec"]["wk"]),
             np.asarray(p["mha_enc_dec"]["wv"])], axis=1))
        add(pref + "cwo", p["mha_enc_dec"]["wo"])

    def add_ffn(pref, p):
        add_ln(pref + "ln_ffn", p["ln_ffn"])
        add(pref + "fw1", np.asarray(p["ffn"]["w1"]).reshape(3 * HIDDEN, FILTER))
        add(pref + "fb1", p["ffn"]["b1"])
        add(pref + "fw2", np.asarray(p["ffn"]["w2"]).reshape(3 * FILTER, HIDDEN))
        add(pref + "fb2", p["ffn"]["b2"])

    for i, p in enumerate(params["vardec"]):
        pref = f"v{i}_"
        add_attn(pref, p)
        add_ln(pref + "ln_pri", p["ln_prior"])
        zF = np.zeros((FILTER, FILTER), np.float32)
        zH = np.zeros((FILTER, HIDDEN), np.float32)
        # mean / log-var MLPs fused: layer1 concatenated, layers 2/3 block-diagonal
        add(pref + "mvw1", np.concatenate(
            [np.asarray(p["mean"]["w1"]), np.asarray(p["var"]["w1"])], axis=1))
        add(pref + "mvb1", np.concatenate(
            [np.asarray(p["mean"]["b1"]), np.asarray(p["var"]["b1"])]))
        add(pref + "mvw2", np.block(
            [[np.asarray(p["mean"]["w2"]), zF], [zF, np.asarray(p["var"]["w2"])]]))
        add(pref + "mvb2", np.concatenate(
            [np.asarray(p["mean"]["b2"]), np.asarray(p["var"]["b2"])]))
        add(pref + "mvw3", np.block(
            [[np.asarray(p["mean"]["w3"]), zH], [zH, np.asarray(p["var"]["w3"])]]))
        add(pref + "mvb3", np.concatenate(
            [np.asarray(p["mean"]["b3"]), np.asarray(p["var"]["b3"])]))
        add(pref + "bow_w", p["out_w"])
        add(pref + "bow_b", p["out_b"])
        add_ffn(pref, p)

    for i, p in enumerate(params["dec"]):
        pref = f"d{i}_"
        add_attn(pref, p)
        add_ffn(pref, p)

    layout, blocks, off = {}, [], 0
    for name, a in entries:
        r, c = a.shape
        pad_r = (-r) % 8
        buf = np.zeros((r + pad_r, SLAB_W), np.float32)
        buf[:r, :c] = a
        layout[name] = (off, r, c)
        blocks.append(buf)
        off += r + pad_r
    slab = np.concatenate(blocks, axis=0)
    return jnp.asarray(slab), layout


# ----------------------------- the fused kernel -------------------------------
def _make_kernel(layout, num_var, num_dec, dcols, ocols):
    L, Ls = L_TRG, L_SRC
    dk = KEY_DEPTH // NUM_HEADS
    dv = VALUE_DEPTH // NUM_HEADS

    def kernel(data_ref, enc_ref, w_ref, out_ref):
        # static-offset slices of the packed weight slab (zero-cost views + loads)
        def wrows(name, r0, nrows):
            off, _, c = layout[name]
            return w_ref[off + r0: off + r0 + nrows, :c]

        def wfull(name):
            off, r, c = layout[name]
            return w_ref[off: off + r, :c]

        data = data_ref[...]
        x = data[:, dcols["x"]:dcols["x"] + EMB]
        self_bias = data[:, dcols["sb"]:dcols["sb"] + L]        # additive (0 / -1e18)
        cross_bias = data[:, dcols["cb"]:dcols["cb"] + Ls]
        m1 = data[:, dcols["m1"]:dcols["m1"] + 1]               # 0 on block row 0
        m2 = data[:, dcols["m2"]:dcols["m2"] + 1]               # 0 on block rows 0,1
        enc = enc_ref[...]

        def ln(v, name):
            """Repo LayerNorm: unbiased std (N-1), eps added to the std."""
            g = wrows(name, 0, 1)
            b = wrows(name, 1, 1)
            mean = jnp.mean(v, axis=-1, keepdims=True)
            d = v - mean
            var = jnp.sum(d * d, axis=-1, keepdims=True) / (v.shape[-1] - 1)
            return g * d / (jnp.sqrt(var) + LN_EPS) + b

        def mha(q, k, v, bias, wo_name, want_logits):
            """Per-head attention; heads accumulate into the output through per-head rows
            of W_o (no lane concatenate). q is already scale-folded at pack time."""
            out, lsum = None, None
            for h in range(NUM_HEADS):
                qh = q[:, h * dk:(h + 1) * dk]
                kh = k[:, h * dk:(h + 1) * dk]
                vh = v[:, h * dv:(h + 1) * dv]
                logits = jax.lax.dot_general(
                    qh, kh, (((1,), (1,)), ((), ())),
                    preferred_element_type=jnp.float32) + bias
                if want_logits:
                    lsum = logits if lsum is None else lsum + logits
                mx = jnp.max(logits, axis=-1, keepdims=True)
                e = jnp.exp(logits - mx)
                wgt = e * pl.reciprocal(jnp.sum(e, axis=-1, keepdims=True), approx=True)
                ctx = jnp.dot(wgt, vh, preferred_element_type=jnp.float32)
                oh = jnp.dot(ctx, wrows(wo_name, h * dv, dv),
                             preferred_element_type=jnp.float32)
                out = oh if out is None else out + oh
            if want_logits:
                lsum = lsum * (1.0 / NUM_HEADS)
            return out, lsum

        def self_block(h, p):
            xn = ln(h, p + "ln_dec")
            qkv = jnp.dot(xn, wfull(p + "wqkv"), preferred_element_type=jnp.float32)
            y, _ = mha(qkv[:, :KEY_DEPTH], qkv[:, KEY_DEPTH:2 * KEY_DEPTH],
                       qkv[:, 2 * KEY_DEPTH:], self_bias, p + "wo", False)
            return h + y                                        # layer dropout = identity

        def cross_block(h, p, want_logits):
            xn = ln(h, p + "ln_enc")
            q = jnp.dot(xn, wfull(p + "cwq"), preferred_element_type=jnp.float32)
            kv = jnp.dot(enc, wfull(p + "cwkv"), preferred_element_type=jnp.float32)
            y, aw = mha(q, kv[:, :KEY_DEPTH], kv[:, KEY_DEPTH:],
                        cross_bias, p + "cwo", want_logits)
            return h + y, aw

        def conv_ffn(h, p):
            """PositionwiseFeedForward('cc', pad='left'): causal k=3 conv -> ReLU -> conv.
            Each conv = 3 tap matmuls; the t-1 / t-2 shifts use a sublane roll + zero mask."""
            xn = ln(h, p + "ln_ffn")

            def conv(u, wname, bname, cin):
                u1 = pltpu.roll(u, 1, 0) * m1                  # u[t-1] (0 at block start)
                u2 = pltpu.roll(u, 2, 0) * m2                  # u[t-2]
                return (jnp.dot(u2, wrows(wname, 0, cin),
                                preferred_element_type=jnp.float32)
                        + jnp.dot(u1, wrows(wname, cin, cin),
                                  preferred_element_type=jnp.float32)
                        + jnp.dot(u, wrows(wname, 2 * cin, cin),
                                  preferred_element_type=jnp.float32)
                        + wrows(bname, 0, 1))

            hh = jnp.maximum(conv(xn, p + "fw1", p + "fb1", HIDDEN), 0.0)  # relu_dropout=id
            return h + conv(hh, p + "fw2", p + "fb2", FILTER)

        out_ref[...] = jnp.zeros_like(out_ref)

        # input_dropout (eval) = identity; embedding_proj (bias=False) + timing signal
        h = jnp.dot(x, wfull("emb_w"), preferred_element_type=jnp.float32) + wfull("timing")

        attn_w = None
        for i in range(num_var):
            p = f"v{i}_"
            last_here = (num_dec == 0 and i == num_var - 1)
            # 1) masked multi-head self-attention
            h = self_block(h, p)
            # 2) encoder-decoder attention (logits only kept for the module's last layer)
            h, aw = cross_block(h, p, last_here)
            if last_here:
                attn_w = aw
            # 3) prior network (mean / log-var MLPs fused into one wide MLP) + reparam
            xn = ln(h, p + "ln_pri")
            h1 = jnp.maximum(jnp.dot(xn, wfull(p + "mvw1"),
                                     preferred_element_type=jnp.float32)
                             + wrows(p + "mvb1", 0, 1), 0.0)
            h2 = jnp.maximum(jnp.dot(h1, wfull(p + "mvw2"),
                                     preferred_element_type=jnp.float32)
                             + wrows(p + "mvb2", 0, 1), 0.0)
            mv = (jnp.dot(h2, wfull(p + "mvw3"), preferred_element_type=jnp.float32)
                  + wrows(p + "mvb3", 0, 1))
            mean_prior = mv[:, :HIDDEN]
            log_var_prior = mv[:, HIDDEN:2 * HIDDEN]
            eps = data[:, dcols["eps"] + i * HIDDEN:dcols["eps"] + (i + 1) * HIDDEN]
            z = mean_prior + jnp.exp(0.5 * log_var_prior) * eps
            out_ref[:, ocols["mean"][i]:ocols["mean"][i] + HIDDEN] = mean_prior
            out_ref[:, ocols["lv"][i]:ocols["lv"][i] + HIDDEN] = log_var_prior
            # TODO(synk): posterior recognition network (training-only posterior=True path).
            # auxiliary bag-of-words distribution from z (exact softmax)
            wl = (jnp.dot(z, wfull(p + "bow_w"), preferred_element_type=jnp.float32)
                  + wrows(p + "bow_b", 0, 1))
            wm = jnp.max(wl, axis=-1, keepdims=True)
            we = jnp.exp(wl - wm)
            out_ref[:, ocols["prob"][i]:ocols["prob"][i] + VOCAB] = (
                we / jnp.sum(we, axis=-1, keepdims=True))
            # 4) inject latent + causal conv FFN
            h = conv_ffn(h + z, p)

        h = ln(h, "ln1")

        for i in range(num_dec):
            p = f"d{i}_"
            last_here = (i == num_dec - 1)
            h = self_block(h, p)
            h, aw = cross_block(h, p, last_here)
            if last_here:
                attn_w = aw
            h = conv_ffn(h, p)

        h = ln(h, "ln2")
        out_ref[:, ocols["y"]:ocols["y"] + HIDDEN] = h
        out_ref[:, ocols["attn"]:ocols["attn"] + Ls] = attn_w

    return kernel


# ----------------------------- forward wrapper --------------------------------
def var_decoder_forward(params, inputs, encoder_output, posterior, mask, rng):
    mask_src, mask_trg = mask
    Bb, L, _ = inputs.shape
    Ls = encoder_output.shape[1]
    assert (Bb, L, Ls) == (B, L_TRG, L_SRC)

    dcols, data_w = _data_layout(NUM_VAR_LAYERS)
    ocols, out_w = _out_layout(NUM_VAR_LAYERS)

    # ---- additive attention biases (0 = attend, -1e18 = masked) ----
    subseq = jnp.asarray(SUBSEQ_MASK[:L, :L].astype(np.int32))
    dec_mask = (mask_trg.astype(jnp.int32) + subseq[None, :, :]) > 0            # (B, L, L)
    self_bias = jnp.where(dec_mask, NEG_INF, 0.0).reshape(Bb * L, L)
    cross_bias = jnp.where(jnp.broadcast_to(mask_src, (Bb, L, Ls)),
                           NEG_INF, 0.0).reshape(Bb * L, Ls)

    # ---- reparameterisation noise (deterministic, host-generated) ----
    eps_list = []
    for _ in range(NUM_VAR_LAYERS):
        rng, sub = jax.random.split(rng)
        eps_list.append(jax.random.normal(sub, (Bb * L, HIDDEN), jnp.float32))

    # ---- lane-dense per-token data slab (x | eps | self bias | cross bias | conv masks) ----
    row_in_block = np.arange(Bb * L) % L
    data = jnp.zeros((Bb * L, data_w), jnp.float32)
    data = data.at[:, dcols["x"]:dcols["x"] + EMB].set(
        inputs.reshape(Bb * L, EMB).astype(jnp.float32))
    for i, e in enumerate(eps_list):
        data = data.at[:, dcols["eps"] + i * HIDDEN:dcols["eps"] + (i + 1) * HIDDEN].set(e)
    data = data.at[:, dcols["sb"]:dcols["sb"] + L].set(self_bias.astype(jnp.float32))
    data = data.at[:, dcols["cb"]:dcols["cb"] + Ls].set(cross_bias.astype(jnp.float32))
    data = data.at[:, dcols["m1"]].set(jnp.asarray((row_in_block >= 1).astype(np.float32)))
    data = data.at[:, dcols["m2"]].set(jnp.asarray((row_in_block >= 2).astype(np.float32)))

    # ---- single packed weight slab (in real use this is packed once, offline) ----
    w_slab, layout = _pack_weights(params)
    slab_rows = w_slab.shape[0]

    kernel = _make_kernel(layout, NUM_VAR_LAYERS, NUM_DEC_LAYERS, dcols, ocols)
    out = pl.pallas_call(
        kernel,
        out_shape=jax.ShapeDtypeStruct((Bb * L, out_w), jnp.float32),
        grid=(Bb,),
        in_specs=[
            pl.BlockSpec((L, data_w), lambda b: (b, 0)),          # per-batch token slab
            pl.BlockSpec((Ls, HIDDEN), lambda b: (b, 0)),         # per-batch encoder output
            pl.BlockSpec((slab_rows, SLAB_W), lambda b: (0, 0)),  # shared weight slab
        ],
        out_specs=pl.BlockSpec((L, out_w), lambda b: (b, 0)),     # lane-dense output slab
        compiler_params=pltpu.CompilerParams(dimension_semantics=("parallel",)),
    )(data,
      encoder_output.reshape(Bb * Ls, HIDDEN).astype(jnp.float32),
      w_slab)

    # ---- split the output slab on the host ----
    y = out[:, ocols["y"]:ocols["y"] + HIDDEN].reshape(Bb, L, HIDDEN)
    attn_dist = out[:, ocols["attn"]:ocols["attn"] + Ls].reshape(Bb, L, Ls)
    means = {"prior": [out[:, c:c + HIDDEN].reshape(Bb, L, HIDDEN) for c in ocols["mean"]],
             "posterior": []}
    log_vars = {"prior": [out[:, c:c + HIDDEN].reshape(Bb, L, HIDDEN) for c in ocols["lv"]],
                "posterior": []}
    logits_probs = [out[:, c:c + VOCAB].reshape(Bb, L, VOCAB) for c in ocols["prob"]]
    if posterior:
        means = {k: (jnp.concatenate(v, 0) if len(v) else v) for k, v in means.items()}
        log_vars = {k: (jnp.concatenate(v, 0) if len(v) else v) for k, v in log_vars.items()}
    return y, attn_dist, means, log_vars, logits_probs


# ----------------------------- parameter init --------------------------------
def _rand(key, shape, scale=0.05):
    return jax.random.normal(key, shape, jnp.float32) * scale


def init_ln():
    return {"g": jnp.ones((HIDDEN,), jnp.float32), "b": jnp.zeros((HIDDEN,), jnp.float32)}


def init_mha(key):
    k1, k2, k3, k4 = jax.random.split(key, 4)
    return {"wq": _rand(k1, (HIDDEN, KEY_DEPTH)),
            "wk": _rand(k2, (HIDDEN, KEY_DEPTH)),
            "wv": _rand(k3, (HIDDEN, VALUE_DEPTH)),
            "wo": _rand(k4, (VALUE_DEPTH, HIDDEN))}


def init_ffn_cc(key):
    k1, k2, k3, k4 = jax.random.split(key, 4)
    return {"w1": _rand(k1, (3, HIDDEN, FILTER)), "b1": _rand(k2, (FILTER,)),
            "w2": _rand(k3, (3, FILTER, HIDDEN)), "b2": _rand(k4, (HIDDEN,))}


def init_ffn_lll(key):
    ks = jax.random.split(key, 6)
    return {"w1": _rand(ks[0], (HIDDEN, FILTER)), "b1": _rand(ks[1], (FILTER,)),
            "w2": _rand(ks[2], (FILTER, FILTER)), "b2": _rand(ks[3], (FILTER,)),
            "w3": _rand(ks[4], (FILTER, HIDDEN)), "b3": _rand(ks[5], (HIDDEN,))}


def init_var_layer(key):
    ks = jax.random.split(key, 6)
    return {"mha_dec": init_mha(ks[0]), "mha_enc_dec": init_mha(ks[1]),
            "ffn": init_ffn_cc(ks[2]),
            "mean": init_ffn_lll(ks[3]), "var": init_ffn_lll(ks[4]),
            "out_w": _rand(ks[5], (HIDDEN, VOCAB)), "out_b": jnp.zeros((VOCAB,), jnp.float32),
            "ln_dec": init_ln(), "ln_enc": init_ln(), "ln_prior": init_ln(), "ln_ffn": init_ln()}


def init_dec_layer(key):
    ks = jax.random.split(key, 3)
    return {"mha_dec": init_mha(ks[0]), "mha_enc_dec": init_mha(ks[1]),
            "ffn": init_ffn_cc(ks[2]),
            "ln_dec": init_ln(), "ln_enc": init_ln(), "ln_ffn": init_ln()}


def init_params(key):
    ks = jax.random.split(key, 1 + NUM_LAYERS)
    return {
        "embedding_proj": _rand(ks[0], (EMB, HIDDEN)),
        "ln1": init_ln(), "ln2": init_ln(),
        "vardec": [init_var_layer(ks[1 + i]) for i in range(NUM_VAR_LAYERS)],
        "dec": [init_dec_layer(ks[1 + NUM_VAR_LAYERS + i]) for i in range(NUM_DEC_LAYERS)],
    }


# ----------------------------- main -----------------------------------------
if __name__ == "__main__":
    key = jax.random.PRNGKey(0)
    kp, ki, ke, kz = jax.random.split(key, 4)
    params = init_params(kp)

    inputs = jax.random.normal(ki, (B, L_TRG, EMB), jnp.float32)          # pre-projection embeddings
    encoder_output = jax.random.normal(ke, (B, L_SRC, HIDDEN), jnp.float32)
    # padding masks (True = PAD), shapes (B, 1, L) as in the PyTorch data pipeline
    mask_src = jnp.array([[[False] * L_SRC],
                          [[False] * (L_SRC - 2) + [True, True]]])
    mask_trg = jnp.array([[[False] * L_TRG],
                          [[False] * (L_TRG - 3) + [True] * 3]])
    posterior = False   # inference path: the `if posterior:` branch in VarDecoder is skipped

    y, attn_dist, means, log_vars, logits_probs = var_decoder_forward(
        params, inputs, encoder_output, posterior, (mask_src, mask_trg), kz)

    jax.block_until_ready(y)
    assert y.shape == (B, L_TRG, HIDDEN)
    assert attn_dist.shape == (B, L_TRG, L_SRC)
    assert len(means["prior"]) == NUM_VAR_LAYERS and means["prior"][0].shape == (B, L_TRG, HIDDEN)
    assert len(logits_probs) == NUM_VAR_LAYERS and logits_probs[0].shape == (B, L_TRG, VOCAB)
    assert bool(jnp.all(jnp.isfinite(y)))
    assert bool(jnp.all(jnp.isfinite(logits_probs[0])))
    print("KERNEL_OK")
</pallas_src>

<mosaic_0001>
module attributes {stable_mosaic.version = 11 : i64} {
  func.func @kernel(%arg0: i32, %arg1: memref<8x128xf32, #tpu.memory_space<vmem>>, %arg2: memref<8x32xf32, #tpu.memory_space<vmem>>, %arg3: memref<1392x128xf32, #tpu.memory_space<vmem>>, %arg4: memref<8x256xf32, #tpu.memory_space<vmem>>) attributes {dimension_semantics = [#tpu.dimension_semantics<parallel>], iteration_bounds = array<i64: 2>, scalar_prefetch = 0 : i64, scratch_operands = 0 : i64, tpu.core_type = #tpu.core_type<tc>, window_params = [{transform_indices = @transform_0, window_bounds = array<i64: 8, 128>}, {transform_indices = @transform_1, window_bounds = array<i64: 8, 32>}, {pipeline_mode = #tpu.pipeline_mode<synchronous>, transform_indices = @transform_2, window_bounds = array<i64: 1392, 128>}, {transform_indices = @transform_3, window_bounds = array<i64: 8, 256>}]} {
    %c0 = arith.constant 0 : index
    %c0_0 = arith.constant 0 : index
    %0 = vector.load %arg1[%c0, %c0_0] : memref<8x128xf32, #tpu.memory_space<vmem>>, vector<8x128xf32>
    %1 = vector.extract_strided_slice %0 {offsets = [0, 0], sizes = [8, 32], strides = [1, 1]} : vector<8x128xf32> to vector<8x32xf32>
    %2 = vector.extract_strided_slice %0 {offsets = [0, 64], sizes = [8, 8], strides = [1, 1]} : vector<8x128xf32> to vector<8x8xf32>
    %3 = vector.extract_strided_slice %0 {offsets = [0, 72], sizes = [8, 8], strides = [1, 1]} : vector<8x128xf32> to vector<8x8xf32>
    %4 = vector.extract_strided_slice %0 {offsets = [0, 80], sizes = [8, 1], strides = [1, 1]} : vector<8x128xf32> to vector<8x1xf32>
    %5 = vector.extract_strided_slice %0 {offsets = [0, 81], sizes = [8, 1], strides = [1, 1]} : vector<8x128xf32> to vector<8x1xf32>
    %c0_1 = arith.constant 0 : index
    %c0_2 = arith.constant 0 : index
    %6 = vector.load %arg2[%c0_1, %c0_2] : memref<8x32xf32, #tpu.memory_space<vmem>>, vector<8x32xf32>
    %cst = arith.constant 0.000000e+00 : f32
    %7 = vector.broadcast %cst : f32 to vector<8x256xf32>
    %c0_3 = arith.constant 0 : index
    %c0_4 = arith.constant 0 : index
    %8 = vector.load %arg4[%c0_3, %c0_4] : memref<8x256xf32, #tpu.memory_space<vmem>>, vector<8x256xf32>
    tpu.vector_store %arg4[%c0_3, %c0_4], %7 {strides = array<i32>} : memref<8x256xf32, #tpu.memory_space<vmem>>, vector<8x256xf32>,
    %c0_5 = arith.constant 0 : index
    %c0_6 = arith.constant 0 : index
    %9 = vector.load %arg3[%c0_5, %c0_6] : memref<1392x128xf32, #tpu.memory_space<vmem>>, vector<32x32xf32>
    %cst_7 = arith.constant dense<0.000000e+00> : vector<8x32xf32>
    %10 = tpu.matmul %1, %9, %cst_7 {dimension_numbers = #tpu.dot_dimension_numbers<[1], [0], [0], [1], [0, 0, 1, 1], [], []>} : vector<8x32xf32>, vector<32x32xf32>, vector<8x32xf32> -> vector<8x32xf32>
    %c32 = arith.constant 32 : index
    %c0_8 = arith.constant 0 : index
    %11 = vector.load %arg3[%c32, %c0_8] : memref<1392x128xf32, #tpu.memory_space<vmem>>, vector<8x32xf32>
    %12 = arith.addf %10, %11 : vector<8x32xf32>
    %c56 = arith.constant 56 : index
    %c0_9 = arith.constant 0 : index
    %13 = vector.load %arg3[%c56, %c0_9] : memref<1392x128xf32, #tpu.memory_space<vmem>>, vector<1x32xf32>
    %c57 = arith.constant 57 : index
    %c0_10 = arith.constant 0 : index
    %14 = vector.load %arg3[%c57, %c0_10] : memref<1392x128xf32, #tpu.memory_space<vmem>>, vector<1x32xf32>
    %cst_11 = arith.constant dense<0.000000e+00> : vector<8xf32>
    %15 = vector.multi_reduction <add>, %12, %cst_11 [1] : vector<8x32xf32> to vector<8xf32>
    %16 = vector.shape_cast %15 : vector<8xf32> to vector<8x1xf32>
    %cst_12 = arith.constant 3.200000e+01 : f32
    %17 = vector.broadcast %cst_12 : f32 to vector<8x1xf32>
    %18 = arith.divf %16, %17 : vector<8x1xf32>
    %19 = vector.broadcast %18 : vector<8x1xf32> to vector<8x32xf32>
    %20 = arith.subf %12, %19 : vector<8x32xf32>
    %21 = arith.mulf %20, %20 : vector<8x32xf32>
    %cst_13 = arith.constant dense<0.000000e+00> : vector<8xf32>
    %22 = vector.multi_reduction <add>, %21, %cst_13 [1] : vector<8x32xf32> to vector<8xf32>
    %23 = vector.shape_cast %22 : vector<8xf32> to vector<8x1xf32>
    %cst_14 = arith.constant 3.100000e+01 : f32
    %24 = vector.broadcast %cst_14 : f32 to vector<8x1xf32>
    %25 = arith.divf %23, %24 : vector<8x1xf32>
    %26 = vector.broadcast %13 : vector<1x32xf32> to vector<8x32xf32>
    %27 = arith.mulf %26, %20 : vector<8x32xf32>
    %28 = math.sqrt %25 : vector<8x1xf32>
    %cst_15 = arith.constant 9.99999997E-7 : f32
    %29 = vector.broadcast %cst_15 : f32 to vector<8x1xf32>
    %30 = arith.addf %28, %29 : vector<8x1xf32>
    %31 = vector.broadcast %30 : vector<8x1xf32> to vector<8x32xf32>
    %32 = arith.divf %27, %31 : vector<8x32xf32>
    %33 = vector.broadcast %14 : vector<1x32xf32> to vector<8x32xf32>
    %34 = arith.addf %32, %33 : vector<8x32xf32>
    %c64 = arith.constant 64 : index
    %c0_16 = arith.constant 0 : index
    %35 = vector.load %arg3[%c64, %c0_16] : memref<1392x128xf32, #tpu.memory_space<vmem>>, vector<32x96xf32>
    %cst_17 = arith.constant dense<0.000000e+00> : vector<8x96xf32>
    %36 = tpu.matmul %34, %35, %cst_17 {dimension_numbers = #tpu.dot_dimension_numbers<[1], [0], [0], [1], [0, 0, 1, 1], [], []>} : vector<8x32xf32>, vector<32x96xf32>, vector<8x96xf32> -> vector<8x96xf32>
    %37 = vector.extract_strided_slice %36 {offsets = [0, 0], sizes = [8, 32], strides = [1, 1]} : vector<8x96xf32> to vector<8x32xf32>
    %38 = vector.extract_strided_slice %36 {offsets = [0, 32], sizes = [8, 32], strides = [1, 1]} : vector<8x96xf32> to vector<8x32xf32>
    %39 = vector.extract_strided_slice %36 {offsets = [0, 64], sizes = [8, 32], strides = [1, 1]} : vector<8x96xf32> to vector<8x32xf32>
    %40 = vector.extract_strided_slice %37 {offsets = [0, 0], sizes = [8, 8], strides = [1, 1]} : vector<8x32xf32> to vector<8x8xf32>
    %41 = vector.extract_strided_slice %38 {offsets = [0, 0], sizes = [8, 8], strides = [1, 1]} : vector<8x32xf32> to vector<8x8xf32>
    %42 = vector.extract_strided_slice %39 {offsets = [0, 0], sizes = [8, 8], strides = [1, 1]} : vector<8x32xf32> to vector<8x8xf32>
    %cst_18 = arith.constant dense<0.000000e+00> : vector<8x8xf32>
    %43 = tpu.matmul %40, %41, %cst_18 {dimension_numbers = #tpu.dot_dimension_numbers<[1], [1], [0], [0], [0, 0, 1, 0], [], []>} : vector<8x8xf32>, vector<8x8xf32>, vector<8x8xf32> -> vector<8x8xf32>
    %44 = arith.addf %43, %2 : vector<8x8xf32>
    %cst_19 = arith.constant dense<0xFF800000> : vector<8xf32>
    %45 = vector.multi_reduction <maximumf>, %44, %cst_19 [1] : vector<8x8xf32> to vector<8xf32>
    %46 = vector.shape_cast %45 : vector<8xf32> to vector<8x1xf32>
    %47 = vector.broadcast %46 : vector<8x1xf32> to vector<8x8xf32>
    %48 = arith.subf %44, %47 : vector<8x8xf32>
    %49 = math.exp %48 : vector<8x8xf32>
    %cst_20 = arith.constant dense<0.000000e+00> : vector<8xf32>
    %50 = vector.multi_reduction <add>, %49, %cst_20 [1] : vector<8x8xf32> to vector<8xf32>
    %51 = vector.shape_cast %50 : vector<8xf32> to vector<8x1xf32>
    %52 = tpu.reciprocal %51 {approx = true} : vector<8x1xf32> -> vector<8x1xf32>
    %53 = vector.broadcast %52 : vector<8x1xf32> to vector<8x8xf32>
    %54 = arith.mulf %49, %53 : vector<8x8xf32>
    %cst_21 = arith.constant dense<0.000000e+00> : vector<8x8xf32>
    %55 = tpu.matmul %54, %42, %cst_21 {dimension_numbers = #tpu.dot_dimension_numbers<[1], [0], [0], [1], [0, 0, 1, 1], [], []>} : vector<8x8xf32>, vector<8x8xf32>, vector<8x8xf32> -> vector<8x8xf32>
    %c96 = arith.constant 96 : index
    %c0_22 = arith.constant 0 : index
    %56 = vector.load %arg3[%c96, %c0_22] : memref<1392x128xf32, #tpu.memory_space<vmem>>, vector<8x32xf32>
    %cst_23 = arith.constant dense<0.000000e+00> : vector<8x32xf32>
    %57 = tpu.matmul %55, %56, %cst_23 {dimension_numbers = #tpu.dot_dimension_numbers<[1], [0], [0], [1], [0, 0, 1, 1], [], []>} : vector<8x8xf32>, vector<8x32xf32>, vector<8x32xf32> -> vector<8x32xf32>
    %58 = vector.extract_strided_slice %37 {offsets = [0, 8], sizes = [8, 8], strides = [1, 1]} : vector<8x32xf32> to vector<8x8xf32>
    %59 = vector.extract_strided_slice %38 {offsets = [0, 8], sizes = [8, 8], strides = [1, 1]} : vector<8x32xf32> to vector<8x8xf32>
    %60 = vector.extract_strided_slice %39 {offsets = [0, 8], sizes = [8, 8], strides = [1, 1]} : vector<8x32xf32> to vector<8x8xf32>
    %cst_24 = arith.constant dense<0.000000e+00> : vector<8x8xf32>
    %61 = tpu.matmul %58, %59, %cst_24 {dimension_numbers = #tpu.dot_dimension_numbers<[1], [1], [0], [0], [0, 0, 1, 0], [], []>} : vector<8x8xf32>, vector<8x8xf32>, vector<8x8xf32> -> vector<8x8xf32>
    %62 = arith.addf %61, %2 : vector<8x8xf32>
    %cst_25 = arith.constant dense<0xFF800000> : vector<8xf32>
    %63 = vector.multi_reduction <maximumf>, %62, %cst_25 [1] : vector<8x8xf32> to vector<8xf32>
    %64 = vector.shape_cast %63 : vector<8xf32> to vector<8x1xf32>
    %65 = vector.broadcast %64 : vector<8x1xf32> to vector<8x8xf32>
    %66 = arith.subf %62, %65 : vector<8x8xf32>
    %67 = math.exp %66 : vector<8x8xf32>
    %cst_26 = arith.constant dense<0.000000e+00> : vector<8xf32>
    %68 = vector.multi_reduction <add>, %67, %cst_26 [1] : vector<8x8xf32> to vector<8xf32>
    %69 = vector.shape_cast %68 : vector<8xf32> to vector<8x1xf32>
    %70 = tpu.reciprocal %69 {approx = true} : vector<8x1xf32> -> vector<8x1xf32>
    %71 = vector.broadcast %70 : vector<8x1xf32> to vector<8x8xf32>
    %72 = arith.mulf %67, %71 : vector<8x8xf32>
    %cst_27 = arith.constant dense<0.000000e+00> : vector<8x8xf32>
    %73 = tpu.matmul %72, %60, %cst_27 {dimension_numbers = #tpu.dot_dimension_numbers<[1], [0], [0], [1], [0, 0, 1, 1], [], []>} : vector<8x8xf32>, vector<8x8xf32>, vector<8x8xf32> -> vector<8x8xf32>
    %c104 = arith.constant 104 : index
    %c0_28 = arith.constant 0 : index
    %74 = vector.load %arg3[%c104, %c0_28] : memref<1392x128xf32, #tpu.memory_space<vmem>>, vector<8x32xf32>
    %cst_29 = arith.constant dense<0.000000e+00> : vector<8x32xf32>
    %75 = tpu.matmul %73, %74, %cst_29 {dimension_numbers = #tpu.dot_dimension_numbers<[1], [0], [0], [1], [0, 0, 1, 1], [], []>} : vector<8x8xf32>, vector<8x32xf32>, vector<8x32xf32> -> vector<8x32xf32>
    %76 = arith.addf %57, %75 : vector<8x32xf32>
    %77 = vector.extract_strided_slice %37 {offsets = [0, 16], sizes = [8, 8], strides = [1, 1]} : vector<8x32xf32> to vector<8x8xf32>
    %78 = vector.extract_strided_slice %38 {offsets = [0, 16], sizes = [8, 8], strides = [1, 1]} : vector<8x32xf32> to vector<8x8xf32>
    %79 = vector.extract_strided_slice %39 {offsets = [0, 16], sizes = [8, 8], strides = [1, 1]} : vector<8x32xf32> to vector<8x8xf32>
    %cst_30 = arith.constant dense<0.000000e+00> : vector<8x8xf32>
    %80 = tpu.matmul %77, %78, %cst_30 {dimension_numbers = #tpu.dot_dimension_numbers<[1], [1], [0], [0], [0, 0, 1, 0], [], []>} : vector<8x8xf32>, vector<8x8xf32>, vector<8x8xf32> -> vector<8x8xf32>
    %81 = arith.addf %80, %2 : vector<8x8xf32>
    %cst_31 = arith.constant dense<0xFF800000> : vector<8xf32>
    %82 = vector.multi_reduction <maximumf>, %81, %cst_31 [1] : vector<8x8xf32> to vector<8xf32>
    %83 = vector.shape_cast %82 : vector<8xf32> to vector<8x1xf32>
    %84 = vector.broadcast %83 : vector<8x1xf32> to vector<8x8xf32>
    %85 = arith.subf %81, %84 : vector<8x8xf32>
    %86 = math.exp %85 : vector<8x8xf32>
    %cst_32 = arith.constant dense<0.000000e+00> : vector<8xf32>
    %87 = vector.multi_reduction <add>, %86, %cst_32 [1] : vector<8x8xf32> to vector<8xf32>
    %88 = vector.shape_cast %87 : vector<8xf32> to vector<8x1xf32>
    %89 = tpu.reciprocal %88 {approx = true} : vector<8x1xf32> -> vector<8x1xf32>
    %90 = vector.broadcast %89 : vector<8x1xf32> to vector<8x8xf32>
    %91 = arith.mulf %86, %90 : vector<8x8xf32>
    %cst_33 = arith.constant dense<0.000000e+00> : vector<8x8xf32>
    %92 = tpu.matmul %91, %79, %cst_33 {dimension_numbers = #tpu.dot_dimension_numbers<[1], [0], [0], [1], [0, 0, 1, 1], [], []>} : vector<8x8xf32>, vector<8x8xf32>, vector<8x8xf32> -> vector<8x8xf32>
    %c112 = arith.constant 112 : index
    %c0_34 = arith.constant 0 : index
    %93 = vector.load %arg3[%c112, %c0_34] : memref<1392x128xf32, #tpu.memory_space<vmem>>, vector<8x32xf32>
    %cst_35 = arith.constant dense<0.000000e+00> : vector<8x32xf32>
    %94 = tpu.matmul %92, %93, %cst_35 {dimension_numbers = #tpu.dot_dimension_numbers<[1], [0], [0], [1], [0, 0, 1, 1], [], []>} : vector<8x8xf32>, vector<8x32xf32>, vector<8x32xf32> -> vector<8x32xf32>
    %95 = arith.addf %76, %94 : vector<8x32xf32>
    %96 = vector.extract_strided_slice %37 {offsets = [0, 24], sizes = [8, 8], strides = [1, 1]} : vector<8x32xf32> to vector<8x8xf32>
    %97 = vector.extract_strided_slice %38 {offsets = [0, 24], sizes = [8, 8], strides = [1, 1]} : vector<8x32xf32> to vector<8x8xf32>
    %98 = vector.extract_strided_slice %39 {offsets = [0, 24], sizes = [8, 8], strides = [1, 1]} : vector<8x32xf32> to vector<8x8xf32>
    %cst_36 = arith.constant dense<0.000000e+00> : vector<8x8xf32>
    %99 = tpu.matmul %96, %97, %cst_36 {dimension_numbers = #tpu.dot_dimension_numbers<[1], [1], [0], [0], [0, 0, 1, 0], [], []>} : vector<8x8xf32>, vector<8x8xf32>, vector<8x8xf32> -> vector<8x8xf32>
    %100 = arith.addf %99, %2 : vector<8x8xf32>
    %cst_37 = arith.constant dense<0xFF800000> : vector<8xf32>
    %101 = vector.multi_reduction <maximumf>, %100, %cst_37 [1] : vector<8x8xf32> to vector<8xf32>
    %102 = vector.shape_cast %101 : vector<8xf32> to vector<8x1xf32>
    %103 = vector.broadcast %102 : vector<8x1xf32> to vector<8x8xf32>
    %104 = arith.subf %100, %103 : vector<8x8xf32>
    %105 = math.exp %104 : vector<8x8xf32>
    %cst_38 = arith.constant dense<0.000000e+00> : vector<8xf32>
    %106 = vector.multi_reduction <add>, %105, %cst_38 [1] : vector<8x8xf32> to vector<8xf32>
    %107 = vector.shape_cast %106 : vector<8xf32> to vector<8x1xf32>
    %108 = tpu.reciprocal %107 {approx = true} : vector<8x1xf32> -> vector<8x1xf32>
    %109 = vector.broadcast %108 : vector<8x1xf32> to vector<8x8xf32>
    %110 = arith.mulf %105, %109 : vector<8x8xf32>
    %cst_39 = arith.constant dense<0.000000e+00> : vector<8x8xf32>
    %111 = tpu.matmul %110, %98, %cst_39 {dimension_numbers = #tpu.dot_dimension_numbers<[1], [0], [0], [1], [0, 0, 1, 1], [], []>} : vector<8x8xf32>, vector<8x8xf32>, vector<8x8xf32> -> vector<8x8xf32>
    %c120 = arith.constant 120 : index
    %c0_40 = arith.constant 0 : index
    %112 = vector.load %arg3[%c120, %c0_40] : memref<1392x128xf32, #tpu.memory_space<vmem>>, vector<8x32xf32>
    %cst_41 = arith.constant dense<0.000000e+00> : vector<8x32xf32>
    %113 = tpu.matmul %111, %112, %cst_41 {dimension_numbers = #tpu.dot_dimension_numbers<[1], [0], [0], [1], [0, 0, 1, 1], [], []>} : vector<8x8xf32>, vector<8x32xf32>, vector<8x32xf32> -> vector<8x32xf32>
    %114 = arith.addf %95, %113 : vector<8x32xf32>
    %115 = arith.addf %12, %114 : vector<8x32xf32>
    %c128 = arith.constant 128 : index
    %c0_42 = arith.constant 0 : index
    %116 = vector.load %arg3[%c128, %c0_42] : memref<1392x128xf32, #tpu.memory_space<vmem>>, vector<1x32xf32>
    %c129 = arith.constant 129 : index
    %c0_43 = arith.constant 0 : index
    %117 = vector.load %arg3[%c129, %c0_43] : memref<1392x128xf32, #tpu.memory_space<vmem>>, vector<1x32xf32>
    %cst_44 = arith.constant dense<0.000000e+00> : vector<8xf32>
    %118 = vector.multi_reduction <add>, %115, %cst_44 [1] : vector<8x32xf32> to vector<8xf32>
    %119 = vector.shape_cast %118 : vector<8xf32> to vector<8x1xf32>
    %cst_45 = arith.constant 3.200000e+01 : f32
    %120 = vector.broadcast %cst_45 : f32 to vector<8x1xf32>
    %121 = arith.divf %119, %120 : vector<8x1xf32>
    %122 = vector.broadcast %121 : vector<8x1xf32> to vector<8x32xf32>
    %123 = arith.subf %115, %122 : vector<8x32xf32>
    %124 = arith.mulf %123, %123 : vector<8x32xf32>
    %cst_46 = arith.constant dense<0.000000e+00> : vector<8xf32>
    %125 = vector.multi_reduction <add>, %124, %cst_46 [1] : vector<8x32xf32> to vector<8xf32>
    %126 = vector.shape_cast %125 : vector<8xf32> to vector<8x1xf32>
    %cst_47 = arith.constant 3.100000e+01 : f32
    %127 = vector.broadcast %cst_47 : f32 to vector<8x1xf32>
    %128 = arith.divf %126, %127 : vector<8x1xf32>
    %129 = vector.broadcast %116 : vector<1x32xf32> to vector<8x32xf32>
    %130 = arith.mulf %129, %123 : vector<8x32xf32>
    %131 = math.sqrt %128 : vector<8x1xf32>
    %cst_48 = arith.constant 9.99999997E-7 : f32
    %132 = vector.broadcast %cst_48 : f32 to vector<8x1xf32>
    %133 = arith.addf %131, %132 : vector<8x1xf32>
    %134 = vector.broadcast %133 : vector<8x1xf32> to vector<8x32xf32>
    %135 = arith.divf %130, %134 : vector<8x32xf32>
    %136 = vector.broadcast %117 : vector<1x32xf32> to vector<8x32xf32>
    %137 = arith.addf %135, %136 : vector<8x32xf32>
    %c136 = arith.constant 136 : index
    %c0_49 = arith.constant 0 : index
    %138 = vector.load %arg3[%c136, %c0_49] : memref<1392x128xf32, #tpu.memory_space<vmem>>, vector<32x32xf32>
    %cst_50 = arith.constant dense<0.000000e+00> : vector<8x32xf32>
    %139 = tpu.matmul %137, %138, %cst_50 {dimension_numbers = #tpu.dot_dimension_numbers<[1], [0], [0], [1], [0, 0, 1, 1], [], []>} : vector<8x32xf32>, vector<32x32xf32>, vector<8x32xf32> -> vector<8x32xf32>
    %c168 = arith.constant 168 : index
    %c0_51 = arith.constant 0 : index
    %140 = vector.load %arg3[%c168, %c0_51] : memref<1392x128xf32, #tpu.memory_space<vmem>>, vector<32x64xf32>
    %cst_52 = arith.constant dense<0.000000e+00> : vector<8x64xf32>
    %141 = tpu.matmul %6, %140, %cst_52 {dimension_numbers = #tpu.dot_dimension_numbers<[1], [0], [0], [1], [0, 0, 1, 1], [], []>} : vector<8x32xf32>, vector<32x64xf32>, vector<8x64xf32> -> vector<8x64xf32>
    %142 = vector.extract_strided_slice %141 {offsets = [0, 0], sizes = [8, 32], strides = [1, 1]} : vector<8x64xf32> to vector<8x32xf32>
    %143 = vector.extract_strided_slice %141 {offsets = [0, 32], sizes = [8, 32], strides = [1, 1]} : vector<8x64xf32> to vector<8x32xf32>
    %144 = vector.extract_strided_slice %139 {offsets = [0, 0], sizes = [8, 8], strides = [1, 1]} : vector<8x32xf32> to vector<8x8xf32>
    %145 = vector.extract_strided_slice %142 {offsets = [0, 0], sizes = [8, 8], strides = [1, 1]} : vector<8x32xf32> to vector<8x8xf32>
    %146 = vector.extract_strided_slice %143 {offsets = [0, 0], sizes = [8, 8], strides = [1, 1]} : vector<8x32xf32> to vector<8x8xf32>
    %cst_53 = arith.constant dense<0.000000e+00> : vector<8x8xf32>
    %147 = tpu.matmul %144, %145, %cst_53 {dimension_numbers = #tpu.dot_dimension_numbers<[1], [1], [0], [0], [0, 0, 1, 0], [], []>} : vector<8x8xf32>, vector<8x8xf32>, vector<8x8xf32> -> vector<8x8xf32>
    %148 = arith.addf %147, %3 : vector<8x8xf32>
    %cst_54 = arith.constant dense<0xFF800000> : vector<8xf32>
    %149 = vector.multi_reduction <maximumf>, %148, %cst_54 [1] : vector<8x8xf32> to vector<8xf32>
    %150 = vector.shape_cast %149 : vector<8xf32> to vector<8x1xf32>
    %151 = vector.broadcast %150 : vector<8x1xf32> to vector<8x8xf32>
    %152 = arith.subf %148, %151 : vector<8x8xf32>
    %153 = math.exp %152 : vector<8x8xf32>
    %cst_55 = arith.constant dense<0.000000e+00> : vector<8xf32>
    %154 = vector.multi_reduction <add>, %153, %cst_55 [1] : vector<8x8xf32> to vector<8xf32>
    %155 = vector.shape_cast %154 : vector<8xf32> to vector<8x1xf32>
    %156 = tpu.reciprocal %155 {approx = true} : vector<8x1xf32> -> vector<8x1xf32>
    %157 = vector.broadcast %156 : vector<8x1xf32> to vector<8x8xf32>
    %158 = arith.mulf %153, %157 : vector<8x8xf32>
    %cst_56 = arith.constant dense<0.000000e+00> : vector<8x8xf32>
    %159 = tpu.matmul %158, %146, %cst_56 {dimension_numbers = #tpu.dot_dimension_numbers<[1], [0], [0], [1], [0, 0, 1, 1], [], []>} : vector<8x8xf32>, vector<8x8xf32>, vector<8x8xf32> -> vector<8x8xf32>
    %c200 = arith.constant 200 : index
    %c0_57 = arith.constant 0 : index
    %160 = vector.load %arg3[%c200, %c0_57] : memref<1392x128xf32, #tpu.memory_space<vmem>>, vector<8x32xf32>
    %cst_58 = arith.constant dense<0.000000e+00> : vector<8x32xf32>
    %161 = tpu.matmul %159, %160, %cst_58 {dimension_numbers = #tpu.dot_dimension_numbers<[1], [0], [0], [1], [0, 0, 1, 1], [], []>} : vector<8x8xf32>, vector<8x32xf32>, vector<8x32xf32> -> vector<8x32xf32>
    %162 = vector.extract_strided_slice %139 {offsets = [0, 8], sizes = [8, 8], strides = [1, 1]} : vector<8x32xf32> to vector<8x8xf32>
    %163 = vector.extract_strided_slice %142 {offsets = [0, 8], sizes = [8, 8], strides = [1, 1]} : vector<8x32xf32> to vector<8x8xf32>
    %164 = vector.extract_strided_slice %143 {offsets = [0, 8], sizes = [8, 8], strides = [1, 1]} : vector<8x32xf32> to vector<8x8xf32>
    %cst_59 = arith.constant dense<0.000000e+00> : vector<8x8xf32>
    %165 = tpu.matmul %162, %163, %cst_59 {dimension_numbers = #tpu.dot_dimension_numbers<[1], [1], [0], [0], [0, 0, 1, 0], [], []>} : vector<8x8xf32>, vector<8x8xf32>, vector<8x8xf32> -> vector<8x8xf32>
    %166 = arith.addf %165, %3 : vector<8x8xf32>
    %cst_60 = arith.constant dense<0xFF800000> : vector<8xf32>
    %167 = vector.multi_reduction <maximumf>, %166, %cst_60 [1] : vector<8x8xf32> to vector<8xf32>
    %168 = vector.shape_cast %167 : vector<8xf32> to vector<8x1xf32>
    %169 = vector.broadcast %168 : vector<8x1xf32> to vector<8x8xf32>
    %170 = arith.subf %166, %169 : vector<8x8xf32>
    %171 = math.exp %170 : vector<8x8xf32>
    %cst_61 = arith.constant dense<0.000000e+00> : vector<8xf32>
    %172 = vector.multi_reduction <add>, %171, %cst_61 [1] : vector<8x8xf32> to vector<8xf32>
    %173 = vector.shape_cast %172 : vector<8xf32> to vector<8x1xf32>
    %174 = tpu.reciprocal %173 {approx = true} : vector<8x1xf32> -> vector<8x1xf32>
    %175 = vector.broadcast %174 : vector<8x1xf32> to vector<8x8xf32>
    %176 = arith.mulf %171, %175 : vector<8x8xf32>
    %cst_62 = arith.constant dense<0.000000e+00> : vector<8x8xf32>
    %177 = tpu.matmul %176, %164, %cst_62 {dimension_numbers = #tpu.dot_dimension_numbers<[1], [0], [0], [1], [0, 0, 1, 1], [], []>} : vector<8x8xf32>, vector<8x8xf32>, vector<8x8xf32> -> vector<8x8xf32>
    %c208 = arith.constant 208 : index
    %c0_63 = arith.constant 0 : index
    %178 = vector.load %arg3[%c208, %c0_63] : memref<1392x128xf32, #tpu.memory_space<vmem>>, vector<8x32xf32>
    %cst_64 = arith.constant dense<0.000000e+00> : vector<8x32xf32>
    %179 = tpu.matmul %177, %178, %cst_64 {dimension_numbers = #tpu.dot_dimension_numbers<[1], [0], [0], [1], [0, 0, 1, 1], [], []>} : vector<8x8xf32>, vector<8x32xf32>, vector<8x32xf32> -> vector<8x32xf32>
    %180 = arith.addf %161, %179 : vector<8x32xf32>
    %181 = vector.extract_strided_slice %139 {offsets = [0, 16], sizes = [8, 8], strides = [1, 1]} : vector<8x32xf32> to vector<8x8xf32>
    %182 = vector.extract_strided_slice %142 {offsets = [0, 16], sizes = [8, 8], strides = [1, 1]} : vector<8x32xf32> to vector<8x8xf32>
    %183 = vector.extract_strided_slice %143 {offsets = [0, 16], sizes = [8, 8], strides = [1, 1]} : vector<8x32xf32> to vector<8x8xf32>
    %cst_65 = arith.constant dense<0.000000e+00> : vector<8x8xf32>
    %184 = tpu.matmul %181, %182, %cst_65 {dimension_numbers = #tpu.dot_dimension_numbers<[1], [1], [0], [0], [0, 0, 1, 0], [], []>} : vector<8x8xf32>, vector<8x8xf32>, vector<8x8xf32> -> vector<8x8xf32>
    %185 = arith.addf %184, %3 : vector<8x8xf32>
    %cst_66 = arith.constant dense<0xFF800000> : vector<8xf32>
    %186 = vector.multi_reduction <maximumf>, %185, %cst_66 [1] : vector<8x8xf32> to vector<8xf32>
    %187 = vector.shape_cast %186 : vector<8xf32> to vector<8x1xf32>
    %188 = vector.broadcast %187 : vector<8x1xf32> to vector<8x8xf32>
    %189 = arith.subf %185, %188 : vector<8x8xf32>
    %190 = math.exp %189 : vector<8x8xf32>
    %cst_67 = arith.constant dense<0.000000e+00> : vector<8xf32>
    %191 = vector.multi_reduction <add>, %190, %cst_67 [1] : vector<8x8xf32> to vector<8xf32>
    %192 = vector.shape_cast %191 : vector<8xf32> to vector<8x1xf32>
    %193 = tpu.reciprocal %192 {approx = true} : vector<8x1xf32> -> vector<8x1xf32>
    %194 = vector.broadcast %193 : vector<8x1xf32> to vector<8x8xf32>
    %195 = arith.mulf %190, %194 : vector<8x8xf32>
    %cst_68 = arith.constant dense<0.000000e+00> : vector<8x8xf32>
    %196 = tpu.matmul %195, %183, %cst_68 {dimension_numbers = #tpu.dot_dimension_numbers<[1], [0], [0], [1], [0, 0, 1, 1], [], []>} : vector<8x8xf32>, vector<8x8xf32>, vector<8x8xf32> -> vector<8x8xf32>
    %c216 = arith.constant 216 : index
    %c0_69 = arith.constant 0 : index
    %197 = vector.load %arg3[%c216, %c0_69] : memref<1392x128xf32, #tpu.memory_space<vmem>>, vector<8x32xf32>
    %cst_70 = arith.constant dense<0.000000e+00> : vector<8x32xf32>
    %198 = tpu.matmul %196, %197, %cst_70 {dimension_numbers = #tpu.dot_dimension_numbers<[1], [0], [0], [1], [0, 0, 1, 1], [], []>} : vector<8x8xf32>, vector<8x32xf32>, vector<8x32xf32> -> vector<8x32xf32>
    %199 = arith.addf %180, %198 : vector<8x32xf32>
    %200 = vector.extract_strided_slice %139 {offsets = [0, 24], sizes = [8, 8], strides = [1, 1]} : vector<8x32xf32> to vector<8x8xf32>
    %201 = vector.extract_strided_slice %142 {offsets = [0, 24], sizes = [8, 8], strides = [1, 1]} : vector<8x32xf32> to vector<8x8xf32>
    %202 = vector.extract_strided_slice %143 {offsets = [0, 24], sizes = [8, 8], strides = [1, 1]} : vector<8x32xf32> to vector<8x8xf32>
    %cst_71 = arith.constant dense<0.000000e+00> : vector<8x8xf32>
    %203 = tpu.matmul %200, %201, %cst_71 {dimension_numbers = #tpu.dot_dimension_numbers<[1], [1], [0], [0], [0, 0, 1, 0], [], []>} : vector<8x8xf32>, vector<8x8xf32>, vector<8x8xf32> -> vector<8x8xf32>
    %204 = arith.addf %203, %3 : vector<8x8xf32>
    %cst_72 = arith.constant dense<0xFF800000> : vector<8xf32>
    %205 = vector.multi_reduction <maximumf>, %204, %cst_72 [1] : vector<8x8xf32> to vector<8xf32>
    %206 = vector.shape_cast %205 : vector<8xf32> to vector<8x1xf32>
    %207 = vector.broadcast %206 : vector<8x1xf32> to vector<8x8xf32>
    %208 = arith.subf %204, %207 : vector<8x8xf32>
    %209 = math.exp %208 : vector<8x8xf32>
    %cst_73 = arith.constant dense<0.000000e+00> : vector<8xf32>
    %210 = vector.multi_reduction <add>, %209, %cst_73 [1] : vector<8x8xf32> to vector<8xf32>
    %211 = vector.shape_cast %210 : vector<8xf32> to vector<8x1xf32>
    %212 = tpu.reciprocal %211 {approx = true} : vector<8x1xf32> -> vector<8x1xf32>
    %213 = vector.broadcast %212 : vector<8x1xf32> to vector<8x8xf32>
    %214 = arith.mulf %209, %213 : vector<8x8xf32>
    %cst_74 = arith.constant dense<0.000000e+00> : vector<8x8xf32>
    %215 = tpu.matmul %214, %202, %cst_74 {dimension_numbers = #tpu.dot_dimension_numbers<[1], [0], [0], [1], [0, 0, 1, 1], [], []>} : vector<8x8xf32>, vector<8x8xf32>, vector<8x8xf32> -> vector<8x8xf32>
    %c224 = arith.constant 224 : index
    %c0_75 = arith.constant 0 : index
    %216 = vector.load %arg3[%c224, %c0_75] : memref<1392x128xf32, #tpu.memory_space<vmem>>, vector<8x32xf32>
    %cst_76 = arith.constant dense<0.000000e+00> : vector<8x32xf32>
    %217 = tpu.matmul %215, %216, %cst_76 {dimension_numbers = #tpu.dot_dimension_numbers<[1], [0], [0], [1], [0, 0, 1, 1], [], []>} : vector<8x8xf32>, vector<8x32xf32>, vector<8x32xf32> -> vector<8x32xf32>
    %218 = arith.addf %199, %217 : vector<8x32xf32>
    %219 = arith.addf %115, %218 : vector<8x32xf32>
    %c232 = arith.constant 232 : index
    %c0_77 = arith.constant 0 : index
    %220 = vector.load %arg3[%c232, %c0_77] : memref<1392x128xf32, #tpu.memory_space<vmem>>, vector<1x32xf32>
    %c233 = arith.constant 233 : index
    %c0_78 = arith.constant 0 : index
    %221 = vector.load %arg3[%c233, %c0_78] : memref<1392x128xf32, #tpu.memory_space<vmem>>, vector<1x32xf32>
    %cst_79 = arith.constant dense<0.000000e+00> : vector<8xf32>
    %222 = vector.multi_reduction <add>, %219, %cst_79 [1] : vector<8x32xf32> to vector<8xf32>
    %223 = vector.shape_cast %222 : vector<8xf32> to vector<8x1xf32>
    %cst_80 = arith.constant 3.200000e+01 : f32
    %224 = vector.broadcast %cst_80 : f32 to vector<8x1xf32>
    %225 = arith.divf %223, %224 : vector<8x1xf32>
    %226 = vector.broadcast %225 : vector<8x1xf32> to vector<8x32xf32>
    %227 = arith.subf %219, %226 : vector<8x32xf32>
    %228 = arith.mulf %227, %227 : vector<8x32xf32>
    %cst_81 = arith.constant dense<0.000000e+00> : vector<8xf32>
    %229 = vector.multi_reduction <add>, %228, %cst_81 [1] : vector<8x32xf32> to vector<8xf32>
    %230 = vector.shape_cast %229 : vector<8xf32> to vector<8x1xf32>
    %cst_82 = arith.constant 3.100000e+01 : f32
    %231 = vector.broadcast %cst_82 : f32 to vector<8x1xf32>
    %232 = arith.divf %230, %231 : vector<8x1xf32>
    %233 = vector.broadcast %220 : vector<1x32xf32> to vector<8x32xf32>
    %234 = arith.mulf %233, %227 : vector<8x32xf32>
    %235 = math.sqrt %232 : vector<8x1xf32>
    %cst_83 = arith.constant 9.99999997E-7 : f32
    %236 = vector.broadcast %cst_83 : f32 to vector<8x1xf32>
    %237 = arith.addf %235, %236 : vector<8x1xf32>
    %238 = vector.broadcast %237 : vector<8x1xf32> to vector<8x32xf32>
    %239 = arith.divf %234, %238 : vector<8x32xf32>
    %240 = vector.broadcast %221 : vector<1x32xf32> to vector<8x32xf32>
    %241 = arith.addf %239, %240 : vector<8x32xf32>
    %c240 = arith.constant 240 : index
    %c0_84 = arith.constant 0 : index
    %242 = vector.load %arg3[%c240, %c0_84] : memref<1392x128xf32, #tpu.memory_space<vmem>>, vector<32x128xf32>
    %cst_85 = arith.constant dense<0.000000e+00> : vector<8x128xf32>
    %243 = tpu.matmul %241, %242, %cst_85 {dimension_numbers = #tpu.dot_dimension_numbers<[1], [0], [0], [1], [0, 0, 1, 1], [], []>} : vector<8x32xf32>, vector<32x128xf32>, vector<8x128xf32> -> vector<8x128xf32>
    %c272 = arith.constant 272 : index
    %c0_86 = arith.constant 0 : index
    %244 = vector.load %arg3[%c272, %c0_86] : memref<1392x128xf32, #tpu.memory_space<vmem>>, vector<1x128xf32>
    %245 = vector.broadcast %244 : vector<1x128xf32> to vector<8x128xf32>
    %246 = arith.addf %243, %245 : vector<8x128xf32>
    %cst_87 = arith.constant 0.000000e+00 : f32
    %247 = vector.broadcast %cst_87 : f32 to vector<8x128xf32>
    %248 = arith.maximumf %246, %247 : vector<8x128xf32>
    %c280 = arith.constant 280 : index
    %c0_88 = arith.constant 0 : index
    %249 = vector.load %arg3[%c280, %c0_88] : memref<1392x128xf32, #tpu.memory_space<vmem>>, vector<128x128xf32>
    %cst_89 = arith.constant dense<0.000000e+00> : vector<8x128xf32>
    %250 = tpu.matmul %248, %249, %cst_89 {dimension_numbers = #tpu.dot_dimension_numbers<[1], [0], [0], [1], [0, 0, 1, 1], [], []>} : vector<8x128xf32>, vector<128x128xf32>, vector<8x128xf32> -> vector<8x128xf32>
    %c408 = arith.constant 408 : index
    %c0_90 = arith.constant 0 : index
    %251 = vector.load %arg3[%c408, %c0_90] : memref<1392x128xf32, #tpu.memory_space<vmem>>, vector<1x128xf32>
    %252 = vector.broadcast %251 : vector<1x128xf32> to vector<8x128xf32>
    %253 = arith.addf %250, %252 : vector<8x128xf32>
    %cst_91 = arith.constant 0.000000e+00 : f32
    %254 = vector.broadcast %cst_91 : f32 to vector<8x128xf32>
    %255 = arith.maximumf %253, %254 : vector<8x128xf32>
    %c416 = arith.constant 416 : index
    %c0_92 = arith.constant 0 : index
    %256 = vector.load %arg3[%c416, %c0_92] : memref<1392x128xf32, #tpu.memory_space<vmem>>, vector<128x64xf32>
    %cst_93 = arith.constant dense<0.000000e+00> : vector<8x64xf32>
    %257 = tpu.matmul %255, %256, %cst_93 {dimension_numbers = #tpu.dot_dimension_numbers<[1], [0], [0], [1], [0, 0, 1, 1], [], []>} : vector<8x128xf32>, vector<128x64xf32>, vector<8x64xf32> -> vector<8x64xf32>
    %c544 = arith.constant 544 : index
    %c0_94 = arith.constant 0 : index
    %258 = vector.load %arg3[%c544, %c0_94] : memref<1392x128xf32, #tpu.memory_space<vmem>>, vector<1x64xf32>
    %259 = vector.broadcast %258 : vector<1x64xf32> to vector<8x64xf32>
    %260 = arith.addf %257, %259 : vector<8x64xf32>
    %261 = vector.extract_strided_slice %260 {offsets = [0, 0], sizes = [8, 32], strides = [1, 1]} : vector<8x64xf32> to vector<8x32xf32>
    %262 = vector.extract_strided_slice %260 {offsets = [0, 32], sizes = [8, 32], strides = [1, 1]} : vector<8x64xf32> to vector<8x32xf32>
    %263 = vector.extract_strided_slice %0 {offsets = [0, 32], sizes = [8, 32], strides = [1, 1]} : vector<8x128xf32> to vector<8x32xf32>
    %cst_95 = arith.constant 5.000000e-01 : f32
    %264 = vector.broadcast %cst_95 : f32 to vector<8x32xf32>
    %265 = arith.mulf %264, %262 : vector<8x32xf32>
    %266 = math.exp %265 : vector<8x32xf32>
    %267 = arith.mulf %266, %263 : vector<8x32xf32>
    %268 = arith.addf %261, %267 : vector<8x32xf32>
    %c0_96 = arith.constant 0 : index
    %c40 = arith.constant 40 : index
    %269 = vector.load %arg4[%c0_96, %c40] : memref<8x256xf32, #tpu.memory_space<vmem>>, vector<8x32xf32>
    tpu.vector_store %arg4[%c0_96, %c40], %261 {strides = array<i32>} : memref<8x256xf32, #tpu.memory_space<vmem>>, vector<8x32xf32>,
    %c0_97 = arith.constant 0 : index
    %c72 = arith.constant 72 : index
    %270 = vector.load %arg4[%c0_97, %c72] : memref<8x256xf32, #tpu.memory_space<vmem>>, vector<8x32xf32>
    tpu.vector_store %arg4[%c0_97, %c72], %262 {strides = array<i32>} : memref<8x256xf32, #tpu.memory_space<vmem>>, vector<8x32xf32>,
    %c552 = arith.constant 552 : index
    %c0_98 = arith.constant 0 : index
    %271 = vector.load %arg3[%c552, %c0_98] : memref<1392x128xf32, #tpu.memory_space<vmem>>, vector<32x50xf32>
    %cst_99 = arith.constant dense<0.000000e+00> : vector<8x50xf32>
    %272 = tpu.matmul %268, %271, %cst_99 {dimension_numbers = #tpu.dot_dimension_numbers<[1], [0], [0], [1], [0, 0, 1, 1], [], []>} : vector<8x32xf32>, vector<32x50xf32>, vector<8x50xf32> -> vector<8x50xf32>
    %c584 = arith.constant 584 : index
    %c0_100 = arith.constant 0 : index
    %273 = vector.load %arg3[%c584, %c0_100] : memref<1392x128xf32, #tpu.memory_space<vmem>>, vector<1x50xf32>
    %274 = vector.broadcast %273 : vector<1x50xf32> to vector<8x50xf32>
    %275 = arith.addf %272, %274 : vector<8x50xf32>
    %cst_101 = arith.constant dense<0xFF800000> : vector<8xf32>
    %276 = vector.multi_reduction <maximumf>, %275, %cst_101 [1] : vector<8x50xf32> to vector<8xf32>
    %277 = vector.shape_cast %276 : vector<8xf32> to vector<8x1xf32>
    %278 = vector.broadcast %277 : vector<8x1xf32> to vector<8x50xf32>
    %279 = arith.subf %275, %278 : vector<8x50xf32>
    %280 = math.exp %279 : vector<8x50xf32>
    %cst_102 = arith.constant dense<0.000000e+00> : vector<8xf32>
    %281 = vector.multi_reduction <add>, %280, %cst_102 [1] : vector<8x50xf32> to vector<8xf32>
    %282 = vector.shape_cast %281 : vector<8xf32> to vector<8x1xf32>
    %283 = vector.broadcast %282 : vector<8x1xf32> to vector<8x50xf32>
    %284 = arith.divf %280, %283 : vector<8x50xf32>
    %c0_103 = arith.constant 0 : index
    %c104_104 = arith.constant 104 : index
    %285 = vector.load %arg4[%c0_103, %c104_104] : memref<8x256xf32, #tpu.memory_space<vmem>>, vector<8x50xf32>
    tpu.vector_store %arg4[%c0_103, %c104_104], %284 {strides = array<i32>} : memref<8x256xf32, #tpu.memory_space<vmem>>, vector<8x50xf32>,
    %286 = arith.addf %219, %268 : vector<8x32xf32>
    %c592 = arith.constant 592 : index
    %c0_105 = arith.constant 0 : index
    %287 = vector.load %arg3[%c592, %c0_105] : memref<1392x128xf32, #tpu.memory_space<vmem>>, vector<1x32xf32>
    %c593 = arith.constant 593 : index
    %c0_106 = arith.constant 0 : index
    %288 = vector.load %arg3[%c593, %c0_106] : memref<1392x128xf32, #tpu.memory_space<vmem>>, vector<1x32xf32>
    %cst_107 = arith.constant dense<0.000000e+00> : vector<8xf32>
    %289 = vector.multi_reduction <add>, %286, %cst_107 [1] : vector<8x32xf32> to vector<8xf32>
    %290 = vector.shape_cast %289 : vector<8xf32> to vector<8x1xf32>
    %cst_108 = arith.constant 3.200000e+01 : f32
    %291 = vector.broadcast %cst_108 : f32 to vector<8x1xf32>
    %292 = arith.divf %290, %291 : vector<8x1xf32>
    %293 = vector.broadcast %292 : vector<8x1xf32> to vector<8x32xf32>
    %294 = arith.subf %286, %293 : vector<8x32xf32>
    %295 = arith.mulf %294, %294 : vector<8x32xf32>
    %cst_109 = arith.constant dense<0.000000e+00> : vector<8xf32>
    %296 = vector.multi_reduction <add>, %295, %cst_109 [1] : vector<8x32xf32> to vector<8xf32>
    %297 = vector.shape_cast %296 : vector<8xf32> to vector<8x1xf32>
    %cst_110 = arith.constant 3.100000e+01 : f32
    %298 = vector.broadcast %cst_110 : f32 to vector<8x1xf32>
    %299 = arith.divf %297, %298 : vector<8x1xf32>
    %300 = vector.broadcast %287 : vector<1x32xf32> to vector<8x32xf32>
    %301 = arith.mulf %300, %294 : vector<8x32xf32>
    %302 = math.sqrt %299 : vector<8x1xf32>
    %cst_111 = arith.constant 9.99999997E-7 : f32
    %303 = vector.broadcast %cst_111 : f32 to vector<8x1xf32>
    %304 = arith.addf %302, %303 : vector<8x1xf32>
    %305 = vector.broadcast %304 : vector<8x1xf32> to vector<8x32xf32>
    %306 = arith.divf %301, %305 : vector<8x32xf32>
    %307 = vector.broadcast %288 : vector<1x32xf32> to vector<8x32xf32>
    %308 = arith.addf %306, %307 : vector<8x32xf32>
    %c1_i32 = arith.constant 1 : i32
    %309 = tpu.dynamic_rotate %308 by %c1_i32 dim 0 : vector<8x32xf32>, i32 -> vector<8x32xf32>
    %310 = vector.broadcast %4 : vector<8x1xf32> to vector<8x32xf32>
    %311 = arith.mulf %309, %310 : vector<8x32xf32>
    %c2_i32 = arith.constant 2 : i32
    %312 = tpu.dynamic_rotate %308 by %c2_i32 dim 0 : vector<8x32xf32>, i32 -> vector<8x32xf32>
    %313 = vector.broadcast %5 : vector<8x1xf32> to vector<8x32xf32>
    %314 = arith.mulf %312, %313 : vector<8x32xf32>
    %c600 = arith.constant 600 : index
    %c0_112 = arith.constant 0 : index
    %315 = vector.load %arg3[%c600, %c0_112] : memref<1392x128xf32, #tpu.memory_space<vmem>>, vector<32x64xf32>
    %cst_113 = arith.constant dense<0.000000e+00> : vector<8x64xf32>
    %316 = tpu.matmul %314, %315, %cst_113 {dimension_numbers = #tpu.dot_dimension_numbers<[1], [0], [0], [1], [0, 0, 1, 1], [], []>} : vector<8x32xf32>, vector<32x64xf32>, vector<8x64xf32> -> vector<8x64xf32>
    %c632 = arith.constant 632 : index
    %c0_114 = arith.constant 0 : index
    %317 = vector.load %arg3[%c632, %c0_114] : memref<1392x128xf32, #tpu.memory_space<vmem>>, vector<32x64xf32>
    %cst_115 = arith.constant dense<0.000000e+00> : vector<8x64xf32>
    %318 = tpu.matmul %311, %317, %cst_115 {dimension_numbers = #tpu.dot_dimension_numbers<[1], [0], [0], [1], [0, 0, 1, 1], [], []>} : vector<8x32xf32>, vector<32x64xf32>, vector<8x64xf32> -> vector<8x64xf32>
    %319 = arith.addf %316, %318 : vector<8x64xf32>
    %c664 = arith.constant 664 : index
    %c0_116 = arith.constant 0 : index
    %320 = vector.load %arg3[%c664, %c0_116] : memref<1392x128xf32, #tpu.memory_space<vmem>>, vector<32x64xf32>
    %cst_117 = arith.constant dense<0.000000e+00> : vector<8x64xf32>
    %321 = tpu.matmul %308, %320, %cst_117 {dimension_numbers = #tpu.dot_dimension_numbers<[1], [0], [0], [1], [0, 0, 1, 1], [], []>} : vector<8x32xf32>, vector<32x64xf32>, vector<8x64xf32> -> vector<8x64xf32>
    %322 = arith.addf %319, %321 : vector<8x64xf32>
    %c696 = arith.constant 696 : index
    %c0_118 = arith.constant 0 : index
    %323 = vector.load %arg3[%c696, %c0_118] : memref<1392x128xf32, #tpu.memory_space<vmem>>, vector<1x64xf32>
    %324 = vector.broadcast %323 : vector<1x64xf32> to vector<8x64xf32>
    %325 = arith.addf %322, %324 : vector<8x64xf32>
    %cst_119 = arith.constant 0.000000e+00 : f32
    %326 = vector.broadcast %cst_119 : f32 to vector<8x64xf32>
    %327 = arith.maximumf %325, %326 : vector<8x64xf32>
    %c1_i32_120 = arith.constant 1 : i32
    %328 = tpu.dynamic_rotate %327 by %c1_i32_120 dim 0 : vector<8x64xf32>, i32 -> vector<8x64xf32>
    %329 = vector.broadcast %4 : vector<8x1xf32> to vector<8x64xf32>
    %330 = arith.mulf %328, %329 : vector<8x64xf32>
    %c2_i32_121 = arith.constant 2 : i32
    %331 = tpu.dynamic_rotate %327 by %c2_i32_121 dim 0 : vector<8x64xf32>, i32 -> vector<8x64xf32>
    %332 = vector.broadcast %5 : vector<8x1xf32> to vector<8x64xf32>
    %333 = arith.mulf %331, %332 : vector<8x64xf32>
    %c704 = arith.constant 704 : index
    %c0_122 = arith.constant 0 : index
    %334 = vector.load %arg3[%c704, %c0_122] : memref<1392x128xf32, #tpu.memory_space<vmem>>, vector<64x32xf32>
    %cst_123 = arith.constant dense<0.000000e+00> : vector<8x32xf32>
    %335 = tpu.matmul %333, %334, %cst_123 {dimension_numbers = #tpu.dot_dimension_numbers<[1], [0], [0], [1], [0, 0, 1, 1], [], []>} : vector<8x64xf32>, vector<64x32xf32>, vector<8x32xf32> -> vector<8x32xf32>
    %c768 = arith.constant 768 : index
    %c0_124 = arith.constant 0 : index
    %336 = vector.load %arg3[%c768, %c0_124] : memref<1392x128xf32, #tpu.memory_space<vmem>>, vector<64x32xf32>
    %cst_125 = arith.constant dense<0.000000e+00> : vector<8x32xf32>
    %337 = tpu.matmul %330, %336, %cst_125 {dimension_numbers = #tpu.dot_dimension_numbers<[1], [0], [0], [1], [0, 0, 1, 1], [], []>} : vector<8x64xf32>, vector<64x32xf32>, vector<8x32xf32> -> vector<8x32xf32>
    %338 = arith.addf %335, %337 : vector<8x32xf32>
    %c832 = arith.constant 832 : index
    %c0_126 = arith.constant 0 : index
    %339 = vector.load %arg3[%c832, %c0_126] : memref<1392x128xf32, #tpu.memory_space<vmem>>, vector<64x32xf32>
    %cst_127 = arith.constant dense<0.000000e+00> : vector<8x32xf32>
    %340 = tpu.matmul %327, %339, %cst_127 {dimension_numbers = #tpu.dot_dimension_numbers<[1], [0], [0], [1], [0, 0, 1, 1], [], []>} : vector<8x64xf32>, vector<64x32xf32>, vector<8x32xf32> -> vector<8x32xf32>
    %341 = arith.addf %338, %340 : vector<8x32xf32>
    %c896 = arith.constant 896 : index
    %c0_128 = arith.constant 0 : index
    %342 = vector.load %arg3[%c896, %c0_128] : memref<1392x128xf32, #tpu.memory_space<vmem>>, vector<1x32xf32>
    %343 = vector.broadcast %342 : vector<1x32xf32> to vector<8x32xf32>
    %344 = arith.addf %341, %343 : vector<8x32xf32>
    %345 = arith.addf %286, %344 : vector<8x32xf32>
    %c40_129 = arith.constant 40 : index
    %c0_130 = arith.constant 0 : index
    %346 = vector.load %arg3[%c40_129, %c0_130] : memref<1392x128xf32, #tpu.memory_space<vmem>>, vector<1x32xf32>
    %c41 = arith.constant 41 : index
    %c0_131 = arith.constant 0 : index
    %347 = vector.load %arg3[%c41, %c0_131] : memref<1392x128xf32, #tpu.memory_space<vmem>>, vector<1x32xf32>
    %cst_132 = arith.constant dense<0.000000e+00> : vector<8xf32>
    %348 = vector.multi_reduction <add>, %345, %cst_132 [1] : vector<8x32xf32> to vector<8xf32>
    %349 = vector.shape_cast %348 : vector<8xf32> to vector<8x1xf32>
    %cst_133 = arith.constant 3.200000e+01 : f32
    %350 = vector.broadcast %cst_133 : f32 to vector<8x1xf32>
    %351 = arith.divf %349, %350 : vector<8x1xf32>
    %352 = vector.broadcast %351 : vector<8x1xf32> to vector<8x32xf32>
    %353 = arith.subf %345, %352 : vector<8x32xf32>
    %354 = arith.mulf %353, %353 : vector<8x32xf32>
    %cst_134 = arith.constant dense<0.000000e+00> : vector<8xf32>
    %355 = vector.multi_reduction <add>, %354, %cst_134 [1] : vector<8x32xf32> to vector<8xf32>
    %356 = vector.shape_cast %355 : vector<8xf32> to vector<8x1xf32>
    %cst_135 = arith.constant 3.100000e+01 : f32
    %357 = vector.broadcast %cst_135 : f32 to vector<8x1xf32>
    %358 = arith.divf %356, %357 : vector<8x1xf32>
    %359 = vector.broadcast %346 : vector<1x32xf32> to vector<8x32xf32>
    %360 = arith.mulf %359, %353 : vector<8x32xf32>
    %361 = math.sqrt %358 : vector<8x1xf32>
    %cst_136 = arith.constant 9.99999997E-7 : f32
    %362 = vector.broadcast %cst_136 : f32 to vector<8x1xf32>
    %363 = arith.addf %361, %362 : vector<8x1xf32>
    %364 = vector.broadcast %363 : vector<8x1xf32> to vector<8x32xf32>
    %365 = arith.divf %360, %364 : vector<8x32xf32>
    %366 = vector.broadcast %347 : vector<1x32xf32> to vector<8x32xf32>
    %367 = arith.addf %365, %366 : vector<8x32xf32>
    %c904 = arith.constant 904 : index
    %c0_137 = arith.constant 0 : index
    %368 = vector.load %arg3[%c904, %c0_137] : memref<1392x128xf32, #tpu.memory_space<vmem>>, vector<1x32xf32>
    %c905 = arith.constant 905 : index
    %c0_138 = arith.constant 0 : index
    %369 = vector.load %arg3[%c905, %c0_138] : memref<1392x128xf32, #tpu.memory_space<vmem>>, vector<1x32xf32>
    %cst_139 = arith.constant dense<0.000000e+00> : vector<8xf32>
    %370 = vector.multi_reduction <add>, %367, %cst_139 [1] : vector<8x32xf32> to vector<8xf32>
    %371 = vector.shape_cast %370 : vector<8xf32> to vector<8x1xf32>
    %cst_140 = arith.constant 3.200000e+01 : f32
    %372 = vector.broadcast %cst_140 : f32 to vector<8x1xf32>
    %373 = arith.divf %371, %372 : vector<8x1xf32>
    %374 = vector.broadcast %373 : vector<8x1xf32> to vector<8x32xf32>
    %375 = arith.subf %367, %374 : vector<8x32xf32>
    %376 = arith.mulf %375, %375 : vector<8x32xf32>
    %cst_141 = arith.constant dense<0.000000e+00> : vector<8xf32>
    %377 = vector.multi_reduction <add>, %376, %cst_141 [1] : vector<8x32xf32> to vector<8xf32>
    %378 = vector.shape_cast %377 : vector<8xf32> to vector<8x1xf32>
    %cst_142 = arith.constant 3.100000e+01 : f32
    %379 = vector.broadcast %cst_142 : f32 to vector<8x1xf32>
    %380 = arith.divf %378, %379 : vector<8x1xf32>
    %381 = vector.broadcast %368 : vector<1x32xf32> to vector<8x32xf32>
    %382 = arith.mulf %381, %375 : vector<8x32xf32>
    %383 = math.sqrt %380 : vector<8x1xf32>
    %cst_143 = arith.constant 9.99999997E-7 : f32
    %384 = vector.broadcast %cst_143 : f32 to vector<8x1xf32>
    %385 = arith.addf %383, %384 : vector<8x1xf32>
    %386 = vector.broadcast %385 : vector<8x1xf32> to vector<8x32xf32>
    %387 = arith.divf %382, %386 : vector<8x32xf32>
    %388 = vector.broadcast %369 : vector<1x32xf32> to vector<8x32xf32>
    %389 = arith.addf %387, %388 : vector<8x32xf32>
    %c912 = arith.constant 912 : index
    %c0_144 = arith.constant 0 : index
    %390 = vector.load %arg3[%c912, %c0_144] : memref<1392x128xf32, #tpu.memory_space<vmem>>, vector<32x96xf32>
    %cst_145 = arith.constant dense<0.000000e+00> : vector<8x96xf32>
    %391 = tpu.matmul %389, %390, %cst_145 {dimension_numbers = #tpu.dot_dimension_numbers<[1], [0], [0], [1], [0, 0, 1, 1], [], []>} : vector<8x32xf32>, vector<32x96xf32>, vector<8x96xf32> -> vector<8x96xf32>
    %392 = vector.extract_strided_slice %391 {offsets = [0, 0], sizes = [8, 32], strides = [1, 1]} : vector<8x96xf32> to vector<8x32xf32>
    %393 = vector.extract_strided_slice %391 {offsets = [0, 32], sizes = [8, 32], strides = [1, 1]} : vector<8x96xf32> to vector<8x32xf32>
    %394 = vector.extract_strided_slice %391 {offsets = [0, 64], sizes = [8, 32], strides = [1, 1]} : vector<8x96xf32> to vector<8x32xf32>
    %395 = vector.extract_strided_slice %392 {offsets = [0, 0], sizes = [8, 8], strides = [1, 1]} : vector<8x32xf32> to vector<8x8xf32>
    %396 = vector.extract_strided_slice %393 {offsets = [0, 0], sizes = [8, 8], strides = [1, 1]} : vector<8x32xf32> to vector<8x8xf32>
    %397 = vector.extract_strided_slice %394 {offsets = [0, 0], sizes = [8, 8], strides = [1, 1]} : vector<8x32xf32> to vector<8x8xf32>
    %cst_146 = arith.constant dense<0.000000e+00> : vector<8x8xf32>
    %398 = tpu.matmul %395, %396, %cst_146 {dimension_numbers = #tpu.dot_dimension_numbers<[1], [1], [0], [0], [0, 0, 1, 0], [], []>} : vector<8x8xf32>, vector<8x8xf32>, vector<8x8xf32> -> vector<8x8xf32>
    %399 = arith.addf %398, %2 : vector<8x8xf32>
    %cst_147 = arith.constant dense<0xFF800000> : vector<8xf32>
    %400 = vector.multi_reduction <maximumf>, %399, %cst_147 [1] : vector<8x8xf32> to vector<8xf32>
    %401 = vector.shape_cast %400 : vector<8xf32> to vector<8x1xf32>
    %402 = vector.broadcast %401 : vector<8x1xf32> to vector<8x8xf32>
    %403 = arith.subf %399, %402 : vector<8x8xf32>
    %404 = math.exp %403 : vector<8x8xf32>
    %cst_148 = arith.constant dense<0.000000e+00> : vector<8xf32>
    %405 = vector.multi_reduction <add>, %404, %cst_148 [1] : vector<8x8xf32> to vector<8xf32>
    %406 = vector.shape_cast %405 : vector<8xf32> to vector<8x1xf32>
    %407 = tpu.reciprocal %406 {approx = true} : vector<8x1xf32> -> vector<8x1xf32>
    %408 = vector.broadcast %407 : vector<8x1xf32> to vector<8x8xf32>
    %409 = arith.mulf %404, %408 : vector<8x8xf32>
    %cst_149 = arith.constant dense<0.000000e+00> : vector<8x8xf32>
    %410 = tpu.matmul %409, %397, %cst_149 {dimension_numbers = #tpu.dot_dimension_numbers<[1], [0], [0], [1], [0, 0, 1, 1], [], []>} : vector<8x8xf32>, vector<8x8xf32>, vector<8x8xf32> -> vector<8x8xf32>
    %c944 = arith.constant 944 : index
    %c0_150 = arith.constant 0 : index
    %411 = vector.load %arg3[%c944, %c0_150] : memref<1392x128xf32, #tpu.memory_space<vmem>>, vector<8x32xf32>
    %cst_151 = arith.constant dense<0.000000e+00> : vector<8x32xf32>
    %412 = tpu.matmul %410, %411, %cst_151 {dimension_numbers = #tpu.dot_dimension_numbers<[1], [0], [0], [1], [0, 0, 1, 1], [], []>} : vector<8x8xf32>, vector<8x32xf32>, vector<8x32xf32> -> vector<8x32xf32>
    %413 = vector.extract_strided_slice %392 {offsets = [0, 8], sizes = [8, 8], strides = [1, 1]} : vector<8x32xf32> to vector<8x8xf32>
    %414 = vector.extract_strided_slice %393 {offsets = [0, 8], sizes = [8, 8], strides = [1, 1]} : vector<8x32xf32> to vector<8x8xf32>
    %415 = vector.extract_strided_slice %394 {offsets = [0, 8], sizes = [8, 8], strides = [1, 1]} : vector<8x32xf32> to vector<8x8xf32>
    %cst_152 = arith.constant dense<0.000000e+00> : vector<8x8xf32>
    %416 = tpu.matmul %413, %414, %cst_152 {dimension_numbers = #tpu.dot_dimension_numbers<[1], [1], [0], [0], [0, 0, 1, 0], [], []>} : vector<8x8xf32>, vector<8x8xf32>, vector<8x8xf32> -> vector<8x8xf32>
    %417 = arith.addf %416, %2 : vector<8x8xf32>
    %cst_153 = arith.constant dense<0xFF800000> : vector<8xf32>
    %418 = vector.multi_reduction <maximumf>, %417, %cst_153 [1] : vector<8x8xf32> to vector<8xf32>
    %419 = vector.shape_cast %418 : vector<8xf32> to vector<8x1xf32>
    %420 = vector.broadcast %419 : vector<8x1xf32> to vector<8x8xf32>
    %421 = arith.subf %417, %420 : vector<8x8xf32>
    %422 = math.exp %421 : vector<8x8xf32>
    %cst_154 = arith.constant dense<0.000000e+00> : vector<8xf32>
    %423 = vector.multi_reduction <add>, %422, %cst_154 [1] : vector<8x8xf32> to vector<8xf32>
    %424 = vector.shape_cast %423 : vector<8xf32> to vector<8x1xf32>
    %425 = tpu.reciprocal %424 {approx = true} : vector<8x1xf32> -> vector<8x1xf32>
    %426 = vector.broadcast %425 : vector<8x1xf32> to vector<8x8xf32>
    %427 = arith.mulf %422, %426 : vector<8x8xf32>
    %cst_155 = arith.constant dense<0.000000e+00> : vector<8x8xf32>
    %428 = tpu.matmul %427, %415, %cst_155 {dimension_numbers = #tpu.dot_dimension_numbers<[1], [0], [0], [1], [0, 0, 1, 1], [], []>} : vector<8x8xf32>, vector<8x8xf32>, vector<8x8xf32> -> vector<8x8xf32>
    %c952 = arith.constant 952 : index
    %c0_156 = arith.constant 0 : index
    %429 = vector.load %arg3[%c952, %c0_156] : memref<1392x128xf32, #tpu.memory_space<vmem>>, vector<8x32xf32>
    %cst_157 = arith.constant dense<0.000000e+00> : vector<8x32xf32>
    %430 = tpu.matmul %428, %429, %cst_157 {dimension_numbers = #tpu.dot_dimension_numbers<[1], [0], [0], [1], [0, 0, 1, 1], [], []>} : vector<8x8xf32>, vector<8x32xf32>, vector<8x32xf32> -> vector<8x32xf32>
    %431 = arith.addf %412, %430 : vector<8x32xf32>
    %432 = vector.extract_strided_slice %392 {offsets = [0, 16], sizes = [8, 8], strides = [1, 1]} : vector<8x32xf32> to vector<8x8xf32>
    %433 = vector.extract_strided_slice %393 {offsets = [0, 16], sizes = [8, 8], strides = [1, 1]} : vector<8x32xf32> to vector<8x8xf32>
    %434 = vector.extract_strided_slice %394 {offsets = [0, 16], sizes = [8, 8], strides = [1, 1]} : vector<8x32xf32> to vector<8x8xf32>
    %cst_158 = arith.constant dense<0.000000e+00> : vector<8x8xf32>
    %435 = tpu.matmul %432, %433, %cst_158 {dimension_numbers = #tpu.dot_dimension_numbers<[1], [1], [0], [0], [0, 0, 1, 0], [], []>} : vector<8x8xf32>, vector<8x8xf32>, vector<8x8xf32> -> vector<8x8xf32>
    %436 = arith.addf %435, %2 : vector<8x8xf32>
    %cst_159 = arith.constant dense<0xFF800000> : vector<8xf32>
    %437 = vector.multi_reduction <maximumf>, %436, %cst_159 [1] : vector<8x8xf32> to vector<8xf32>
    %438 = vector.shape_cast %437 : vector<8xf32> to vector<8x1xf32>
    %439 = vector.broadcast %438 : vector<8x1xf32> to vector<8x8xf32>
    %440 = arith.subf %436, %439 : vector<8x8xf32>
    %441 = math.exp %440 : vector<8x8xf32>
    %cst_160 = arith.constant dense<0.000000e+00> : vector<8xf32>
    %442 = vector.multi_reduction <add>, %441, %cst_160 [1] : vector<8x8xf32> to vector<8xf32>
    %443 = vector.shape_cast %442 : vector<8xf32> to vector<8x1xf32>
    %444 = tpu.reciprocal %443 {approx = true} : vector<8x1xf32> -> vector<8x1xf32>
    %445 = vector.broadcast %444 : vector<8x1xf32> to vector<8x8xf32>
    %446 = arith.mulf %441, %445 : vector<8x8xf32>
    %cst_161 = arith.constant dense<0.000000e+00> : vector<8x8xf32>
    %447 = tpu.matmul %446, %434, %cst_161 {dimension_numbers = #tpu.dot_dimension_numbers<[1], [0], [0], [1], [0, 0, 1, 1], [], []>} : vector<8x8xf32>, vector<8x8xf32>, vector<8x8xf32> -> vector<8x8xf32>
    %c960 = arith.constant 960 : index
    %c0_162 = arith.constant 0 : index
    %448 = vector.load %arg3[%c960, %c0_162] : memref<1392x128xf32, #tpu.memory_space<vmem>>, vector<8x32xf32>
    %cst_163 = arith.constant dense<0.000000e+00> : vector<8x32xf32>
    %449 = tpu.matmul %447, %448, %cst_163 {dimension_numbers = #tpu.dot_dimension_numbers<[1], [0], [0], [1], [0, 0, 1, 1], [], []>} : vector<8x8xf32>, vector<8x32xf32>, vector<8x32xf32> -> vector<8x32xf32>
    %450 = arith.addf %431, %449 : vector<8x32xf32>
    %451 = vector.extract_strided_slice %392 {offsets = [0, 24], sizes = [8, 8], strides = [1, 1]} : vector<8x32xf32> to vector<8x8xf32>
    %452 = vector.extract_strided_slice %393 {offsets = [0, 24], sizes = [8, 8], strides = [1, 1]} : vector<8x32xf32> to vector<8x8xf32>
    %453 = vector.extract_strided_slice %394 {offsets = [0, 24], sizes = [8, 8], strides = [1, 1]} : vector<8x32xf32> to vector<8x8xf32>
    %cst_164 = arith.constant dense<0.000000e+00> : vector<8x8xf32>
    %454 = tpu.matmul %451, %452, %cst_164 {dimension_numbers = #tpu.dot_dimension_numbers<[1], [1], [0], [0], [0, 0, 1, 0], [], []>} : vector<8x8xf32>, vector<8x8xf32>, vector<8x8xf32> -> vector<8x8xf32>
    %455 = arith.addf %454, %2 : vector<8x8xf32>
    %cst_165 = arith.constant dense<0xFF800000> : vector<8xf32>
    %456 = vector.multi_reduction <maximumf>, %455, %cst_165 [1] : vector<8x8xf32> to vector<8xf32>
    %457 = vector.shape_cast %456 : vector<8xf32> to vector<8x1xf32>
    %458 = vector.broadcast %457 : vector<8x1xf32> to vector<8x8xf32>
    %459 = arith.subf %455, %458 : vector<8x8xf32>
    %460 = math.exp %459 : vector<8x8xf32>
    %cst_166 = arith.constant dense<0.000000e+00> : vector<8xf32>
    %461 = vector.multi_reduction <add>, %460, %cst_166 [1] : vector<8x8xf32> to vector<8xf32>
    %462 = vector.shape_cast %461 : vector<8xf32> to vector<8x1xf32>
    %463 = tpu.reciprocal %462 {approx = true} : vector<8x1xf32> -> vector<8x1xf32>
    %464 = vector.broadcast %463 : vector<8x1xf32> to vector<8x8xf32>
    %465 = arith.mulf %460, %464 : vector<8x8xf32>
    %cst_167 = arith.constant dense<0.000000e+00> : vector<8x8xf32>
    %466 = tpu.matmul %465, %453, %cst_167 {dimension_numbers = #tpu.dot_dimension_numbers<[1], [0], [0], [1], [0, 0, 1, 1], [], []>} : vector<8x8xf32>, vector<8x8xf32>, vector<8x8xf32> -> vector<8x8xf32>
    %c968 = arith.constant 968 : index
    %c0_168 = arith.constant 0 : index
    %467 = vector.load %arg3[%c968, %c0_168] : memref<1392x128xf32, #tpu.memory_space<vmem>>, vector<8x32xf32>
    %cst_169 = arith.constant dense<0.000000e+00> : vector<8x32xf32>
    %468 = tpu.matmul %466, %467, %cst_169 {dimension_numbers = #tpu.dot_dimension_numbers<[1], [0], [0], [1], [0, 0, 1, 1], [], []>} : vector<8x8xf32>, vector<8x32xf32>, vector<8x32xf32> -> vector<8x32xf32>
    %469 = arith.addf %450, %468 : vector<8x32xf32>
    %470 = arith.addf %367, %469 : vector<8x32xf32>
    %c976 = arith.constant 976 : index
    %c0_170 = arith.constant 0 : index
    %471 = vector.load %arg3[%c976, %c0_170] : memref<1392x128xf32, #tpu.memory_space<vmem>>, vector<1x32xf32>
    %c977 = arith.constant 977 : index
    %c0_171 = arith.constant 0 : index
    %472 = vector.load %arg3[%c977, %c0_171] : memref<1392x128xf32, #tpu.memory_space<vmem>>, vector<1x32xf32>
    %cst_172 = arith.constant dense<0.000000e+00> : vector<8xf32>
    %473 = vector.multi_reduction <add>, %470, %cst_172 [1] : vector<8x32xf32> to vector<8xf32>
    %474 = vector.shape_cast %473 : vector<8xf32> to vector<8x1xf32>
    %cst_173 = arith.constant 3.200000e+01 : f32
    %475 = vector.broadcast %cst_173 : f32 to vector<8x1xf32>
    %476 = arith.divf %474, %475 : vector<8x1xf32>
    %477 = vector.broadcast %476 : vector<8x1xf32> to vector<8x32xf32>
    %478 = arith.subf %470, %477 : vector<8x32xf32>
    %479 = arith.mulf %478, %478 : vector<8x32xf32>
    %cst_174 = arith.constant dense<0.000000e+00> : vector<8xf32>
    %480 = vector.multi_reduction <add>, %479, %cst_174 [1] : vector<8x32xf32> to vector<8xf32>
    %481 = vector.shape_cast %480 : vector<8xf32> to vector<8x1xf32>
    %cst_175 = arith.constant 3.100000e+01 : f32
    %482 = vector.broadcast %cst_175 : f32 to vector<8x1xf32>
    %483 = arith.divf %481, %482 : vector<8x1xf32>
    %484 = vector.broadcast %471 : vector<1x32xf32> to vector<8x32xf32>
    %485 = arith.mulf %484, %478 : vector<8x32xf32>
    %486 = math.sqrt %483 : vector<8x1xf32>
    %cst_176 = arith.constant 9.99999997E-7 : f32
    %487 = vector.broadcast %cst_176 : f32 to vector<8x1xf32>
    %488 = arith.addf %486, %487 : vector<8x1xf32>
    %489 = vector.broadcast %488 : vector<8x1xf32> to vector<8x32xf32>
    %490 = arith.divf %485, %489 : vector<8x32xf32>
    %491 = vector.broadcast %472 : vector<1x32xf32> to vector<8x32xf32>
    %492 = arith.addf %490, %491 : vector<8x32xf32>
    %c984 = arith.constant 984 : index
    %c0_177 = arith.constant 0 : index
    %493 = vector.load %arg3[%c984, %c0_177] : memref<1392x128xf32, #tpu.memory_space<vmem>>, vector<32x32xf32>
    %cst_178 = arith.constant dense<0.000000e+00> : vector<8x32xf32>
    %494 = tpu.matmul %492, %493, %cst_178 {dimension_numbers = #tpu.dot_dimension_numbers<[1], [0], [0], [1], [0, 0, 1, 1], [], []>} : vector<8x32xf32>, vector<32x32xf32>, vector<8x32xf32> -> vector<8x32xf32>
    %c1016 = arith.constant 1016 : index
    %c0_179 = arith.constant 0 : index
    %495 = vector.load %arg3[%c1016, %c0_179] : memref<1392x128xf32, #tpu.memory_space<vmem>>, vector<32x64xf32>
    %cst_180 = arith.constant dense<0.000000e+00> : vector<8x64xf32>
    %496 = tpu.matmul %6, %495, %cst_180 {dimension_numbers = #tpu.dot_dimension_numbers<[1], [0], [0], [1], [0, 0, 1, 1], [], []>} : vector<8x32xf32>, vector<32x64xf32>, vector<8x64xf32> -> vector<8x64xf32>
    %497 = vector.extract_strided_slice %496 {offsets = [0, 0], sizes = [8, 32], strides = [1, 1]} : vector<8x64xf32> to vector<8x32xf32>
    %498 = vector.extract_strided_slice %496 {offsets = [0, 32], sizes = [8, 32], strides = [1, 1]} : vector<8x64xf32> to vector<8x32xf32>
    %499 = vector.extract_strided_slice %494 {offsets = [0, 0], sizes = [8, 8], strides = [1, 1]} : vector<8x32xf32> to vector<8x8xf32>
    %500 = vector.extract_strided_slice %497 {offsets = [0, 0], sizes = [8, 8], strides = [1, 1]} : vector<8x32xf32> to vector<8x8xf32>
    %501 = vector.extract_strided_slice %498 {offsets = [0, 0], sizes = [8, 8], strides = [1, 1]} : vector<8x32xf32> to vector<8x8xf32>
    %cst_181 = arith.constant dense<0.000000e+00> : vector<8x8xf32>
    %502 = tpu.matmul %499, %500, %cst_181 {dimension_numbers = #tpu.dot_dimension_numbers<[1], [1], [0], [0], [0, 0, 1, 0], [], []>} : vector<8x8xf32>, vector<8x8xf32>, vector<8x8xf32> -> vector<8x8xf32>
    %503 = arith.addf %502, %3 : vector<8x8xf32>
    %cst_182 = arith.constant dense<0xFF800000> : vector<8xf32>
    %504 = vector.multi_reduction <maximumf>, %503, %cst_182 [1] : vector<8x8xf32> to vector<8xf32>
    %505 = vector.shape_cast %504 : vector<8xf32> to vector<8x1xf32>
    %506 = vector.broadcast %505 : vector<8x1xf32> to vector<8x8xf32>
    %507 = arith.subf %503, %506 : vector<8x8xf32>
    %508 = math.exp %507 : vector<8x8xf32>
    %cst_183 = arith.constant dense<0.000000e+00> : vector<8xf32>
    %509 = vector.multi_reduction <add>, %508, %cst_183 [1] : vector<8x8xf32> to vector<8xf32>
    %510 = vector.shape_cast %509 : vector<8xf32> to vector<8x1xf32>
    %511 = tpu.reciprocal %510 {approx = true} : vector<8x1xf32> -> vector<8x1xf32>
    %512 = vector.broadcast %511 : vector<8x1xf32> to vector<8x8xf32>
    %513 = arith.mulf %508, %512 : vector<8x8xf32>
    %cst_184 = arith.constant dense<0.000000e+00> : vector<8x8xf32>
    %514 = tpu.matmul %513, %501, %cst_184 {dimension_numbers = #tpu.dot_dimension_numbers<[1], [0], [0], [1], [0, 0, 1, 1], [], []>} : vector<8x8xf32>, vector<8x8xf32>, vector<8x8xf32> -> vector<8x8xf32>
    %c1048 = arith.constant 1048 : index
    %c0_185 = arith.constant 0 : index
    %515 = vector.load %arg3[%c1048, %c0_185] : memref<1392x128xf32, #tpu.memory_space<vmem>>, vector<8x32xf32>
    %cst_186 = arith.constant dense<0.000000e+00> : vector<8x32xf32>
    %516 = tpu.matmul %514, %515, %cst_186 {dimension_numbers = #tpu.dot_dimension_numbers<[1], [0], [0], [1], [0, 0, 1, 1], [], []>} : vector<8x8xf32>, vector<8x32xf32>, vector<8x32xf32> -> vector<8x32xf32>
    %517 = vector.extract_strided_slice %494 {offsets = [0, 8], sizes = [8, 8], strides = [1, 1]} : vector<8x32xf32> to vector<8x8xf32>
    %518 = vector.extract_strided_slice %497 {offsets = [0, 8], sizes = [8, 8], strides = [1, 1]} : vector<8x32xf32> to vector<8x8xf32>
    %519 = vector.extract_strided_slice %498 {offsets = [0, 8], sizes = [8, 8], strides = [1, 1]} : vector<8x32xf32> to vector<8x8xf32>
    %cst_187 = arith.constant dense<0.000000e+00> : vector<8x8xf32>
    %520 = tpu.matmul %517, %518, %cst_187 {dimension_numbers = #tpu.dot_dimension_numbers<[1], [1], [0], [0], [0, 0, 1, 0], [], []>} : vector<8x8xf32>, vector<8x8xf32>, vector<8x8xf32> -> vector<8x8xf32>
    %521 = arith.addf %520, %3 : vector<8x8xf32>
    %522 = arith.addf %503, %521 : vector<8x8xf32>
    %cst_188 = arith.constant dense<0xFF800000> : vector<8xf32>
    %523 = vector.multi_reduction <maximumf>, %521, %cst_188 [1] : vector<8x8xf32> to vector<8xf32>
    %524 = vector.shape_cast %523 : vector<8xf32> to vector<8x1xf32>
    %525 = vector.broadcast %524 : vector<8x1xf32> to vector<8x8xf32>
    %526 = arith.subf %521, %525 : vector<8x8xf32>
    %527 = math.exp %526 : vector<8x8xf32>
    %cst_189 = arith.constant dense<0.000000e+00> : vector<8xf32>
    %528 = vector.multi_reduction <add>, %527, %cst_189 [1] : vector<8x8xf32> to vector<8xf32>
    %529 = vector.shape_cast %528 : vector<8xf32> to vector<8x1xf32>
    %530 = tpu.reciprocal %529 {approx = true} : vector<8x1xf32> -> vector<8x1xf32>
    %531 = vector.broadcast %530 : vector<8x1xf32> to vector<8x8xf32>
    %532 = arith.mulf %527, %531 : vector<8x8xf32>
    %cst_190 = arith.constant dense<0.000000e+00> : vector<8x8xf32>
    %533 = tpu.matmul %532, %519, %cst_190 {dimension_numbers = #tpu.dot_dimension_numbers<[1], [0], [0], [1], [0, 0, 1, 1], [], []>} : vector<8x8xf32>, vector<8x8xf32>, vector<8x8xf32> -> vector<8x8xf32>
    %c1056 = arith.constant 1056 : index
    %c0_191 = arith.constant 0 : index
    %534 = vector.load %arg3[%c1056, %c0_191] : memref<1392x128xf32, #tpu.memory_space<vmem>>, vector<8x32xf32>
    %cst_192 = arith.constant dense<0.000000e+00> : vector<8x32xf32>
    %535 = tpu.matmul %533, %534, %cst_192 {dimension_numbers = #tpu.dot_dimension_numbers<[1], [0], [0], [1], [0, 0, 1, 1], [], []>} : vector<8x8xf32>, vector<8x32xf32>, vector<8x32xf32> -> vector<8x32xf32>
    %536 = arith.addf %516, %535 : vector<8x32xf32>
    %537 = vector.extract_strided_slice %494 {offsets = [0, 16], sizes = [8, 8], strides = [1, 1]} : vector<8x32xf32> to vector<8x8xf32>
    %538 = vector.extract_strided_slice %497 {offsets = [0, 16], sizes = [8, 8], strides = [1, 1]} : vector<8x32xf32> to vector<8x8xf32>
    %539 = vector.extract_strided_slice %498 {offsets = [0, 16], sizes = [8, 8], strides = [1, 1]} : vector<8x32xf32> to vector<8x8xf32>
    %cst_193 = arith.constant dense<0.000000e+00> : vector<8x8xf32>
    %540 = tpu.matmul %537, %538, %cst_193 {dimension_numbers = #tpu.dot_dimension_numbers<[1], [1], [0], [0], [0, 0, 1, 0], [], []>} : vector<8x8xf32>, vector<8x8xf32>, vector<8x8xf32> -> vector<8x8xf32>
    %541 = arith.addf %540, %3 : vector<8x8xf32>
    %542 = arith.addf %522, %541 : vector<8x8xf32>
    %cst_194 = arith.constant dense<0xFF800000> : vector<8xf32>
    %543 = vector.multi_reduction <maximumf>, %541, %cst_194 [1] : vector<8x8xf32> to vector<8xf32>
    %544 = vector.shape_cast %543 : vector<8xf32> to vector<8x1xf32>
    %545 = vector.broadcast %544 : vector<8x1xf32> to vector<8x8xf32>
    %546 = arith.subf %541, %545 : vector<8x8xf32>
    %547 = math.exp %546 : vector<8x8xf32>
    %cst_195 = arith.constant dense<0.000000e+00> : vector<8xf32>
    %548 = vector.multi_reduction <add>, %547, %cst_195 [1] : vector<8x8xf32> to vector<8xf32>
    %549 = vector.shape_cast %548 : vector<8xf32> to vector<8x1xf32>
    %550 = tpu.reciprocal %549 {approx = true} : vector<8x1xf32> -> vector<8x1xf32>
    %551 = vector.broadcast %550 : vector<8x1xf32> to vector<8x8xf32>
    %552 = arith.mulf %547, %551 : vector<8x8xf32>
    %cst_196 = arith.constant dense<0.000000e+00> : vector<8x8xf32>
    %553 = tpu.matmul %552, %539, %cst_196 {dimension_numbers = #tpu.dot_dimension_numbers<[1], [0], [0], [1], [0, 0, 1, 1], [], []>} : vector<8x8xf32>, vector<8x8xf32>, vector<8x8xf32> -> vector<8x8xf32>
    %c1064 = arith.constant 1064 : index
    %c0_197 = arith.constant 0 : index
    %554 = vector.load %arg3[%c1064, %c0_197] : memref<1392x128xf32, #tpu.memory_space<vmem>>, vector<8x32xf32>
    %cst_198 = arith.constant dense<0.000000e+00> : vector<8x32xf32>
    %555 = tpu.matmul %553, %554, %cst_198 {dimension_numbers = #tpu.dot_dimension_numbers<[1], [0], [0], [1], [0, 0, 1, 1], [], []>} : vector<8x8xf32>, vector<8x32xf32>, vector<8x32xf32> -> vector<8x32xf32>
    %556 = arith.addf %536, %555 : vector<8x32xf32>
    %557 = vector.extract_strided_slice %494 {offsets = [0, 24], sizes = [8, 8], strides = [1, 1]} : vector<8x32xf32> to vector<8x8xf32>
    %558 = vector.extract_strided_slice %497 {offsets = [0, 24], sizes = [8, 8], strides = [1, 1]} : vector<8x32xf32> to vector<8x8xf32>
    %559 = vector.extract_strided_slice %498 {offsets = [0, 24], sizes = [8, 8], strides = [1, 1]} : vector<8x32xf32> to vector<8x8xf32>
    %cst_199 = arith.constant dense<0.000000e+00> : vector<8x8xf32>
    %560 = tpu.matmul %557, %558, %cst_199 {dimension_numbers = #tpu.dot_dimension_numbers<[1], [1], [0], [0], [0, 0, 1, 0], [], []>} : vector<8x8xf32>, vector<8x8xf32>, vector<8x8xf32> -> vector<8x8xf32>
    %561 = arith.addf %560, %3 : vector<8x8xf32>
    %562 = arith.addf %542, %561 : vector<8x8xf32>
    %cst_200 = arith.constant dense<0xFF800000> : vector<8xf32>
    %563 = vector.multi_reduction <maximumf>, %561, %cst_200 [1] : vector<8x8xf32> to vector<8xf32>
    %564 = vector.shape_cast %563 : vector<8xf32> to vector<8x1xf32>
    %565 = vector.broadcast %564 : vector<8x1xf32> to vector<8x8xf32>
    %566 = arith.subf %561, %565 : vector<8x8xf32>
    %567 = math.exp %566 : vector<8x8xf32>
    %cst_201 = arith.constant dense<0.000000e+00> : vector<8xf32>
    %568 = vector.multi_reduction <add>, %567, %cst_201 [1] : vector<8x8xf32> to vector<8xf32>
    %569 = vector.shape_cast %568 : vector<8xf32> to vector<8x1xf32>
    %570 = tpu.reciprocal %569 {approx = true} : vector<8x1xf32> -> vector<8x1xf32>
    %571 = vector.broadcast %570 : vector<8x1xf32> to vector<8x8xf32>
    %572 = arith.mulf %567, %571 : vector<8x8xf32>
    %cst_202 = arith.constant dense<0.000000e+00> : vector<8x8xf32>
    %573 = tpu.matmul %572, %559, %cst_202 {dimension_numbers = #tpu.dot_dimension_numbers<[1], [0], [0], [1], [0, 0, 1, 1], [], []>} : vector<8x8xf32>, vector<8x8xf32>, vector<8x8xf32> -> vector<8x8xf32>
    %c1072 = arith.constant 1072 : index
    %c0_203 = arith.constant 0 : index
    %574 = vector.load %arg3[%c1072, %c0_203] : memref<1392x128xf32, #tpu.memory_space<vmem>>, vector<8x32xf32>
    %cst_204 = arith.constant dense<0.000000e+00> : vector<8x32xf32>
    %575 = tpu.matmul %573, %574, %cst_204 {dimension_numbers = #tpu.dot_dimension_numbers<[1], [0], [0], [1], [0, 0, 1, 1], [], []>} : vector<8x8xf32>, vector<8x32xf32>, vector<8x32xf32> -> vector<8x32xf32>
    %576 = arith.addf %556, %575 : vector<8x32xf32>
    %cst_205 = arith.constant 2.500000e-01 : f32
    %577 = vector.broadcast %cst_205 : f32 to vector<8x8xf32>
    %578 = arith.mulf %562, %577 : vector<8x8xf32>
    %579 = arith.addf %470, %576 : vector<8x32xf32>
    %c1080 = arith.constant 1080 : index
    %c0_206 = arith.constant 0 : index
    %580 = vector.load %arg3[%c1080, %c0_206] : memref<1392x128xf32, #tpu.memory_space<vmem>>, vector<1x32xf32>
    %c1081 = arith.constant 1081 : index
    %c0_207 = arith.constant 0 : index
    %581 = vector.load %arg3[%c1081, %c0_207] : memref<1392x128xf32, #tpu.memory_space<vmem>>, vector<1x32xf32>
    %cst_208 = arith.constant dense<0.000000e+00> : vector<8xf32>
    %582 = vector.multi_reduction <add>, %579, %cst_208 [1] : vector<8x32xf32> to vector<8xf32>
    %583 = vector.shape_cast %582 : vector<8xf32> to vector<8x1xf32>
    %cst_209 = arith.constant 3.200000e+01 : f32
    %584 = vector.broadcast %cst_209 : f32 to vector<8x1xf32>
    %585 = arith.divf %583, %584 : vector<8x1xf32>
    %586 = vector.broadcast %585 : vector<8x1xf32> to vector<8x32xf32>
    %587 = arith.subf %579, %586 : vector<8x32xf32>
    %588 = arith.mulf %587, %587 : vector<8x32xf32>
    %cst_210 = arith.constant dense<0.000000e+00> : vector<8xf32>
    %589 = vector.multi_reduction <add>, %588, %cst_210 [1] : vector<8x32xf32> to vector<8xf32>
    %590 = vector.shape_cast %589 : vector<8xf32> to vector<8x1xf32>
    %cst_211 = arith.constant 3.100000e+01 : f32
    %591 = vector.broadcast %cst_211 : f32 to vector<8x1xf32>
    %592 = arith.divf %590, %591 : vector<8x1xf32>
    %593 = vector.broadcast %580 : vector<1x32xf32> to vector<8x32xf32>
    %594 = arith.mulf %593, %587 : vector<8x32xf32>
    %595 = math.sqrt %592 : vector<8x1xf32>
    %cst_212 = arith.constant 9.99999997E-7 : f32
    %596 = vector.broadcast %cst_212 : f32 to vector<8x1xf32>
    %597 = arith.addf %595, %596 : vector<8x1xf32>
    %598 = vector.broadcast %597 : vector<8x1xf32> to vector<8x32xf32>
    %599 = arith.divf %594, %598 : vector<8x32xf32>
    %600 = vector.broadcast %581 : vector<1x32xf32> to vector<8x32xf32>
    %601 = arith.addf %599, %600 : vector<8x32xf32>
    %c1_i32_213 = arith.constant 1 : i32
    %602 = tpu.dynamic_rotate %601 by %c1_i32_213 dim 0 : vector<8x32xf32>, i32 -> vector<8x32xf32>
    %603 = vector.broadcast %4 : vector<8x1xf32> to vector<8x32xf32>
    %604 = arith.mulf %602, %603 : vector<8x32xf32>
    %c2_i32_214 = arith.constant 2 : i32
    %605 = tpu.dynamic_rotate %601 by %c2_i32_214 dim 0 : vector<8x32xf32>, i32 -> vector<8x32xf32>
    %606 = vector.broadcast %5 : vector<8x1xf32> to vector<8x32xf32>
    %607 = arith.mulf %605, %606 : vector<8x32xf32>
    %c1088 = arith.constant 1088 : index
    %c0_215 = arith.constant 0 : index
    %608 = vector.load %arg3[%c1088, %c0_215] : memref<1392x128xf32, #tpu.memory_space<vmem>>, vector<32x64xf32>
    %cst_216 = arith.constant dense<0.000000e+00> : vector<8x64xf32>
    %609 = tpu.matmul %607, %608, %cst_216 {dimension_numbers = #tpu.dot_dimension_numbers<[1], [0], [0], [1], [0, 0, 1, 1], [], []>} : vector<8x32xf32>, vector<32x64xf32>, vector<8x64xf32> -> vector<8x64xf32>
    %c1120 = arith.constant 1120 : index
    %c0_217 = arith.constant 0 : index
    %610 = vector.load %arg3[%c1120, %c0_217] : memref<1392x128xf32, #tpu.memory_space<vmem>>, vector<32x64xf32>
    %cst_218 = arith.constant dense<0.000000e+00> : vector<8x64xf32>
    %611 = tpu.matmul %604, %610, %cst_218 {dimension_numbers = #tpu.dot_dimension_numbers<[1], [0], [0], [1], [0, 0, 1, 1], [], []>} : vector<8x32xf32>, vector<32x64xf32>, vector<8x64xf32> -> vector<8x64xf32>
    %612 = arith.addf %609, %611 : vector<8x64xf32>
    %c1152 = arith.constant 1152 : index
    %c0_219 = arith.constant 0 : index
    %613 = vector.load %arg3[%c1152, %c0_219] : memref<1392x128xf32, #tpu.memory_space<vmem>>, vector<32x64xf32>
    %cst_220 = arith.constant dense<0.000000e+00> : vector<8x64xf32>
    %614 = tpu.matmul %601, %613, %cst_220 {dimension_numbers = #tpu.dot_dimension_numbers<[1], [0], [0], [1], [0, 0, 1, 1], [], []>} : vector<8x32xf32>, vector<32x64xf32>, vector<8x64xf32> -> vector<8x64xf32>
    %615 = arith.addf %612, %614 : vector<8x64xf32>
    %c1184 = arith.constant 1184 : index
    %c0_221 = arith.constant 0 : index
    %616 = vector.load %arg3[%c1184, %c0_221] : memref<1392x128xf32, #tpu.memory_space<vmem>>, vector<1x64xf32>
    %617 = vector.broadcast %616 : vector<1x64xf32> to vector<8x64xf32>
    %618 = arith.addf %615, %617 : vector<8x64xf32>
    %cst_222 = arith.constant 0.000000e+00 : f32
    %619 = vector.broadcast %cst_222 : f32 to vector<8x64xf32>
    %620 = arith.maximumf %618, %619 : vector<8x64xf32>
    %c1_i32_223 = arith.constant 1 : i32
    %621 = tpu.dynamic_rotate %620 by %c1_i32_223 dim 0 : vector<8x64xf32>, i32 -> vector<8x64xf32>
    %622 = vector.broadcast %4 : vector<8x1xf32> to vector<8x64xf32>
    %623 = arith.mulf %621, %622 : vector<8x64xf32>
    %c2_i32_224 = arith.constant 2 : i32
    %624 = tpu.dynamic_rotate %620 by %c2_i32_224 dim 0 : vector<8x64xf32>, i32 -> vector<8x64xf32>
    %625 = vector.broadcast %5 : vector<8x1xf32> to vector<8x64xf32>
    %626 = arith.mulf %624, %625 : vector<8x64xf32>
    %c1192 = arith.constant 1192 : index
    %c0_225 = arith.constant 0 : index
    %627 = vector.load %arg3[%c1192, %c0_225] : memref<1392x128xf32, #tpu.memory_space<vmem>>, vector<64x32xf32>
    %cst_226 = arith.constant dense<0.000000e+00> : vector<8x32xf32>
    %628 = tpu.matmul %626, %627, %cst_226 {dimension_numbers = #tpu.dot_dimension_numbers<[1], [0], [0], [1], [0, 0, 1, 1], [], []>} : vector<8x64xf32>, vector<64x32xf32>, vector<8x32xf32> -> vector<8x32xf32>
    %c1256 = arith.constant 1256 : index
    %c0_227 = arith.constant 0 : index
    %629 = vector.load %arg3[%c1256, %c0_227] : memref<1392x128xf32, #tpu.memory_space<vmem>>, vector<64x32xf32>
    %cst_228 = arith.constant dense<0.000000e+00> : vector<8x32xf32>
    %630 = tpu.matmul %623, %629, %cst_228 {dimension_numbers = #tpu.dot_dimension_numbers<[1], [0], [0], [1], [0, 0, 1, 1], [], []>} : vector<8x64xf32>, vector<64x32xf32>, vector<8x32xf32> -> vector<8x32xf32>
    %631 = arith.addf %628, %630 : vector<8x32xf32>
    %c1320 = arith.constant 1320 : index
    %c0_229 = arith.constant 0 : index
    %632 = vector.load %arg3[%c1320, %c0_229] : memref<1392x128xf32, #tpu.memory_space<vmem>>, vector<64x32xf32>
    %cst_230 = arith.constant dense<0.000000e+00> : vector<8x32xf32>
    %633 = tpu.matmul %620, %632, %cst_230 {dimension_numbers = #tpu.dot_dimension_numbers<[1], [0], [0], [1], [0, 0, 1, 1], [], []>} : vector<8x64xf32>, vector<64x32xf32>, vector<8x32xf32> -> vector<8x32xf32>
    %634 = arith.addf %631, %633 : vector<8x32xf32>
    %c1384 = arith.constant 1384 : index
    %c0_231 = arith.constant 0 : index
    %635 = vector.load %arg3[%c1384, %c0_231] : memref<1392x128xf32, #tpu.memory_space<vmem>>, vector<1x32xf32>
    %636 = vector.broadcast %635 : vector<1x32xf32> to vector<8x32xf32>
    %637 = arith.addf %634, %636 : vector<8x32xf32>
    %638 = arith.addf %579, %637 : vector<8x32xf32>
    %c48 = arith.constant 48 : index
    %c0_232 = arith.constant 0 : index
    %639 = vector.load %arg3[%c48, %c0_232] : memref<1392x128xf32, #tpu.memory_space<vmem>>, vector<1x32xf32>
    %c49 = arith.constant 49 : index
    %c0_233 = arith.constant 0 : index
    %640 = vector.load %arg3[%c49, %c0_233] : memref<1392x128xf32, #tpu.memory_space<vmem>>, vector<1x32xf32>
    %cst_234 = arith.constant dense<0.000000e+00> : vector<8xf32>
    %641 = vector.multi_reduction <add>, %638, %cst_234 [1] : vector<8x32xf32> to vector<8xf32>
    %642 = vector.shape_cast %641 : vector<8xf32> to vector<8x1xf32>
    %cst_235 = arith.constant 3.200000e+01 : f32
    %643 = vector.broadcast %cst_235 : f32 to vector<8x1xf32>
    %644 = arith.divf %642, %643 : vector<8x1xf32>
    %645 = vector.broadcast %644 : vector<8x1xf32> to vector<8x32xf32>
    %646 = arith.subf %638, %645 : vector<8x32xf32>
    %647 = arith.mulf %646, %646 : vector<8x32xf32>
    %cst_236 = arith.constant dense<0.000000e+00> : vector<8xf32>
    %648 = vector.multi_reduction <add>, %647, %cst_236 [1] : vector<8x32xf32> to vector<8xf32>
    %649 = vector.shape_cast %648 : vector<8xf32> to vector<8x1xf32>
    %cst_237 = arith.constant 3.100000e+01 : f32
    %650 = vector.broadcast %cst_237 : f32 to vector<8x1xf32>
    %651 = arith.divf %649, %650 : vector<8x1xf32>
    %652 = vector.broadcast %639 : vector<1x32xf32> to vector<8x32xf32>
    %653 = arith.mulf %652, %646 : vector<8x32xf32>
    %654 = math.sqrt %651 : vector<8x1xf32>
    %cst_238 = arith.constant 9.99999997E-7 : f32
    %655 = vector.broadcast %cst_238 : f32 to vector<8x1xf32>
    %656 = arith.addf %654, %655 : vector<8x1xf32>
    %657 = vector.broadcast %656 : vector<8x1xf32> to vector<8x32xf32>
    %658 = arith.divf %653, %657 : vector<8x32xf32>
    %659 = vector.broadcast %640 : vector<1x32xf32> to vector<8x32xf32>
    %660 = arith.addf %658, %659 : vector<8x32xf32>
    %c0_239 = arith.constant 0 : index
    %c0_240 = arith.constant 0 : index
    %661 = vector.load %arg4[%c0_239, %c0_240] : memref<8x256xf32, #tpu.memory_space<vmem>>, vector<8x32xf32>
    tpu.vector_store %arg4[%c0_239, %c0_240], %660 {strides = array<i32>} : memref<8x256xf32, #tpu.memory_space<vmem>>, vector<8x32xf32>,
    %c0_241 = arith.constant 0 : index
    %c32_242 = arith.constant 32 : index
    %662 = vector.load %arg4[%c0_241, %c32_242] : memref<8x256xf32, #tpu.memory_space<vmem>>, vector<8x8xf32>
    tpu.vector_store %arg4[%c0_241, %c32_242], %578 {strides = array<i32>} : memref<8x256xf32, #tpu.memory_space<vmem>>, vector<8x8xf32>,
    return
  }
  func.func @transform_0(%arg0: i32) -> (i32, i32) {
    %c0_i32 = arith.constant 0 : i32
    %c0_i32_0 = arith.constant 0 : i32
    return %arg0, %c0_i32 : i32, i32
  }
  func.func @transform_1(%arg0: i32) -> (i32, i32) {
    %c0_i32 = arith.constant 0 : i32
    %c0_i32_0 = arith.constant 0 : i32
    return %arg0, %c0_i32 : i32, i32
  }
  func.func @transform_2(%arg0: i32) -> (i32, i32) {
    %c0_i32 = arith.constant 0 : i32
    %c0_i32_0 = arith.constant 0 : i32
    %c0_i32_1 = arith.constant 0 : i32
    return %c0_i32, %c0_i32_0 : i32, i32
  }
  func.func @transform_3(%arg0: i32) -> (i32, i32) {
    %c0_i32 = arith.constant 0 : i32
    %c0_i32_0 = arith.constant 0 : i32
    return %arg0, %c0_i32 : i32, i32
  }
}

</mosaic_0001>

<llo_original>
// kernel: tpu_custom_call.1
$region0: #{tpu_custom_call.1}
  #allocation0 [shape = 'u32[]', space=smem, size = 0x4, offset = 0x4, fixed_abs, tag = 'smem constant byte address 0x4 - core index']
  #allocation1 [shape = 'u32[144,128]{1,0:T(1,128)}', space=vmem, size = 0x12000, scoped, tag = 'internal scratch']
  %s0 = inlined_call_operand.hbm [shape: f32[16,128], index: 0, kind: input, shape index: {}]
  %s1 = inlined_call_operand.hbm [shape: f32[16,32], index: 1, kind: input, shape index: {}]
  %s2 = inlined_call_operand.hbm [shape: f32[1392,128], index: 2, kind: input, shape index: {}]
  %s3 = inlined_call_operand.hbm [shape: f32[16,256], index: 3, kind: output, shape index: {}]
  %s4 = sld [smem:[#allocation0]]
  $region57: #{tpu_custom_call.1} parent=0
    _
  %s6 = ssub.s32 1, %s4
  %s7 = scalar_select 0, %s6, %s4
  $region1: #{tpu_custom_call.1} parent=0
    #allocation2 [shape = 'u8[8192]{0}', space=vmem, size = 0x2000, scoped, tag = 'input window, operand 0']
    #allocation3 [shape = 's32[2]{0}', space=sflag, size = 0x8, scoped, tag = 'scoped memory for tpu_custom_call.1']
    #allocation4 [shape = 's32[2]{0}', space=sflag, size = 0x8, scoped, tag = 'scoped memory for tpu_custom_call.1']
    #allocation5 [shape = 'u8[8192]{0}', space=vmem, size = 0x2000, scoped, tag = 'input window, operand 1']
    #allocation6 [shape = 's32[2]{0}', space=sflag, size = 0x8, scoped, tag = 'scoped memory for tpu_custom_call.1']
    #allocation7 [shape = 'u8[712704]{0}', space=vmem, size = 0xae000, scoped, tag = 'input window, operand 2, single buffered']
    #allocation8 [shape = 'u8[16384]{0}', space=vmem, size = 0x4000, scoped, tag = 'output window, operand 0']
    %8 = vsyncpa [#allocation3], 0
    %s9 = scalar_lea.sflag [#allocation3], 1
    %10 = vsyncpa %s9, 0
    %11 = vsyncpa [#allocation6], 0
    %s12 = scalar_lea.sflag [#allocation6], 1
    %13 = vsyncpa %s12, 0
    %14 = vsyncpa [#allocation4], 0
    %s15 = scalar_lea.sflag [#allocation4], 1
    %16 = vsyncpa %s15, 0
    loop: start=0, step=1, limit=4
    $region2: #{tpu_custom_call.1} parent=1 // loop_pre_header
      _
    $region3: #{tpu_custom_call.1} parent=1 // loop_header
      %s18 = sphi 0, %s22
      %p19 = scmp.ge.s32.totalorder %s18, 4
      %s28 = sphi 0, %s30
      %s31 = sphi 0, %s28
      %s32 = sphi 0, %s31
      %s48 = sphi 0, %s32
      %s54 = sphi 0, %s56
      %s57 = sphi 0, %s54
      %s58 = sphi 0, %s57
      %s74 = sphi 0, %s58
      %s78 = sphi 0, %s78
      %s80 = sphi 0, %s78
      %s81 = sphi 0, %s80
      %s95 = sphi 0, %s81
      %s101 = sphi 0, %s103
      %s104 = sphi 0, %s101
      %s105 = sphi 0, %s104
      %s121 = sphi 0, %s105
    $region4: #{tpu_custom_call.1} parent=1 // loop_header_branch
      %21 = sbr.rel (%p19) target = $region8
    $region5: #{tpu_custom_call.1} parent=1 // loop_body
      %s23 = ssub.s32 %s18, 1
      %s24 = ssub.s32 %s18, 2
      %s25 = sadd.s32 %s18, 1
      %s26 = ssub.s32 %s18, %s25
      %p27 = scmp.eq.s32.totalorder %s26, 0
      %s29 = sadd.s32 %s28, 1
      %s30 = scalar_select %p27, %s28, %s29
      %p33 = pneg %p27
      %p34 = scmp.eq.s32.totalorder %s18, 1
      %p35 = por %p33, %p34
      %p36 = scmp.ne.s32.totalorder %s28, %s31
      %p37 = scmp.eq.s32.totalorder %s18, 0
      %p38 = por %p36, %p37
      %p39 = scmp.ne.s32.totalorder %s28, %s31
      %p40 = scmp.eq.s32.totalorder %s23, 1
      %p41 = por %p39, %p40
      %p42 = scmp.ne.s32.totalorder %s31, %s32
      %p43 = scmp.eq.s32.totalorder %s23, 0
      %p44 = por %p42, %p43
      %p45 = scmp.ne.s32.totalorder %s31, %s32
      %p46 = scmp.eq.s32.totalorder %s24, 1
      %p47 = por %p45, %p46
      %p49 = scmp.ne.s32.totalorder %s32, %s48
      %p50 = scmp.eq.s32.totalorder %s24, 0
      %p51 = por %p49, %p50
      %s52 = ssub.s32 %s18, %s25
      %p53 = scmp.eq.s32.totalorder %s52, 0
      %s55 = sadd.s32 %s54, 1
      %s56 = scalar_select %p53, %s54, %s55
      %p59 = pneg %p53
      %p60 = scmp.eq.s32.totalorder %s18, 1
      %p61 = por %p59, %p60
      %p62 = scmp.ne.s32.totalorder %s54, %s57
      %p63 = scmp.eq.s32.totalorder %s18, 0
      %p64 = por %p62, %p63
      %p65 = scmp.ne.s32.totalorder %s54, %s57
      %p66 = scmp.eq.s32.totalorder %s23, 1
      %p67 = por %p65, %p66
      %p68 = scmp.ne.s32.totalorder %s57, %s58
      %p69 = scmp.eq.s32.totalorder %s23, 0
      %p70 = por %p68, %p69
      %p71 = scmp.ne.s32.totalorder %s57, %s58
      %p72 = scmp.eq.s32.totalorder %s24, 1
      %p73 = por %p71, %p72
      %p75 = scmp.ne.s32.totalorder %s58, %s74
      %p76 = scmp.eq.s32.totalorder %s24, 0
      %p77 = por %p75, %p76
      %s79 = sadd.s32 %s78, 1
      %p82 = scmp.eq.s32.totalorder %s18, 1
      %p83 = scmp.ne.s32.totalorder %s78, %s80
      %p84 = scmp.eq.s32.totalorder %s18, 0
      %p85 = por %p83, %p84
      %p86 = scmp.ne.s32.totalorder %s78, %s80
      %p87 = scmp.eq.s32.totalorder %s23, 1
      %p88 = por %p86, %p87
      %p89 = scmp.ne.s32.totalorder %s80, %s81
      %p90 = scmp.eq.s32.totalorder %s23, 0
      %p91 = por %p89, %p90
      %p92 = scmp.ne.s32.totalorder %s80, %s81
      %p93 = scmp.eq.s32.totalorder %s24, 1
      %p94 = por %p92, %p93
      %p96 = scmp.ne.s32.totalorder %s81, %s95
      %p97 = scmp.eq.s32.totalorder %s24, 0
      %p98 = por %p96, %p97
      %s99 = ssub.s32 %s18, %s25
      %p100 = scmp.eq.s32.totalorder %s99, 0
      %s102 = sadd.s32 %s101, 1
      %s103 = scalar_select %p100, %s101, %s102
      %p106 = pneg %p100
      %p107 = scmp.eq.s32.totalorder %s18, 1
      %p108 = por %p106, %p107
      %p109 = scmp.ne.s32.totalorder %s101, %s104
      %p110 = scmp.eq.s32.totalorder %s18, 0
      %p111 = por %p109, %p110
      %p112 = scmp.ne.s32.totalorder %s101, %s104
      %p113 = scmp.eq.s32.totalorder %s23, 1
      %p114 = por %p112, %p113
      %p115 = scmp.ne.s32.totalorder %s104, %s105
      %p116 = scmp.eq.s32.totalorder %s23, 0
      %p117 = por %p115, %p116
      %p118 = scmp.ne.s32.totalorder %s104, %s105
      %p119 = scmp.eq.s32.totalorder %s24, 1
      %p120 = por %p118, %p119
      %p122 = scmp.ne.s32.totalorder %s105, %s121
      %p123 = scmp.eq.s32.totalorder %s24, 0
      %p124 = por %p122, %p123
      %p125 = scmp.le.s32.totalorder 1, %s18
      %p126 = scmp.lt.s32.totalorder %s18, 3
      %p127 = pnand %p125, %p126
      %p128 = pneg %p127
      // Predicated region
      $region9: #{tpu_custom_call.1} parent=5 // pred_check
        _
      $region10: #{tpu_custom_call.1} parent=5 // pred_check_branch
        %130 = sbr.rel (%p127) target = $region12
      $region11: #{tpu_custom_call.1} parent=5 // pred_region
        %s131 = ssub.s32 %s18, 1
        // Predicated region
        $region13: #{tpu_custom_call.1} parent=11 // pred_check
          %p132 = pneg %p91
        $region14: #{tpu_custom_call.1} parent=11 // pred_check_branch
          %134 = sbr.rel (%p132) target = $region16
        $region15: #{tpu_custom_call.1} parent=11 // pred_region
          %s136 = ssub.s32 22272, 22272
          %137 = vsyncadd [#allocation6], %s136
          %s138 = sshll.u32 [#allocation7], 4
          %s139 = int_to_ptr.vmem [resolvable:$true] %s138
          %144 = dma.hbm_to_vmem [thread:$0]  %s2, 22272, %s139, [#allocation6], 128, 128, 8
        $region16: #{tpu_custom_call.1} parent=11 // pred_fallthru
          _
      $region12: #{tpu_custom_call.1} parent=5 // pred_fallthru
        _
      %p145 = scmp.lt.s32.totalorder %s18, 2
      // Predicated region
      $region17: #{tpu_custom_call.1} parent=5 // pred_check
        %p146 = pneg %p145
      $region18: #{tpu_custom_call.1} parent=5 // pred_check_branch
        %148 = sbr.rel (%p146) target = $region20
      $region19: #{tpu_custom_call.1} parent=5 // pred_region
        // Predicated region
        $region21: #{tpu_custom_call.1} parent=19 // pred_check
          %p149 = pneg %p38
        $region22: #{tpu_custom_call.1} parent=19 // pred_check_branch
          %151 = sbr.rel (%p149) target = $region24
        $region23: #{tpu_custom_call.1} parent=19 // pred_region
          %s152 = sand.u32 %s28, 1
          %s153 = scalar_lea.sflag [#allocation3], %s152
          %s154 = sand.u32 %s28, 1
          %s155 = smul.addr %s154, 8
          %s156 = scalar_lea.vmem [#allocation2], %s155
          %s158 = ssub.s32 128, 128
          %159 = vsyncadd %s153, %s158
          %s160 = smul.addr %s18, 128
          %s161 = scalar_lea.hbm %s0, %s160
          %s163 = sshll.u32 %s156, 4
          %s164 = int_to_ptr.vmem [resolvable:$true] %s163
          %166 = dma.hbm_to_vmem [thread:$0]  %s161, 128, %s164, %s153
        $region24: #{tpu_custom_call.1} parent=19 // pred_fallthru
          _
        // Predicated region
        $region25: #{tpu_custom_call.1} parent=19 // pred_check
          %p167 = pneg %p64
        $region26: #{tpu_custom_call.1} parent=19 // pred_check_branch
          %169 = sbr.rel (%p167) target = $region28
        $region27: #{tpu_custom_call.1} parent=19 // pred_region
          %s170 = sand.u32 %s18, 1
          %s171 = scalar_lea.sflag [#allocation6], %s170
          %s172 = sand.u32 %s54, 1
          %s173 = smul.addr %s172, 8
          %s174 = scalar_lea.vmem [#allocation5], %s173
          %s176 = ssub.s32 128, 128
          %177 = vsyncadd %s171, %s176
          %s178 = smul.addr %s18, 128
          %s179 = scalar_lea.hbm %s1, %s178
          %s181 = sshll.u32 %s174, 4
          %s182 = int_to_ptr.vmem [resolvable:$true] %s181
          %184 = dma.hbm_to_vmem [thread:$0]  %s179, 128, %s182, %s171
        $region28: #{tpu_custom_call.1} parent=19 // pred_fallthru
          _
      $region20: #{tpu_custom_call.1} parent=5 // pred_fallthru
        _
      %p185 = scmp.le.s32.totalorder 1, %s18
      %p186 = scmp.lt.s32.totalorder %s18, 3
      %p187 = pnand %p185, %p186
      %p188 = pneg %p187
      // Predicated region
      $region29: #{tpu_custom_call.1} parent=5 // pred_check
        _
      $region30: #{tpu_custom_call.1} parent=5 // pred_check_branch
        %190 = sbr.rel (%p187) target = $region32
      $region31: #{tpu_custom_call.1} parent=5 // pred_region
        %s191 = ssub.s32 %s18, 1
        %s192 = sand.u32 %s31, 1
        %s193 = scalar_lea.sflag [#allocation3], %s192
        %s194 = sand.u32 %s31, 1
        %s195 = smul.addr %s194, 8
        %s196 = scalar_lea.vmem [#allocation2], %s195
        // Predicated region
        $region33: #{tpu_custom_call.1} parent=31 // pred_check
          %p197 = pneg %p44
        $region34: #{tpu_custom_call.1} parent=31 // pred_check_branch
          %199 = sbr.rel (%p197) target = $region36
        $region35: #{tpu_custom_call.1} parent=31 // pred_region
          %200 = dma.done %s193, 128
        $region36: #{tpu_custom_call.1} parent=31 // pred_fallthru
          _
        %s201 = sand.u32 %s23, 1
        %s202 = scalar_lea.sflag [#allocation6], %s201
        %s203 = sand.u32 %s57, 1
        %s204 = smul.addr %s203, 8
        %s205 = scalar_lea.vmem [#allocation5], %s204
        // Predicated region
        $region37: #{tpu_custom_call.1} parent=31 // pred_check
          %p206 = pneg %p70
        $region38: #{tpu_custom_call.1} parent=31 // pred_check_branch
          %208 = sbr.rel (%p206) target = $region40
        $region39: #{tpu_custom_call.1} parent=31 // pred_region
          %209 = dma.done %s202, 128
        $region40: #{tpu_custom_call.1} parent=31 // pred_fallthru
          _
        // Predicated region
        $region41: #{tpu_custom_call.1} parent=31 // pred_check
          %p210 = pneg %p91
        $region42: #{tpu_custom_call.1} parent=31 // pred_check_branch
          %212 = sbr.rel (%p210) target = $region44
        $region43: #{tpu_custom_call.1} parent=31 // pred_region
          %213 = dma.done [#allocation6], 22272
        $region44: #{tpu_custom_call.1} parent=31 // pred_fallthru
          _
        %s214 = sand.u32 %s31, 1
        %s215 = scalar_lea.sflag [#allocation3], %s214
        %s216 = sand.u32 %s31, 1
        %s217 = smul.addr %s216, 8
        %s218 = scalar_lea.vmem [#allocation2], %s217
        %p219 = pneg %p44
        %p220 = pneg %p41
        %s221 = sand.u32 %s23, 1
        %s222 = scalar_lea.sflag [#allocation6], %s221
        %s223 = sand.u32 %s57, 1
        %s224 = smul.addr %s223, 8
        %s225 = scalar_lea.vmem [#allocation5], %s224
        %p226 = pneg %p70
        %p227 = pneg %p67
        %p228 = pneg %p91
        %p229 = pneg %p88
        %p230 = pneg %p117
        %p231 = pneg %p114
        %s232 = sand.u32 %s104, 1
        %s233 = scalar_lea.sflag [#allocation4], %s232
        %s234 = sand.u32 %s104, 1
        %s235 = smul.addr %s234, 16
        %s236 = scalar_lea.vmem [#allocation8], %s235
        %v237 = vld [vmem:[%s196] sm:$0xff]
        %v238 = vld [vmem:[%s205] sm:$0xff]
        %239 = vst [vmem:[%s236] sm:$0xff] 0.0
        %240 = vst [vmem:[%s236 + $0x8] sm:$0xff] 0.0
        %v241 = vld [vmem:[#allocation7] sm:$0xff]
        %v242 = vld [vmem:[#allocation7 + $0x8] sm:$0xff]
        %v243 = vld [vmem:[#allocation7 + $0x10] sm:$0xff]
        %v244 = vld [vmem:[#allocation7 + $0x18] sm:$0xff]
        %v245 = vld [vmem:[#allocation7 + $0x20] sm:$0xff]
        %vm246 = vcmask 261120
        %v248 = vsel %vm246, %v237, 0
        %250 = vmatprep.subr.mxu0 0.0
        %251 = vmatpush1.msra.mxu0 %v241
        %252 = vmatprep.subr.mxu0 0.0
        %253 = vmatpush1.msra.mxu0 %v242
        %254 = vmatprep.subr.mxu0 0.0
        %255 = vmatpush1.msra.mxu0 %v243
        %256 = vmatprep.subr.mxu0 0.0
        %257 = vmatpush1.msra.mxu0 %v244
        %258 = vmatprep.subr.mxu0 0.0
        %259 = vmatpush1.msra.mxu0 0.0
        %260 = vmatprep.subr.mxu0 0.0
        %261 = vmatpush1.msra.mxu0 0.0
        %262 = vmatprep.subr.mxu0 0.0
        %263 = vmatpush1.msra.mxu0 0.0
        %264 = vmatprep.subr.mxu0 0.0
        %265 = vmatpush1.msra.mxu0 0.0
        %266 = vmatprep.subr.mxu0 0.0
        %267 = vmatpush1.msra.mxu0 0.0
        %268 = vmatprep.subr.mxu0 0.0
        %269 = vmatpush1.msra.mxu0 0.0
        %270 = vmatprep.subr.mxu0 0.0
        %271 = vmatpush1.msra.mxu0 0.0
        %272 = vmatprep.subr.mxu0 0.0
        %273 = vmatpush1.msra.mxu0 0.0
        %274 = vmatprep.subr.mxu0 0.0
        %275 = vmatpush1.msra.mxu0 0.0
        %276 = vmatprep.subr.mxu0 0.0
        %277 = vmatpush1.msra.mxu0 0.0
        %278 = vmatprep.subr.mxu0 0.0
        %279 = vmatpush1.msra.mxu0 0.0
        %280 = vmatprep.subr.mxu0 0.0
        %281 = vmatpush1.msra.mxu0 0.0
        %282 = vmatprep.subr.mxu0 0.0
        %283 = vmatpush1.msra.mxu0 0.0
        %284 = vmatprep.subr.mxu0 0.0
        %285 = vmatpush1.msra.mxu0 0.0
        %286 = vmatprep.subr.mxu0 0.0
        %287 = vmatpush1.msra.mxu0 0.0
        %288 = vmatprep.subr.mxu0 0.0
        %289 = vmatpush1.msra.mxu0 0.0
        %290 = vmatprep.subr.mxu0 0.0
        %291 = vmatpush1.msra.mxu0 0.0
        %292 = vmatprep.subr.mxu0 0.0
        %293 = vmatpush1.msra.mxu0 0.0
        %294 = vmatprep.subr.mxu0 0.0
        %295 = vmatpush1.msra.mxu0 0.0
        %296 = vmatprep.subr.mxu0 0.0
        %297 = vmatpush1.msra.mxu0 0.0
        %298 = vmatprep.subr.mxu0 0.0
        %299 = vmatpush1.msra.mxu0 0.0
        %300 = vmatprep.subr.mxu0 0.0
        %301 = vmatpush1.msra.mxu0 0.0
        %302 = vmatprep.subr.mxu0 0.0
        %303 = vmatpush1.msra.mxu0 0.0
        %304 = vmatprep.subr.mxu0 0.0
        %305 = vmatpush1.msra.mxu0 0.0
        %306 = vmatprep.subr.mxu0 0.0
        %307 = vmatpush1.msra.mxu0 0.0
        %308 = vmatprep.subr.mxu0 0.0
        %309 = vmatpush1.msra.mxu0 0.0
        %310 = vmatprep.subr.mxu0 0.0
        %311 = vmatpush1.msra.mxu0 0.0
        %312 = vmatprep.subr.mxu0 0.0
        %313 = vmatpush1.msra.mxu0 0.0
        %314 = vmatprep.mubr.f32.mxu0 0.0
        %315 = vmatmul.mubr.f32.gmra.mrb[0].mxu0 %v248
        %v316 = vpop.f32.mrb[0].mxu0
        %v317 = vadd.f32 %v245, %v316
        %v318 = vpop.f32.mrb[0].mxu0
        %319 = vdwg.mxu0
        %v320 = vld [vmem:[#allocation7 + $0x38] sm:$0x1]
        %v321 = vld [vmem:[#allocation7 + $0x39] sm:$0x1]
        %v322 = vsel %vm246, %v317, 0.0
        %323 = vadd.xlane.f32.xlu0 %v322
        %v324 = vpop.xlane.xlu0 %323
        %v325 = vrcp.pop 32.0
        %v326 = vmul.f32 %v324, %v325
        %v327 = vsub.f32 %v317, %v326
        %v328 = vmul.f32 %v327, %v327
        %v329 = vsel %vm246, %v328, 0.0
        %330 = vadd.xlane.f32.xlu0 %v329
        %v331 = vpop.xlane.xlu0 %330
        %v332 = vrcp.pop 31.0
        %v333 = vmul.f32 %v331, %v332
        %v334 = vlaneseq
        %v335 = vshrl.u32 %v334, 7
        %v336 = vsub.s32 0, %v335
        %v337 = vrot.slane %v320, %v336
        %v338 = vmul.f32 %v337, %v327
        %v339 = vrsqrt.pop %v333
        %v340 = vmul.f32 %v333, %v339
        %vm341 = vcmp.eq.f32.partialorder %v333, inf
        %v342 = vsel %vm341, %v333, %v340
        %vm343 = vcmp.eq.f32.partialorder %v333, 0.0
        %v344 = vand.u32 %v333, 2147483648
        %v345 = vsel %vm343, %v344, %v342
        %v346 = vadd.f32 %v345, 1e-06
        %v347 = vrcp.pop %v346
        %v348 = vmul.f32 %v338, %v347
        %v349 = vlaneseq
        %v350 = vshrl.u32 %v349, 7
        %v351 = vsub.s32 0, %v350
        %v352 = vrot.slane %v321, %v351
        %v353 = vadd.f32 %v348, %v352
        %v354 = vld [vmem:[#allocation7 + $0x40] sm:$0xff]
        %v355 = vld [vmem:[#allocation7 + $0x48] sm:$0xff]
        %v356 = vld [vmem:[#allocation7 + $0x50] sm:$0xff]
        %v357 = vld [vmem:[#allocation7 + $0x58] sm:$0xff]
        %v359 = vsel %vm246, %v353, 0
        %361 = vmatprep.subr.mxu0 0.0
        %362 = vmatpush1.msra.mxu0 %v354
        %363 = vmatprep.subr.mxu0 0.0
        %364 = vmatpush1.msra.mxu0 %v355
        %365 = vmatprep.subr.mxu0 0.0
        %366 = vmatpush1.msra.mxu0 %v356
        %367 = vmatprep.subr.mxu0 0.0
        %368 = vmatpush1.msra.mxu0 %v357
        %369 = vmatprep.subr.mxu0 0.0
        %370 = vmatpush1.msra.mxu0 0.0
        %371 = vmatprep.subr.mxu0 0.0
        %372 = vmatpush1.msra.mxu0 0.0
        %373 = vmatprep.subr.mxu0 0.0
        %374 = vmatpush1.msra.mxu0 0.0
        %375 = vmatprep.subr.mxu0 0.0
        %376 = vmatpush1.msra.mxu0 0.0
        %377 = vmatprep.subr.mxu0 0.0
        %378 = vmatpush1.msra.mxu0 0.0
        %379 = vmatprep.subr.mxu0 0.0
        %380 = vmatpush1.msra.mxu0 0.0
        %381 = vmatprep.subr.mxu0 0.0
        %382 = vmatpush1.msra.mxu0 0.0
        %383 = vmatprep.subr.mxu0 0.0
        %384 = vmatpush1.msra.mxu0 0.0
        %385 = vmatprep.subr.mxu0 0.0
        %386 = vmatpush1.msra.mxu0 0.0
        %387 = vmatprep.subr.mxu0 0.0
        %388 = vmatpush1.msra.mxu0 0.0
        %389 = vmatprep.subr.mxu0 0.0
        %390 = vmatpush1.msra.mxu0 0.0
        %391 = vmatprep.subr.mxu0 0.0
        %392 = vmatpush1.msra.mxu0 0.0
        %393 = vmatprep.subr.mxu0 0.0
        %394 = vmatpush1.msra.mxu0 0.0
        %395 = vmatprep.subr.mxu0 0.0
        %396 = vmatpush1.msra.mxu0 0.0
        %397 = vmatprep.subr.mxu0 0.0
        %398 = vmatpush1.msra.mxu0 0.0
        %399 = vmatprep.subr.mxu0 0.0
        %400 = vmatpush1.msra.mxu0 0.0
        %401 = vmatprep.subr.mxu0 0.0
        %402 = vmatpush1.msra.mxu0 0.0
        %403 = vmatprep.subr.mxu0 0.0
        %404 = vmatpush1.msra.mxu0 0.0
        %405 = vmatprep.subr.mxu0 0.0
        %406 = vmatpush1.msra.mxu0 0.0
        %407 = vmatprep.subr.mxu0 0.0
        %408 = vmatpush1.msra.mxu0 0.0
        %409 = vmatprep.subr.mxu0 0.0
        %410 = vmatpush1.msra.mxu0 0.0
        %411 = vmatprep.subr.mxu0 0.0
        %412 = vmatpush1.msra.mxu0 0.0
        %413 = vmatprep.subr.mxu0 0.0
        %414 = vmatpush1.msra.mxu0 0.0
        %415 = vmatprep.subr.mxu0 0.0
        %416 = vmatpush1.msra.mxu0 0.0
        %417 = vmatprep.subr.mxu0 0.0
        %418 = vmatpush1.msra.mxu0 0.0
        %419 = vmatprep.subr.mxu0 0.0
        %420 = vmatpush1.msra.mxu0 0.0
        %421 = vmatprep.subr.mxu0 0.0
        %422 = vmatpush1.msra.mxu0 0.0
        %423 = vmatprep.subr.mxu0 0.0
        %424 = vmatpush1.msra.mxu0 0.0
        %425 = vmatprep.mubr.f32.mxu0 0.0
        %426 = vmatmul.mubr.f32.gmra.mrb[0].mxu0 %v359
        %v427 = vpop.f32.mrb[0].mxu0
        %v428 = vadd.f32 0.0, %v427
        %v429 = vpop.f32.mrb[0].mxu0
        %430 = vdwg.mxu0
        %432 = vrot.lane.b32.xlu0 %v428, 96
        %v433 = vpop.permute.xlu0 %432
        %434 = vrot.lane.b32.xlu0 %v237, 64
        %v435 = vpop.permute.xlu0 %434
        %vm437 = vcmask 64512
        %v438 = vsel %vm437, %v428, 0
        %v440 = vsel %vm437, %v433, 0
        %442 = vmatprep.subr.mxu0 0.0
        %443 = vmatpush1.xpose.msra.mxu0 %v440
        %444 = vmatprep.subr.mxu0 0.0
        %445 = vmatpush1.xpose.msra.mxu0 0.0
        %446 = vmatprep.subr.mxu0 0.0
        %447 = vmatpush1.xpose.msra.mxu0 0.0
        %448 = vmatprep.subr.mxu0 0.0
        %449 = vmatpush1.xpose.msra.mxu0 0.0
        %450 = vmatprep.subr.mxu0 0.0
        %451 = vmatpush1.xpose.msra.mxu0 0.0
        %452 = vmatprep.subr.mxu0 0.0
        %453 = vmatpush1.xpose.msra.mxu0 0.0
        %454 = vmatprep.subr.mxu0 0.0
        %455 = vmatpush1.xpose.msra.mxu0 0.0
        %456 = vmatprep.subr.mxu0 0.0
        %457 = vmatpush1.xpose.msra.mxu0 0.0
        %458 = vmatprep.subr.mxu0 0.0
        %459 = vmatpush1.xpose.msra.mxu0 0.0
        %460 = vmatprep.subr.mxu0 0.0
        %461 = vmatpush1.xpose.msra.mxu0 0.0
        %462 = vmatprep.subr.mxu0 0.0
        %463 = vmatpush1.xpose.msra.mxu0 0.0
        %464 = vmatprep.subr.mxu0 0.0
        %465 = vmatpush1.xpose.msra.mxu0 0.0
        %466 = vmatprep.subr.mxu0 0.0
        %467 = vmatpush1.xpose.msra.mxu0 0.0
        %468 = vmatprep.subr.mxu0 0.0
        %469 = vmatpush1.xpose.msra.mxu0 0.0
        %470 = vmatprep.subr.mxu0 0.0
        %471 = vmatpush1.xpose.msra.mxu0 0.0
        %472 = vmatprep.subr.mxu0 0.0
        %473 = vmatpush1.xpose.msra.mxu0 0.0
        %474 = vmatprep.subr.mxu0 0.0
        %475 = vmatpush1.xpose.msra.mxu0 0.0
        %476 = vmatprep.subr.mxu0 0.0
        %477 = vmatpush1.xpose.msra.mxu0 0.0
        %478 = vmatprep.subr.mxu0 0.0
        %479 = vmatpush1.xpose.msra.mxu0 0.0
        %480 = vmatprep.subr.mxu0 0.0
        %481 = vmatpush1.xpose.msra.mxu0 0.0
        %482 = vmatprep.subr.mxu0 0.0
        %483 = vmatpush1.xpose.msra.mxu0 0.0
        %484 = vmatprep.subr.mxu0 0.0
        %485 = vmatpush1.xpose.msra.mxu0 0.0
        %486 = vmatprep.subr.mxu0 0.0
        %487 = vmatpush1.xpose.msra.mxu0 0.0
        %488 = vmatprep.subr.mxu0 0.0
        %489 = vmatpush1.xpose.msra.mxu0 0.0
        %490 = vmatprep.subr.mxu0 0.0
        %491 = vmatpush1.xpose.msra.mxu0 0.0
        %492 = vmatprep.subr.mxu0 0.0
        %493 = vmatpush1.xpose.msra.mxu0 0.0
        %494 = vmatprep.subr.mxu0 0.0
        %495 = vmatpush1.xpose.msra.mxu0 0.0
        %496 = vmatprep.subr.mxu0 0.0
        %497 = vmatpush1.xpose.msra.mxu0 0.0
        %498 = vmatprep.subr.mxu0 0.0
        %499 = vmatpush1.xpose.msra.mxu0 0.0
        %500 = vmatprep.subr.mxu0 0.0
        %501 = vmatpush1.xpose.msra.mxu0 0.0
        %502 = vmatprep.subr.mxu0 0.0
        %503 = vmatpush1.xpose.msra.mxu0 0.0
        %504 = vmatprep.subr.mxu0 0.0
        %505 = vmatpush1.xpose.msra.mxu0 0.0
        %506 = vmatprep.mubr.f32.mxu0 0.0
        %507 = vmatmul.mubr.f32.gmra.mrb[0].mxu0 %v438
        %v508 = vpop.f32.mrb[0].mxu0
        %v509 = vadd.f32 %v435, %v508
        %v510 = vpop.f32.mrb[0].mxu0
        %511 = vdwg.mxu0
        %v512 = vsel %vm437, %v509, -inf
        %513 = vmax.xlane.f32.xlu0 %v512
        %v514 = vpop.xlane.xlu0 %513
        %v515 = vsub.f32 %v509, %v514
        %v516 = vmul.f32 %v515, 1.442695
        %v517 = vpow.pop %v516
        %v518 = vsel %vm437, %v517, 0.0
        %519 = vadd.xlane.f32.xlu0 %v518
        %v520 = vpop.xlane.xlu0 %519
        %v521 = vrcp.pop %v520
        %v522 = vmul.f32 %v517, %v521
        %523 = vrot.lane.b32.xlu0 %v428, 64
        %v524 = vpop.permute.xlu0 %523
        %v527 = vsel %vm437, %v522, 0
        %529 = vmatprep.subr.mxu0 0.0
        %530 = vmatpush1.msra.mxu0 %v524
        %531 = vmatprep.subr.mxu0 0.0
        %532 = vmatpush1.msra.mxu0 0.0
        %533 = vmatprep.subr.mxu0 0.0
        %534 = vmatpush1.msra.mxu0 0.0
        %535 = vmatprep.subr.mxu0 0.0
        %536 = vmatpush1.msra.mxu0 0.0
        %537 = vmatprep.subr.mxu0 0.0
        %538 = vmatpush1.msra.mxu0 0.0
        %539 = vmatprep.subr.mxu0 0.0
        %540 = vmatpush1.msra.mxu0 0.0
        %541 = vmatprep.subr.mxu0 0.0
        %542 = vmatpush1.msra.mxu0 0.0
        %543 = vmatprep.subr.mxu0 0.0
        %544 = vmatpush1.msra.mxu0 0.0
        %545 = vmatprep.subr.mxu0 0.0
        %546 = vmatpush1.msra.mxu0 0.0
        %547 = vmatprep.subr.mxu0 0.0
        %548 = vmatpush1.msra.mxu0 0.0
        %549 = vmatprep.subr.mxu0 0.0
        %550 = vmatpush1.msra.mxu0 0.0
        %551 = vmatprep.subr.mxu0 0.0
        %552 = vmatpush1.msra.mxu0 0.0
        %553 = vmatprep.subr.mxu0 0.0
        %554 = vmatpush1.msra.mxu0 0.0
        %555 = vmatprep.subr.mxu0 0.0
        %556 = vmatpush1.msra.mxu0 0.0
        %557 = vmatprep.subr.mxu0 0.0
        %558 = vmatpush1.msra.mxu0 0.0
        %559 = vmatprep.subr.mxu0 0.0
        %560 = vmatpush1.msra.mxu0 0.0
        %561 = vmatprep.subr.mxu0 0.0
        %562 = vmatpush1.msra.mxu0 0.0
        %563 = vmatprep.subr.mxu0 0.0
        %564 = vmatpush1.msra.mxu0 0.0
        %565 = vmatprep.subr.mxu0 0.0
        %566 = vmatpush1.msra.mxu0 0.0
        %567 = vmatprep.subr.mxu0 0.0
        %568 = vmatpush1.msra.mxu0 0.0
        %569 = vmatprep.subr.mxu0 0.0
        %570 = vmatpush1.msra.mxu0 0.0
        %571 = vmatprep.subr.mxu0 0.0
        %572 = vmatpush1.msra.mxu0 0.0
        %573 = vmatprep.subr.mxu0 0.0
        %574 = vmatpush1.msra.mxu0 0.0
        %575 = vmatprep.subr.mxu0 0.0
        %576 = vmatpush1.msra.mxu0 0.0
        %577 = vmatprep.subr.mxu0 0.0
        %578 = vmatpush1.msra.mxu0 0.0
        %579 = vmatprep.subr.mxu0 0.0
        %580 = vmatpush1.msra.mxu0 0.0
        %581 = vmatprep.subr.mxu0 0.0
        %582 = vmatpush1.msra.mxu0 0.0
        %583 = vmatprep.subr.mxu0 0.0
        %584 = vmatpush1.msra.mxu0 0.0
        %585 = vmatprep.subr.mxu0 0.0
        %586 = vmatpush1.msra.mxu0 0.0
        %587 = vmatprep.subr.mxu0 0.0
        %588 = vmatpush1.msra.mxu0 0.0
        %589 = vmatprep.subr.mxu0 0.0
        %590 = vmatpush1.msra.mxu0 0.0
        %591 = vmatprep.subr.mxu0 0.0
        %592 = vmatpush1.msra.mxu0 0.0
        %593 = vmatprep.mubr.f32.mxu0 0.0
        %594 = vmatmul.mubr.f32.gmra.mrb[0].mxu0 %v527
        %v595 = vpop.f32.mrb[0].mxu0
        %v596 = vadd.f32 0.0, %v595
        %v597 = vpop.f32.mrb[0].mxu0
        %598 = vdwg.mxu0
        %v599 = vld [vmem:[#allocation7 + $0x60] sm:$0xff]
        %600 = vrot.lane.b32.xlu0 %v428, 120
        %v601 = vpop.permute.xlu0 %600
        %602 = vrot.lane.b32.xlu0 %v428, 88
        %v603 = vpop.permute.xlu0 %602
        %v604 = vsel %vm437, %v601, 0
        %v606 = vsel %vm437, %v603, 0
        %608 = vmatprep.subr.mxu0 0.0
        %609 = vmatpush1.xpose.msra.mxu0 %v606
        %610 = vmatprep.subr.mxu0 0.0
        %611 = vmatpush1.xpose.msra.mxu0 0.0
        %612 = vmatprep.subr.mxu0 0.0
        %613 = vmatpush1.xpose.msra.mxu0 0.0
        %614 = vmatprep.subr.mxu0 0.0
        %615 = vmatpush1.xpose.msra.mxu0 0.0
        %616 = vmatprep.subr.mxu0 0.0
        %617 = vmatpush1.xpose.msra.mxu0 0.0
        %618 = vmatprep.subr.mxu0 0.0
        %619 = vmatpush1.xpose.msra.mxu0 0.0
        %620 = vmatprep.subr.mxu0 0.0
        %621 = vmatpush1.xpose.msra.mxu0 0.0
        %622 = vmatprep.subr.mxu0 0.0
        %623 = vmatpush1.xpose.msra.mxu0 0.0
        %624 = vmatprep.subr.mxu0 0.0
        %625 = vmatpush1.xpose.msra.mxu0 0.0
        %626 = vmatprep.subr.mxu0 0.0
        %627 = vmatpush1.xpose.msra.mxu0 0.0
        %628 = vmatprep.subr.mxu0 0.0
        %629 = vmatpush1.xpose.msra.mxu0 0.0
        %630 = vmatprep.subr.mxu0 0.0
        %631 = vmatpush1.xpose.msra.mxu0 0.0
        %632 = vmatprep.subr.mxu0 0.0
        %633 = vmatpush1.xpose.msra.mxu0 0.0
        %634 = vmatprep.subr.mxu0 0.0
        %635 = vmatpush1.xpose.msra.mxu0 0.0
        %636 = vmatprep.subr.mxu0 0.0
        %637 = vmatpush1.xpose.msra.mxu0 0.0
        %638 = vmatprep.subr.mxu0 0.0
        %639 = vmatpush1.xpose.msra.mxu0 0.0
        %640 = vmatprep.subr.mxu0 0.0
        %641 = vmatpush1.xpose.msra.mxu0 0.0
        %642 = vmatprep.subr.mxu0 0.0
        %643 = vmatpush1.xpose.msra.mxu0 0.0
        %644 = vmatprep.subr.mxu0 0.0
        %645 = vmatpush1.xpose.msra.mxu0 0.0
        %646 = vmatprep.subr.mxu0 0.0
        %647 = vmatpush1.xpose.msra.mxu0 0.0
        %648 = vmatprep.subr.mxu0 0.0
        %649 = vmatpush1.xpose.msra.mxu0 0.0
        %650 = vmatprep.subr.mxu0 0.0
        %651 = vmatpush1.xpose.msra.mxu0 0.0
        %652 = vmatprep.subr.mxu0 0.0
        %653 = vmatpush1.xpose.msra.mxu0 0.0
        %654 = vmatprep.subr.mxu0 0.0
        %655 = vmatpush1.xpose.msra.mxu0 0.0
        %656 = vmatprep.subr.mxu0 0.0
        %657 = vmatpush1.xpose.msra.mxu0 0.0
        %658 = vmatprep.subr.mxu0 0.0
        %659 = vmatpush1.xpose.msra.mxu0 0.0
        %660 = vmatprep.subr.mxu0 0.0
        %661 = vmatpush1.xpose.msra.mxu0 0.0
        %662 = vmatprep.subr.mxu0 0.0
        %663 = vmatpush1.xpose.msra.mxu0 0.0
        %664 = vmatprep.subr.mxu0 0.0
        %665 = vmatpush1.xpose.msra.mxu0 0.0
        %666 = vmatprep.subr.mxu0 0.0
        %667 = vmatpush1.xpose.msra.mxu0 0.0
        %668 = vmatprep.subr.mxu0 0.0
        %669 = vmatpush1.xpose.msra.mxu0 0.0
        %670 = vmatprep.subr.mxu0 0.0
        %671 = vmatpush1.xpose.msra.mxu0 0.0
        %672 = vmatprep.mubr.f32.mxu0 0.0
        %673 = vmatmul.mubr.f32.gmra.mrb[0].mxu0 %v604
        %v674 = vpop.f32.mrb[0].mxu0
        %v675 = vadd.f32 %v435, %v674
        %v676 = vpop.f32.mrb[0].mxu0
        %677 = vdwg.mxu0
        %v678 = vsel %vm437, %v675, -inf
        %679 = vmax.xlane.f32.xlu0 %v678
        %v680 = vpop.xlane.xlu0 %679
        %v681 = vsub.f32 %v675, %v680
        %v682 = vmul.f32 %v681, 1.442695
        %v683 = vpow.pop %v682
        %v684 = vsel %vm437, %v683, 0.0
        %685 = vadd.xlane.f32.xlu0 %v684
        %v686 = vpop.xlane.xlu0 %685
        %v687 = vrcp.pop %v686
        %v688 = vmul.f32 %v683, %v687
        %689 = vrot.lane.b32.xlu0 %v428, 56
        %v690 = vpop.permute.xlu0 %689
        %v693 = vsel %vm437, %v688, 0
        %695 = vmatprep.subr.mxu0 0.0
        %696 = vmatpush1.msra.mxu0 %v690
        %697 = vmatprep.subr.mxu0 0.0
        %698 = vmatpush1.msra.mxu0 0.0
        %699 = vmatprep.subr.mxu0 0.0
        %700 = vmatpush1.msra.mxu0 0.0
        %701 = vmatprep.subr.mxu0 0.0
        %702 = vmatpush1.msra.mxu0 0.0
        %703 = vmatprep.subr.mxu0 0.0
        %704 = vmatpush1.msra.mxu0 0.0
        %705 = vmatprep.subr.mxu0 0.0
        %706 = vmatpush1.msra.mxu0 0.0
        %707 = vmatprep.subr.mxu0 0.0
        %708 = vmatpush1.msra.mxu0 0.0
        %709 = vmatprep.subr.mxu0 0.0
        %710 = vmatpush1.msra.mxu0 0.0
        %711 = vmatprep.subr.mxu0 0.0
        %712 = vmatpush1.msra.mxu0 0.0
        %713 = vmatprep.subr.mxu0 0.0
        %714 = vmatpush1.msra.mxu0 0.0
        %715 = vmatprep.subr.mxu0 0.0
        %716 = vmatpush1.msra.mxu0 0.0
        %717 = vmatprep.subr.mxu0 0.0
        %718 = vmatpush1.msra.mxu0 0.0
        %719 = vmatprep.subr.mxu0 0.0
        %720 = vmatpush1.msra.mxu0 0.0
        %721 = vmatprep.subr.mxu0 0.0
        %722 = vmatpush1.msra.mxu0 0.0
        %723 = vmatprep.subr.mxu0 0.0
        %724 = vmatpush1.msra.mxu0 0.0
        %725 = vmatprep.subr.mxu0 0.0
        %726 = vmatpush1.msra.mxu0 0.0
        %727 = vmatprep.subr.mxu0 0.0
        %728 = vmatpush1.msra.mxu0 0.0
        %729 = vmatprep.subr.mxu0 0.0
        %730 = vmatpush1.msra.mxu0 0.0
        %731 = vmatprep.subr.mxu0 0.0
        %732 = vmatpush1.msra.mxu0 0.0
        %733 = vmatprep.subr.mxu0 0.0
        %734 = vmatpush1.msra.mxu0 0.0
        %735 = vmatprep.subr.mxu0 0.0
        %736 = vmatpush1.msra.mxu0 0.0
        %737 = vmatprep.subr.mxu0 0.0
        %738 = vmatpush1.msra.mxu0 0.0
        %739 = vmatprep.subr.mxu0 0.0
        %740 = vmatpush1.msra.mxu0 0.0
        %741 = vmatprep.subr.mxu0 0.0
        %742 = vmatpush1.msra.mxu0 0.0
        %743 = vmatprep.subr.mxu0 0.0
        %744 = vmatpush1.msra.mxu0 0.0
        %745 = vmatprep.subr.mxu0 0.0
        %746 = vmatpush1.msra.mxu0 0.0
        %747 = vmatprep.subr.mxu0 0.0
        %748 = vmatpush1.msra.mxu0 0.0
        %749 = vmatprep.subr.mxu0 0.0
        %750 = vmatpush1.msra.mxu0 0.0
        %751 = vmatprep.subr.mxu0 0.0
        %752 = vmatpush1.msra.mxu0 0.0
        %753 = vmatprep.subr.mxu0 0.0
        %754 = vmatpush1.msra.mxu0 0.0
        %755 = vmatprep.subr.mxu0 0.0
        %756 = vmatpush1.msra.mxu0 0.0
        %757 = vmatprep.subr.mxu0 0.0
        %758 = vmatpush1.msra.mxu0 0.0
        %759 = vmatprep.mubr.f32.mxu0 0.0
        %760 = vmatmul.mubr.f32.gmra.mrb[0].mxu0 %v693
        %v761 = vpop.f32.mrb[0].mxu0
        %v762 = vadd.f32 0.0, %v761
        %v763 = vpop.f32.mrb[0].mxu0
        %764 = vdwg.mxu0
        %v765 = vld [vmem:[#allocation7 + $0x68] sm:$0xff]
        %v767 = vsel %vm437, %v762, 0
        %769 = vmatprep.subr.mxu0 0.0
        %770 = vmatpush1.msra.mxu0 %v765
        %771 = vmatprep.subr.mxu0 0.0
        %772 = vmatpush1.msra.mxu0 0.0
        %773 = vmatprep.subr.mxu0 0.0
        %774 = vmatpush1.msra.mxu0 0.0
        %775 = vmatprep.subr.mxu0 0.0
        %776 = vmatpush1.msra.mxu0 0.0
        %777 = vmatprep.subr.mxu0 0.0
        %778 = vmatpush1.msra.mxu0 0.0
        %779 = vmatprep.subr.mxu0 0.0
        %780 = vmatpush1.msra.mxu0 0.0
        %781 = vmatprep.subr.mxu0 0.0
        %782 = vmatpush1.msra.mxu0 0.0
        %783 = vmatprep.subr.mxu0 0.0
        %784 = vmatpush1.msra.mxu0 0.0
        %785 = vmatprep.subr.mxu0 0.0
        %786 = vmatpush1.msra.mxu0 0.0
        %787 = vmatprep.subr.mxu0 0.0
        %788 = vmatpush1.msra.mxu0 0.0
        %789 = vmatprep.subr.mxu0 0.0
        %790 = vmatpush1.msra.mxu0 0.0
        %791 = vmatprep.subr.mxu0 0.0
        %792 = vmatpush1.msra.mxu0 0.0
        %793 = vmatprep.subr.mxu0 0.0
        %794 = vmatpush1.msra.mxu0 0.0
        %795 = vmatprep.subr.mxu0 0.0
        %796 = vmatpush1.msra.mxu0 0.0
        %797 = vmatprep.subr.mxu0 0.0
        %798 = vmatpush1.msra.mxu0 0.0
        %799 = vmatprep.subr.mxu0 0.0
        %800 = vmatpush1.msra.mxu0 0.0
        %801 = vmatprep.subr.mxu0 0.0
        %802 = vmatpush1.msra.mxu0 0.0
        %803 = vmatprep.subr.mxu0 0.0
        %804 = vmatpush1.msra.mxu0 0.0
        %805 = vmatprep.subr.mxu0 0.0
        %806 = vmatpush1.msra.mxu0 0.0
        %807 = vmatprep.subr.mxu0 0.0
        %808 = vmatpush1.msra.mxu0 0.0
        %809 = vmatprep.subr.mxu0 0.0
        %810 = vmatpush1.msra.mxu0 0.0
        %811 = vmatprep.subr.mxu0 0.0
        %812 = vmatpush1.msra.mxu0 0.0
        %813 = vmatprep.subr.mxu0 0.0
        %814 = vmatpush1.msra.mxu0 0.0
        %815 = vmatprep.subr.mxu0 0.0
        %816 = vmatpush1.msra.mxu0 0.0
        %817 = vmatprep.subr.mxu0 0.0
        %818 = vmatpush1.msra.mxu0 0.0
        %819 = vmatprep.subr.mxu0 0.0
        %820 = vmatpush1.msra.mxu0 0.0
        %821 = vmatprep.subr.mxu0 0.0
        %822 = vmatpush1.msra.mxu0 0.0
        %823 = vmatprep.subr.mxu0 0.0
        %824 = vmatpush1.msra.mxu0 0.0
        %825 = vmatprep.subr.mxu0 0.0
        %826 = vmatpush1.msra.mxu0 0.0
        %827 = vmatprep.subr.mxu0 0.0
        %828 = vmatpush1.msra.mxu0 0.0
        %829 = vmatprep.subr.mxu0 0.0
        %830 = vmatpush1.msra.mxu0 0.0
        %831 = vmatprep.subr.mxu0 0.0
        %832 = vmatpush1.msra.mxu0 0.0
        %833 = vmatprep.mubr.f32.mxu0 0.0
        %834 = vmatmul.mubr.f32.gmra.mrb[0].mxu0 %v767
        %v835 = vpop.f32.mrb[0].mxu0
        %v836 = vadd.f32 0.0, %v835
        %v837 = vpop.f32.mrb[0].mxu0
        %838 = vdwg.mxu0
        %v840 = vsel %vm437, %v596, 0
        %842 = vmatprep.subr.mxu0 0.0
        %843 = vmatpush1.msra.mxu0 %v599
        %844 = vmatprep.subr.mxu0 0.0
        %845 = vmatpush1.msra.mxu0 0.0
        %846 = vmatprep.subr.mxu0 0.0
        %847 = vmatpush1.msra.mxu0 0.0
        %848 = vmatprep.subr.mxu0 0.0
        %849 = vmatpush1.msra.mxu0 0.0
        %850 = vmatprep.subr.mxu0 0.0
        %851 = vmatpush1.msra.mxu0 0.0
        %852 = vmatprep.subr.mxu0 0.0
        %853 = vmatpush1.msra.mxu0 0.0
        %854 = vmatprep.subr.mxu0 0.0
        %855 = vmatpush1.msra.mxu0 0.0
        %856 = vmatprep.subr.mxu0 0.0
        %857 = vmatpush1.msra.mxu0 0.0
        %858 = vmatprep.subr.mxu0 0.0
        %859 = vmatpush1.msra.mxu0 0.0
        %860 = vmatprep.subr.mxu0 0.0
        %861 = vmatpush1.msra.mxu0 0.0
        %862 = vmatprep.subr.mxu0 0.0
        %863 = vmatpush1.msra.mxu0 0.0
        %864 = vmatprep.subr.mxu0 0.0
        %865 = vmatpush1.msra.mxu0 0.0
        %866 = vmatprep.subr.mxu0 0.0
        %867 = vmatpush1.msra.mxu0 0.0
        %868 = vmatprep.subr.mxu0 0.0
        %869 = vmatpush1.msra.mxu0 0.0
        %870 = vmatprep.subr.mxu0 0.0
        %871 = vmatpush1.msra.mxu0 0.0
        %872 = vmatprep.subr.mxu0 0.0
        %873 = vmatpush1.msra.mxu0 0.0
        %874 = vmatprep.subr.mxu0 0.0
        %875 = vmatpush1.msra.mxu0 0.0
        %876 = vmatprep.subr.mxu0 0.0
        %877 = vmatpush1.msra.mxu0 0.0
        %878 = vmatprep.subr.mxu0 0.0
        %879 = vmatpush1.msra.mxu0 0.0
        %880 = vmatprep.subr.mxu0 0.0
        %881 = vmatpush1.msra.mxu0 0.0
        %882 = vmatprep.subr.mxu0 0.0
        %883 = vmatpush1.msra.mxu0 0.0
        %884 = vmatprep.subr.mxu0 0.0
        %885 = vmatpush1.msra.mxu0 0.0
        %886 = vmatprep.subr.mxu0 0.0
        %887 = vmatpush1.msra.mxu0 0.0
        %888 = vmatprep.subr.mxu0 0.0
        %889 = vmatpush1.msra.mxu0 0.0
        %890 = vmatprep.subr.mxu0 0.0
        %891 = vmatpush1.msra.mxu0 0.0
        %892 = vmatprep.subr.mxu0 0.0
        %893 = vmatpush1.msra.mxu0 0.0
        %894 = vmatprep.subr.mxu0 0.0
        %895 = vmatpush1.msra.mxu0 0.0
        %896 = vmatprep.subr.mxu0 0.0
        %897 = vmatpush1.msra.mxu0 0.0
        %898 = vmatprep.subr.mxu0 0.0
        %899 = vmatpush1.msra.mxu0 0.0
        %900 = vmatprep.subr.mxu0 0.0
        %901 = vmatpush1.msra.mxu0 0.0
        %902 = vmatprep.subr.mxu0 0.0
        %903 = vmatpush1.msra.mxu0 0.0
        %904 = vmatprep.subr.mxu0 0.0
        %905 = vmatpush1.msra.mxu0 0.0
        %906 = vmatprep.mubr.f32.mxu0 0.0
        %907 = vmatmul.mubr.f32.gmra.mrb[0].mxu0 %v840
        %v908 = vpop.f32.mrb[0].mxu0
        %v909 = vadd.f32 %v836, %v908
        %v910 = vpop.f32.mrb[0].mxu0
        %911 = vdwg.mxu0
        %912 = vrot.lane.b32.xlu0 %v428, 112
        %v913 = vpop.permute.xlu0 %912
        %914 = vrot.lane.b32.xlu0 %v428, 80
        %v915 = vpop.permute.xlu0 %914
        %v916 = vsel %vm437, %v913, 0
        %v918 = vsel %vm437, %v915, 0
        %920 = vmatprep.subr.mxu0 0.0
        %921 = vmatpush1.xpose.msra.mxu0 %v918
        %922 = vmatprep.subr.mxu0 0.0
        %923 = vmatpush1.xpose.msra.mxu0 0.0
        %924 = vmatprep.subr.mxu0 0.0
        %925 = vmatpush1.xpose.msra.mxu0 0.0
        %926 = vmatprep.subr.mxu0 0.0
        %927 = vmatpush1.xpose.msra.mxu0 0.0
        %928 = vmatprep.subr.mxu0 0.0
        %929 = vmatpush1.xpose.msra.mxu0 0.0
        %930 = vmatprep.subr.mxu0 0.0
        %931 = vmatpush1.xpose.msra.mxu0 0.0
        %932 = vmatprep.subr.mxu0 0.0
        %933 = vmatpush1.xpose.msra.mxu0 0.0
        %934 = vmatprep.subr.mxu0 0.0
        %935 = vmatpush1.xpose.msra.mxu0 0.0
        %936 = vmatprep.subr.mxu0 0.0
        %937 = vmatpush1.xpose.msra.mxu0 0.0
        %938 = vmatprep.subr.mxu0 0.0
        %939 = vmatpush1.xpose.msra.mxu0 0.0
        %940 = vmatprep.subr.mxu0 0.0
        %941 = vmatpush1.xpose.msra.mxu0 0.0
        %942 = vmatprep.subr.mxu0 0.0
        %943 = vmatpush1.xpose.msra.mxu0 0.0
        %944 = vmatprep.subr.mxu0 0.0
        %945 = vmatpush1.xpose.msra.mxu0 0.0
        %946 = vmatprep.subr.mxu0 0.0
        %947 = vmatpush1.xpose.msra.mxu0 0.0
        %948 = vmatprep.subr.mxu0 0.0
        %949 = vmatpush1.xpose.msra.mxu0 0.0
        %950 = vmatprep.subr.mxu0 0.0
        %951 = vmatpush1.xpose.msra.mxu0 0.0
        %952 = vmatprep.subr.mxu0 0.0
        %953 = vmatpush1.xpose.msra.mxu0 0.0
        %954 = vmatprep.subr.mxu0 0.0
        %955 = vmatpush1.xpose.msra.mxu0 0.0
        %956 = vmatprep.subr.mxu0 0.0
        %957 = vmatpush1.xpose.msra.mxu0 0.0
        %958 = vmatprep.subr.mxu0 0.0
        %959 = vmatpush1.xpose.msra.mxu0 0.0
        %960 = vmatprep.subr.mxu0 0.0
        %961 = vmatpush1.xpose.msra.mxu0 0.0
        %962 = vmatprep.subr.mxu0 0.0
        %963 = vmatpush1.xpose.msra.mxu0 0.0
        %964 = vmatprep.subr.mxu0 0.0
        %965 = vmatpush1.xpose.msra.mxu0 0.0
        %966 = vmatprep.subr.mxu0 0.0
        %967 = vmatpush1.xpose.msra.mxu0 0.0
        %968 = vmatprep.subr.mxu0 0.0
        %969 = vmatpush1.xpose.msra.mxu0 0.0
        %970 = vmatprep.subr.mxu0 0.0
        %971 = vmatpush1.xpose.msra.mxu0 0.0
        %972 = vmatprep.subr.mxu0 0.0
        %973 = vmatpush1.xpose.msra.mxu0 0.0
        %974 = vmatprep.subr.mxu0 0.0
        %975 = vmatpush1.xpose.msra.mxu0 0.0
        %976 = vmatprep.subr.mxu0 0.0
        %977 = vmatpush1.xpose.msra.mxu0 0.0
        %978 = vmatprep.subr.mxu0 0.0
        %979 = vmatpush1.xpose.msra.mxu0 0.0
        %980 = vmatprep.subr.mxu0 0.0
        %981 = vmatpush1.xpose.msra.mxu0 0.0
        %982 = vmatprep.subr.mxu0 0.0
        %983 = vmatpush1.xpose.msra.mxu0 0.0
        %984 = vmatprep.mubr.f32.mxu0 0.0
        %985 = vmatmul.mubr.f32.gmra.mrb[0].mxu0 %v916
        %v986 = vpop.f32.mrb[0].mxu0
        %v987 = vadd.f32 %v435, %v986
        %v988 = vpop.f32.mrb[0].mxu0
        %989 = vdwg.mxu0
        %v990 = vsel %vm437, %v987, -inf
        %991 = vmax.xlane.f32.xlu0 %v990
        %v992 = vpop.xlane.xlu0 %991
        %v993 = vsub.f32 %v987, %v992
        %v994 = vmul.f32 %v993, 1.442695
        %v995 = vpow.pop %v994
        %v996 = vsel %vm437, %v995, 0.0
        %997 = vadd.xlane.f32.xlu0 %v996
        %v998 = vpop.xlane.xlu0 %997
        %v999 = vrcp.pop %v998
        %v1000 = vmul.f32 %v995, %v999
        %1001 = vrot.lane.b32.xlu0 %v428, 48
        %v1002 = vpop.permute.xlu0 %1001
        %v1005 = vsel %vm437, %v1000, 0
        %1007 = vmatprep.subr.mxu0 0.0
        %1008 = vmatpush1.msra.mxu0 %v1002
        %1009 = vmatprep.subr.mxu0 0.0
        %1010 = vmatpush1.msra.mxu0 0.0
        %1011 = vmatprep.subr.mxu0 0.0
        %1012 = vmatpush1.msra.mxu0 0.0
        %1013 = vmatprep.subr.mxu0 0.0
        %1014 = vmatpush1.msra.mxu0 0.0
        %1015 = vmatprep.subr.mxu0 0.0
        %1016 = vmatpush1.msra.mxu0 0.0
        %1017 = vmatprep.subr.mxu0 0.0
        %1018 = vmatpush1.msra.mxu0 0.0
        %1019 = vmatprep.subr.mxu0 0.0
        %1020 = vmatpush1.msra.mxu0 0.0
        %1021 = vmatprep.subr.mxu0 0.0
        %1022 = vmatpush1.msra.mxu0 0.0
        %1023 = vmatprep.subr.mxu0 0.0
        %1024 = vmatpush1.msra.mxu0 0.0
        %1025 = vmatprep.subr.mxu0 0.0
        %1026 = vmatpush1.msra.mxu0 0.0
        %1027 = vmatprep.subr.mxu0 0.0
        %1028 = vmatpush1.msra.mxu0 0.0
        %1029 = vmatprep.subr.mxu0 0.0
        %1030 = vmatpush1.msra.mxu0 0.0
        %1031 = vmatprep.subr.mxu0 0.0
        %1032 = vmatpush1.msra.mxu0 0.0
        %1033 = vmatprep.subr.mxu0 0.0
        %1034 = vmatpush1.msra.mxu0 0.0
        %1035 = vmatprep.subr.mxu0 0.0
        %1036 = vmatpush1.msra.mxu0 0.0
        %1037 = vmatprep.subr.mxu0 0.0
        %1038 = vmatpush1.msra.mxu0 0.0
        %1039 = vmatprep.subr.mxu0 0.0
        %1040 = vmatpush1.msra.mxu0 0.0
        %1041 = vmatprep.subr.mxu0 0.0
        %1042 = vmatpush1.msra.mxu0 0.0
        %1043 = vmatprep.subr.mxu0 0.0
        %1044 = vmatpush1.msra.mxu0 0.0
        %1045 = vmatprep.subr.mxu0 0.0
        %1046 = vmatpush1.msra.mxu0 0.0
        %1047 = vmatprep.subr.mxu0 0.0
        %1048 = vmatpush1.msra.mxu0 0.0
        %1049 = vmatprep.subr.mxu0 0.0
        %1050 = vmatpush1.msra.mxu0 0.0
        %1051 = vmatprep.subr.mxu0 0.0
        %1052 = vmatpush1.msra.mxu0 0.0
        %1053 = vmatprep.subr.mxu0 0.0
        %1054 = vmatpush1.msra.mxu0 0.0
        %1055 = vmatprep.subr.mxu0 0.0
        %1056 = vmatpush1.msra.mxu0 0.0
        %1057 = vmatprep.subr.mxu0 0.0
        %1058 = vmatpush1.msra.mxu0 0.0
        %1059 = vmatprep.subr.mxu0 0.0
        %1060 = vmatpush1.msra.mxu0 0.0
        %1061 = vmatprep.subr.mxu0 0.0
        %1062 = vmatpush1.msra.mxu0 0.0
        %1063 = vmatprep.subr.mxu0 0.0
        %1064 = vmatpush1.msra.mxu0 0.0
        %1065 = vmatprep.subr.mxu0 0.0
        %1066 = vmatpush1.msra.mxu0 0.0
        %1067 = vmatprep.subr.mxu0 0.0
        %1068 = vmatpush1.msra.mxu0 0.0
        %1069 = vmatprep.subr.mxu0 0.0
        %1070 = vmatpush1.msra.mxu0 0.0
        %1071 = vmatprep.mubr.f32.mxu0 0.0
        %1072 = vmatmul.mubr.f32.gmra.mrb[0].mxu0 %v1005
        %v1073 = vpop.f32.mrb[0].mxu0
        %v1074 = vadd.f32 0.0, %v1073
        %v1075 = vpop.f32.mrb[0].mxu0
        %1076 = vdwg.mxu0
        %v1077 = vld [vmem:[#allocation7 + $0x70] sm:$0xff]
        %v1079 = vsel %vm437, %v1074, 0
        %1081 = vmatprep.subr.mxu0 0.0
        %1082 = vmatpush1.msra.mxu0 %v1077
        %1083 = vmatprep.subr.mxu0 0.0
        %1084 = vmatpush1.msra.mxu0 0.0
        %1085 = vmatprep.subr.mxu0 0.0
        %1086 = vmatpush1.msra.mxu0 0.0
        %1087 = vmatprep.subr.mxu0 0.0
        %1088 = vmatpush1.msra.mxu0 0.0
        %1089 = vmatprep.subr.mxu0 0.0
        %1090 = vmatpush1.msra.mxu0 0.0
        %1091 = vmatprep.subr.mxu0 0.0
        %1092 = vmatpush1.msra.mxu0 0.0
        %1093 = vmatprep.subr.mxu0 0.0
        %1094 = vmatpush1.msra.mxu0 0.0
        %1095 = vmatprep.subr.mxu0 0.0
        %1096 = vmatpush1.msra.mxu0 0.0
        %1097 = vmatprep.subr.mxu0 0.0
        %1098 = vmatpush1.msra.mxu0 0.0
        %1099 = vmatprep.subr.mxu0 0.0
        %1100 = vmatpush1.msra.mxu0 0.0
        %1101 = vmatprep.subr.mxu0 0.0
        %1102 = vmatpush1.msra.mxu0 0.0
        %1103 = vmatprep.subr.mxu0 0.0
        %1104 = vmatpush1.msra.mxu0 0.0
        %1105 = vmatprep.subr.mxu0 0.0
        %1106 = vmatpush1.msra.mxu0 0.0
        %1107 = vmatprep.subr.mxu0 0.0
        %1108 = vmatpush1.msra.mxu0 0.0
        %1109 = vmatprep.subr.mxu0 0.0
        %1110 = vmatpush1.msra.mxu0 0.0
        %1111 = vmatprep.subr.mxu0 0.0
        %1112 = vmatpush1.msra.mxu0 0.0
        %1113 = vmatprep.subr.mxu0 0.0
        %1114 = vmatpush1.msra.mxu0 0.0
        %1115 = vmatprep.subr.mxu0 0.0
        %1116 = vmatpush1.msra.mxu0 0.0
        %1117 = vmatprep.subr.mxu0 0.0
        %1118 = vmatpush1.msra.mxu0 0.0
        %1119 = vmatprep.subr.mxu0 0.0
        %1120 = vmatpush1.msra.mxu0 0.0
        %1121 = vmatprep.subr.mxu0 0.0
        %1122 = vmatpush1.msra.mxu0 0.0
        %1123 = vmatprep.subr.mxu0 0.0
        %1124 = vmatpush1.msra.mxu0 0.0
        %1125 = vmatprep.subr.mxu0 0.0
        %1126 = vmatpush1.msra.mxu0 0.0
        %1127 = vmatprep.subr.mxu0 0.0
        %1128 = vmatpush1.msra.mxu0 0.0
        %1129 = vmatprep.subr.mxu0 0.0
        %1130 = vmatpush1.msra.mxu0 0.0
        %1131 = vmatprep.subr.mxu0 0.0
        %1132 = vmatpush1.msra.mxu0 0.0
        %1133 = vmatprep.subr.mxu0 0.0
        %1134 = vmatpush1.msra.mxu0 0.0
        %1135 = vmatprep.subr.mxu0 0.0
        %1136 = vmatpush1.msra.mxu0 0.0
        %1137 = vmatprep.subr.mxu0 0.0
        %1138 = vmatpush1.msra.mxu0 0.0
        %1139 = vmatprep.subr.mxu0 0.0
        %1140 = vmatpush1.msra.mxu0 0.0
        %1141 = vmatprep.subr.mxu0 0.0
        %1142 = vmatpush1.msra.mxu0 0.0
        %1143 = vmatprep.subr.mxu0 0.0
        %1144 = vmatpush1.msra.mxu0 0.0
        %1145 = vmatprep.mubr.f32.mxu0 0.0
        %1146 = vmatmul.mubr.f32.gmra.mrb[0].mxu0 %v1079
        %v1147 = vpop.f32.mrb[0].mxu0
        %v1148 = vadd.f32 0.0, %v1147
        %v1149 = vpop.f32.mrb[0].mxu0
        %1150 = vdwg.mxu0
        %v1151 = vadd.f32 %v909, %v1148
        %1152 = vrot.lane.b32.xlu0 %v428, 104
        %v1153 = vpop.permute.xlu0 %1152
        %1154 = vrot.lane.b32.xlu0 %v428, 72
        %v1155 = vpop.permute.xlu0 %1154
        %v1156 = vsel %vm437, %v1153, 0
        %v1158 = vsel %vm437, %v1155, 0
        %1160 = vmatprep.subr.mxu0 0.0
        %1161 = vmatpush1.xpose.msra.mxu0 %v1158
        %1162 = vmatprep.subr.mxu0 0.0
        %1163 = vmatpush1.xpose.msra.mxu0 0.0
        %1164 = vmatprep.subr.mxu0 0.0
        %1165 = vmatpush1.xpose.msra.mxu0 0.0
        %1166 = vmatprep.subr.mxu0 0.0
        %1167 = vmatpush1.xpose.msra.mxu0 0.0
        %1168 = vmatprep.subr.mxu0 0.0
        %1169 = vmatpush1.xpose.msra.mxu0 0.0
        %1170 = vmatprep.subr.mxu0 0.0
        %1171 = vmatpush1.xpose.msra.mxu0 0.0
        %1172 = vmatprep.subr.mxu0 0.0
        %1173 = vmatpush1.xpose.msra.mxu0 0.0
        %1174 = vmatprep.subr.mxu0 0.0
        %1175 = vmatpush1.xpose.msra.mxu0 0.0
        %1176 = vmatprep.subr.mxu0 0.0
        %1177 = vmatpush1.xpose.msra.mxu0 0.0
        %1178 = vmatprep.subr.mxu0 0.0
        %1179 = vmatpush1.xpose.msra.mxu0 0.0
        %1180 = vmatprep.subr.mxu0 0.0
        %1181 = vmatpush1.xpose.msra.mxu0 0.0
        %1182 = vmatprep.subr.mxu0 0.0
        %1183 = vmatpush1.xpose.msra.mxu0 0.0
        %1184 = vmatprep.subr.mxu0 0.0
        %1185 = vmatpush1.xpose.msra.mxu0 0.0
        %1186 = vmatprep.subr.mxu0 0.0
        %1187 = vmatpush1.xpose.msra.mxu0 0.0
        %1188 = vmatprep.subr.mxu0 0.0
        %1189 = vmatpush1.xpose.msra.mxu0 0.0
        %1190 = vmatprep.subr.mxu0 0.0
        %1191 = vmatpush1.xpose.msra.mxu0 0.0
        %1192 = vmatprep.subr.mxu0 0.0
        %1193 = vmatpush1.xpose.msra.mxu0 0.0
        %1194 = vmatprep.subr.mxu0 0.0
        %1195 = vmatpush1.xpose.msra.mxu0 0.0
        %1196 = vmatprep.subr.mxu0 0.0
        %1197 = vmatpush1.xpose.msra.mxu0 0.0
        %1198 = vmatprep.subr.mxu0 0.0
        %1199 = vmatpush1.xpose.msra.mxu0 0.0
        %1200 = vmatprep.subr.mxu0 0.0
        %1201 = vmatpush1.xpose.msra.mxu0 0.0
        %1202 = vmatprep.subr.mxu0 0.0
        %1203 = vmatpush1.xpose.msra.mxu0 0.0
        %1204 = vmatprep.subr.mxu0 0.0
        %1205 = vmatpush1.xpose.msra.mxu0 0.0
        %1206 = vmatprep.subr.mxu0 0.0
        %1207 = vmatpush1.xpose.msra.mxu0 0.0
        %1208 = vmatprep.subr.mxu0 0.0
        %1209 = vmatpush1.xpose.msra.mxu0 0.0
        %1210 = vmatprep.subr.mxu0 0.0
        %1211 = vmatpush1.xpose.msra.mxu0 0.0
        %1212 = vmatprep.subr.mxu0 0.0
        %1213 = vmatpush1.xpose.msra.mxu0 0.0
        %1214 = vmatprep.subr.mxu0 0.0
        %1215 = vmatpush1.xpose.msra.mxu0 0.0
        %1216 = vmatprep.subr.mxu0 0.0
        %1217 = vmatpush1.xpose.msra.mxu0 0.0
        %1218 = vmatprep.subr.mxu0 0.0
        %1219 = vmatpush1.xpose.msra.mxu0 0.0
        %1220 = vmatprep.subr.mxu0 0.0
        %1221 = vmatpush1.xpose.msra.mxu0 0.0
        %1222 = vmatprep.subr.mxu0 0.0
        %1223 = vmatpush1.xpose.msra.mxu0 0.0
        %1224 = vmatprep.mubr.f32.mxu0 0.0
        %1225 = vmatmul.mubr.f32.gmra.mrb[0].mxu0 %v1156
        %v1226 = vpop.f32.mrb[0].mxu0
        %v1227 = vadd.f32 %v435, %v1226
        %v1228 = vpop.f32.mrb[0].mxu0
        %1229 = vdwg.mxu0
        %v1230 = vsel %vm437, %v1227, -inf
        %1231 = vmax.xlane.f32.xlu0 %v1230
        %v1232 = vpop.xlane.xlu0 %1231
        %v1233 = vsub.f32 %v1227, %v1232
        %v1234 = vmul.f32 %v1233, 1.442695
        %v1235 = vpow.pop %v1234
        %v1236 = vsel %vm437, %v1235, 0.0
        %1237 = vadd.xlane.f32.xlu0 %v1236
        %v1238 = vpop.xlane.xlu0 %1237
        %v1239 = vrcp.pop %v1238
        %v1240 = vmul.f32 %v1235, %v1239
        %1241 = vrot.lane.b32.xlu0 %v428, 40
        %v1242 = vpop.permute.xlu0 %1241
        %v1245 = vsel %vm437, %v1240, 0
        %1247 = vmatprep.subr.mxu0 0.0
        %1248 = vmatpush1.msra.mxu0 %v1242
        %1249 = vmatprep.subr.mxu0 0.0
        %1250 = vmatpush1.msra.mxu0 0.0
        %1251 = vmatprep.subr.mxu0 0.0
        %1252 = vmatpush1.msra.mxu0 0.0
        %1253 = vmatprep.subr.mxu0 0.0
        %1254 = vmatpush1.msra.mxu0 0.0
        %1255 = vmatprep.subr.mxu0 0.0
        %1256 = vmatpush1.msra.mxu0 0.0
        %1257 = vmatprep.subr.mxu0 0.0
        %1258 = vmatpush1.msra.mxu0 0.0
        %1259 = vmatprep.subr.mxu0 0.0
        %1260 = vmatpush1.msra.mxu0 0.0
        %1261 = vmatprep.subr.mxu0 0.0
        %1262 = vmatpush1.msra.mxu0 0.0
        %1263 = vmatprep.subr.mxu0 0.0
        %1264 = vmatpush1.msra.mxu0 0.0
        %1265 = vmatprep.subr.mxu0 0.0
        %1266 = vmatpush1.msra.mxu0 0.0
        %1267 = vmatprep.subr.mxu0 0.0
        %1268 = vmatpush1.msra.mxu0 0.0
        %1269 = vmatprep.subr.mxu0 0.0
        %1270 = vmatpush1.msra.mxu0 0.0
        %1271 = vmatprep.subr.mxu0 0.0
        %1272 = vmatpush1.msra.mxu0 0.0
        %1273 = vmatprep.subr.mxu0 0.0
        %1274 = vmatpush1.msra.mxu0 0.0
        %1275 = vmatprep.subr.mxu0 0.0
        %1276 = vmatpush1.msra.mxu0 0.0
        %1277 = vmatprep.subr.mxu0 0.0
        %1278 = vmatpush1.msra.mxu0 0.0
        %1279 = vmatprep.subr.mxu0 0.0
        %1280 = vmatpush1.msra.mxu0 0.0
        %1281 = vmatprep.subr.mxu0 0.0
        %1282 = vmatpush1.msra.mxu0 0.0
        %1283 = vmatprep.subr.mxu0 0.0
        %1284 = vmatpush1.msra.mxu0 0.0
        %1285 = vmatprep.subr.mxu0 0.0
        %1286 = vmatpush1.msra.mxu0 0.0
        %1287 = vmatprep.subr.mxu0 0.0
        %1288 = vmatpush1.msra.mxu0 0.0
        %1289 = vmatprep.subr.mxu0 0.0
        %1290 = vmatpush1.msra.mxu0 0.0
        %1291 = vmatprep.subr.mxu0 0.0
        %1292 = vmatpush1.msra.mxu0 0.0
        %1293 = vmatprep.subr.mxu0 0.0
        %1294 = vmatpush1.msra.mxu0 0.0
        %1295 = vmatprep.subr.mxu0 0.0
        %1296 = vmatpush1.msra.mxu0 0.0
        %1297 = vmatprep.subr.mxu0 0.0
        %1298 = vmatpush1.msra.mxu0 0.0
        %1299 = vmatprep.subr.mxu0 0.0
        %1300 = vmatpush1.msra.mxu0 0.0
        %1301 = vmatprep.subr.mxu0 0.0
        %1302 = vmatpush1.msra.mxu0 0.0
        %1303 = vmatprep.subr.mxu0 0.0
        %1304 = vmatpush1.msra.mxu0 0.0
        %1305 = vmatprep.subr.mxu0 0.0
        %1306 = vmatpush1.msra.mxu0 0.0
        %1307 = vmatprep.subr.mxu0 0.0
        %1308 = vmatpush1.msra.mxu0 0.0
        %1309 = vmatprep.subr.mxu0 0.0
        %1310 = vmatpush1.msra.mxu0 0.0
        %1311 = vmatprep.mubr.f32.mxu0 0.0
        %1312 = vmatmul.mubr.f32.gmra.mrb[0].mxu0 %v1245
        %v1313 = vpop.f32.mrb[0].mxu0
        %v1314 = vadd.f32 0.0, %v1313
        %v1315 = vpop.f32.mrb[0].mxu0
        %1316 = vdwg.mxu0
        %v1317 = vld [vmem:[#allocation7 + $0x78] sm:$0xff]
        %v1319 = vsel %vm437, %v1314, 0
        %1321 = vmatprep.subr.mxu0 0.0
        %1322 = vmatpush1.msra.mxu0 %v1317
        %1323 = vmatprep.subr.mxu0 0.0
        %1324 = vmatpush1.msra.mxu0 0.0
        %1325 = vmatprep.subr.mxu0 0.0
        %1326 = vmatpush1.msra.mxu0 0.0
        %1327 = vmatprep.subr.mxu0 0.0
        %1328 = vmatpush1.msra.mxu0 0.0
        %1329 = vmatprep.subr.mxu0 0.0
        %1330 = vmatpush1.msra.mxu0 0.0
        %1331 = vmatprep.subr.mxu0 0.0
        %1332 = vmatpush1.msra.mxu0 0.0
        %1333 = vmatprep.subr.mxu0 0.0
        %1334 = vmatpush1.msra.mxu0 0.0
        %1335 = vmatprep.subr.mxu0 0.0
        %1336 = vmatpush1.msra.mxu0 0.0
        %1337 = vmatprep.subr.mxu0 0.0
        %1338 = vmatpush1.msra.mxu0 0.0
        %1339 = vmatprep.subr.mxu0 0.0
        %1340 = vmatpush1.msra.mxu0 0.0
        %1341 = vmatprep.subr.mxu0 0.0
        %1342 = vmatpush1.msra.mxu0 0.0
        %1343 = vmatprep.subr.mxu0 0.0
        %1344 = vmatpush1.msra.mxu0 0.0
        %1345 = vmatprep.subr.mxu0 0.0
        %1346 = vmatpush1.msra.mxu0 0.0
        %1347 = vmatprep.subr.mxu0 0.0
        %1348 = vmatpush1.msra.mxu0 0.0
        %1349 = vmatprep.subr.mxu0 0.0
        %1350 = vmatpush1.msra.mxu0 0.0
        %1351 = vmatprep.subr.mxu0 0.0
        %1352 = vmatpush1.msra.mxu0 0.0
        %1353 = vmatprep.subr.mxu0 0.0
        %1354 = vmatpush1.msra.mxu0 0.0
        %1355 = vmatprep.subr.mxu0 0.0
        %1356 = vmatpush1.msra.mxu0 0.0
        %1357 = vmatprep.subr.mxu0 0.0
        %1358 = vmatpush1.msra.mxu0 0.0
        %1359 = vmatprep.subr.mxu0 0.0
        %1360 = vmatpush1.msra.mxu0 0.0
        %1361 = vmatprep.subr.mxu0 0.0
        %1362 = vmatpush1.msra.mxu0 0.0
        %1363 = vmatprep.subr.mxu0 0.0
        %1364 = vmatpush1.msra.mxu0 0.0
        %1365 = vmatprep.subr.mxu0 0.0
        %1366 = vmatpush1.msra.mxu0 0.0
        %1367 = vmatprep.subr.mxu0 0.0
        %1368 = vmatpush1.msra.mxu0 0.0
        %1369 = vmatprep.subr.mxu0 0.0
        %1370 = vmatpush1.msra.mxu0 0.0
        %1371 = vmatprep.subr.mxu0 0.0
        %1372 = vmatpush1.msra.mxu0 0.0
        %1373 = vmatprep.subr.mxu0 0.0
        %1374 = vmatpush1.msra.mxu0 0.0
        %1375 = vmatprep.subr.mxu0 0.0
        %1376 = vmatpush1.msra.mxu0 0.0
        %1377 = vmatprep.subr.mxu0 0.0
        %1378 = vmatpush1.msra.mxu0 0.0
        %1379 = vmatprep.subr.mxu0 0.0
        %1380 = vmatpush1.msra.mxu0 0.0
        %1381 = vmatprep.subr.mxu0 0.0
        %1382 = vmatpush1.msra.mxu0 0.0
        %1383 = vmatprep.subr.mxu0 0.0
        %1384 = vmatpush1.msra.mxu0 0.0
        %1385 = vmatprep.mubr.f32.mxu0 0.0
        %1386 = vmatmul.mubr.f32.gmra.mrb[0].mxu0 %v1319
        %v1387 = vpop.f32.mrb[0].mxu0
        %v1388 = vadd.f32 0.0, %v1387
        %v1389 = vpop.f32.mrb[0].mxu0
        %1390 = vdwg.mxu0
        %v1391 = vadd.f32 %v1151, %v1388
        %v1392 = vadd.f32 %v317, %v1391
        %v1393 = vld [vmem:[#allocation7 + $0x80] sm:$0x1]
        %v1394 = vld [vmem:[#allocation7 + $0x81] sm:$0x1]
        %v1395 = vsel %vm246, %v1392, 0.0
        %1396 = vadd.xlane.f32.xlu0 %v1395
        %v1397 = vpop.xlane.xlu0 %1396
        %v1398 = vmul.f32 %v1397, %v325
        %v1399 = vsub.f32 %v1392, %v1398
        %v1400 = vmul.f32 %v1399, %v1399
        %v1401 = vsel %vm246, %v1400, 0.0
        %1402 = vadd.xlane.f32.xlu0 %v1401
        %v1403 = vpop.xlane.xlu0 %1402
        %v1404 = vmul.f32 %v1403, %v332
        %v1405 = vlaneseq
        %v1406 = vshrl.u32 %v1405, 7
        %v1407 = vsub.s32 0, %v1406
        %v1408 = vrot.slane %v1393, %v1407
        %v1409 = vmul.f32 %v1408, %v1399
        %v1410 = vrsqrt.pop %v1404
        %v1411 = vmul.f32 %v1404, %v1410
        %vm1412 = vcmp.eq.f32.partialorder %v1404, inf
        %v1413 = vsel %vm1412, %v1404, %v1411
        %vm1414 = vcmp.eq.f32.partialorder %v1404, 0.0
        %v1415 = vand.u32 %v1404, 2147483648
        %v1416 = vsel %vm1414, %v1415, %v1413
        %v1417 = vadd.f32 %v1416, 1e-06
        %v1418 = vrcp.pop %v1417
        %v1419 = vmul.f32 %v1409, %v1418
        %v1420 = vlaneseq
        %v1421 = vshrl.u32 %v1420, 7
        %v1422 = vsub.s32 0, %v1421
        %v1423 = vrot.slane %v1394, %v1422
        %v1424 = vadd.f32 %v1419, %v1423
        %v1425 = vld [vmem:[#allocation7 + $0x88] sm:$0xff]
        %v1426 = vld [vmem:[#allocation7 + $0x90] sm:$0xff]
        %v1427 = vld [vmem:[#allocation7 + $0x98] sm:$0xff]
        %v1428 = vld [vmem:[#allocation7 + $0xa0] sm:$0xff]
        %v1430 = vsel %vm246, %v1424, 0
        %1432 = vmatprep.subr.mxu0 0.0
        %1433 = vmatpush1.msra.mxu0 %v1425
        %1434 = vmatprep.subr.mxu0 0.0
        %1435 = vmatpush1.msra.mxu0 %v1426
        %1436 = vmatprep.subr.mxu0 0.0
        %1437 = vmatpush1.msra.mxu0 %v1427
        %1438 = vmatprep.subr.mxu0 0.0
        %1439 = vmatpush1.msra.mxu0 %v1428
        %1440 = vmatprep.subr.mxu0 0.0
        %1441 = vmatpush1.msra.mxu0 0.0
        %1442 = vmatprep.subr.mxu0 0.0
        %1443 = vmatpush1.msra.mxu0 0.0
        %1444 = vmatprep.subr.mxu0 0.0
        %1445 = vmatpush1.msra.mxu0 0.0
        %1446 = vmatprep.subr.mxu0 0.0
        %1447 = vmatpush1.msra.mxu0 0.0
        %1448 = vmatprep.subr.mxu0 0.0
        %1449 = vmatpush1.msra.mxu0 0.0
        %1450 = vmatprep.subr.mxu0 0.0
        %1451 = vmatpush1.msra.mxu0 0.0
        %1452 = vmatprep.subr.mxu0 0.0
        %1453 = vmatpush1.msra.mxu0 0.0
        %1454 = vmatprep.subr.mxu0 0.0
        %1455 = vmatpush1.msra.mxu0 0.0
        %1456 = vmatprep.subr.mxu0 0.0
        %1457 = vmatpush1.msra.mxu0 0.0
        %1458 = vmatprep.subr.mxu0 0.0
        %1459 = vmatpush1.msra.mxu0 0.0
        %1460 = vmatprep.subr.mxu0 0.0
        %1461 = vmatpush1.msra.mxu0 0.0
        %1462 = vmatprep.subr.mxu0 0.0
        %1463 = vmatpush1.msra.mxu0 0.0
        %1464 = vmatprep.subr.mxu0 0.0
        %1465 = vmatpush1.msra.mxu0 0.0
        %1466 = vmatprep.subr.mxu0 0.0
        %1467 = vmatpush1.msra.mxu0 0.0
        %1468 = vmatprep.subr.mxu0 0.0
        %1469 = vmatpush1.msra.mxu0 0.0
        %1470 = vmatprep.subr.mxu0 0.0
        %1471 = vmatpush1.msra.mxu0 0.0
        %1472 = vmatprep.subr.mxu0 0.0
        %1473 = vmatpush1.msra.mxu0 0.0
        %1474 = vmatprep.subr.mxu0 0.0
        %1475 = vmatpush1.msra.mxu0 0.0
        %1476 = vmatprep.subr.mxu0 0.0
        %1477 = vmatpush1.msra.mxu0 0.0
        %1478 = vmatprep.subr.mxu0 0.0
        %1479 = vmatpush1.msra.mxu0 0.0
        %1480 = vmatprep.subr.mxu0 0.0
        %1481 = vmatpush1.msra.mxu0 0.0
        %1482 = vmatprep.subr.mxu0 0.0
        %1483 = vmatpush1.msra.mxu0 0.0
        %1484 = vmatprep.subr.mxu0 0.0
        %1485 = vmatpush1.msra.mxu0 0.0
        %1486 = vmatprep.subr.mxu0 0.0
        %1487 = vmatpush1.msra.mxu0 0.0
        %1488 = vmatprep.subr.mxu0 0.0
        %1489 = vmatpush1.msra.mxu0 0.0
        %1490 = vmatprep.subr.mxu0 0.0
        %1491 = vmatpush1.msra.mxu0 0.0
        %1492 = vmatprep.subr.mxu0 0.0
        %1493 = vmatpush1.msra.mxu0 0.0
        %1494 = vmatprep.subr.mxu0 0.0
        %1495 = vmatpush1.msra.mxu0 0.0
        %1496 = vmatprep.mubr.f32.mxu0 0.0
        %1497 = vmatmul.mubr.f32.gmra.mrb[0].mxu0 %v1430
        %v1498 = vpop.f32.mrb[0].mxu0
        %v1499 = vadd.f32 0.0, %v1498
        %v1500 = vpop.f32.mrb[0].mxu0
        %1501 = vdwg.mxu0
        %v1502 = vld [vmem:[#allocation7 + $0xa8] sm:$0xff]
        %v1503 = vld [vmem:[#allocation7 + $0xb0] sm:$0xff]
        %v1504 = vld [vmem:[#allocation7 + $0xb8] sm:$0xff]
        %v1505 = vld [vmem:[#allocation7 + $0xc0] sm:$0xff]
        %v1507 = vsel %vm246, %v238, 0
        %1509 = vmatprep.subr.mxu0 0.0
        %1510 = vmatpush1.msra.mxu0 %v1502
        %1511 = vmatprep.subr.mxu0 0.0
        %1512 = vmatpush1.msra.mxu0 %v1503
        %1513 = vmatprep.subr.mxu0 0.0
        %1514 = vmatpush1.msra.mxu0 %v1504
        %1515 = vmatprep.subr.mxu0 0.0
        %1516 = vmatpush1.msra.mxu0 %v1505
        %1517 = vmatprep.subr.mxu0 0.0
        %1518 = vmatpush1.msra.mxu0 0.0
        %1519 = vmatprep.subr.mxu0 0.0
        %1520 = vmatpush1.msra.mxu0 0.0
        %1521 = vmatprep.subr.mxu0 0.0
        %1522 = vmatpush1.msra.mxu0 0.0
        %1523 = vmatprep.subr.mxu0 0.0
        %1524 = vmatpush1.msra.mxu0 0.0
        %1525 = vmatprep.subr.mxu0 0.0
        %1526 = vmatpush1.msra.mxu0 0.0
        %1527 = vmatprep.subr.mxu0 0.0
        %1528 = vmatpush1.msra.mxu0 0.0
        %1529 = vmatprep.subr.mxu0 0.0
        %1530 = vmatpush1.msra.mxu0 0.0
        %1531 = vmatprep.subr.mxu0 0.0
        %1532 = vmatpush1.msra.mxu0 0.0
        %1533 = vmatprep.subr.mxu0 0.0
        %1534 = vmatpush1.msra.mxu0 0.0
        %1535 = vmatprep.subr.mxu0 0.0
        %1536 = vmatpush1.msra.mxu0 0.0
        %1537 = vmatprep.subr.mxu0 0.0
        %1538 = vmatpush1.msra.mxu0 0.0
        %1539 = vmatprep.subr.mxu0 0.0
        %1540 = vmatpush1.msra.mxu0 0.0
        %1541 = vmatprep.subr.mxu0 0.0
        %1542 = vmatpush1.msra.mxu0 0.0
        %1543 = vmatprep.subr.mxu0 0.0
        %1544 = vmatpush1.msra.mxu0 0.0
        %1545 = vmatprep.subr.mxu0 0.0
        %1546 = vmatpush1.msra.mxu0 0.0
        %1547 = vmatprep.subr.mxu0 0.0
        %1548 = vmatpush1.msra.mxu0 0.0
        %1549 = vmatprep.subr.mxu0 0.0
        %1550 = vmatpush1.msra.mxu0 0.0
        %1551 = vmatprep.subr.mxu0 0.0
        %1552 = vmatpush1.msra.mxu0 0.0
        %1553 = vmatprep.subr.mxu0 0.0
        %1554 = vmatpush1.msra.mxu0 0.0
        %1555 = vmatprep.subr.mxu0 0.0
        %1556 = vmatpush1.msra.mxu0 0.0
        %1557 = vmatprep.subr.mxu0 0.0
        %1558 = vmatpush1.msra.mxu0 0.0
        %1559 = vmatprep.subr.mxu0 0.0
        %1560 = vmatpush1.msra.mxu0 0.0
        %1561 = vmatprep.subr.mxu0 0.0
        %1562 = vmatpush1.msra.mxu0 0.0
        %1563 = vmatprep.subr.mxu0 0.0
        %1564 = vmatpush1.msra.mxu0 0.0
        %1565 = vmatprep.subr.mxu0 0.0
        %1566 = vmatpush1.msra.mxu0 0.0
        %1567 = vmatprep.subr.mxu0 0.0
        %1568 = vmatpush1.msra.mxu0 0.0
        %1569 = vmatprep.subr.mxu0 0.0
        %1570 = vmatpush1.msra.mxu0 0.0
        %1571 = vmatprep.subr.mxu0 0.0
        %1572 = vmatpush1.msra.mxu0 0.0
        %1573 = vmatprep.mubr.f32.mxu0 0.0
        %1574 = vmatmul.mubr.f32.gmra.mrb[0].mxu0 %v1507
        %v1575 = vpop.f32.mrb[0].mxu0
        %v1576 = vadd.f32 0.0, %v1575
        %v1577 = vpop.f32.mrb[0].mxu0
        %1578 = vdwg.mxu0
        %1579 = vrot.lane.b32.xlu0 %v237, 56
        %v1580 = vpop.permute.xlu0 %1579
        %v1583 = vsel %vm437, %v1499, 0
        %v1586 = vsel %vm437, %v1576, 0
        %1588 = vmatprep.subr.mxu0 0.0
        %1589 = vmatpush1.xpose.msra.mxu0 %v1586
        %1590 = vmatprep.subr.mxu0 0.0
        %1591 = vmatpush1.xpose.msra.mxu0 0.0
        %1592 = vmatprep.subr.mxu0 0.0
        %1593 = vmatpush1.xpose.msra.mxu0 0.0
        %1594 = vmatprep.subr.mxu0 0.0
        %1595 = vmatpush1.xpose.msra.mxu0 0.0
        %1596 = vmatprep.subr.mxu0 0.0
        %1597 = vmatpush1.xpose.msra.mxu0 0.0
        %1598 = vmatprep.subr.mxu0 0.0
        %1599 = vmatpush1.xpose.msra.mxu0 0.0
        %1600 = vmatprep.subr.mxu0 0.0
        %1601 = vmatpush1.xpose.msra.mxu0 0.0
        %1602 = vmatprep.subr.mxu0 0.0
        %1603 = vmatpush1.xpose.msra.mxu0 0.0
        %1604 = vmatprep.subr.mxu0 0.0
        %1605 = vmatpush1.xpose.msra.mxu0 0.0
        %1606 = vmatprep.subr.mxu0 0.0
        %1607 = vmatpush1.xpose.msra.mxu0 0.0
        %1608 = vmatprep.subr.mxu0 0.0
        %1609 = vmatpush1.xpose.msra.mxu0 0.0
        %1610 = vmatprep.subr.mxu0 0.0
        %1611 = vmatpush1.xpose.msra.mxu0 0.0
        %1612 = vmatprep.subr.mxu0 0.0
        %1613 = vmatpush1.xpose.msra.mxu0 0.0
        %1614 = vmatprep.subr.mxu0 0.0
        %1615 = vmatpush1.xpose.msra.mxu0 0.0
        %1616 = vmatprep.subr.mxu0 0.0
        %1617 = vmatpush1.xpose.msra.mxu0 0.0
        %1618 = vmatprep.subr.mxu0 0.0
        %1619 = vmatpush1.xpose.msra.mxu0 0.0
        %1620 = vmatprep.subr.mxu0 0.0
        %1621 = vmatpush1.xpose.msra.mxu0 0.0
        %1622 = vmatprep.subr.mxu0 0.0
        %1623 = vmatpush1.xpose.msra.mxu0 0.0
        %1624 = vmatprep.subr.mxu0 0.0
        %1625 = vmatpush1.xpose.msra.mxu0 0.0
        %1626 = vmatprep.subr.mxu0 0.0
        %1627 = vmatpush1.xpose.msra.mxu0 0.0
        %1628 = vmatprep.subr.mxu0 0.0
        %1629 = vmatpush1.xpose.msra.mxu0 0.0
        %1630 = vmatprep.subr.mxu0 0.0
        %1631 = vmatpush1.xpose.msra.mxu0 0.0
        %1632 = vmatprep.subr.mxu0 0.0
        %1633 = vmatpush1.xpose.msra.mxu0 0.0
        %1634 = vmatprep.subr.mxu0 0.0
        %1635 = vmatpush1.xpose.msra.mxu0 0.0
        %1636 = vmatprep.subr.mxu0 0.0
        %1637 = vmatpush1.xpose.msra.mxu0 0.0
        %1638 = vmatprep.subr.mxu0 0.0
        %1639 = vmatpush1.xpose.msra.mxu0 0.0
        %1640 = vmatprep.subr.mxu0 0.0
        %1641 = vmatpush1.xpose.msra.mxu0 0.0
        %1642 = vmatprep.subr.mxu0 0.0
        %1643 = vmatpush1.xpose.msra.mxu0 0.0
        %1644 = vmatprep.subr.mxu0 0.0
        %1645 = vmatpush1.xpose.msra.mxu0 0.0
        %1646 = vmatprep.subr.mxu0 0.0
        %1647 = vmatpush1.xpose.msra.mxu0 0.0
        %1648 = vmatprep.subr.mxu0 0.0
        %1649 = vmatpush1.xpose.msra.mxu0 0.0
        %1650 = vmatprep.subr.mxu0 0.0
        %1651 = vmatpush1.xpose.msra.mxu0 0.0
        %1652 = vmatprep.mubr.f32.mxu0 0.0
        %1653 = vmatmul.mubr.f32.gmra.mrb[0].mxu0 %v1583
        %v1654 = vpop.f32.mrb[0].mxu0
        %v1655 = vadd.f32 %v1580, %v1654
        %v1656 = vpop.f32.mrb[0].mxu0
        %1657 = vdwg.mxu0
        %v1658 = vsel %vm437, %v1655, -inf
        %1659 = vmax.xlane.f32.xlu0 %v1658
        %v1660 = vpop.xlane.xlu0 %1659
        %v1661 = vsub.f32 %v1655, %v1660
        %v1662 = vmul.f32 %v1661, 1.442695
        %v1663 = vpow.pop %v1662
        %v1664 = vsel %vm437, %v1663, 0.0
        %1665 = vadd.xlane.f32.xlu0 %v1664
        %v1666 = vpop.xlane.xlu0 %1665
        %v1667 = vrcp.pop %v1666
        %v1668 = vmul.f32 %v1663, %v1667
        %1669 = vrot.lane.b32.xlu0 %v1576, 96
        %v1670 = vpop.permute.xlu0 %1669
        %v1673 = vsel %vm437, %v1668, 0
        %1675 = vmatprep.subr.mxu0 0.0
        %1676 = vmatpush1.msra.mxu0 %v1670
        %1677 = vmatprep.subr.mxu0 0.0
        %1678 = vmatpush1.msra.mxu0 0.0
        %1679 = vmatprep.subr.mxu0 0.0
        %1680 = vmatpush1.msra.mxu0 0.0
        %1681 = vmatprep.subr.mxu0 0.0
        %1682 = vmatpush1.msra.mxu0 0.0
        %1683 = vmatprep.subr.mxu0 0.0
        %1684 = vmatpush1.msra.mxu0 0.0
        %1685 = vmatprep.subr.mxu0 0.0
        %1686 = vmatpush1.msra.mxu0 0.0
        %1687 = vmatprep.subr.mxu0 0.0
        %1688 = vmatpush1.msra.mxu0 0.0
        %1689 = vmatprep.subr.mxu0 0.0
        %1690 = vmatpush1.msra.mxu0 0.0
        %1691 = vmatprep.subr.mxu0 0.0
        %1692 = vmatpush1.msra.mxu0 0.0
        %1693 = vmatprep.subr.mxu0 0.0
        %1694 = vmatpush1.msra.mxu0 0.0
        %1695 = vmatprep.subr.mxu0 0.0
        %1696 = vmatpush1.msra.mxu0 0.0
        %1697 = vmatprep.subr.mxu0 0.0
        %1698 = vmatpush1.msra.mxu0 0.0
        %1699 = vmatprep.subr.mxu0 0.0
        %1700 = vmatpush1.msra.mxu0 0.0
        %1701 = vmatprep.subr.mxu0 0.0
        %1702 = vmatpush1.msra.mxu0 0.0
        %1703 = vmatprep.subr.mxu0 0.0
        %1704 = vmatpush1.msra.mxu0 0.0
        %1705 = vmatprep.subr.mxu0 0.0
        %1706 = vmatpush1.msra.mxu0 0.0
        %1707 = vmatprep.subr.mxu0 0.0
        %1708 = vmatpush1.msra.mxu0 0.0
        %1709 = vmatprep.subr.mxu0 0.0
        %1710 = vmatpush1.msra.mxu0 0.0
        %1711 = vmatprep.subr.mxu0 0.0
        %1712 = vmatpush1.msra.mxu0 0.0
        %1713 = vmatprep.subr.mxu0 0.0
        %1714 = vmatpush1.msra.mxu0 0.0
        %1715 = vmatprep.subr.mxu0 0.0
        %1716 = vmatpush1.msra.mxu0 0.0
        %1717 = vmatprep.subr.mxu0 0.0
        %1718 = vmatpush1.msra.mxu0 0.0
        %1719 = vmatprep.subr.mxu0 0.0
        %1720 = vmatpush1.msra.mxu0 0.0
        %1721 = vmatprep.subr.mxu0 0.0
        %1722 = vmatpush1.msra.mxu0 0.0
        %1723 = vmatprep.subr.mxu0 0.0
        %1724 = vmatpush1.msra.mxu0 0.0
        %1725 = vmatprep.subr.mxu0 0.0
        %1726 = vmatpush1.msra.mxu0 0.0
        %1727 = vmatprep.subr.mxu0 0.0
        %1728 = vmatpush1.msra.mxu0 0.0
        %1729 = vmatprep.subr.mxu0 0.0
        %1730 = vmatpush1.msra.mxu0 0.0
        %1731 = vmatprep.subr.mxu0 0.0
        %1732 = vmatpush1.msra.mxu0 0.0
        %1733 = vmatprep.subr.mxu0 0.0
        %1734 = vmatpush1.msra.mxu0 0.0
        %1735 = vmatprep.subr.mxu0 0.0
        %1736 = vmatpush1.msra.mxu0 0.0
        %1737 = vmatprep.subr.mxu0 0.0
        %1738 = vmatpush1.msra.mxu0 0.0
        %1739 = vmatprep.mubr.f32.mxu0 0.0
        %1740 = vmatmul.mubr.f32.gmra.mrb[0].mxu0 %v1673
        %v1741 = vpop.f32.mrb[0].mxu0
        %v1742 = vadd.f32 0.0, %v1741
        %v1743 = vpop.f32.mrb[0].mxu0
        %1744 = vdwg.mxu0
        %v1745 = vld [vmem:[#allocation7 + $0xc8] sm:$0xff]
        %1746 = vrot.lane.b32.xlu0 %v1499, 120
        %v1747 = vpop.permute.xlu0 %1746
        %1748 = vrot.lane.b32.xlu0 %v1576, 120
        %v1749 = vpop.permute.xlu0 %1748
        %v1750 = vsel %vm437, %v1747, 0
        %v1752 = vsel %vm437, %v1749, 0
        %1754 = vmatprep.subr.mxu0 0.0
        %1755 = vmatpush1.xpose.msra.mxu0 %v1752
        %1756 = vmatprep.subr.mxu0 0.0
        %1757 = vmatpush1.xpose.msra.mxu0 0.0
        %1758 = vmatprep.subr.mxu0 0.0
        %1759 = vmatpush1.xpose.msra.mxu0 0.0
        %1760 = vmatprep.subr.mxu0 0.0
        %1761 = vmatpush1.xpose.msra.mxu0 0.0
        %1762 = vmatprep.subr.mxu0 0.0
        %1763 = vmatpush1.xpose.msra.mxu0 0.0
        %1764 = vmatprep.subr.mxu0 0.0
        %1765 = vmatpush1.xpose.msra.mxu0 0.0
        %1766 = vmatprep.subr.mxu0 0.0
        %1767 = vmatpush1.xpose.msra.mxu0 0.0
        %1768 = vmatprep.subr.mxu0 0.0
        %1769 = vmatpush1.xpose.msra.mxu0 0.0
        %1770 = vmatprep.subr.mxu0 0.0
        %1771 = vmatpush1.xpose.msra.mxu0 0.0
        %1772 = vmatprep.subr.mxu0 0.0
        %1773 = vmatpush1.xpose.msra.mxu0 0.0
        %1774 = vmatprep.subr.mxu0 0.0
        %1775 = vmatpush1.xpose.msra.mxu0 0.0
        %1776 = vmatprep.subr.mxu0 0.0
        %1777 = vmatpush1.xpose.msra.mxu0 0.0
        %1778 = vmatprep.subr.mxu0 0.0
        %1779 = vmatpush1.xpose.msra.mxu0 0.0
        %1780 = vmatprep.subr.mxu0 0.0
        %1781 = vmatpush1.xpose.msra.mxu0 0.0
        %1782 = vmatprep.subr.mxu0 0.0
        %1783 = vmatpush1.xpose.msra.mxu0 0.0
        %1784 = vmatprep.subr.mxu0 0.0
        %1785 = vmatpush1.xpose.msra.mxu0 0.0
        %1786 = vmatprep.subr.mxu0 0.0
        %1787 = vmatpush1.xpose.msra.mxu0 0.0
        %1788 = vmatprep.subr.mxu0 0.0
        %1789 = vmatpush1.xpose.msra.mxu0 0.0
        %1790 = vmatprep.subr.mxu0 0.0
        %1791 = vmatpush1.xpose.msra.mxu0 0.0
        %1792 = vmatprep.subr.mxu0 0.0
        %1793 = vmatpush1.xpose.msra.mxu0 0.0
        %1794 = vmatprep.subr.mxu0 0.0
        %1795 = vmatpush1.xpose.msra.mxu0 0.0
        %1796 = vmatprep.subr.mxu0 0.0
        %1797 = vmatpush1.xpose.msra.mxu0 0.0
        %1798 = vmatprep.subr.mxu0 0.0
        %1799 = vmatpush1.xpose.msra.mxu0 0.0
        %1800 = vmatprep.subr.mxu0 0.0
        %1801 = vmatpush1.xpose.msra.mxu0 0.0
        %1802 = vmatprep.subr.mxu0 0.0
        %1803 = vmatpush1.xpose.msra.mxu0 0.0
        %1804 = vmatprep.subr.mxu0 0.0
        %1805 = vmatpush1.xpose.msra.mxu0 0.0
        %1806 = vmatprep.subr.mxu0 0.0
        %1807 = vmatpush1.xpose.msra.mxu0 0.0
        %1808 = vmatprep.subr.mxu0 0.0
        %1809 = vmatpush1.xpose.msra.mxu0 0.0
        %1810 = vmatprep.subr.mxu0 0.0
        %1811 = vmatpush1.xpose.msra.mxu0 0.0
        %1812 = vmatprep.subr.mxu0 0.0
        %1813 = vmatpush1.xpose.msra.mxu0 0.0
        %1814 = vmatprep.subr.mxu0 0.0
        %1815 = vmatpush1.xpose.msra.mxu0 0.0
        %1816 = vmatprep.subr.mxu0 0.0
        %1817 = vmatpush1.xpose.msra.mxu0 0.0
        %1818 = vmatprep.mubr.f32.mxu0 0.0
        %1819 = vmatmul.mubr.f32.gmra.mrb[0].mxu0 %v1750
        %v1820 = vpop.f32.mrb[0].mxu0
        %v1821 = vadd.f32 %v1580, %v1820
        %v1822 = vpop.f32.mrb[0].mxu0
        %1823 = vdwg.mxu0
        %v1824 = vsel %vm437, %v1821, -inf
        %1825 = vmax.xlane.f32.xlu0 %v1824
        %v1826 = vpop.xlane.xlu0 %1825
        %v1827 = vsub.f32 %v1821, %v1826
        %v1828 = vmul.f32 %v1827, 1.442695
        %v1829 = vpow.pop %v1828
        %v1830 = vsel %vm437, %v1829, 0.0
        %1831 = vadd.xlane.f32.xlu0 %v1830
        %v1832 = vpop.xlane.xlu0 %1831
        %v1833 = vrcp.pop %v1832
        %v1834 = vmul.f32 %v1829, %v1833
        %1835 = vrot.lane.b32.xlu0 %v1576, 88
        %v1836 = vpop.permute.xlu0 %1835
        %v1839 = vsel %vm437, %v1834, 0
        %1841 = vmatprep.subr.mxu0 0.0
        %1842 = vmatpush1.msra.mxu0 %v1836
        %1843 = vmatprep.subr.mxu0 0.0
        %1844 = vmatpush1.msra.mxu0 0.0
        %1845 = vmatprep.subr.mxu0 0.0
        %1846 = vmatpush1.msra.mxu0 0.0
        %1847 = vmatprep.subr.mxu0 0.0
        %1848 = vmatpush1.msra.mxu0 0.0
        %1849 = vmatprep.subr.mxu0 0.0
        %1850 = vmatpush1.msra.mxu0 0.0
        %1851 = vmatprep.subr.mxu0 0.0
        %1852 = vmatpush1.msra.mxu0 0.0
        %1853 = vmatprep.subr.mxu0 0.0
        %1854 = vmatpush1.msra.mxu0 0.0
        %1855 = vmatprep.subr.mxu0 0.0
        %1856 = vmatpush1.msra.mxu0 0.0
        %1857 = vmatprep.subr.mxu0 0.0
        %1858 = vmatpush1.msra.mxu0 0.0
        %1859 = vmatprep.subr.mxu0 0.0
        %1860 = vmatpush1.msra.mxu0 0.0
        %1861 = vmatprep.subr.mxu0 0.0
        %1862 = vmatpush1.msra.mxu0 0.0
        %1863 = vmatprep.subr.mxu0 0.0
        %1864 = vmatpush1.msra.mxu0 0.0
        %1865 = vmatprep.subr.mxu0 0.0
        %1866 = vmatpush1.msra.mxu0 0.0
        %1867 = vmatprep.subr.mxu0 0.0
        %1868 = vmatpush1.msra.mxu0 0.0
        %1869 = vmatprep.subr.mxu0 0.0
        %1870 = vmatpush1.msra.mxu0 0.0
        %1871 = vmatprep.subr.mxu0 0.0
        %1872 = vmatpush1.msra.mxu0 0.0
        %1873 = vmatprep.subr.mxu0 0.0
        %1874 = vmatpush1.msra.mxu0 0.0
        %1875 = vmatprep.subr.mxu0 0.0
        %1876 = vmatpush1.msra.mxu0 0.0
        %1877 = vmatprep.subr.mxu0 0.0
        %1878 = vmatpush1.msra.mxu0 0.0
        %1879 = vmatprep.subr.mxu0 0.0
        %1880 = vmatpush1.msra.mxu0 0.0
        %1881 = vmatprep.subr.mxu0 0.0
        %1882 = vmatpush1.msra.mxu0 0.0
        %1883 = vmatprep.subr.mxu0 0.0
        %1884 = vmatpush1.msra.mxu0 0.0
        %1885 = vmatprep.subr.mxu0 0.0
        %1886 = vmatpush1.msra.mxu0 0.0
        %1887 = vmatprep.subr.mxu0 0.0
        %1888 = vmatpush1.msra.mxu0 0.0
        %1889 = vmatprep.subr.mxu0 0.0
        %1890 = vmatpush1.msra.mxu0 0.0
        %1891 = vmatprep.subr.mxu0 0.0
        %1892 = vmatpush1.msra.mxu0 0.0
        %1893 = vmatprep.subr.mxu0 0.0
        %1894 = vmatpush1.msra.mxu0 0.0
        %1895 = vmatprep.subr.mxu0 0.0
        %1896 = vmatpush1.msra.mxu0 0.0
        %1897 = vmatprep.subr.mxu0 0.0
        %1898 = vmatpush1.msra.mxu0 0.0
        %1899 = vmatprep.subr.mxu0 0.0
        %1900 = vmatpush1.msra.mxu0 0.0
        %1901 = vmatprep.subr.mxu0 0.0
        %1902 = vmatpush1.msra.mxu0 0.0
        %1903 = vmatprep.subr.mxu0 0.0
        %1904 = vmatpush1.msra.mxu0 0.0
        %1905 = vmatprep.mubr.f32.mxu0 0.0
        %1906 = vmatmul.mubr.f32.gmra.mrb[0].mxu0 %v1839
        %v1907 = vpop.f32.mrb[0].mxu0
        %v1908 = vadd.f32 0.0, %v1907
        %v1909 = vpop.f32.mrb[0].mxu0
        %1910 = vdwg.mxu0
        %v1911 = vld [vmem:[#allocation7 + $0xd0] sm:$0xff]
        %v1913 = vsel %vm437, %v1908, 0
        %1915 = vmatprep.subr.mxu0 0.0
        %1916 = vmatpush1.msra.mxu0 %v1911
        %1917 = vmatprep.subr.mxu0 0.0
        %1918 = vmatpush1.msra.mxu0 0.0
        %1919 = vmatprep.subr.mxu0 0.0
        %1920 = vmatpush1.msra.mxu0 0.0
        %1921 = vmatprep.subr.mxu0 0.0
        %1922 = vmatpush1.msra.mxu0 0.0
        %1923 = vmatprep.subr.mxu0 0.0
        %1924 = vmatpush1.msra.mxu0 0.0
        %1925 = vmatprep.subr.mxu0 0.0
        %1926 = vmatpush1.msra.mxu0 0.0
        %1927 = vmatprep.subr.mxu0 0.0
        %1928 = vmatpush1.msra.mxu0 0.0
        %1929 = vmatprep.subr.mxu0 0.0
        %1930 = vmatpush1.msra.mxu0 0.0
        %1931 = vmatprep.subr.mxu0 0.0
        %1932 = vmatpush1.msra.mxu0 0.0
        %1933 = vmatprep.subr.mxu0 0.0
        %1934 = vmatpush1.msra.mxu0 0.0
        %1935 = vmatprep.subr.mxu0 0.0
        %1936 = vmatpush1.msra.mxu0 0.0
        %1937 = vmatprep.subr.mxu0 0.0
        %1938 = vmatpush1.msra.mxu0 0.0
        %1939 = vmatprep.subr.mxu0 0.0
        %1940 = vmatpush1.msra.mxu0 0.0
        %1941 = vmatprep.subr.mxu0 0.0
        %1942 = vmatpush1.msra.mxu0 0.0
        %1943 = vmatprep.subr.mxu0 0.0
        %1944 = vmatpush1.msra.mxu0 0.0
        %1945 = vmatprep.subr.mxu0 0.0
        %1946 = vmatpush1.msra.mxu0 0.0
        %1947 = vmatprep.subr.mxu0 0.0
        %1948 = vmatpush1.msra.mxu0 0.0
        %1949 = vmatprep.subr.mxu0 0.0
        %1950 = vmatpush1.msra.mxu0 0.0
        %1951 = vmatprep.subr.mxu0 0.0
        %1952 = vmatpush1.msra.mxu0 0.0
        %1953 = vmatprep.subr.mxu0 0.0
        %1954 = vmatpush1.msra.mxu0 0.0
        %1955 = vmatprep.subr.mxu0 0.0
        %1956 = vmatpush1.msra.mxu0 0.0
        %1957 = vmatprep.subr.mxu0 0.0
        %1958 = vmatpush1.msra.mxu0 0.0
        %1959 = vmatprep.subr.mxu0 0.0
        %1960 = vmatpush1.msra.mxu0 0.0
        %1961 = vmatprep.subr.mxu0 0.0
        %1962 = vmatpush1.msra.mxu0 0.0
        %1963 = vmatprep.subr.mxu0 0.0
        %1964 = vmatpush1.msra.mxu0 0.0
        %1965 = vmatprep.subr.mxu0 0.0
        %1966 = vmatpush1.msra.mxu0 0.0
        %1967 = vmatprep.subr.mxu0 0.0
        %1968 = vmatpush1.msra.mxu0 0.0
        %1969 = vmatprep.subr.mxu0 0.0
        %1970 = vmatpush1.msra.mxu0 0.0
        %1971 = vmatprep.subr.mxu0 0.0
        %1972 = vmatpush1.msra.mxu0 0.0
        %1973 = vmatprep.subr.mxu0 0.0
        %1974 = vmatpush1.msra.mxu0 0.0
        %1975 = vmatprep.subr.mxu0 0.0
        %1976 = vmatpush1.msra.mxu0 0.0
        %1977 = vmatprep.subr.mxu0 0.0
        %1978 = vmatpush1.msra.mxu0 0.0
        %1979 = vmatprep.mubr.f32.mxu0 0.0
        %1980 = vmatmul.mubr.f32.gmra.mrb[0].mxu0 %v1913
        %v1981 = vpop.f32.mrb[0].mxu0
        %v1982 = vadd.f32 0.0, %v1981
        %v1983 = vpop.f32.mrb[0].mxu0
        %1984 = vdwg.mxu0
        %v1986 = vsel %vm437, %v1742, 0
        %1988 = vmatprep.subr.mxu0 0.0
        %1989 = vmatpush1.msra.mxu0 %v1745
        %1990 = vmatprep.subr.mxu0 0.0
        %1991 = vmatpush1.msra.mxu0 0.0
        %1992 = vmatprep.subr.mxu0 0.0
        %1993 = vmatpush1.msra.mxu0 0.0
        %1994 = vmatprep.subr.mxu0 0.0
        %1995 = vmatpush1.msra.mxu0 0.0
        %1996 = vmatprep.subr.mxu0 0.0
        %1997 = vmatpush1.msra.mxu0 0.0
        %1998 = vmatprep.subr.mxu0 0.0
        %1999 = vmatpush1.msra.mxu0 0.0
        %2000 = vmatprep.subr.mxu0 0.0
        %2001 = vmatpush1.msra.mxu0 0.0
        %2002 = vmatprep.subr.mxu0 0.0
        %2003 = vmatpush1.msra.mxu0 0.0
        %2004 = vmatprep.subr.mxu0 0.0
        %2005 = vmatpush1.msra.mxu0 0.0
        %2006 = vmatprep.subr.mxu0 0.0
        %2007 = vmatpush1.msra.mxu0 0.0
        %2008 = vmatprep.subr.mxu0 0.0
        %2009 = vmatpush1.msra.mxu0 0.0
        %2010 = vmatprep.subr.mxu0 0.0
        %2011 = vmatpush1.msra.mxu0 0.0
        %2012 = vmatprep.subr.mxu0 0.0
        %2013 = vmatpush1.msra.mxu0 0.0
        %2014 = vmatprep.subr.mxu0 0.0
        %2015 = vmatpush1.msra.mxu0 0.0
        %2016 = vmatprep.subr.mxu0 0.0
        %2017 = vmatpush1.msra.mxu0 0.0
        %2018 = vmatprep.subr.mxu0 0.0
        %2019 = vmatpush1.msra.mxu0 0.0
        %2020 = vmatprep.subr.mxu0 0.0
        %2021 = vmatpush1.msra.mxu0 0.0
        %2022 = vmatprep.subr.mxu0 0.0
        %2023 = vmatpush1.msra.mxu0 0.0
        %2024 = vmatprep.subr.mxu0 0.0
        %2025 = vmatpush1.msra.mxu0 0.0
        %2026 = vmatprep.subr.mxu0 0.0
        %2027 = vmatpush1.msra.mxu0 0.0
        %2028 = vmatprep.subr.mxu0 0.0
        %2029 = vmatpush1.msra.mxu0 0.0
        %2030 = vmatprep.subr.mxu0 0.0
        %2031 = vmatpush1.msra.mxu0 0.0
        %2032 = vmatprep.subr.mxu0 0.0
        %2033 = vmatpush1.msra.mxu0 0.0
        %2034 = vmatprep.subr.mxu0 0.0
        %2035 = vmatpush1.msra.mxu0 0.0
        %2036 = vmatprep.subr.mxu0 0.0
        %2037 = vmatpush1.msra.mxu0 0.0
        %2038 = vmatprep.subr.mxu0 0.0
        %2039 = vmatpush1.msra.mxu0 0.0
        %2040 = vmatprep.subr.mxu0 0.0
        %2041 = vmatpush1.msra.mxu0 0.0
        %2042 = vmatprep.subr.mxu0 0.0
        %2043 = vmatpush1.msra.mxu0 0.0
        %2044 = vmatprep.subr.mxu0 0.0
        %2045 = vmatpush1.msra.mxu0 0.0
        %2046 = vmatprep.subr.mxu0 0.0
        %2047 = vmatpush1.msra.mxu0 0.0
        %2048 = vmatprep.subr.mxu0 0.0
        %2049 = vmatpush1.msra.mxu0 0.0
        %2050 = vmatprep.subr.mxu0 0.0
        %2051 = vmatpush1.msra.mxu0 0.0
        %2052 = vmatprep.mubr.f32.mxu0 0.0
        %2053 = vmatmul.mubr.f32.gmra.mrb[0].mxu0 %v1986
        %v2054 = vpop.f32.mrb[0].mxu0
        %v2055 = vadd.f32 %v1982, %v2054
        %v2056 = vpop.f32.mrb[0].mxu0
        %2057 = vdwg.mxu0
        %2058 = vrot.lane.b32.xlu0 %v1499, 112
        %v2059 = vpop.permute.xlu0 %2058
        %2060 = vrot.lane.b32.xlu0 %v1576, 112
        %v2061 = vpop.permute.xlu0 %2060
        %v2062 = vsel %vm437, %v2059, 0
        %v2064 = vsel %vm437, %v2061, 0
        %2066 = vmatprep.subr.mxu0 0.0
        %2067 = vmatpush1.xpose.msra.mxu0 %v2064
        %2068 = vmatprep.subr.mxu0 0.0
        %2069 = vmatpush1.xpose.msra.mxu0 0.0
        %2070 = vmatprep.subr.mxu0 0.0
        %2071 = vmatpush1.xpose.msra.mxu0 0.0
        %2072 = vmatprep.subr.mxu0 0.0
        %2073 = vmatpush1.xpose.msra.mxu0 0.0
        %2074 = vmatprep.subr.mxu0 0.0
        %2075 = vmatpush1.xpose.msra.mxu0 0.0
        %2076 = vmatprep.subr.mxu0 0.0
        %2077 = vmatpush1.xpose.msra.mxu0 0.0
        %2078 = vmatprep.subr.mxu0 0.0
        %2079 = vmatpush1.xpose.msra.mxu0 0.0
        %2080 = vmatprep.subr.mxu0 0.0
        %2081 = vmatpush1.xpose.msra.mxu0 0.0
        %2082 = vmatprep.subr.mxu0 0.0
        %2083 = vmatpush1.xpose.msra.mxu0 0.0
        %2084 = vmatprep.subr.mxu0 0.0
        %2085 = vmatpush1.xpose.msra.mxu0 0.0
        %2086 = vmatprep.subr.mxu0 0.0
        %2087 = vmatpush1.xpose.msra.mxu0 0.0
        %2088 = vmatprep.subr.mxu0 0.0
        %2089 = vmatpush1.xpose.msra.mxu0 0.0
        %2090 = vmatprep.subr.mxu0 0.0
        %2091 = vmatpush1.xpose.msra.mxu0 0.0
        %2092 = vmatprep.subr.mxu0 0.0
        %2093 = vmatpush1.xpose.msra.mxu0 0.0
        %2094 = vmatprep.subr.mxu0 0.0
        %2095 = vmatpush1.xpose.msra.mxu0 0.0
        %2096 = vmatprep.subr.mxu0 0.0
        %2097 = vmatpush1.xpose.msra.mxu0 0.0
        %2098 = vmatprep.subr.mxu0 0.0
        %2099 = vmatpush1.xpose.msra.mxu0 0.0
        %2100 = vmatprep.subr.mxu0 0.0
        %2101 = vmatpush1.xpose.msra.mxu0 0.0
        %2102 = vmatprep.subr.mxu0 0.0
        %2103 = vmatpush1.xpose.msra.mxu0 0.0
        %2104 = vmatprep.subr.mxu0 0.0
        %2105 = vmatpush1.xpose.msra.mxu0 0.0
        %2106 = vmatprep.subr.mxu0 0.0
        %2107 = vmatpush1.xpose.msra.mxu0 0.0
        %2108 = vmatprep.subr.mxu0 0.0
        %2109 = vmatpush1.xpose.msra.mxu0 0.0
        %2110 = vmatprep.subr.mxu0 0.0
        %2111 = vmatpush1.xpose.msra.mxu0 0.0
        %2112 = vmatprep.subr.mxu0 0.0
        %2113 = vmatpush1.xpose.msra.mxu0 0.0
        %2114 = vmatprep.subr.mxu0 0.0
        %2115 = vmatpush1.xpose.msra.mxu0 0.0
        %2116 = vmatprep.subr.mxu0 0.0
        %2117 = vmatpush1.xpose.msra.mxu0 0.0
        %2118 = vmatprep.subr.mxu0 0.0
        %2119 = vmatpush1.xpose.msra.mxu0 0.0
        %2120 = vmatprep.subr.mxu0 0.0
        %2121 = vmatpush1.xpose.msra.mxu0 0.0
        %2122 = vmatprep.subr.mxu0 0.0
        %2123 = vmatpush1.xpose.msra.mxu0 0.0
        %2124 = vmatprep.subr.mxu0 0.0
        %2125 = vmatpush1.xpose.msra.mxu0 0.0
        %2126 = vmatprep.subr.mxu0 0.0
        %2127 = vmatpush1.xpose.msra.mxu0 0.0
        %2128 = vmatprep.subr.mxu0 0.0
        %2129 = vmatpush1.xpose.msra.mxu0 0.0
        %2130 = vmatprep.mubr.f32.mxu0 0.0
        %2131 = vmatmul.mubr.f32.gmra.mrb[0].mxu0 %v2062
        %v2132 = vpop.f32.mrb[0].mxu0
        %v2133 = vadd.f32 %v1580, %v2132
        %v2134 = vpop.f32.mrb[0].mxu0
        %2135 = vdwg.mxu0
        %v2136 = vsel %vm437, %v2133, -inf
        %2137 = vmax.xlane.f32.xlu0 %v2136
        %v2138 = vpop.xlane.xlu0 %2137
        %v2139 = vsub.f32 %v2133, %v2138
        %v2140 = vmul.f32 %v2139, 1.442695
        %v2141 = vpow.pop %v2140
        %v2142 = vsel %vm437, %v2141, 0.0
        %2143 = vadd.xlane.f32.xlu0 %v2142
        %v2144 = vpop.xlane.xlu0 %2143
        %v2145 = vrcp.pop %v2144
        %v2146 = vmul.f32 %v2141, %v2145
        %2147 = vrot.lane.b32.xlu0 %v1576, 80
        %v2148 = vpop.permute.xlu0 %2147
        %v2151 = vsel %vm437, %v2146, 0
        %2153 = vmatprep.subr.mxu0 0.0
        %2154 = vmatpush1.msra.mxu0 %v2148
        %2155 = vmatprep.subr.mxu0 0.0
        %2156 = vmatpush1.msra.mxu0 0.0
        %2157 = vmatprep.subr.mxu0 0.0
        %2158 = vmatpush1.msra.mxu0 0.0
        %2159 = vmatprep.subr.mxu0 0.0
        %2160 = vmatpush1.msra.mxu0 0.0
        %2161 = vmatprep.subr.mxu0 0.0
        %2162 = vmatpush1.msra.mxu0 0.0
        %2163 = vmatprep.subr.mxu0 0.0
        %2164 = vmatpush1.msra.mxu0 0.0
        %2165 = vmatprep.subr.mxu0 0.0
        %2166 = vmatpush1.msra.mxu0 0.0
        %2167 = vmatprep.subr.mxu0 0.0
        %2168 = vmatpush1.msra.mxu0 0.0
        %2169 = vmatprep.subr.mxu0 0.0
        %2170 = vmatpush1.msra.mxu0 0.0
        %2171 = vmatprep.subr.mxu0 0.0
        %2172 = vmatpush1.msra.mxu0 0.0
        %2173 = vmatprep.subr.mxu0 0.0
        %2174 = vmatpush1.msra.mxu0 0.0
        %2175 = vmatprep.subr.mxu0 0.0
        %2176 = vmatpush1.msra.mxu0 0.0
        %2177 = vmatprep.subr.mxu0 0.0
        %2178 = vmatpush1.msra.mxu0 0.0
        %2179 = vmatprep.subr.mxu0 0.0
        %2180 = vmatpush1.msra.mxu0 0.0
        %2181 = vmatprep.subr.mxu0 0.0
        %2182 = vmatpush1.msra.mxu0 0.0
        %2183 = vmatprep.subr.mxu0 0.0
        %2184 = vmatpush1.msra.mxu0 0.0
        %2185 = vmatprep.subr.mxu0 0.0
        %2186 = vmatpush1.msra.mxu0 0.0
        %2187 = vmatprep.subr.mxu0 0.0
        %2188 = vmatpush1.msra.mxu0 0.0
        %2189 = vmatprep.subr.mxu0 0.0
        %2190 = vmatpush1.msra.mxu0 0.0
        %2191 = vmatprep.subr.mxu0 0.0
        %2192 = vmatpush1.msra.mxu0 0.0
        %2193 = vmatprep.subr.mxu0 0.0
        %2194 = vmatpush1.msra.mxu0 0.0
        %2195 = vmatprep.subr.mxu0 0.0
        %2196 = vmatpush1.msra.mxu0 0.0
        %2197 = vmatprep.subr.mxu0 0.0
        %2198 = vmatpush1.msra.mxu0 0.0
        %2199 = vmatprep.subr.mxu0 0.0
        %2200 = vmatpush1.msra.mxu0 0.0
        %2201 = vmatprep.subr.mxu0 0.0
        %2202 = vmatpush1.msra.mxu0 0.0
        %2203 = vmatprep.subr.mxu0 0.0
        %2204 = vmatpush1.msra.mxu0 0.0
        %2205 = vmatprep.subr.mxu0 0.0
        %2206 = vmatpush1.msra.mxu0 0.0
        %2207 = vmatprep.subr.mxu0 0.0
        %2208 = vmatpush1.msra.mxu0 0.0
        %2209 = vmatprep.subr.mxu0 0.0
        %2210 = vmatpush1.msra.mxu0 0.0
        %2211 = vmatprep.subr.mxu0 0.0
        %2212 = vmatpush1.msra.mxu0 0.0
        %2213 = vmatprep.subr.mxu0 0.0
        %2214 = vmatpush1.msra.mxu0 0.0
        %2215 = vmatprep.subr.mxu0 0.0
        %2216 = vmatpush1.msra.mxu0 0.0
        %2217 = vmatprep.mubr.f32.mxu0 0.0
        %2218 = vmatmul.mubr.f32.gmra.mrb[0].mxu0 %v2151
        %v2219 = vpop.f32.mrb[0].mxu0
        %v2220 = vadd.f32 0.0, %v2219
        %v2221 = vpop.f32.mrb[0].mxu0
        %2222 = vdwg.mxu0
        %v2223 = vld [vmem:[#allocation7 + $0xd8] sm:$0xff]
        %v2225 = vsel %vm437, %v2220, 0
        %2227 = vmatprep.subr.mxu0 0.0
        %2228 = vmatpush1.msra.mxu0 %v2223
        %2229 = vmatprep.subr.mxu0 0.0
        %2230 = vmatpush1.msra.mxu0 0.0
        %2231 = vmatprep.subr.mxu0 0.0
        %2232 = vmatpush1.msra.mxu0 0.0
        %2233 = vmatprep.subr.mxu0 0.0
        %2234 = vmatpush1.msra.mxu0 0.0
        %2235 = vmatprep.subr.mxu0 0.0
        %2236 = vmatpush1.msra.mxu0 0.0
        %2237 = vmatprep.subr.mxu0 0.0
        %2238 = vmatpush1.msra.mxu0 0.0
        %2239 = vmatprep.subr.mxu0 0.0
        %2240 = vmatpush1.msra.mxu0 0.0
        %2241 = vmatprep.subr.mxu0 0.0
        %2242 = vmatpush1.msra.mxu0 0.0
        %2243 = vmatprep.subr.mxu0 0.0
        %2244 = vmatpush1.msra.mxu0 0.0
        %2245 = vmatprep.subr.mxu0 0.0
        %2246 = vmatpush1.msra.mxu0 0.0
        %2247 = vmatprep.subr.mxu0 0.0
        %2248 = vmatpush1.msra.mxu0 0.0
        %2249 = vmatprep.subr.mxu0 0.0
        %2250 = vmatpush1.msra.mxu0 0.0
        %2251 = vmatprep.subr.mxu0 0.0
        %2252 = vmatpush1.msra.mxu0 0.0
        %2253 = vmatprep.subr.mxu0 0.0
        %2254 = vmatpush1.msra.mxu0 0.0
        %2255 = vmatprep.subr.mxu0 0.0
        %2256 = vmatpush1.msra.mxu0 0.0
        %2257 = vmatprep.subr.mxu0 0.0
        %2258 = vmatpush1.msra.mxu0 0.0
        %2259 = vmatprep.subr.mxu0 0.0
        %2260 = vmatpush1.msra.mxu0 0.0
        %2261 = vmatprep.subr.mxu0 0.0
        %2262 = vmatpush1.msra.mxu0 0.0
        %2263 = vmatprep.subr.mxu0 0.0
        %2264 = vmatpush1.msra.mxu0 0.0
        %2265 = vmatprep.subr.mxu0 0.0
        %2266 = vmatpush1.msra.mxu0 0.0
        %2267 = vmatprep.subr.mxu0 0.0
        %2268 = vmatpush1.msra.mxu0 0.0
        %2269 = vmatprep.subr.mxu0 0.0
        %2270 = vmatpush1.msra.mxu0 0.0
        %2271 = vmatprep.subr.mxu0 0.0
        %2272 = vmatpush1.msra.mxu0 0.0
        %2273 = vmatprep.subr.mxu0 0.0
        %2274 = vmatpush1.msra.mxu0 0.0
        %2275 = vmatprep.subr.mxu0 0.0
        %2276 = vmatpush1.msra.mxu0 0.0
        %2277 = vmatprep.subr.mxu0 0.0
        %2278 = vmatpush1.msra.mxu0 0.0
        %2279 = vmatprep.subr.mxu0 0.0
        %2280 = vmatpush1.msra.mxu0 0.0
        %2281 = vmatprep.subr.mxu0 0.0
        %2282 = vmatpush1.msra.mxu0 0.0
        %2283 = vmatprep.subr.mxu0 0.0
        %2284 = vmatpush1.msra.mxu0 0.0
        %2285 = vmatprep.subr.mxu0 0.0
        %2286 = vmatpush1.msra.mxu0 0.0
        %2287 = vmatprep.subr.mxu0 0.0
        %2288 = vmatpush1.msra.mxu0 0.0
        %2289 = vmatprep.subr.mxu0 0.0
        %2290 = vmatpush1.msra.mxu0 0.0
        %2291 = vmatprep.mubr.f32.mxu0 0.0
        %2292 = vmatmul.mubr.f32.gmra.mrb[0].mxu0 %v2225
        %v2293 = vpop.f32.mrb[0].mxu0
        %v2294 = vadd.f32 0.0, %v2293
        %v2295 = vpop.f32.mrb[0].mxu0
        %2296 = vdwg.mxu0
        %v2297 = vadd.f32 %v2055, %v2294
        %2298 = vrot.lane.b32.xlu0 %v1499, 104
        %v2299 = vpop.permute.xlu0 %2298
        %2300 = vrot.lane.b32.xlu0 %v1576, 104
        %v2301 = vpop.permute.xlu0 %2300
        %v2302 = vsel %vm437, %v2299, 0
        %v2304 = vsel %vm437, %v2301, 0
        %2306 = vmatprep.subr.mxu0 0.0
        %2307 = vmatpush1.xpose.msra.mxu0 %v2304
        %2308 = vmatprep.subr.mxu0 0.0
        %2309 = vmatpush1.xpose.msra.mxu0 0.0
        %2310 = vmatprep.subr.mxu0 0.0
        %2311 = vmatpush1.xpose.msra.mxu0 0.0
        %2312 = vmatprep.subr.mxu0 0.0
        %2313 = vmatpush1.xpose.msra.mxu0 0.0
        %2314 = vmatprep.subr.mxu0 0.0
        %2315 = vmatpush1.xpose.msra.mxu0 0.0
        %2316 = vmatprep.subr.mxu0 0.0
        %2317 = vmatpush1.xpose.msra.mxu0 0.0
        %2318 = vmatprep.subr.mxu0 0.0
        %2319 = vmatpush1.xpose.msra.mxu0 0.0
        %2320 = vmatprep.subr.mxu0 0.0
        %2321 = vmatpush1.xpose.msra.mxu0 0.0
        %2322 = vmatprep.subr.mxu0 0.0
        %2323 = vmatpush1.xpose.msra.mxu0 0.0
        %2324 = vmatprep.subr.mxu0 0.0
        %2325 = vmatpush1.xpose.msra.mxu0 0.0
        %2326 = vmatprep.subr.mxu0 0.0
        %2327 = vmatpush1.xpose.msra.mxu0 0.0
        %2328 = vmatprep.subr.mxu0 0.0
        %2329 = vmatpush1.xpose.msra.mxu0 0.0
        %2330 = vmatprep.subr.mxu0 0.0
        %2331 = vmatpush1.xpose.msra.mxu0 0.0
        %2332 = vmatprep.subr.mxu0 0.0
        %2333 = vmatpush1.xpose.msra.mxu0 0.0
        %2334 = vmatprep.subr.mxu0 0.0
        %2335 = vmatpush1.xpose.msra.mxu0 0.0
        %2336 = vmatprep.subr.mxu0 0.0
        %2337 = vmatpush1.xpose.msra.mxu0 0.0
        %2338 = vmatprep.subr.mxu0 0.0
        %2339 = vmatpush1.xpose.msra.mxu0 0.0
        %2340 = vmatprep.subr.mxu0 0.0
        %2341 = vmatpush1.xpose.msra.mxu0 0.0
        %2342 = vmatprep.subr.mxu0 0.0
        %2343 = vmatpush1.xpose.msra.mxu0 0.0
        %2344 = vmatprep.subr.mxu0 0.0
        %2345 = vmatpush1.xpose.msra.mxu0 0.0
        %2346 = vmatprep.subr.mxu0 0.0
        %2347 = vmatpush1.xpose.msra.mxu0 0.0
        %2348 = vmatprep.subr.mxu0 0.0
        %2349 = vmatpush1.xpose.msra.mxu0 0.0
        %2350 = vmatprep.subr.mxu0 0.0
        %2351 = vmatpush1.xpose.msra.mxu0 0.0
        %2352 = vmatprep.subr.mxu0 0.0
        %2353 = vmatpush1.xpose.msra.mxu0 0.0
        %2354 = vmatprep.subr.mxu0 0.0
        %2355 = vmatpush1.xpose.msra.mxu0 0.0
        %2356 = vmatprep.subr.mxu0 0.0
        %2357 = vmatpush1.xpose.msra.mxu0 0.0
        %2358 = vmatprep.subr.mxu0 0.0
        %2359 = vmatpush1.xpose.msra.mxu0 0.0
        %2360 = vmatprep.subr.mxu0 0.0
        %2361 = vmatpush1.xpose.msra.mxu0 0.0
        %2362 = vmatprep.subr.mxu0 0.0
        %2363 = vmatpush1.xpose.msra.mxu0 0.0
        %2364 = vmatprep.subr.mxu0 0.0
        %2365 = vmatpush1.xpose.msra.mxu0 0.0
        %2366 = vmatprep.subr.mxu0 0.0
        %2367 = vmatpush1.xpose.msra.mxu0 0.0
        %2368 = vmatprep.subr.mxu0 0.0
        %2369 = vmatpush1.xpose.msra.mxu0 0.0
        %2370 = vmatprep.mubr.f32.mxu0 0.0
        %2371 = vmatmul.mubr.f32.gmra.mrb[0].mxu0 %v2302
        %v2372 = vpop.f32.mrb[0].mxu0
        %v2373 = vadd.f32 %v1580, %v2372
        %v2374 = vpop.f32.mrb[0].mxu0
        %2375 = vdwg.mxu0
        %v2376 = vsel %vm437, %v2373, -inf
        %2377 = vmax.xlane.f32.xlu0 %v2376
        %v2378 = vpop.xlane.xlu0 %2377
        %v2379 = vsub.f32 %v2373, %v2378
        %v2380 = vmul.f32 %v2379, 1.442695
        %v2381 = vpow.pop %v2380
        %v2382 = vsel %vm437, %v2381, 0.0
        %2383 = vadd.xlane.f32.xlu0 %v2382
        %v2384 = vpop.xlane.xlu0 %2383
        %v2385 = vrcp.pop %v2384
        %v2386 = vmul.f32 %v2381, %v2385
        %2387 = vrot.lane.b32.xlu0 %v1576, 72
        %v2388 = vpop.permute.xlu0 %2387
        %v2391 = vsel %vm437, %v2386, 0
        %2393 = vmatprep.subr.mxu0 0.0
        %2394 = vmatpush1.msra.mxu0 %v2388
        %2395 = vmatprep.subr.mxu0 0.0
        %2396 = vmatpush1.msra.mxu0 0.0
        %2397 = vmatprep.subr.mxu0 0.0
        %2398 = vmatpush1.msra.mxu0 0.0
        %2399 = vmatprep.subr.mxu0 0.0
        %2400 = vmatpush1.msra.mxu0 0.0
        %2401 = vmatprep.subr.mxu0 0.0
        %2402 = vmatpush1.msra.mxu0 0.0
        %2403 = vmatprep.subr.mxu0 0.0
        %2404 = vmatpush1.msra.mxu0 0.0
        %2405 = vmatprep.subr.mxu0 0.0
        %2406 = vmatpush1.msra.mxu0 0.0
        %2407 = vmatprep.subr.mxu0 0.0
        %2408 = vmatpush1.msra.mxu0 0.0
        %2409 = vmatprep.subr.mxu0 0.0
        %2410 = vmatpush1.msra.mxu0 0.0
        %2411 = vmatprep.subr.mxu0 0.0
        %2412 = vmatpush1.msra.mxu0 0.0
        %2413 = vmatprep.subr.mxu0 0.0
        %2414 = vmatpush1.msra.mxu0 0.0
        %2415 = vmatprep.subr.mxu0 0.0
        %2416 = vmatpush1.msra.mxu0 0.0
        %2417 = vmatprep.subr.mxu0 0.0
        %2418 = vmatpush1.msra.mxu0 0.0
        %2419 = vmatprep.subr.mxu0 0.0
        %2420 = vmatpush1.msra.mxu0 0.0
        %2421 = vmatprep.subr.mxu0 0.0
        %2422 = vmatpush1.msra.mxu0 0.0
        %2423 = vmatprep.subr.mxu0 0.0
        %2424 = vmatpush1.msra.mxu0 0.0
        %2425 = vmatprep.subr.mxu0 0.0
        %2426 = vmatpush1.msra.mxu0 0.0
        %2427 = vmatprep.subr.mxu0 0.0
        %2428 = vmatpush1.msra.mxu0 0.0
        %2429 = vmatprep.subr.mxu0 0.0
        %2430 = vmatpush1.msra.mxu0 0.0
        %2431 = vmatprep.subr.mxu0 0.0
        %2432 = vmatpush1.msra.mxu0 0.0
        %2433 = vmatprep.subr.mxu0 0.0
        %2434 = vmatpush1.msra.mxu0 0.0
        %2435 = vmatprep.subr.mxu0 0.0
        %2436 = vmatpush1.msra.mxu0 0.0
        %2437 = vmatprep.subr.mxu0 0.0
        %2438 = vmatpush1.msra.mxu0 0.0
        %2439 = vmatprep.subr.mxu0 0.0
        %2440 = vmatpush1.msra.mxu0 0.0
        %2441 = vmatprep.subr.mxu0 0.0
        %2442 = vmatpush1.msra.mxu0 0.0
        %2443 = vmatprep.subr.mxu0 0.0
        %2444 = vmatpush1.msra.mxu0 0.0
        %2445 = vmatprep.subr.mxu0 0.0
        %2446 = vmatpush1.msra.mxu0 0.0
        %2447 = vmatprep.subr.mxu0 0.0
        %2448 = vmatpush1.msra.mxu0 0.0
        %2449 = vmatprep.subr.mxu0 0.0
        %2450 = vmatpush1.msra.mxu0 0.0
        %2451 = vmatprep.subr.mxu0 0.0
        %2452 = vmatpush1.msra.mxu0 0.0
        %2453 = vmatprep.subr.mxu0 0.0
        %2454 = vmatpush1.msra.mxu0 0.0
        %2455 = vmatprep.subr.mxu0 0.0
        %2456 = vmatpush1.msra.mxu0 0.0
        %2457 = vmatprep.mubr.f32.mxu0 0.0
        %2458 = vmatmul.mubr.f32.gmra.mrb[0].mxu0 %v2391
        %v2459 = vpop.f32.mrb[0].mxu0
        %v2460 = vadd.f32 0.0, %v2459
        %v2461 = vpop.f32.mrb[0].mxu0
        %2462 = vdwg.mxu0
        %v2463 = vld [vmem:[#allocation7 + $0xe0] sm:$0xff]
        %v2465 = vsel %vm437, %v2460, 0
        %2467 = vmatprep.subr.mxu0 0.0
        %2468 = vmatpush1.msra.mxu0 %v2463
        %2469 = vmatprep.subr.mxu0 0.0
        %2470 = vmatpush1.msra.mxu0 0.0
        %2471 = vmatprep.subr.mxu0 0.0
        %2472 = vmatpush1.msra.mxu0 0.0
        %2473 = vmatprep.subr.mxu0 0.0
        %2474 = vmatpush1.msra.mxu0 0.0
        %2475 = vmatprep.subr.mxu0 0.0
        %2476 = vmatpush1.msra.mxu0 0.0
        %2477 = vmatprep.subr.mxu0 0.0
        %2478 = vmatpush1.msra.mxu0 0.0
        %2479 = vmatprep.subr.mxu0 0.0
        %2480 = vmatpush1.msra.mxu0 0.0
        %2481 = vmatprep.subr.mxu0 0.0
        %2482 = vmatpush1.msra.mxu0 0.0
        %2483 = vmatprep.subr.mxu0 0.0
        %2484 = vmatpush1.msra.mxu0 0.0
        %2485 = vmatprep.subr.mxu0 0.0
        %2486 = vmatpush1.msra.mxu0 0.0
        %2487 = vmatprep.subr.mxu0 0.0
        %2488 = vmatpush1.msra.mxu0 0.0
        %2489 = vmatprep.subr.mxu0 0.0
        %2490 = vmatpush1.msra.mxu0 0.0
        %2491 = vmatprep.subr.mxu0 0.0
        %2492 = vmatpush1.msra.mxu0 0.0
        %2493 = vmatprep.subr.mxu0 0.0
        %2494 = vmatpush1.msra.mxu0 0.0
        %2495 = vmatprep.subr.mxu0 0.0
        %2496 = vmatpush1.msra.mxu0 0.0
        %2497 = vmatprep.subr.mxu0 0.0
        %2498 = vmatpush1.msra.mxu0 0.0
        %2499 = vmatprep.subr.mxu0 0.0
        %2500 = vmatpush1.msra.mxu0 0.0
        %2501 = vmatprep.subr.mxu0 0.0
        %2502 = vmatpush1.msra.mxu0 0.0
        %2503 = vmatprep.subr.mxu0 0.0
        %2504 = vmatpush1.msra.mxu0 0.0
        %2505 = vmatprep.subr.mxu0 0.0
        %2506 = vmatpush1.msra.mxu0 0.0
        %2507 = vmatprep.subr.mxu0 0.0
        %2508 = vmatpush1.msra.mxu0 0.0
        %2509 = vmatprep.subr.mxu0 0.0
        %2510 = vmatpush1.msra.mxu0 0.0
        %2511 = vmatprep.subr.mxu0 0.0
        %2512 = vmatpush1.msra.mxu0 0.0
        %2513 = vmatprep.subr.mxu0 0.0
        %2514 = vmatpush1.msra.mxu0 0.0
        %2515 = vmatprep.subr.mxu0 0.0
        %2516 = vmatpush1.msra.mxu0 0.0
        %2517 = vmatprep.subr.mxu0 0.0
        %2518 = vmatpush1.msra.mxu0 0.0
        %2519 = vmatprep.subr.mxu0 0.0
        %2520 = vmatpush1.msra.mxu0 0.0
        %2521 = vmatprep.subr.mxu0 0.0
        %2522 = vmatpush1.msra.mxu0 0.0
        %2523 = vmatprep.subr.mxu0 0.0
        %2524 = vmatpush1.msra.mxu0 0.0
        %2525 = vmatprep.subr.mxu0 0.0
        %2526 = vmatpush1.msra.mxu0 0.0
        %2527 = vmatprep.subr.mxu0 0.0
        %2528 = vmatpush1.msra.mxu0 0.0
        %2529 = vmatprep.subr.mxu0 0.0
        %2530 = vmatpush1.msra.mxu0 0.0
        %2531 = vmatprep.mubr.f32.mxu0 0.0
        %2532 = vmatmul.mubr.f32.gmra.mrb[0].mxu0 %v2465
        %v2533 = vpop.f32.mrb[0].mxu0
        %v2534 = vadd.f32 0.0, %v2533
        %v2535 = vpop.f32.mrb[0].mxu0
        %2536 = vdwg.mxu0
        %v2537 = vadd.f32 %v2297, %v2534
        %v2538 = vadd.f32 %v1392, %v2537
        %v2539 = vld [vmem:[#allocation7 + $0xe8] sm:$0x1]
        %v2540 = vld [vmem:[#allocation7 + $0xe9] sm:$0x1]
        %v2541 = vsel %vm246, %v2538, 0.0
        %2542 = vadd.xlane.f32.xlu0 %v2541
        %v2543 = vpop.xlane.xlu0 %2542
        %v2544 = vmul.f32 %v2543, %v325
        %v2545 = vsub.f32 %v2538, %v2544
        %v2546 = vmul.f32 %v2545, %v2545
        %v2547 = vsel %vm246, %v2546, 0.0
        %2548 = vadd.xlane.f32.xlu0 %v2547
        %v2549 = vpop.xlane.xlu0 %2548
        %v2550 = vmul.f32 %v2549, %v332
        %v2551 = vlaneseq
        %v2552 = vshrl.u32 %v2551, 7
        %v2553 = vsub.s32 0, %v2552
        %v2554 = vrot.slane %v2539, %v2553
        %v2555 = vmul.f32 %v2554, %v2545
        %v2556 = vrsqrt.pop %v2550
        %v2557 = vmul.f32 %v2550, %v2556
        %vm2558 = vcmp.eq.f32.partialorder %v2550, inf
        %v2559 = vsel %vm2558, %v2550, %v2557
        %vm2560 = vcmp.eq.f32.partialorder %v2550, 0.0
        %v2561 = vand.u32 %v2550, 2147483648
        %v2562 = vsel %vm2560, %v2561, %v2559
        %v2563 = vadd.f32 %v2562, 1e-06
        %v2564 = vrcp.pop %v2563
        %v2565 = vmul.f32 %v2555, %v2564
        %v2566 = vlaneseq
        %v2567 = vshrl.u32 %v2566, 7
        %v2568 = vsub.s32 0, %v2567
        %v2569 = vrot.slane %v2540, %v2568
        %v2570 = vadd.f32 %v2565, %v2569
        %v2571 = vld [vmem:[#allocation7 + $0xf0] sm:$0xff]
        %v2572 = vld [vmem:[#allocation7 + $0xf8] sm:$0xff]
        %v2573 = vld [vmem:[#allocation7 + $0x100] sm:$0xff]
        %v2574 = vld [vmem:[#allocation7 + $0x108] sm:$0xff]
        %v2575 = vld [vmem:[#allocation7 + $0x110] sm:$0x1]
        %v2576 = vlaneseq
        %v2577 = vshrl.u32 %v2576, 7
        %v2578 = vsub.s32 0, %v2577
        %v2579 = vrot.slane %v2575, %v2578
        %v2581 = vsel %vm246, %v2570, 0
        %2583 = vmatprep.subr.mxu0 0.0
        %2584 = vmatpush1.msra.mxu0 %v2571
        %2585 = vmatprep.subr.mxu0 0.0
        %2586 = vmatpush1.msra.mxu0 %v2572
        %2587 = vmatprep.subr.mxu0 0.0
        %2588 = vmatpush1.msra.mxu0 %v2573
        %2589 = vmatprep.subr.mxu0 0.0
        %2590 = vmatpush1.msra.mxu0 %v2574
        %2591 = vmatprep.subr.mxu0 0.0
        %2592 = vmatpush1.msra.mxu0 0.0
        %2593 = vmatprep.subr.mxu0 0.0
        %2594 = vmatpush1.msra.mxu0 0.0
        %2595 = vmatprep.subr.mxu0 0.0
        %2596 = vmatpush1.msra.mxu0 0.0
        %2597 = vmatprep.subr.mxu0 0.0
        %2598 = vmatpush1.msra.mxu0 0.0
        %2599 = vmatprep.subr.mxu0 0.0
        %2600 = vmatpush1.msra.mxu0 0.0
        %2601 = vmatprep.subr.mxu0 0.0
        %2602 = vmatpush1.msra.mxu0 0.0
        %2603 = vmatprep.subr.mxu0 0.0
        %2604 = vmatpush1.msra.mxu0 0.0
        %2605 = vmatprep.subr.mxu0 0.0
        %2606 = vmatpush1.msra.mxu0 0.0
        %2607 = vmatprep.subr.mxu0 0.0
        %2608 = vmatpush1.msra.mxu0 0.0
        %2609 = vmatprep.subr.mxu0 0.0
        %2610 = vmatpush1.msra.mxu0 0.0
        %2611 = vmatprep.subr.mxu0 0.0
        %2612 = vmatpush1.msra.mxu0 0.0
        %2613 = vmatprep.subr.mxu0 0.0
        %2614 = vmatpush1.msra.mxu0 0.0
        %2615 = vmatprep.subr.mxu0 0.0
        %2616 = vmatpush1.msra.mxu0 0.0
        %2617 = vmatprep.subr.mxu0 0.0
        %2618 = vmatpush1.msra.mxu0 0.0
        %2619 = vmatprep.subr.mxu0 0.0
        %2620 = vmatpush1.msra.mxu0 0.0
        %2621 = vmatprep.subr.mxu0 0.0
        %2622 = vmatpush1.msra.mxu0 0.0
        %2623 = vmatprep.subr.mxu0 0.0
        %2624 = vmatpush1.msra.mxu0 0.0
        %2625 = vmatprep.subr.mxu0 0.0
        %2626 = vmatpush1.msra.mxu0 0.0
        %2627 = vmatprep.subr.mxu0 0.0
        %2628 = vmatpush1.msra.mxu0 0.0
        %2629 = vmatprep.subr.mxu0 0.0
        %2630 = vmatpush1.msra.mxu0 0.0
        %2631 = vmatprep.subr.mxu0 0.0
        %2632 = vmatpush1.msra.mxu0 0.0
        %2633 = vmatprep.subr.mxu0 0.0
        %2634 = vmatpush1.msra.mxu0 0.0
        %2635 = vmatprep.subr.mxu0 0.0
        %2636 = vmatpush1.msra.mxu0 0.0
        %2637 = vmatprep.subr.mxu0 0.0
        %2638 = vmatpush1.msra.mxu0 0.0
        %2639 = vmatprep.subr.mxu0 0.0
        %2640 = vmatpush1.msra.mxu0 0.0
        %2641 = vmatprep.subr.mxu0 0.0
        %2642 = vmatpush1.msra.mxu0 0.0
        %2643 = vmatprep.subr.mxu0 0.0
        %2644 = vmatpush1.msra.mxu0 0.0
        %2645 = vmatprep.subr.mxu0 0.0
        %2646 = vmatpush1.msra.mxu0 0.0
        %2647 = vmatprep.mubr.f32.mxu0 0.0
        %2648 = vmatmul.mubr.f32.gmra.mrb[0].mxu0 %v2581
        %v2649 = vpop.f32.mrb[0].mxu0
        %v2650 = vadd.f32 %v2579, %v2649
        %v2651 = vpop.f32.mrb[0].mxu0
        %2652 = vdwg.mxu0
        %v2653 = vmax.f32 %v2650, 0.0
        %v2654 = vld [vmem:[#allocation7 + $0x118] sm:$0xff]
        %v2655 = vld [vmem:[#allocation7 + $0x120] sm:$0xff]
        %v2656 = vld [vmem:[#allocation7 + $0x128] sm:$0xff]
        %v2657 = vld [vmem:[#allocation7 + $0x130] sm:$0xff]
        %v2658 = vld [vmem:[#allocation7 + $0x138] sm:$0xff]
        %v2659 = vld [vmem:[#allocation7 + $0x140] sm:$0xff]
        %v2660 = vld [vmem:[#allocation7 + $0x148] sm:$0xff]
        %v2661 = vld [vmem:[#allocation7 + $0x150] sm:$0xff]
        %v2662 = vld [vmem:[#allocation7 + $0x158] sm:$0xff]
        %v2663 = vld [vmem:[#allocation7 + $0x160] sm:$0xff]
        %v2664 = vld [vmem:[#allocation7 + $0x168] sm:$0xff]
        %v2665 = vld [vmem:[#allocation7 + $0x170] sm:$0xff]
        %v2666 = vld [vmem:[#allocation7 + $0x178] sm:$0xff]
        %v2667 = vld [vmem:[#allocation7 + $0x180] sm:$0xff]
        %v2668 = vld [vmem:[#allocation7 + $0x188] sm:$0xff]
        %v2669 = vld [vmem:[#allocation7 + $0x190] sm:$0xff]
        %v2670 = vld [vmem:[#allocation7 + $0x198] sm:$0x1]
        %v2671 = vlaneseq
        %v2672 = vshrl.u32 %v2671, 7
        %v2673 = vsub.s32 0, %v2672
        %v2674 = vrot.slane %v2670, %v2673
        %2675 = vmatprep.subr.mxu0 0.0
        %2676 = vmatpush1.msra.mxu0 %v2654
        %2677 = vmatprep.subr.mxu0 0.0
        %2678 = vmatpush1.msra.mxu0 %v2655
        %2679 = vmatprep.subr.mxu0 0.0
        %2680 = vmatpush1.msra.mxu0 %v2656
        %2681 = vmatprep.subr.mxu0 0.0
        %2682 = vmatpush1.msra.mxu0 %v2657
        %2683 = vmatprep.subr.mxu0 0.0
        %2684 = vmatpush1.msra.mxu0 %v2658
        %2685 = vmatprep.subr.mxu0 0.0
        %2686 = vmatpush1.msra.mxu0 %v2659
        %2687 = vmatprep.subr.mxu0 0.0
        %2688 = vmatpush1.msra.mxu0 %v2660
        %2689 = vmatprep.subr.mxu0 0.0
        %2690 = vmatpush1.msra.mxu0 %v2661
        %2691 = vmatprep.subr.mxu0 0.0
        %2692 = vmatpush1.msra.mxu0 %v2662
        %2693 = vmatprep.subr.mxu0 0.0
        %2694 = vmatpush1.msra.mxu0 %v2663
        %2695 = vmatprep.subr.mxu0 0.0
        %2696 = vmatpush1.msra.mxu0 %v2664
        %2697 = vmatprep.subr.mxu0 0.0
        %2698 = vmatpush1.msra.mxu0 %v2665
        %2699 = vmatprep.subr.mxu0 0.0
        %2700 = vmatpush1.msra.mxu0 %v2666
        %2701 = vmatprep.subr.mxu0 0.0
        %2702 = vmatpush1.msra.mxu0 %v2667
        %2703 = vmatprep.subr.mxu0 0.0
        %2704 = vmatpush1.msra.mxu0 %v2668
        %2705 = vmatprep.subr.mxu0 0.0
        %2706 = vmatpush1.msra.mxu0 %v2669
        %2707 = vmatprep.subr.mxu0 0.0
        %2708 = vmatpush1.msra.mxu0 0.0
        %2709 = vmatprep.subr.mxu0 0.0
        %2710 = vmatpush1.msra.mxu0 0.0
        %2711 = vmatprep.subr.mxu0 0.0
        %2712 = vmatpush1.msra.mxu0 0.0
        %2713 = vmatprep.subr.mxu0 0.0
        %2714 = vmatpush1.msra.mxu0 0.0
        %2715 = vmatprep.subr.mxu0 0.0
        %2716 = vmatpush1.msra.mxu0 0.0
        %2717 = vmatprep.subr.mxu0 0.0
        %2718 = vmatpush1.msra.mxu0 0.0
        %2719 = vmatprep.subr.mxu0 0.0
        %2720 = vmatpush1.msra.mxu0 0.0
        %2721 = vmatprep.subr.mxu0 0.0
        %2722 = vmatpush1.msra.mxu0 0.0
        %2723 = vmatprep.subr.mxu0 0.0
        %2724 = vmatpush1.msra.mxu0 0.0
        %2725 = vmatprep.subr.mxu0 0.0
        %2726 = vmatpush1.msra.mxu0 0.0
        %2727 = vmatprep.subr.mxu0 0.0
        %2728 = vmatpush1.msra.mxu0 0.0
        %2729 = vmatprep.subr.mxu0 0.0
        %2730 = vmatpush1.msra.mxu0 0.0
        %2731 = vmatprep.subr.mxu0 0.0
        %2732 = vmatpush1.msra.mxu0 0.0
        %2733 = vmatprep.subr.mxu0 0.0
        %2734 = vmatpush1.msra.mxu0 0.0
        %2735 = vmatprep.subr.mxu0 0.0
        %2736 = vmatpush1.msra.mxu0 0.0
        %2737 = vmatprep.subr.mxu0 0.0
        %2738 = vmatpush1.msra.mxu0 0.0
        %2739 = vmatprep.mubr.f32.mxu0 0.0
        %2740 = vmatmul.mubr.f32.gmra.mrb[0].mxu0 %v2653
        %v2741 = vpop.f32.mrb[0].mxu0
        %v2742 = vadd.f32 %v2674, %v2741
        %v2743 = vpop.f32.mrb[0].mxu0
        %2744 = vdwg.mxu0
        %v2745 = vmax.f32 %v2742, 0.0
        %v2746 = vld [vmem:[#allocation7 + $0x1a0] sm:$0xff]
        %v2747 = vld [vmem:[#allocation7 + $0x1a8] sm:$0xff]
        %v2748 = vld [vmem:[#allocation7 + $0x1b0] sm:$0xff]
        %v2749 = vld [vmem:[#allocation7 + $0x1b8] sm:$0xff]
        %v2750 = vld [vmem:[#allocation7 + $0x1c0] sm:$0xff]
        %v2751 = vld [vmem:[#allocation7 + $0x1c8] sm:$0xff]
        %v2752 = vld [vmem:[#allocation7 + $0x1d0] sm:$0xff]
        %v2753 = vld [vmem:[#allocation7 + $0x1d8] sm:$0xff]
        %v2754 = vld [vmem:[#allocation7 + $0x1e0] sm:$0xff]
        %v2755 = vld [vmem:[#allocation7 + $0x1e8] sm:$0xff]
        %v2756 = vld [vmem:[#allocation7 + $0x1f0] sm:$0xff]
        %v2757 = vld [vmem:[#allocation7 + $0x1f8] sm:$0xff]
        %v2758 = vld [vmem:[#allocation7 + $0x200] sm:$0xff]
        %v2759 = vld [vmem:[#allocation7 + $0x208] sm:$0xff]
        %v2760 = vld [vmem:[#allocation7 + $0x210] sm:$0xff]
        %v2761 = vld [vmem:[#allocation7 + $0x218] sm:$0xff]
        %v2762 = vld [vmem:[#allocation7 + $0x220] sm:$0x1]
        %v2763 = vlaneseq
        %v2764 = vshrl.u32 %v2763, 7
        %v2765 = vsub.s32 0, %v2764
        %v2766 = vrot.slane %v2762, %v2765
        %2767 = vmatprep.subr.mxu0 0.0
        %2768 = vmatpush1.msra.mxu0 %v2746
        %2769 = vmatprep.subr.mxu0 0.0
        %2770 = vmatpush1.msra.mxu0 %v2747
        %2771 = vmatprep.subr.mxu0 0.0
        %2772 = vmatpush1.msra.mxu0 %v2748
        %2773 = vmatprep.subr.mxu0 0.0
        %2774 = vmatpush1.msra.mxu0 %v2749
        %2775 = vmatprep.subr.mxu0 0.0
        %2776 = vmatpush1.msra.mxu0 %v2750
        %2777 = vmatprep.subr.mxu0 0.0
        %2778 = vmatpush1.msra.mxu0 %v2751
        %2779 = vmatprep.subr.mxu0 0.0
        %2780 = vmatpush1.msra.mxu0 %v2752
        %2781 = vmatprep.subr.mxu0 0.0
        %2782 = vmatpush1.msra.mxu0 %v2753
        %2783 = vmatprep.subr.mxu0 0.0
        %2784 = vmatpush1.msra.mxu0 %v2754
        %2785 = vmatprep.subr.mxu0 0.0
        %2786 = vmatpush1.msra.mxu0 %v2755
        %2787 = vmatprep.subr.mxu0 0.0
        %2788 = vmatpush1.msra.mxu0 %v2756
        %2789 = vmatprep.subr.mxu0 0.0
        %2790 = vmatpush1.msra.mxu0 %v2757
        %2791 = vmatprep.subr.mxu0 0.0
        %2792 = vmatpush1.msra.mxu0 %v2758
        %2793 = vmatprep.subr.mxu0 0.0
        %2794 = vmatpush1.msra.mxu0 %v2759
        %2795 = vmatprep.subr.mxu0 0.0
        %2796 = vmatpush1.msra.mxu0 %v2760
        %2797 = vmatprep.subr.mxu0 0.0
        %2798 = vmatpush1.msra.mxu0 %v2761
        %2799 = vmatprep.subr.mxu0 0.0
        %2800 = vmatpush1.msra.mxu0 0.0
        %2801 = vmatprep.subr.mxu0 0.0
        %2802 = vmatpush1.msra.mxu0 0.0
        %2803 = vmatprep.subr.mxu0 0.0
        %2804 = vmatpush1.msra.mxu0 0.0
        %2805 = vmatprep.subr.mxu0 0.0
        %2806 = vmatpush1.msra.mxu0 0.0
        %2807 = vmatprep.subr.mxu0 0.0
        %2808 = vmatpush1.msra.mxu0 0.0
        %2809 = vmatprep.subr.mxu0 0.0
        %2810 = vmatpush1.msra.mxu0 0.0
        %2811 = vmatprep.subr.mxu0 0.0
        %2812 = vmatpush1.msra.mxu0 0.0
        %2813 = vmatprep.subr.mxu0 0.0
        %2814 = vmatpush1.msra.mxu0 0.0
        %2815 = vmatprep.subr.mxu0 0.0
        %2816 = vmatpush1.msra.mxu0 0.0
        %2817 = vmatprep.subr.mxu0 0.0
        %2818 = vmatpush1.msra.mxu0 0.0
        %2819 = vmatprep.subr.mxu0 0.0
        %2820 = vmatpush1.msra.mxu0 0.0
        %2821 = vmatprep.subr.mxu0 0.0
        %2822 = vmatpush1.msra.mxu0 0.0
        %2823 = vmatprep.subr.mxu0 0.0
        %2824 = vmatpush1.msra.mxu0 0.0
        %2825 = vmatprep.subr.mxu0 0.0
        %2826 = vmatpush1.msra.mxu0 0.0
        %2827 = vmatprep.subr.mxu0 0.0
        %2828 = vmatpush1.msra.mxu0 0.0
        %2829 = vmatprep.subr.mxu0 0.0
        %2830 = vmatpush1.msra.mxu0 0.0
        %2831 = vmatprep.mubr.f32.mxu0 0.0
        %2832 = vmatmul.mubr.f32.gmra.mrb[0].mxu0 %v2745
        %v2833 = vpop.f32.mrb[0].mxu0
        %v2834 = vadd.f32 %v2766, %v2833
        %v2835 = vpop.f32.mrb[0].mxu0
        %2836 = vdwg.mxu0
        %v2837 = vmul.f32 %v2834, 0.5
        %v2838 = vmul.f32 %v2837, 1.442695
        %v2839 = vpow.pop %v2838
        %v2840 = vmul.f32 %v2839, %v237
        %2842 = vrot.lane.b32.xlu0 %v2840, 96
        %v2843 = vpop.permute.xlu0 %2842
        %v2845 = vadd.f32 %v2834, %v2843
        %2847 = vrot.lane.b32.xlu0 %v2834, 40
        %v2848 = vpop.permute.xlu0 %2847
        %vm2850 = vcmask 589120
        %2851 = vst.msk [vmem:[%s236] sm:$0xff] %vm2850, %v2848
        %vm2852 = vcmask 851520
        %2853 = vst.msk [vmem:[%s236] sm:$0xff] %vm2852, %v2848
        %v2854 = vld [vmem:[#allocation7 + $0x228] sm:$0xff]
        %v2855 = vld [vmem:[#allocation7 + $0x230] sm:$0xff]
        %v2856 = vld [vmem:[#allocation7 + $0x238] sm:$0xff]
        %v2857 = vld [vmem:[#allocation7 + $0x240] sm:$0xff]
        %v2858 = vld [vmem:[#allocation7 + $0x248] sm:$0x1]
        %v2859 = vlaneseq
        %v2860 = vshrl.u32 %v2859, 7
        %v2861 = vsub.s32 0, %v2860
        %v2862 = vrot.slane %v2858, %v2861
        %v2864 = vsel %vm246, %v2845, 0
        %2866 = vmatprep.subr.mxu0 0.0
        %2867 = vmatpush1.msra.mxu0 %v2854
        %2868 = vmatprep.subr.mxu0 0.0
        %2869 = vmatpush1.msra.mxu0 %v2855
        %2870 = vmatprep.subr.mxu0 0.0
        %2871 = vmatpush1.msra.mxu0 %v2856
        %2872 = vmatprep.subr.mxu0 0.0
        %2873 = vmatpush1.msra.mxu0 %v2857
        %2874 = vmatprep.subr.mxu0 0.0
        %2875 = vmatpush1.msra.mxu0 0.0
        %2876 = vmatprep.subr.mxu0 0.0
        %2877 = vmatpush1.msra.mxu0 0.0
        %2878 = vmatprep.subr.mxu0 0.0
        %2879 = vmatpush1.msra.mxu0 0.0
        %2880 = vmatprep.subr.mxu0 0.0
        %2881 = vmatpush1.msra.mxu0 0.0
        %2882 = vmatprep.subr.mxu0 0.0
        %2883 = vmatpush1.msra.mxu0 0.0
        %2884 = vmatprep.subr.mxu0 0.0
        %2885 = vmatpush1.msra.mxu0 0.0
        %2886 = vmatprep.subr.mxu0 0.0
        %2887 = vmatpush1.msra.mxu0 0.0
        %2888 = vmatprep.subr.mxu0 0.0
        %2889 = vmatpush1.msra.mxu0 0.0
        %2890 = vmatprep.subr.mxu0 0.0
        %2891 = vmatpush1.msra.mxu0 0.0
        %2892 = vmatprep.subr.mxu0 0.0
        %2893 = vmatpush1.msra.mxu0 0.0
        %2894 = vmatprep.subr.mxu0 0.0
        %2895 = vmatpush1.msra.mxu0 0.0
        %2896 = vmatprep.subr.mxu0 0.0
        %2897 = vmatpush1.msra.mxu0 0.0
        %2898 = vmatprep.subr.mxu0 0.0
        %2899 = vmatpush1.msra.mxu0 0.0
        %2900 = vmatprep.subr.mxu0 0.0
        %2901 = vmatpush1.msra.mxu0 0.0
        %2902 = vmatprep.subr.mxu0 0.0
        %2903 = vmatpush1.msra.mxu0 0.0
        %2904 = vmatprep.subr.mxu0 0.0
        %2905 = vmatpush1.msra.mxu0 0.0
        %2906 = vmatprep.subr.mxu0 0.0
        %2907 = vmatpush1.msra.mxu0 0.0
        %2908 = vmatprep.subr.mxu0 0.0
        %2909 = vmatpush1.msra.mxu0 0.0
        %2910 = vmatprep.subr.mxu0 0.0
        %2911 = vmatpush1.msra.mxu0 0.0
        %2912 = vmatprep.subr.mxu0 0.0
        %2913 = vmatpush1.msra.mxu0 0.0
        %2914 = vmatprep.subr.mxu0 0.0
        %2915 = vmatpush1.msra.mxu0 0.0
        %2916 = vmatprep.subr.mxu0 0.0
        %2917 = vmatpush1.msra.mxu0 0.0
        %2918 = vmatprep.subr.mxu0 0.0
        %2919 = vmatpush1.msra.mxu0 0.0
        %2920 = vmatprep.subr.mxu0 0.0
        %2921 = vmatpush1.msra.mxu0 0.0
        %2922 = vmatprep.subr.mxu0 0.0
        %2923 = vmatpush1.msra.mxu0 0.0
        %2924 = vmatprep.subr.mxu0 0.0
        %2925 = vmatpush1.msra.mxu0 0.0
        %2926 = vmatprep.subr.mxu0 0.0
        %2927 = vmatpush1.msra.mxu0 0.0
        %2928 = vmatprep.subr.mxu0 0.0
        %2929 = vmatpush1.msra.mxu0 0.0
        %2930 = vmatprep.mubr.f32.mxu0 0.0
        %2931 = vmatmul.mubr.f32.gmra.mrb[0].mxu0 %v2864
        %v2932 = vpop.f32.mrb[0].mxu0
        %v2933 = vadd.f32 %v2862, %v2932
        %v2934 = vpop.f32.mrb[0].mxu0
        %2935 = vdwg.mxu0
        %vm2936 = vcmask 408576
        %v2937 = vsel %vm2936, %v2933, -inf
        %2938 = vmax.xlane.f32.xlu0 %v2937
        %v2939 = vpop.xlane.xlu0 %2938
        %v2940 = vsub.f32 %v2933, %v2939
        %v2941 = vmul.f32 %v2940, 1.442695
        %v2942 = vpow.pop %v2941
        %v2943 = vsel %vm2936, %v2942, 0.0
        %2944 = vadd.xlane.f32.xlu0 %v2943
        %v2945 = vpop.xlane.xlu0 %2944
        %v2946 = vrcp.pop %v2945
        %v2947 = vmul.f32 %v2942, %v2946
        %2949 = vrot.lane.b32.xlu0 %v2947, 104
        %v2950 = vpop.permute.xlu0 %2949
        %vm2952 = vcmask 1048384
        %2953 = vst.msk [vmem:[%s236] sm:$0xff] %vm2952, %v2950
        %vm2954 = vcmask 211968
        %2955 = vst.msk [vmem:[%s236 + $0x8] sm:$0xff] %vm2954, %v2950
        %v2956 = vadd.f32 %v2538, %v2845
        %v2957 = vld [vmem:[#allocation7 + $0x250] sm:$0x1]
        %v2958 = vld [vmem:[#allocation7 + $0x251] sm:$0x1]
        %v2959 = vsel %vm246, %v2956, 0.0
        %2960 = vadd.xlane.f32.xlu0 %v2959
        %v2961 = vpop.xlane.xlu0 %2960
        %v2962 = vmul.f32 %v2961, %v325
        %v2963 = vsub.f32 %v2956, %v2962
        %v2964 = vmul.f32 %v2963, %v2963
        %v2965 = vsel %vm246, %v2964, 0.0
        %2966 = vadd.xlane.f32.xlu0 %v2965
        %v2967 = vpop.xlane.xlu0 %2966
        %v2968 = vmul.f32 %v2967, %v332
        %v2969 = vlaneseq
        %v2970 = vshrl.u32 %v2969, 7
        %v2971 = vsub.s32 0, %v2970
        %v2972 = vrot.slane %v2957, %v2971
        %v2973 = vmul.f32 %v2972, %v2963
        %v2974 = vrsqrt.pop %v2968
        %v2975 = vmul.f32 %v2968, %v2974
        %vm2976 = vcmp.eq.f32.partialorder %v2968, inf
        %v2977 = vsel %vm2976, %v2968, %v2975
        %vm2978 = vcmp.eq.f32.partialorder %v2968, 0.0
        %v2979 = vand.u32 %v2968, 2147483648
        %v2980 = vsel %vm2978, %v2979, %v2977
        %v2981 = vadd.f32 %v2980, 1e-06
        %v2982 = vrcp.pop %v2981
        %v2983 = vmul.f32 %v2973, %v2982
        %v2984 = vlaneseq
        %v2985 = vshrl.u32 %v2984, 7
        %v2986 = vsub.s32 0, %v2985
        %v2987 = vrot.slane %v2958, %v2986
        %v2988 = vadd.f32 %v2983, %v2987
        %v2989 = vrot.slane %v2988, 7
        %2990 = vset.pattern.permute.xlu0 80
        %2991 = vperm.xlu0 %2990, %v237
        %v2992 = vpop.permute.xlu0 %2991
        %v2994 = vmul.f32 %v2989, %v2992
        %v2995 = vrot.slane %v2988, 6
        %2996 = vset.pattern.permute.xlu0 81
        %2997 = vperm.xlu0 %2996, %v237
        %v2998 = vpop.permute.xlu0 %2997
        %v3000 = vmul.f32 %v2995, %v2998
        %v3001 = vld [vmem:[#allocation7 + $0x258] sm:$0xff]
        %v3002 = vld [vmem:[#allocation7 + $0x260] sm:$0xff]
        %v3003 = vld [vmem:[#allocation7 + $0x268] sm:$0xff]
        %v3004 = vld [vmem:[#allocation7 + $0x270] sm:$0xff]
        %v3005 = vld [vmem:[#allocation7 + $0x278] sm:$0xff]
        %v3006 = vld [vmem:[#allocation7 + $0x280] sm:$0xff]
        %v3007 = vld [vmem:[#allocation7 + $0x288] sm:$0xff]
        %v3008 = vld [vmem:[#allocation7 + $0x290] sm:$0xff]
        %v3010 = vsel %vm246, %v2994, 0
        %3012 = vmatprep.subr.mxu0 0.0
        %3013 = vmatpush1.msra.mxu0 %v3005
        %3014 = vmatprep.subr.mxu0 0.0
        %3015 = vmatpush1.msra.mxu0 %v3006
        %3016 = vmatprep.subr.mxu0 0.0
        %3017 = vmatpush1.msra.mxu0 %v3007
        %3018 = vmatprep.subr.mxu0 0.0
        %3019 = vmatpush1.msra.mxu0 %v3008
        %3020 = vmatprep.subr.mxu0 0.0
        %3021 = vmatpush1.msra.mxu0 0.0
        %3022 = vmatprep.subr.mxu0 0.0
        %3023 = vmatpush1.msra.mxu0 0.0
        %3024 = vmatprep.subr.mxu0 0.0
        %3025 = vmatpush1.msra.mxu0 0.0
        %3026 = vmatprep.subr.mxu0 0.0
        %3027 = vmatpush1.msra.mxu0 0.0
        %3028 = vmatprep.subr.mxu0 0.0
        %3029 = vmatpush1.msra.mxu0 0.0
        %3030 = vmatprep.subr.mxu0 0.0
        %3031 = vmatpush1.msra.mxu0 0.0
        %3032 = vmatprep.subr.mxu0 0.0
        %3033 = vmatpush1.msra.mxu0 0.0
        %3034 = vmatprep.subr.mxu0 0.0
        %3035 = vmatpush1.msra.mxu0 0.0
        %3036 = vmatprep.subr.mxu0 0.0
        %3037 = vmatpush1.msra.mxu0 0.0
        %3038 = vmatprep.subr.mxu0 0.0
        %3039 = vmatpush1.msra.mxu0 0.0
        %3040 = vmatprep.subr.mxu0 0.0
        %3041 = vmatpush1.msra.mxu0 0.0
        %3042 = vmatprep.subr.mxu0 0.0
        %3043 = vmatpush1.msra.mxu0 0.0
        %3044 = vmatprep.subr.mxu0 0.0
        %3045 = vmatpush1.msra.mxu0 0.0
        %3046 = vmatprep.subr.mxu0 0.0
        %3047 = vmatpush1.msra.mxu0 0.0
        %3048 = vmatprep.subr.mxu0 0.0
        %3049 = vmatpush1.msra.mxu0 0.0
        %3050 = vmatprep.subr.mxu0 0.0
        %3051 = vmatpush1.msra.mxu0 0.0
        %3052 = vmatprep.subr.mxu0 0.0
        %3053 = vmatpush1.msra.mxu0 0.0
        %3054 = vmatprep.subr.mxu0 0.0
        %3055 = vmatpush1.msra.mxu0 0.0
        %3056 = vmatprep.subr.mxu0 0.0
        %3057 = vmatpush1.msra.mxu0 0.0
        %3058 = vmatprep.subr.mxu0 0.0
        %3059 = vmatpush1.msra.mxu0 0.0
        %3060 = vmatprep.subr.mxu0 0.0
        %3061 = vmatpush1.msra.mxu0 0.0
        %3062 = vmatprep.subr.mxu0 0.0
        %3063 = vmatpush1.msra.mxu0 0.0
        %3064 = vmatprep.subr.mxu0 0.0
        %3065 = vmatpush1.msra.mxu0 0.0
        %3066 = vmatprep.subr.mxu0 0.0
        %3067 = vmatpush1.msra.mxu0 0.0
        %3068 = vmatprep.subr.mxu0 0.0
        %3069 = vmatpush1.msra.mxu0 0.0
        %3070 = vmatprep.subr.mxu0 0.0
        %3071 = vmatpush1.msra.mxu0 0.0
        %3072 = vmatprep.subr.mxu0 0.0
        %3073 = vmatpush1.msra.mxu0 0.0
        %3074 = vmatprep.subr.mxu0 0.0
        %3075 = vmatpush1.msra.mxu0 0.0
        %3076 = vmatprep.mubr.f32.mxu0 0.0
        %3077 = vmatmul.mubr.f32.gmra.mrb[0].mxu0 %v3010
        %v3078 = vpop.f32.mrb[0].mxu0
        %v3079 = vadd.f32 0.0, %v3078
        %v3080 = vpop.f32.mrb[0].mxu0
        %3081 = vdwg.mxu0
        %v3083 = vsel %vm246, %v3000, 0
        %3085 = vmatprep.subr.mxu0 0.0
        %3086 = vmatpush1.msra.mxu0 %v3001
        %3087 = vmatprep.subr.mxu0 0.0
        %3088 = vmatpush1.msra.mxu0 %v3002
        %3089 = vmatprep.subr.mxu0 0.0
        %3090 = vmatpush1.msra.mxu0 %v3003
        %3091 = vmatprep.subr.mxu0 0.0
        %3092 = vmatpush1.msra.mxu0 %v3004
        %3093 = vmatprep.subr.mxu0 0.0
        %3094 = vmatpush1.msra.mxu0 0.0
        %3095 = vmatprep.subr.mxu0 0.0
        %3096 = vmatpush1.msra.mxu0 0.0
        %3097 = vmatprep.subr.mxu0 0.0
        %3098 = vmatpush1.msra.mxu0 0.0
        %3099 = vmatprep.subr.mxu0 0.0
        %3100 = vmatpush1.msra.mxu0 0.0
        %3101 = vmatprep.subr.mxu0 0.0
        %3102 = vmatpush1.msra.mxu0 0.0
        %3103 = vmatprep.subr.mxu0 0.0
        %3104 = vmatpush1.msra.mxu0 0.0
        %3105 = vmatprep.subr.mxu0 0.0
        %3106 = vmatpush1.msra.mxu0 0.0
        %3107 = vmatprep.subr.mxu0 0.0
        %3108 = vmatpush1.msra.mxu0 0.0
        %3109 = vmatprep.subr.mxu0 0.0
        %3110 = vmatpush1.msra.mxu0 0.0
        %3111 = vmatprep.subr.mxu0 0.0
        %3112 = vmatpush1.msra.mxu0 0.0
        %3113 = vmatprep.subr.mxu0 0.0
        %3114 = vmatpush1.msra.mxu0 0.0
        %3115 = vmatprep.subr.mxu0 0.0
        %3116 = vmatpush1.msra.mxu0 0.0
        %3117 = vmatprep.subr.mxu0 0.0
        %3118 = vmatpush1.msra.mxu0 0.0
        %3119 = vmatprep.subr.mxu0 0.0
        %3120 = vmatpush1.msra.mxu0 0.0
        %3121 = vmatprep.subr.mxu0 0.0
        %3122 = vmatpush1.msra.mxu0 0.0
        %3123 = vmatprep.subr.mxu0 0.0
        %3124 = vmatpush1.msra.mxu0 0.0
        %3125 = vmatprep.subr.mxu0 0.0
        %3126 = vmatpush1.msra.mxu0 0.0
        %3127 = vmatprep.subr.mxu0 0.0
        %3128 = vmatpush1.msra.mxu0 0.0
        %3129 = vmatprep.subr.mxu0 0.0
        %3130 = vmatpush1.msra.mxu0 0.0
        %3131 = vmatprep.subr.mxu0 0.0
        %3132 = vmatpush1.msra.mxu0 0.0
        %3133 = vmatprep.subr.mxu0 0.0
        %3134 = vmatpush1.msra.mxu0 0.0
        %3135 = vmatprep.subr.mxu0 0.0
        %3136 = vmatpush1.msra.mxu0 0.0
        %3137 = vmatprep.subr.mxu0 0.0
        %3138 = vmatpush1.msra.mxu0 0.0
        %3139 = vmatprep.subr.mxu0 0.0
        %3140 = vmatpush1.msra.mxu0 0.0
        %3141 = vmatprep.subr.mxu0 0.0
        %3142 = vmatpush1.msra.mxu0 0.0
        %3143 = vmatprep.subr.mxu0 0.0
        %3144 = vmatpush1.msra.mxu0 0.0
        %3145 = vmatprep.subr.mxu0 0.0
        %3146 = vmatpush1.msra.mxu0 0.0
        %3147 = vmatprep.subr.mxu0 0.0
        %3148 = vmatpush1.msra.mxu0 0.0
        %3149 = vmatprep.mubr.f32.mxu0 0.0
        %3150 = vmatmul.mubr.f32.gmra.mrb[0].mxu0 %v3083
        %v3151 = vpop.f32.mrb[0].mxu0
        %v3152 = vadd.f32 %v3079, %v3151
        %v3153 = vpop.f32.mrb[0].mxu0
        %3154 = vdwg.mxu0
        %v3155 = vld [vmem:[#allocation7 + $0x298] sm:$0xff]
        %v3156 = vld [vmem:[#allocation7 + $0x2a0] sm:$0xff]
        %v3157 = vld [vmem:[#allocation7 + $0x2a8] sm:$0xff]
        %v3158 = vld [vmem:[#allocation7 + $0x2b0] sm:$0xff]
        %v3160 = vsel %vm246, %v2988, 0
        %3162 = vmatprep.subr.mxu0 0.0
        %3163 = vmatpush1.msra.mxu0 %v3155
        %3164 = vmatprep.subr.mxu0 0.0
        %3165 = vmatpush1.msra.mxu0 %v3156
        %3166 = vmatprep.subr.mxu0 0.0
        %3167 = vmatpush1.msra.mxu0 %v3157
        %3168 = vmatprep.subr.mxu0 0.0
        %3169 = vmatpush1.msra.mxu0 %v3158
        %3170 = vmatprep.subr.mxu0 0.0
        %3171 = vmatpush1.msra.mxu0 0.0
        %3172 = vmatprep.subr.mxu0 0.0
        %3173 = vmatpush1.msra.mxu0 0.0
        %3174 = vmatprep.subr.mxu0 0.0
        %3175 = vmatpush1.msra.mxu0 0.0
        %3176 = vmatprep.subr.mxu0 0.0
        %3177 = vmatpush1.msra.mxu0 0.0
        %3178 = vmatprep.subr.mxu0 0.0
        %3179 = vmatpush1.msra.mxu0 0.0
        %3180 = vmatprep.subr.mxu0 0.0
        %3181 = vmatpush1.msra.mxu0 0.0
        %3182 = vmatprep.subr.mxu0 0.0
        %3183 = vmatpush1.msra.mxu0 0.0
        %3184 = vmatprep.subr.mxu0 0.0
        %3185 = vmatpush1.msra.mxu0 0.0
        %3186 = vmatprep.subr.mxu0 0.0
        %3187 = vmatpush1.msra.mxu0 0.0
        %3188 = vmatprep.subr.mxu0 0.0
        %3189 = vmatpush1.msra.mxu0 0.0
        %3190 = vmatprep.subr.mxu0 0.0
        %3191 = vmatpush1.msra.mxu0 0.0
        %3192 = vmatprep.subr.mxu0 0.0
        %3193 = vmatpush1.msra.mxu0 0.0
        %3194 = vmatprep.subr.mxu0 0.0
        %3195 = vmatpush1.msra.mxu0 0.0
        %3196 = vmatprep.subr.mxu0 0.0
        %3197 = vmatpush1.msra.mxu0 0.0
        %3198 = vmatprep.subr.mxu0 0.0
        %3199 = vmatpush1.msra.mxu0 0.0
        %3200 = vmatprep.subr.mxu0 0.0
        %3201 = vmatpush1.msra.mxu0 0.0
        %3202 = vmatprep.subr.mxu0 0.0
        %3203 = vmatpush1.msra.mxu0 0.0
        %3204 = vmatprep.subr.mxu0 0.0
        %3205 = vmatpush1.msra.mxu0 0.0
        %3206 = vmatprep.subr.mxu0 0.0
        %3207 = vmatpush1.msra.mxu0 0.0
        %3208 = vmatprep.subr.mxu0 0.0
        %3209 = vmatpush1.msra.mxu0 0.0
        %3210 = vmatprep.subr.mxu0 0.0
        %3211 = vmatpush1.msra.mxu0 0.0
        %3212 = vmatprep.subr.mxu0 0.0
        %3213 = vmatpush1.msra.mxu0 0.0
        %3214 = vmatprep.subr.mxu0 0.0
        %3215 = vmatpush1.msra.mxu0 0.0
        %3216 = vmatprep.subr.mxu0 0.0
        %3217 = vmatpush1.msra.mxu0 0.0
        %3218 = vmatprep.subr.mxu0 0.0
        %3219 = vmatpush1.msra.mxu0 0.0
        %3220 = vmatprep.subr.mxu0 0.0
        %3221 = vmatpush1.msra.mxu0 0.0
        %3222 = vmatprep.subr.mxu0 0.0
        %3223 = vmatpush1.msra.mxu0 0.0
        %3224 = vmatprep.subr.mxu0 0.0
        %3225 = vmatpush1.msra.mxu0 0.0
        %3226 = vmatprep.mubr.f32.mxu0 0.0
        %3227 = vmatmul.mubr.f32.gmra.mrb[0].mxu0 %v3160
        %v3228 = vpop.f32.mrb[0].mxu0
        %v3229 = vadd.f32 0.0, %v3228
        %v3230 = vpop.f32.mrb[0].mxu0
        %3231 = vdwg.mxu0
        %v3232 = vadd.f32 %v3152, %v3229
        %v3233 = vld [vmem:[#allocation7 + $0x2b8] sm:$0x1]
        %v3234 = vlaneseq
        %v3235 = vshrl.u32 %v3234, 7
        %v3236 = vsub.s32 0, %v3235
        %v3237 = vrot.slane %v3233, %v3236
        %v3238 = vadd.f32 %v3232, %v3237
        %v3239 = vmax.f32 %v3238, 0.0
        %v3240 = vrot.slane %v3239, 7
        %v3241 = vmul.f32 %v3240, %v2992
        %v3242 = vrot.slane %v3239, 6
        %v3243 = vmul.f32 %v3242, %v2998
        %v3244 = vld [vmem:[#allocation7 + $0x2c0] sm:$0xff]
        %v3245 = vld [vmem:[#allocation7 + $0x2c8] sm:$0xff]
        %v3246 = vld [vmem:[#allocation7 + $0x2d0] sm:$0xff]
        %v3247 = vld [vmem:[#allocation7 + $0x2d8] sm:$0xff]
        %v3248 = vld [vmem:[#allocation7 + $0x2e0] sm:$0xff]
        %v3249 = vld [vmem:[#allocation7 + $0x2e8] sm:$0xff]
        %v3250 = vld [vmem:[#allocation7 + $0x2f0] sm:$0xff]
        %v3251 = vld [vmem:[#allocation7 + $0x2f8] sm:$0xff]
        %v3252 = vld [vmem:[#allocation7 + $0x300] sm:$0xff]
        %v3253 = vld [vmem:[#allocation7 + $0x308] sm:$0xff]
        %v3254 = vld [vmem:[#allocation7 + $0x310] sm:$0xff]
        %v3255 = vld [vmem:[#allocation7 + $0x318] sm:$0xff]
        %v3256 = vld [vmem:[#allocation7 + $0x320] sm:$0xff]
        %v3257 = vld [vmem:[#allocation7 + $0x328] sm:$0xff]
        %v3258 = vld [vmem:[#allocation7 + $0x330] sm:$0xff]
        %v3259 = vld [vmem:[#allocation7 + $0x338] sm:$0xff]
        %vm3260 = vcmask 523264
        %v3262 = vsel %vm3260, %v3241, 0
        %3264 = vmatprep.subr.mxu0 0.0
        %3265 = vmatpush1.msra.mxu0 %v3252
        %3266 = vmatprep.subr.mxu0 0.0
        %3267 = vmatpush1.msra.mxu0 %v3253
        %3268 = vmatprep.subr.mxu0 0.0
        %3269 = vmatpush1.msra.mxu0 %v3254
        %3270 = vmatprep.subr.mxu0 0.0
        %3271 = vmatpush1.msra.mxu0 %v3255
        %3272 = vmatprep.subr.mxu0 0.0
        %3273 = vmatpush1.msra.mxu0 %v3256
        %3274 = vmatprep.subr.mxu0 0.0
        %3275 = vmatpush1.msra.mxu0 %v3257
        %3276 = vmatprep.subr.mxu0 0.0
        %3277 = vmatpush1.msra.mxu0 %v3258
        %3278 = vmatprep.subr.mxu0 0.0
        %3279 = vmatpush1.msra.mxu0 %v3259
        %3280 = vmatprep.subr.mxu0 0.0
        %3281 = vmatpush1.msra.mxu0 0.0
        %3282 = vmatprep.subr.mxu0 0.0
        %3283 = vmatpush1.msra.mxu0 0.0
        %3284 = vmatprep.subr.mxu0 0.0
        %3285 = vmatpush1.msra.mxu0 0.0
        %3286 = vmatprep.subr.mxu0 0.0
        %3287 = vmatpush1.msra.mxu0 0.0
        %3288 = vmatprep.subr.mxu0 0.0
        %3289 = vmatpush1.msra.mxu0 0.0
        %3290 = vmatprep.subr.mxu0 0.0
        %3291 = vmatpush1.msra.mxu0 0.0
        %3292 = vmatprep.subr.mxu0 0.0
        %3293 = vmatpush1.msra.mxu0 0.0
        %3294 = vmatprep.subr.mxu0 0.0
        %3295 = vmatpush1.msra.mxu0 0.0
        %3296 = vmatprep.subr.mxu0 0.0
        %3297 = vmatpush1.msra.mxu0 0.0
        %3298 = vmatprep.subr.mxu0 0.0
        %3299 = vmatpush1.msra.mxu0 0.0
        %3300 = vmatprep.subr.mxu0 0.0
        %3301 = vmatpush1.msra.mxu0 0.0
        %3302 = vmatprep.subr.mxu0 0.0
        %3303 = vmatpush1.msra.mxu0 0.0
        %3304 = vmatprep.subr.mxu0 0.0
        %3305 = vmatpush1.msra.mxu0 0.0
        %3306 = vmatprep.subr.mxu0 0.0
        %3307 = vmatpush1.msra.mxu0 0.0
        %3308 = vmatprep.subr.mxu0 0.0
        %3309 = vmatpush1.msra.mxu0 0.0
        %3310 = vmatprep.subr.mxu0 0.0
        %3311 = vmatpush1.msra.mxu0 0.0
        %3312 = vmatprep.subr.mxu0 0.0
        %3313 = vmatpush1.msra.mxu0 0.0
        %3314 = vmatprep.subr.mxu0 0.0
        %3315 = vmatpush1.msra.mxu0 0.0
        %3316 = vmatprep.subr.mxu0 0.0
        %3317 = vmatpush1.msra.mxu0 0.0
        %3318 = vmatprep.subr.mxu0 0.0
        %3319 = vmatpush1.msra.mxu0 0.0
        %3320 = vmatprep.subr.mxu0 0.0
        %3321 = vmatpush1.msra.mxu0 0.0
        %3322 = vmatprep.subr.mxu0 0.0
        %3323 = vmatpush1.msra.mxu0 0.0
        %3324 = vmatprep.subr.mxu0 0.0
        %3325 = vmatpush1.msra.mxu0 0.0
        %3326 = vmatprep.subr.mxu0 0.0
        %3327 = vmatpush1.msra.mxu0 0.0
        %3328 = vmatprep.mubr.f32.mxu0 0.0
        %3329 = vmatmul.mubr.f32.gmra.mrb[0].mxu0 %v3262
        %v3330 = vpop.f32.mrb[0].mxu0
        %v3331 = vadd.f32 0.0, %v3330
        %v3332 = vpop.f32.mrb[0].mxu0
        %3333 = vdwg.mxu0
        %v3335 = vsel %vm3260, %v3243, 0
        %3337 = vmatprep.subr.mxu0 0.0
        %3338 = vmatpush1.msra.mxu0 %v3244
        %3339 = vmatprep.subr.mxu0 0.0
        %3340 = vmatpush1.msra.mxu0 %v3245
        %3341 = vmatprep.subr.mxu0 0.0
        %3342 = vmatpush1.msra.mxu0 %v3246
        %3343 = vmatprep.subr.mxu0 0.0
        %3344 = vmatpush1.msra.mxu0 %v3247
        %3345 = vmatprep.subr.mxu0 0.0
        %3346 = vmatpush1.msra.mxu0 %v3248
        %3347 = vmatprep.subr.mxu0 0.0
        %3348 = vmatpush1.msra.mxu0 %v3249
        %3349 = vmatprep.subr.mxu0 0.0
        %3350 = vmatpush1.msra.mxu0 %v3250
        %3351 = vmatprep.subr.mxu0 0.0
        %3352 = vmatpush1.msra.mxu0 %v3251
        %3353 = vmatprep.subr.mxu0 0.0
        %3354 = vmatpush1.msra.mxu0 0.0
        %3355 = vmatprep.subr.mxu0 0.0
        %3356 = vmatpush1.msra.mxu0 0.0
        %3357 = vmatprep.subr.mxu0 0.0
        %3358 = vmatpush1.msra.mxu0 0.0
        %3359 = vmatprep.subr.mxu0 0.0
        %3360 = vmatpush1.msra.mxu0 0.0
        %3361 = vmatprep.subr.mxu0 0.0
        %3362 = vmatpush1.msra.mxu0 0.0
        %3363 = vmatprep.subr.mxu0 0.0
        %3364 = vmatpush1.msra.mxu0 0.0
        %3365 = vmatprep.subr.mxu0 0.0
        %3366 = vmatpush1.msra.mxu0 0.0
        %3367 = vmatprep.subr.mxu0 0.0
        %3368 = vmatpush1.msra.mxu0 0.0
        %3369 = vmatprep.subr.mxu0 0.0
        %3370 = vmatpush1.msra.mxu0 0.0
        %3371 = vmatprep.subr.mxu0 0.0
        %3372 = vmatpush1.msra.mxu0 0.0
        %3373 = vmatprep.subr.mxu0 0.0
        %3374 = vmatpush1.msra.mxu0 0.0
        %3375 = vmatprep.subr.mxu0 0.0
        %3376 = vmatpush1.msra.mxu0 0.0
        %3377 = vmatprep.subr.mxu0 0.0
        %3378 = vmatpush1.msra.mxu0 0.0
        %3379 = vmatprep.subr.mxu0 0.0
        %3380 = vmatpush1.msra.mxu0 0.0
        %3381 = vmatprep.subr.mxu0 0.0
        %3382 = vmatpush1.msra.mxu0 0.0
        %3383 = vmatprep.subr.mxu0 0.0
        %3384 = vmatpush1.msra.mxu0 0.0
        %3385 = vmatprep.subr.mxu0 0.0
        %3386 = vmatpush1.msra.mxu0 0.0
        %3387 = vmatprep.subr.mxu0 0.0
        %3388 = vmatpush1.msra.mxu0 0.0
        %3389 = vmatprep.subr.mxu0 0.0
        %3390 = vmatpush1.msra.mxu0 0.0
        %3391 = vmatprep.subr.mxu0 0.0
        %3392 = vmatpush1.msra.mxu0 0.0
        %3393 = vmatprep.subr.mxu0 0.0
        %3394 = vmatpush1.msra.mxu0 0.0
        %3395 = vmatprep.subr.mxu0 0.0
        %3396 = vmatpush1.msra.mxu0 0.0
        %3397 = vmatprep.subr.mxu0 0.0
        %3398 = vmatpush1.msra.mxu0 0.0
        %3399 = vmatprep.subr.mxu0 0.0
        %3400 = vmatpush1.msra.mxu0 0.0
        %3401 = vmatprep.mubr.f32.mxu0 0.0
        %3402 = vmatmul.mubr.f32.gmra.mrb[0].mxu0 %v3335
        %v3403 = vpop.f32.mrb[0].mxu0
        %v3404 = vadd.f32 %v3331, %v3403
        %v3405 = vpop.f32.mrb[0].mxu0
        %3406 = vdwg.mxu0
        %v3407 = vld [vmem:[#allocation7 + $0x340] sm:$0xff]
        %v3408 = vld [vmem:[#allocation7 + $0x348] sm:$0xff]
        %v3409 = vld [vmem:[#allocation7 + $0x350] sm:$0xff]
        %v3410 = vld [vmem:[#allocation7 + $0x358] sm:$0xff]
        %v3411 = vld [vmem:[#allocation7 + $0x360] sm:$0xff]
        %v3412 = vld [vmem:[#allocation7 + $0x368] sm:$0xff]
        %v3413 = vld [vmem:[#allocation7 + $0x370] sm:$0xff]
        %v3414 = vld [vmem:[#allocation7 + $0x378] sm:$0xff]
        %v3416 = vsel %vm3260, %v3239, 0
        %3418 = vmatprep.subr.mxu0 0.0
        %3419 = vmatpush1.msra.mxu0 %v3407
        %3420 = vmatprep.subr.mxu0 0.0
        %3421 = vmatpush1.msra.mxu0 %v3408
        %3422 = vmatprep.subr.mxu0 0.0
        %3423 = vmatpush1.msra.mxu0 %v3409
        %3424 = vmatprep.subr.mxu0 0.0
        %3425 = vmatpush1.msra.mxu0 %v3410
        %3426 = vmatprep.subr.mxu0 0.0
        %3427 = vmatpush1.msra.mxu0 %v3411
        %3428 = vmatprep.subr.mxu0 0.0
        %3429 = vmatpush1.msra.mxu0 %v3412
        %3430 = vmatprep.subr.mxu0 0.0
        %3431 = vmatpush1.msra.mxu0 %v3413
        %3432 = vmatprep.subr.mxu0 0.0
        %3433 = vmatpush1.msra.mxu0 %v3414
        %3434 = vmatprep.subr.mxu0 0.0
        %3435 = vmatpush1.msra.mxu0 0.0
        %3436 = vmatprep.subr.mxu0 0.0
        %3437 = vmatpush1.msra.mxu0 0.0
        %3438 = vmatprep.subr.mxu0 0.0
        %3439 = vmatpush1.msra.mxu0 0.0
        %3440 = vmatprep.subr.mxu0 0.0
        %3441 = vmatpush1.msra.mxu0 0.0
        %3442 = vmatprep.subr.mxu0 0.0
        %3443 = vmatpush1.msra.mxu0 0.0
        %3444 = vmatprep.subr.mxu0 0.0
        %3445 = vmatpush1.msra.mxu0 0.0
        %3446 = vmatprep.subr.mxu0 0.0
        %3447 = vmatpush1.msra.mxu0 0.0
        %3448 = vmatprep.subr.mxu0 0.0
        %3449 = vmatpush1.msra.mxu0 0.0
        %3450 = vmatprep.subr.mxu0 0.0
        %3451 = vmatpush1.msra.mxu0 0.0
        %3452 = vmatprep.subr.mxu0 0.0
        %3453 = vmatpush1.msra.mxu0 0.0
        %3454 = vmatprep.subr.mxu0 0.0
        %3455 = vmatpush1.msra.mxu0 0.0
        %3456 = vmatprep.subr.mxu0 0.0
        %3457 = vmatpush1.msra.mxu0 0.0
        %3458 = vmatprep.subr.mxu0 0.0
        %3459 = vmatpush1.msra.mxu0 0.0
        %3460 = vmatprep.subr.mxu0 0.0
        %3461 = vmatpush1.msra.mxu0 0.0
        %3462 = vmatprep.subr.mxu0 0.0
        %3463 = vmatpush1.msra.mxu0 0.0
        %3464 = vmatprep.subr.mxu0 0.0
        %3465 = vmatpush1.msra.mxu0 0.0
        %3466 = vmatprep.subr.mxu0 0.0
        %3467 = vmatpush1.msra.mxu0 0.0
        %3468 = vmatprep.subr.mxu0 0.0
        %3469 = vmatpush1.msra.mxu0 0.0
        %3470 = vmatprep.subr.mxu0 0.0
        %3471 = vmatpush1.msra.mxu0 0.0
        %3472 = vmatprep.subr.mxu0 0.0
        %3473 = vmatpush1.msra.mxu0 0.0
        %3474 = vmatprep.subr.mxu0 0.0
        %3475 = vmatpush1.msra.mxu0 0.0
        %3476 = vmatprep.subr.mxu0 0.0
        %3477 = vmatpush1.msra.mxu0 0.0
        %3478 = vmatprep.subr.mxu0 0.0
        %3479 = vmatpush1.msra.mxu0 0.0
        %3480 = vmatprep.subr.mxu0 0.0
        %3481 = vmatpush1.msra.mxu0 0.0
        %3482 = vmatprep.mubr.f32.mxu0 0.0
        %3483 = vmatmul.mubr.f32.gmra.mrb[0].mxu0 %v3416
        %v3484 = vpop.f32.mrb[0].mxu0
        %v3485 = vadd.f32 0.0, %v3484
        %v3486 = vpop.f32.mrb[0].mxu0
        %3487 = vdwg.mxu0
        %v3488 = vadd.f32 %v3404, %v3485
        %v3489 = vld [vmem:[#allocation7 + $0x380] sm:$0x1]
        %v3490 = vlaneseq
        %v3491 = vshrl.u32 %v3490, 7
        %v3492 = vsub.s32 0, %v3491
        %v3493 = vrot.slane %v3489, %v3492
        %v3494 = vadd.f32 %v3488, %v3493
        %v3495 = vadd.f32 %v2956, %v3494
        %v3496 = vld [vmem:[#allocation7 + $0x28] sm:$0x1]
        %v3497 = vld [vmem:[#allocation7 + $0x29] sm:$0x1]
        %v3498 = vsel %vm246, %v3495, 0.0
        %3499 = vadd.xlane.f32.xlu0 %v3498
        %v3500 = vpop.xlane.xlu0 %3499
        %v3501 = vmul.f32 %v3500, %v325
        %v3502 = vsub.f32 %v3495, %v3501
        %v3503 = vmul.f32 %v3502, %v3502
        %v3504 = vsel %vm246, %v3503, 0.0
        %3505 = vadd.xlane.f32.xlu0 %v3504
        %v3506 = vpop.xlane.xlu0 %3505
        %v3507 = vmul.f32 %v3506, %v332
        %v3508 = vlaneseq
        %v3509 = vshrl.u32 %v3508, 7
        %v3510 = vsub.s32 0, %v3509
        %v3511 = vrot.slane %v3496, %v3510
        %v3512 = vmul.f32 %v3511, %v3502
        %v3513 = vrsqrt.pop %v3507
        %v3514 = vmul.f32 %v3507, %v3513
        %vm3515 = vcmp.eq.f32.partialorder %v3507, inf
        %v3516 = vsel %vm3515, %v3507, %v3514
        %vm3517 = vcmp.eq.f32.partialorder %v3507, 0.0
        %v3518 = vand.u32 %v3507, 2147483648
        %v3519 = vsel %vm3517, %v3518, %v3516
        %v3520 = vadd.f32 %v3519, 1e-06
        %v3521 = vrcp.pop %v3520
        %v3522 = vmul.f32 %v3512, %v3521
        %v3523 = vlaneseq
        %v3524 = vshrl.u32 %v3523, 7
        %v3525 = vsub.s32 0, %v3524
        %v3526 = vrot.slane %v3497, %v3525
        %v3527 = vadd.f32 %v3522, %v3526
        %v3528 = vld [vmem:[#allocation7 + $0x388] sm:$0x1]
        %v3529 = vld [vmem:[#allocation7 + $0x389] sm:$0x1]
        %v3530 = vsel %vm246, %v3527, 0.0
        %3531 = vadd.xlane.f32.xlu0 %v3530
        %v3532 = vpop.xlane.xlu0 %3531
        %v3533 = vmul.f32 %v3532, %v325
        %v3534 = vsub.f32 %v3527, %v3533
        %v3535 = vmul.f32 %v3534, %v3534
        %v3536 = vsel %vm246, %v3535, 0.0
        %3537 = vadd.xlane.f32.xlu0 %v3536
        %v3538 = vpop.xlane.xlu0 %3537
        %v3539 = vmul.f32 %v3538, %v332
        %v3540 = vlaneseq
        %v3541 = vshrl.u32 %v3540, 7
        %v3542 = vsub.s32 0, %v3541
        %v3543 = vrot.slane %v3528, %v3542
        %v3544 = vmul.f32 %v3543, %v3534
        %v3545 = vrsqrt.pop %v3539
        %v3546 = vmul.f32 %v3539, %v3545
        %vm3547 = vcmp.eq.f32.partialorder %v3539, inf
        %v3548 = vsel %vm3547, %v3539, %v3546
        %vm3549 = vcmp.eq.f32.partialorder %v3539, 0.0
        %v3550 = vand.u32 %v3539, 2147483648
        %v3551 = vsel %vm3549, %v3550, %v3548
        %v3552 = vadd.f32 %v3551, 1e-06
        %v3553 = vrcp.pop %v3552
        %v3554 = vmul.f32 %v3544, %v3553
        %v3555 = vlaneseq
        %v3556 = vshrl.u32 %v3555, 7
        %v3557 = vsub.s32 0, %v3556
        %v3558 = vrot.slane %v3529, %v3557
        %v3559 = vadd.f32 %v3554, %v3558
        %v3560 = vld [vmem:[#allocation7 + $0x390] sm:$0xff]
        %v3561 = vld [vmem:[#allocation7 + $0x398] sm:$0xff]
        %v3562 = vld [vmem:[#allocation7 + $0x3a0] sm:$0xff]
        %v3563 = vld [vmem:[#allocation7 + $0x3a8] sm:$0xff]
        %v3565 = vsel %vm246, %v3559, 0
        %3567 = vmatprep.subr.mxu0 0.0
        %3568 = vmatpush1.msra.mxu0 %v3560
        %3569 = vmatprep.subr.mxu0 0.0
        %3570 = vmatpush1.msra.mxu0 %v3561
        %3571 = vmatprep.subr.mxu0 0.0
        %3572 = vmatpush1.msra.mxu0 %v3562
        %3573 = vmatprep.subr.mxu0 0.0
        %3574 = vmatpush1.msra.mxu0 %v3563
        %3575 = vmatprep.subr.mxu0 0.0
        %3576 = vmatpush1.msra.mxu0 0.0
        %3577 = vmatprep.subr.mxu0 0.0
        %3578 = vmatpush1.msra.mxu0 0.0
        %3579 = vmatprep.subr.mxu0 0.0
        %3580 = vmatpush1.msra.mxu0 0.0
        %3581 = vmatprep.subr.mxu0 0.0
        %3582 = vmatpush1.msra.mxu0 0.0
        %3583 = vmatprep.subr.mxu0 0.0
        %3584 = vmatpush1.msra.mxu0 0.0
        %3585 = vmatprep.subr.mxu0 0.0
        %3586 = vmatpush1.msra.mxu0 0.0
        %3587 = vmatprep.subr.mxu0 0.0
        %3588 = vmatpush1.msra.mxu0 0.0
        %3589 = vmatprep.subr.mxu0 0.0
        %3590 = vmatpush1.msra.mxu0 0.0
        %3591 = vmatprep.subr.mxu0 0.0
        %3592 = vmatpush1.msra.mxu0 0.0
        %3593 = vmatprep.subr.mxu0 0.0
        %3594 = vmatpush1.msra.mxu0 0.0
        %3595 = vmatprep.subr.mxu0 0.0
        %3596 = vmatpush1.msra.mxu0 0.0
        %3597 = vmatprep.subr.mxu0 0.0
        %3598 = vmatpush1.msra.mxu0 0.0
        %3599 = vmatprep.subr.mxu0 0.0
        %3600 = vmatpush1.msra.mxu0 0.0
        %3601 = vmatprep.subr.mxu0 0.0
        %3602 = vmatpush1.msra.mxu0 0.0
        %3603 = vmatprep.subr.mxu0 0.0
        %3604 = vmatpush1.msra.mxu0 0.0
        %3605 = vmatprep.subr.mxu0 0.0
        %3606 = vmatpush1.msra.mxu0 0.0
        %3607 = vmatprep.subr.mxu0 0.0
        %3608 = vmatpush1.msra.mxu0 0.0
        %3609 = vmatprep.subr.mxu0 0.0
        %3610 = vmatpush1.msra.mxu0 0.0
        %3611 = vmatprep.subr.mxu0 0.0
        %3612 = vmatpush1.msra.mxu0 0.0
        %3613 = vmatprep.subr.mxu0 0.0
        %3614 = vmatpush1.msra.mxu0 0.0
        %3615 = vmatprep.subr.mxu0 0.0
        %3616 = vmatpush1.msra.mxu0 0.0
        %3617 = vmatprep.subr.mxu0 0.0
        %3618 = vmatpush1.msra.mxu0 0.0
        %3619 = vmatprep.subr.mxu0 0.0
        %3620 = vmatpush1.msra.mxu0 0.0
        %3621 = vmatprep.subr.mxu0 0.0
        %3622 = vmatpush1.msra.mxu0 0.0
        %3623 = vmatprep.subr.mxu0 0.0
        %3624 = vmatpush1.msra.mxu0 0.0
        %3625 = vmatprep.subr.mxu0 0.0
        %3626 = vmatpush1.msra.mxu0 0.0
        %3627 = vmatprep.subr.mxu0 0.0
        %3628 = vmatpush1.msra.mxu0 0.0
        %3629 = vmatprep.subr.mxu0 0.0
        %3630 = vmatpush1.msra.mxu0 0.0
        %3631 = vmatprep.mubr.f32.mxu0 0.0
        %3632 = vmatmul.mubr.f32.gmra.mrb[0].mxu0 %v3565
        %v3633 = vpop.f32.mrb[0].mxu0
        %v3634 = vadd.f32 0.0, %v3633
        %v3635 = vpop.f32.mrb[0].mxu0
        %3636 = vdwg.mxu0
        %3638 = vrot.lane.b32.xlu0 %v3634, 96
        %v3639 = vpop.permute.xlu0 %3638
        %v3640 = vsel %vm437, %v3634, 0
        %v3642 = vsel %vm437, %v3639, 0
        %3644 = vmatprep.subr.mxu0 0.0
        %3645 = vmatpush1.xpose.msra.mxu0 %v3642
        %3646 = vmatprep.subr.mxu0 0.0
        %3647 = vmatpush1.xpose.msra.mxu0 0.0
        %3648 = vmatprep.subr.mxu0 0.0
        %3649 = vmatpush1.xpose.msra.mxu0 0.0
        %3650 = vmatprep.subr.mxu0 0.0
        %3651 = vmatpush1.xpose.msra.mxu0 0.0
        %3652 = vmatprep.subr.mxu0 0.0
        %3653 = vmatpush1.xpose.msra.mxu0 0.0
        %3654 = vmatprep.subr.mxu0 0.0
        %3655 = vmatpush1.xpose.msra.mxu0 0.0
        %3656 = vmatprep.subr.mxu0 0.0
        %3657 = vmatpush1.xpose.msra.mxu0 0.0
        %3658 = vmatprep.subr.mxu0 0.0
        %3659 = vmatpush1.xpose.msra.mxu0 0.0
        %3660 = vmatprep.subr.mxu0 0.0
        %3661 = vmatpush1.xpose.msra.mxu0 0.0
        %3662 = vmatprep.subr.mxu0 0.0
        %3663 = vmatpush1.xpose.msra.mxu0 0.0
        %3664 = vmatprep.subr.mxu0 0.0
        %3665 = vmatpush1.xpose.msra.mxu0 0.0
        %3666 = vmatprep.subr.mxu0 0.0
        %3667 = vmatpush1.xpose.msra.mxu0 0.0
        %3668 = vmatprep.subr.mxu0 0.0
        %3669 = vmatpush1.xpose.msra.mxu0 0.0
        %3670 = vmatprep.subr.mxu0 0.0
        %3671 = vmatpush1.xpose.msra.mxu0 0.0
        %3672 = vmatprep.subr.mxu0 0.0
        %3673 = vmatpush1.xpose.msra.mxu0 0.0
        %3674 = vmatprep.subr.mxu0 0.0
        %3675 = vmatpush1.xpose.msra.mxu0 0.0
        %3676 = vmatprep.subr.mxu0 0.0
        %3677 = vmatpush1.xpose.msra.mxu0 0.0
        %3678 = vmatprep.subr.mxu0 0.0
        %3679 = vmatpush1.xpose.msra.mxu0 0.0
        %3680 = vmatprep.subr.mxu0 0.0
        %3681 = vmatpush1.xpose.msra.mxu0 0.0
        %3682 = vmatprep.subr.mxu0 0.0
        %3683 = vmatpush1.xpose.msra.mxu0 0.0
        %3684 = vmatprep.subr.mxu0 0.0
        %3685 = vmatpush1.xpose.msra.mxu0 0.0
        %3686 = vmatprep.subr.mxu0 0.0
        %3687 = vmatpush1.xpose.msra.mxu0 0.0
        %3688 = vmatprep.subr.mxu0 0.0
        %3689 = vmatpush1.xpose.msra.mxu0 0.0
        %3690 = vmatprep.subr.mxu0 0.0
        %3691 = vmatpush1.xpose.msra.mxu0 0.0
        %3692 = vmatprep.subr.mxu0 0.0
        %3693 = vmatpush1.xpose.msra.mxu0 0.0
        %3694 = vmatprep.subr.mxu0 0.0
        %3695 = vmatpush1.xpose.msra.mxu0 0.0
        %3696 = vmatprep.subr.mxu0 0.0
        %3697 = vmatpush1.xpose.msra.mxu0 0.0
        %3698 = vmatprep.subr.mxu0 0.0
        %3699 = vmatpush1.xpose.msra.mxu0 0.0
        %3700 = vmatprep.subr.mxu0 0.0
        %3701 = vmatpush1.xpose.msra.mxu0 0.0
        %3702 = vmatprep.subr.mxu0 0.0
        %3703 = vmatpush1.xpose.msra.mxu0 0.0
        %3704 = vmatprep.subr.mxu0 0.0
        %3705 = vmatpush1.xpose.msra.mxu0 0.0
        %3706 = vmatprep.subr.mxu0 0.0
        %3707 = vmatpush1.xpose.msra.mxu0 0.0
        %3708 = vmatprep.mubr.f32.mxu0 0.0
        %3709 = vmatmul.mubr.f32.gmra.mrb[0].mxu0 %v3640
        %v3710 = vpop.f32.mrb[0].mxu0
        %v3711 = vadd.f32 %v435, %v3710
        %v3712 = vpop.f32.mrb[0].mxu0
        %3713 = vdwg.mxu0
        %v3714 = vsel %vm437, %v3711, -inf
        %3715 = vmax.xlane.f32.xlu0 %v3714
        %v3716 = vpop.xlane.xlu0 %3715
        %v3717 = vsub.f32 %v3711, %v3716
        %v3718 = vmul.f32 %v3717, 1.442695
        %v3719 = vpow.pop %v3718
        %v3720 = vsel %vm437, %v3719, 0.0
        %3721 = vadd.xlane.f32.xlu0 %v3720
        %v3722 = vpop.xlane.xlu0 %3721
        %v3723 = vrcp.pop %v3722
        %v3724 = vmul.f32 %v3719, %v3723
        %3725 = vrot.lane.b32.xlu0 %v3634, 64
        %v3726 = vpop.permute.xlu0 %3725
        %v3729 = vsel %vm437, %v3724, 0
        %3731 = vmatprep.subr.mxu0 0.0
        %3732 = vmatpush1.msra.mxu0 %v3726
        %3733 = vmatprep.subr.mxu0 0.0
        %3734 = vmatpush1.msra.mxu0 0.0
        %3735 = vmatprep.subr.mxu0 0.0
        %3736 = vmatpush1.msra.mxu0 0.0
        %3737 = vmatprep.subr.mxu0 0.0
        %3738 = vmatpush1.msra.mxu0 0.0
        %3739 = vmatprep.subr.mxu0 0.0
        %3740 = vmatpush1.msra.mxu0 0.0
        %3741 = vmatprep.subr.mxu0 0.0
        %3742 = vmatpush1.msra.mxu0 0.0
        %3743 = vmatprep.subr.mxu0 0.0
        %3744 = vmatpush1.msra.mxu0 0.0
        %3745 = vmatprep.subr.mxu0 0.0
        %3746 = vmatpush1.msra.mxu0 0.0
        %3747 = vmatprep.subr.mxu0 0.0
        %3748 = vmatpush1.msra.mxu0 0.0
        %3749 = vmatprep.subr.mxu0 0.0
        %3750 = vmatpush1.msra.mxu0 0.0
        %3751 = vmatprep.subr.mxu0 0.0
        %3752 = vmatpush1.msra.mxu0 0.0
        %3753 = vmatprep.subr.mxu0 0.0
        %3754 = vmatpush1.msra.mxu0 0.0
        %3755 = vmatprep.subr.mxu0 0.0
        %3756 = vmatpush1.msra.mxu0 0.0
        %3757 = vmatprep.subr.mxu0 0.0
        %3758 = vmatpush1.msra.mxu0 0.0
        %3759 = vmatprep.subr.mxu0 0.0
        %3760 = vmatpush1.msra.mxu0 0.0
        %3761 = vmatprep.subr.mxu0 0.0
        %3762 = vmatpush1.msra.mxu0 0.0
        %3763 = vmatprep.subr.mxu0 0.0
        %3764 = vmatpush1.msra.mxu0 0.0
        %3765 = vmatprep.subr.mxu0 0.0
        %3766 = vmatpush1.msra.mxu0 0.0
        %3767 = vmatprep.subr.mxu0 0.0
        %3768 = vmatpush1.msra.mxu0 0.0
        %3769 = vmatprep.subr.mxu0 0.0
        %3770 = vmatpush1.msra.mxu0 0.0
        %3771 = vmatprep.subr.mxu0 0.0
        %3772 = vmatpush1.msra.mxu0 0.0
        %3773 = vmatprep.subr.mxu0 0.0
        %3774 = vmatpush1.msra.mxu0 0.0
        %3775 = vmatprep.subr.mxu0 0.0
        %3776 = vmatpush1.msra.mxu0 0.0
        %3777 = vmatprep.subr.mxu0 0.0
        %3778 = vmatpush1.msra.mxu0 0.0
        %3779 = vmatprep.subr.mxu0 0.0
        %3780 = vmatpush1.msra.mxu0 0.0
        %3781 = vmatprep.subr.mxu0 0.0
        %3782 = vmatpush1.msra.mxu0 0.0
        %3783 = vmatprep.subr.mxu0 0.0
        %3784 = vmatpush1.msra.mxu0 0.0
        %3785 = vmatprep.subr.mxu0 0.0
        %3786 = vmatpush1.msra.mxu0 0.0
        %3787 = vmatprep.subr.mxu0 0.0
        %3788 = vmatpush1.msra.mxu0 0.0
        %3789 = vmatprep.subr.mxu0 0.0
        %3790 = vmatpush1.msra.mxu0 0.0
        %3791 = vmatprep.subr.mxu0 0.0
        %3792 = vmatpush1.msra.mxu0 0.0
        %3793 = vmatprep.subr.mxu0 0.0
        %3794 = vmatpush1.msra.mxu0 0.0
        %3795 = vmatprep.mubr.f32.mxu0 0.0
        %3796 = vmatmul.mubr.f32.gmra.mrb[0].mxu0 %v3729
        %v3797 = vpop.f32.mrb[0].mxu0
        %v3798 = vadd.f32 0.0, %v3797
        %v3799 = vpop.f32.mrb[0].mxu0
        %3800 = vdwg.mxu0
        %v3801 = vld [vmem:[#allocation7 + $0x3b0] sm:$0xff]
        %3802 = vrot.lane.b32.xlu0 %v3634, 120
        %v3803 = vpop.permute.xlu0 %3802
        %3804 = vrot.lane.b32.xlu0 %v3634, 88
        %v3805 = vpop.permute.xlu0 %3804
        %v3806 = vsel %vm437, %v3803, 0
        %v3808 = vsel %vm437, %v3805, 0
        %3810 = vmatprep.subr.mxu0 0.0
        %3811 = vmatpush1.xpose.msra.mxu0 %v3808
        %3812 = vmatprep.subr.mxu0 0.0
        %3813 = vmatpush1.xpose.msra.mxu0 0.0
        %3814 = vmatprep.subr.mxu0 0.0
        %3815 = vmatpush1.xpose.msra.mxu0 0.0
        %3816 = vmatprep.subr.mxu0 0.0
        %3817 = vmatpush1.xpose.msra.mxu0 0.0
        %3818 = vmatprep.subr.mxu0 0.0
        %3819 = vmatpush1.xpose.msra.mxu0 0.0
        %3820 = vmatprep.subr.mxu0 0.0
        %3821 = vmatpush1.xpose.msra.mxu0 0.0
        %3822 = vmatprep.subr.mxu0 0.0
        %3823 = vmatpush1.xpose.msra.mxu0 0.0
        %3824 = vmatprep.subr.mxu0 0.0
        %3825 = vmatpush1.xpose.msra.mxu0 0.0
        %3826 = vmatprep.subr.mxu0 0.0
        %3827 = vmatpush1.xpose.msra.mxu0 0.0
        %3828 = vmatprep.subr.mxu0 0.0
        %3829 = vmatpush1.xpose.msra.mxu0 0.0
        %3830 = vmatprep.subr.mxu0 0.0
        %3831 = vmatpush1.xpose.msra.mxu0 0.0
        %3832 = vmatprep.subr.mxu0 0.0
        %3833 = vmatpush1.xpose.msra.mxu0 0.0
        %3834 = vmatprep.subr.mxu0 0.0
        %3835 = vmatpush1.xpose.msra.mxu0 0.0
        %3836 = vmatprep.subr.mxu0 0.0
        %3837 = vmatpush1.xpose.msra.mxu0 0.0
        %3838 = vmatprep.subr.mxu0 0.0
        %3839 = vmatpush1.xpose.msra.mxu0 0.0
        %3840 = vmatprep.subr.mxu0 0.0
        %3841 = vmatpush1.xpose.msra.mxu0 0.0
        %3842 = vmatprep.subr.mxu0 0.0
        %3843 = vmatpush1.xpose.msra.mxu0 0.0
        %3844 = vmatprep.subr.mxu0 0.0
        %3845 = vmatpush1.xpose.msra.mxu0 0.0
        %3846 = vmatprep.subr.mxu0 0.0
        %3847 = vmatpush1.xpose.msra.mxu0 0.0
        %3848 = vmatprep.subr.mxu0 0.0
        %3849 = vmatpush1.xpose.msra.mxu0 0.0
        %3850 = vmatprep.subr.mxu0 0.0
        %3851 = vmatpush1.xpose.msra.mxu0 0.0
        %3852 = vmatprep.subr.mxu0 0.0
        %3853 = vmatpush1.xpose.msra.mxu0 0.0
        %3854 = vmatprep.subr.mxu0 0.0
        %3855 = vmatpush1.xpose.msra.mxu0 0.0
        %3856 = vmatprep.subr.mxu0 0.0
        %3857 = vmatpush1.xpose.msra.mxu0 0.0
        %3858 = vmatprep.subr.mxu0 0.0
        %3859 = vmatpush1.xpose.msra.mxu0 0.0
        %3860 = vmatprep.subr.mxu0 0.0
        %3861 = vmatpush1.xpose.msra.mxu0 0.0
        %3862 = vmatprep.subr.mxu0 0.0
        %3863 = vmatpush1.xpose.msra.mxu0 0.0
        %3864 = vmatprep.subr.mxu0 0.0
        %3865 = vmatpush1.xpose.msra.mxu0 0.0
        %3866 = vmatprep.subr.mxu0 0.0
        %3867 = vmatpush1.xpose.msra.mxu0 0.0
        %3868 = vmatprep.subr.mxu0 0.0
        %3869 = vmatpush1.xpose.msra.mxu0 0.0
        %3870 = vmatprep.subr.mxu0 0.0
        %3871 = vmatpush1.xpose.msra.mxu0 0.0
        %3872 = vmatprep.subr.mxu0 0.0
        %3873 = vmatpush1.xpose.msra.mxu0 0.0
        %3874 = vmatprep.mubr.f32.mxu0 0.0
        %3875 = vmatmul.mubr.f32.gmra.mrb[0].mxu0 %v3806
        %v3876 = vpop.f32.mrb[0].mxu0
        %v3877 = vadd.f32 %v435, %v3876
        %v3878 = vpop.f32.mrb[0].mxu0
        %3879 = vdwg.mxu0
        %v3880 = vsel %vm437, %v3877, -inf
        %3881 = vmax.xlane.f32.xlu0 %v3880
        %v3882 = vpop.xlane.xlu0 %3881
        %v3883 = vsub.f32 %v3877, %v3882
        %v3884 = vmul.f32 %v3883, 1.442695
        %v3885 = vpow.pop %v3884
        %v3886 = vsel %vm437, %v3885, 0.0
        %3887 = vadd.xlane.f32.xlu0 %v3886
        %v3888 = vpop.xlane.xlu0 %3887
        %v3889 = vrcp.pop %v3888
        %v3890 = vmul.f32 %v3885, %v3889
        %3891 = vrot.lane.b32.xlu0 %v3634, 56
        %v3892 = vpop.permute.xlu0 %3891
        %v3895 = vsel %vm437, %v3890, 0
        %3897 = vmatprep.subr.mxu0 0.0
        %3898 = vmatpush1.msra.mxu0 %v3892
        %3899 = vmatprep.subr.mxu0 0.0
        %3900 = vmatpush1.msra.mxu0 0.0
        %3901 = vmatprep.subr.mxu0 0.0
        %3902 = vmatpush1.msra.mxu0 0.0
        %3903 = vmatprep.subr.mxu0 0.0
        %3904 = vmatpush1.msra.mxu0 0.0
        %3905 = vmatprep.subr.mxu0 0.0
        %3906 = vmatpush1.msra.mxu0 0.0
        %3907 = vmatprep.subr.mxu0 0.0
        %3908 = vmatpush1.msra.mxu0 0.0
        %3909 = vmatprep.subr.mxu0 0.0
        %3910 = vmatpush1.msra.mxu0 0.0
        %3911 = vmatprep.subr.mxu0 0.0
        %3912 = vmatpush1.msra.mxu0 0.0
        %3913 = vmatprep.subr.mxu0 0.0
        %3914 = vmatpush1.msra.mxu0 0.0
        %3915 = vmatprep.subr.mxu0 0.0
        %3916 = vmatpush1.msra.mxu0 0.0
        %3917 = vmatprep.subr.mxu0 0.0
        %3918 = vmatpush1.msra.mxu0 0.0
        %3919 = vmatprep.subr.mxu0 0.0
        %3920 = vmatpush1.msra.mxu0 0.0
        %3921 = vmatprep.subr.mxu0 0.0
        %3922 = vmatpush1.msra.mxu0 0.0
        %3923 = vmatprep.subr.mxu0 0.0
        %3924 = vmatpush1.msra.mxu0 0.0
        %3925 = vmatprep.subr.mxu0 0.0
        %3926 = vmatpush1.msra.mxu0 0.0
        %3927 = vmatprep.subr.mxu0 0.0
        %3928 = vmatpush1.msra.mxu0 0.0
        %3929 = vmatprep.subr.mxu0 0.0
        %3930 = vmatpush1.msra.mxu0 0.0
        %3931 = vmatprep.subr.mxu0 0.0
        %3932 = vmatpush1.msra.mxu0 0.0
        %3933 = vmatprep.subr.mxu0 0.0
        %3934 = vmatpush1.msra.mxu0 0.0
        %3935 = vmatprep.subr.mxu0 0.0
        %3936 = vmatpush1.msra.mxu0 0.0
        %3937 = vmatprep.subr.mxu0 0.0
        %3938 = vmatpush1.msra.mxu0 0.0
        %3939 = vmatprep.subr.mxu0 0.0
        %3940 = vmatpush1.msra.mxu0 0.0
        %3941 = vmatprep.subr.mxu0 0.0
        %3942 = vmatpush1.msra.mxu0 0.0
        %3943 = vmatprep.subr.mxu0 0.0
        %3944 = vmatpush1.msra.mxu0 0.0
        %3945 = vmatprep.subr.mxu0 0.0
        %3946 = vmatpush1.msra.mxu0 0.0
        %3947 = vmatprep.subr.mxu0 0.0
        %3948 = vmatpush1.msra.mxu0 0.0
        %3949 = vmatprep.subr.mxu0 0.0
        %3950 = vmatpush1.msra.mxu0 0.0
        %3951 = vmatprep.subr.mxu0 0.0
        %3952 = vmatpush1.msra.mxu0 0.0
        %3953 = vmatprep.subr.mxu0 0.0
        %3954 = vmatpush1.msra.mxu0 0.0
        %3955 = vmatprep.subr.mxu0 0.0
        %3956 = vmatpush1.msra.mxu0 0.0
        %3957 = vmatprep.subr.mxu0 0.0
        %3958 = vmatpush1.msra.mxu0 0.0
        %3959 = vmatprep.subr.mxu0 0.0
        %3960 = vmatpush1.msra.mxu0 0.0
        %3961 = vmatprep.mubr.f32.mxu0 0.0
        %3962 = vmatmul.mubr.f32.gmra.mrb[0].mxu0 %v3895
        %v3963 = vpop.f32.mrb[0].mxu0
        %v3964 = vadd.f32 0.0, %v3963
        %v3965 = vpop.f32.mrb[0].mxu0
        %3966 = vdwg.mxu0
        %v3967 = vld [vmem:[#allocation7 + $0x3b8] sm:$0xff]
        %v3969 = vsel %vm437, %v3964, 0
        %3971 = vmatprep.subr.mxu0 0.0
        %3972 = vmatpush1.msra.mxu0 %v3967
        %3973 = vmatprep.subr.mxu0 0.0
        %3974 = vmatpush1.msra.mxu0 0.0
        %3975 = vmatprep.subr.mxu0 0.0
        %3976 = vmatpush1.msra.mxu0 0.0
        %3977 = vmatprep.subr.mxu0 0.0
        %3978 = vmatpush1.msra.mxu0 0.0
        %3979 = vmatprep.subr.mxu0 0.0
        %3980 = vmatpush1.msra.mxu0 0.0
        %3981 = vmatprep.subr.mxu0 0.0
        %3982 = vmatpush1.msra.mxu0 0.0
        %3983 = vmatprep.subr.mxu0 0.0
        %3984 = vmatpush1.msra.mxu0 0.0
        %3985 = vmatprep.subr.mxu0 0.0
        %3986 = vmatpush1.msra.mxu0 0.0
        %3987 = vmatprep.subr.mxu0 0.0
        %3988 = vmatpush1.msra.mxu0 0.0
        %3989 = vmatprep.subr.mxu0 0.0
        %3990 = vmatpush1.msra.mxu0 0.0
        %3991 = vmatprep.subr.mxu0 0.0
        %3992 = vmatpush1.msra.mxu0 0.0
        %3993 = vmatprep.subr.mxu0 0.0
        %3994 = vmatpush1.msra.mxu0 0.0
        %3995 = vmatprep.subr.mxu0 0.0
        %3996 = vmatpush1.msra.mxu0 0.0
        %3997 = vmatprep.subr.mxu0 0.0
        %3998 = vmatpush1.msra.mxu0 0.0
        %3999 = vmatprep.subr.mxu0 0.0
        %4000 = vmatpush1.msra.mxu0 0.0
        %4001 = vmatprep.subr.mxu0 0.0
        %4002 = vmatpush1.msra.mxu0 0.0
        %4003 = vmatprep.subr.mxu0 0.0
        %4004 = vmatpush1.msra.mxu0 0.0
        %4005 = vmatprep.subr.mxu0 0.0
        %4006 = vmatpush1.msra.mxu0 0.0
        %4007 = vmatprep.subr.mxu0 0.0
        %4008 = vmatpush1.msra.mxu0 0.0
        %4009 = vmatprep.subr.mxu0 0.0
        %4010 = vmatpush1.msra.mxu0 0.0
        %4011 = vmatprep.subr.mxu0 0.0
        %4012 = vmatpush1.msra.mxu0 0.0
        %4013 = vmatprep.subr.mxu0 0.0
        %4014 = vmatpush1.msra.mxu0 0.0
        %4015 = vmatprep.subr.mxu0 0.0
        %4016 = vmatpush1.msra.mxu0 0.0
        %4017 = vmatprep.subr.mxu0 0.0
        %4018 = vmatpush1.msra.mxu0 0.0
        %4019 = vmatprep.subr.mxu0 0.0
        %4020 = vmatpush1.msra.mxu0 0.0
        %4021 = vmatprep.subr.mxu0 0.0
        %4022 = vmatpush1.msra.mxu0 0.0
        %4023 = vmatprep.subr.mxu0 0.0
        %4024 = vmatpush1.msra.mxu0 0.0
        %4025 = vmatprep.subr.mxu0 0.0
        %4026 = vmatpush1.msra.mxu0 0.0
        %4027 = vmatprep.subr.mxu0 0.0
        %4028 = vmatpush1.msra.mxu0 0.0
        %4029 = vmatprep.subr.mxu0 0.0
        %4030 = vmatpush1.msra.mxu0 0.0
        %4031 = vmatprep.subr.mxu0 0.0
        %4032 = vmatpush1.msra.mxu0 0.0
        %4033 = vmatprep.subr.mxu0 0.0
        %4034 = vmatpush1.msra.mxu0 0.0
        %4035 = vmatprep.mubr.f32.mxu0 0.0
        %4036 = vmatmul.mubr.f32.gmra.mrb[0].mxu0 %v3969
        %v4037 = vpop.f32.mrb[0].mxu0
        %v4038 = vadd.f32 0.0, %v4037
        %v4039 = vpop.f32.mrb[0].mxu0
        %4040 = vdwg.mxu0
        %v4042 = vsel %vm437, %v3798, 0
        %4044 = vmatprep.subr.mxu0 0.0
        %4045 = vmatpush1.msra.mxu0 %v3801
        %4046 = vmatprep.subr.mxu0 0.0
        %4047 = vmatpush1.msra.mxu0 0.0
        %4048 = vmatprep.subr.mxu0 0.0
        %4049 = vmatpush1.msra.mxu0 0.0
        %4050 = vmatprep.subr.mxu0 0.0
        %4051 = vmatpush1.msra.mxu0 0.0
        %4052 = vmatprep.subr.mxu0 0.0
        %4053 = vmatpush1.msra.mxu0 0.0
        %4054 = vmatprep.subr.mxu0 0.0
        %4055 = vmatpush1.msra.mxu0 0.0
        %4056 = vmatprep.subr.mxu0 0.0
        %4057 = vmatpush1.msra.mxu0 0.0
        %4058 = vmatprep.subr.mxu0 0.0
        %4059 = vmatpush1.msra.mxu0 0.0
        %4060 = vmatprep.subr.mxu0 0.0
        %4061 = vmatpush1.msra.mxu0 0.0
        %4062 = vmatprep.subr.mxu0 0.0
        %4063 = vmatpush1.msra.mxu0 0.0
        %4064 = vmatprep.subr.mxu0 0.0
        %4065 = vmatpush1.msra.mxu0 0.0
        %4066 = vmatprep.subr.mxu0 0.0
        %4067 = vmatpush1.msra.mxu0 0.0
        %4068 = vmatprep.subr.mxu0 0.0
        %4069 = vmatpush1.msra.mxu0 0.0
        %4070 = vmatprep.subr.mxu0 0.0
        %4071 = vmatpush1.msra.mxu0 0.0
        %4072 = vmatprep.subr.mxu0 0.0
        %4073 = vmatpush1.msra.mxu0 0.0
        %4074 = vmatprep.subr.mxu0 0.0
        %4075 = vmatpush1.msra.mxu0 0.0
        %4076 = vmatprep.subr.mxu0 0.0
        %4077 = vmatpush1.msra.mxu0 0.0
        %4078 = vmatprep.subr.mxu0 0.0
        %4079 = vmatpush1.msra.mxu0 0.0
        %4080 = vmatprep.subr.mxu0 0.0
        %4081 = vmatpush1.msra.mxu0 0.0
        %4082 = vmatprep.subr.mxu0 0.0
        %4083 = vmatpush1.msra.mxu0 0.0
        %4084 = vmatprep.subr.mxu0 0.0
        %4085 = vmatpush1.msra.mxu0 0.0
        %4086 = vmatprep.subr.mxu0 0.0
        %4087 = vmatpush1.msra.mxu0 0.0
        %4088 = vmatprep.subr.mxu0 0.0
        %4089 = vmatpush1.msra.mxu0 0.0
        %4090 = vmatprep.subr.mxu0 0.0
        %4091 = vmatpush1.msra.mxu0 0.0
        %4092 = vmatprep.subr.mxu0 0.0
        %4093 = vmatpush1.msra.mxu0 0.0
        %4094 = vmatprep.subr.mxu0 0.0
        %4095 = vmatpush1.msra.mxu0 0.0
        %4096 = vmatprep.subr.mxu0 0.0
        %4097 = vmatpush1.msra.mxu0 0.0
        %4098 = vmatprep.subr.mxu0 0.0
        %4099 = vmatpush1.msra.mxu0 0.0
        %4100 = vmatprep.subr.mxu0 0.0
        %4101 = vmatpush1.msra.mxu0 0.0
        %4102 = vmatprep.subr.mxu0 0.0
        %4103 = vmatpush1.msra.mxu0 0.0
        %4104 = vmatprep.subr.mxu0 0.0
        %4105 = vmatpush1.msra.mxu0 0.0
        %4106 = vmatprep.subr.mxu0 0.0
        %4107 = vmatpush1.msra.mxu0 0.0
        %4108 = vmatprep.mubr.f32.mxu0 0.0
        %4109 = vmatmul.mubr.f32.gmra.mrb[0].mxu0 %v4042
        %v4110 = vpop.f32.mrb[0].mxu0
        %v4111 = vadd.f32 %v4038, %v4110
        %v4112 = vpop.f32.mrb[0].mxu0
        %4113 = vdwg.mxu0
        %4114 = vrot.lane.b32.xlu0 %v3634, 112
        %v4115 = vpop.permute.xlu0 %4114
        %4116 = vrot.lane.b32.xlu0 %v3634, 80
        %v4117 = vpop.permute.xlu0 %4116
        %v4118 = vsel %vm437, %v4115, 0
        %v4120 = vsel %vm437, %v4117, 0
        %4122 = vmatprep.subr.mxu0 0.0
        %4123 = vmatpush1.xpose.msra.mxu0 %v4120
        %4124 = vmatprep.subr.mxu0 0.0
        %4125 = vmatpush1.xpose.msra.mxu0 0.0
        %4126 = vmatprep.subr.mxu0 0.0
        %4127 = vmatpush1.xpose.msra.mxu0 0.0
        %4128 = vmatprep.subr.mxu0 0.0
        %4129 = vmatpush1.xpose.msra.mxu0 0.0
        %4130 = vmatprep.subr.mxu0 0.0
        %4131 = vmatpush1.xpose.msra.mxu0 0.0
        %4132 = vmatprep.subr.mxu0 0.0
        %4133 = vmatpush1.xpose.msra.mxu0 0.0
        %4134 = vmatprep.subr.mxu0 0.0
        %4135 = vmatpush1.xpose.msra.mxu0 0.0
        %4136 = vmatprep.subr.mxu0 0.0
        %4137 = vmatpush1.xpose.msra.mxu0 0.0
        %4138 = vmatprep.subr.mxu0 0.0
        %4139 = vmatpush1.xpose.msra.mxu0 0.0
        %4140 = vmatprep.subr.mxu0 0.0
        %4141 = vmatpush1.xpose.msra.mxu0 0.0
        %4142 = vmatprep.subr.mxu0 0.0
        %4143 = vmatpush1.xpose.msra.mxu0 0.0
        %4144 = vmatprep.subr.mxu0 0.0
        %4145 = vmatpush1.xpose.msra.mxu0 0.0
        %4146 = vmatprep.subr.mxu0 0.0
        %4147 = vmatpush1.xpose.msra.mxu0 0.0
        %4148 = vmatprep.subr.mxu0 0.0
        %4149 = vmatpush1.xpose.msra.mxu0 0.0
        %4150 = vmatprep.subr.mxu0 0.0
        %4151 = vmatpush1.xpose.msra.mxu0 0.0
        %4152 = vmatprep.subr.mxu0 0.0
        %4153 = vmatpush1.xpose.msra.mxu0 0.0
        %4154 = vmatprep.subr.mxu0 0.0
        %4155 = vmatpush1.xpose.msra.mxu0 0.0
        %4156 = vmatprep.subr.mxu0 0.0
        %4157 = vmatpush1.xpose.msra.mxu0 0.0
        %4158 = vmatprep.subr.mxu0 0.0
        %4159 = vmatpush1.xpose.msra.mxu0 0.0
        %4160 = vmatprep.subr.mxu0 0.0
        %4161 = vmatpush1.xpose.msra.mxu0 0.0
        %4162 = vmatprep.subr.mxu0 0.0
        %4163 = vmatpush1.xpose.msra.mxu0 0.0
        %4164 = vmatprep.subr.mxu0 0.0
        %4165 = vmatpush1.xpose.msra.mxu0 0.0
        %4166 = vmatprep.subr.mxu0 0.0
        %4167 = vmatpush1.xpose.msra.mxu0 0.0
        %4168 = vmatprep.subr.mxu0 0.0
        %4169 = vmatpush1.xpose.msra.mxu0 0.0
        %4170 = vmatprep.subr.mxu0 0.0
        %4171 = vmatpush1.xpose.msra.mxu0 0.0
        %4172 = vmatprep.subr.mxu0 0.0
        %4173 = vmatpush1.xpose.msra.mxu0 0.0
        %4174 = vmatprep.subr.mxu0 0.0
        %4175 = vmatpush1.xpose.msra.mxu0 0.0
        %4176 = vmatprep.subr.mxu0 0.0
        %4177 = vmatpush1.xpose.msra.mxu0 0.0
        %4178 = vmatprep.subr.mxu0 0.0
        %4179 = vmatpush1.xpose.msra.mxu0 0.0
        %4180 = vmatprep.subr.mxu0 0.0
        %4181 = vmatpush1.xpose.msra.mxu0 0.0
        %4182 = vmatprep.subr.mxu0 0.0
        %4183 = vmatpush1.xpose.msra.mxu0 0.0
        %4184 = vmatprep.subr.mxu0 0.0
        %4185 = vmatpush1.xpose.msra.mxu0 0.0
        %4186 = vmatprep.mubr.f32.mxu0 0.0
        %4187 = vmatmul.mubr.f32.gmra.mrb[0].mxu0 %v4118
        %v4188 = vpop.f32.mrb[0].mxu0
        %v4189 = vadd.f32 %v435, %v4188
        %v4190 = vpop.f32.mrb[0].mxu0
        %4191 = vdwg.mxu0
        %v4192 = vsel %vm437, %v4189, -inf
        %4193 = vmax.xlane.f32.xlu0 %v4192
        %v4194 = vpop.xlane.xlu0 %4193
        %v4195 = vsub.f32 %v4189, %v4194
        %v4196 = vmul.f32 %v4195, 1.442695
        %v4197 = vpow.pop %v4196
        %v4198 = vsel %vm437, %v4197, 0.0
        %4199 = vadd.xlane.f32.xlu0 %v4198
        %v4200 = vpop.xlane.xlu0 %4199
        %v4201 = vrcp.pop %v4200
        %v4202 = vmul.f32 %v4197, %v4201
        %4203 = vrot.lane.b32.xlu0 %v3634, 48
        %v4204 = vpop.permute.xlu0 %4203
        %v4207 = vsel %vm437, %v4202, 0
        %4209 = vmatprep.subr.mxu0 0.0
        %4210 = vmatpush1.msra.mxu0 %v4204
        %4211 = vmatprep.subr.mxu0 0.0
        %4212 = vmatpush1.msra.mxu0 0.0
        %4213 = vmatprep.subr.mxu0 0.0
        %4214 = vmatpush1.msra.mxu0 0.0
        %4215 = vmatprep.subr.mxu0 0.0
        %4216 = vmatpush1.msra.mxu0 0.0
        %4217 = vmatprep.subr.mxu0 0.0
        %4218 = vmatpush1.msra.mxu0 0.0
        %4219 = vmatprep.subr.mxu0 0.0
        %4220 = vmatpush1.msra.mxu0 0.0
        %4221 = vmatprep.subr.mxu0 0.0
        %4222 = vmatpush1.msra.mxu0 0.0
        %4223 = vmatprep.subr.mxu0 0.0
        %4224 = vmatpush1.msra.mxu0 0.0
        %4225 = vmatprep.subr.mxu0 0.0
        %4226 = vmatpush1.msra.mxu0 0.0
        %4227 = vmatprep.subr.mxu0 0.0
        %4228 = vmatpush1.msra.mxu0 0.0
        %4229 = vmatprep.subr.mxu0 0.0
        %4230 = vmatpush1.msra.mxu0 0.0
        %4231 = vmatprep.subr.mxu0 0.0
        %4232 = vmatpush1.msra.mxu0 0.0
        %4233 = vmatprep.subr.mxu0 0.0
        %4234 = vmatpush1.msra.mxu0 0.0
        %4235 = vmatprep.subr.mxu0 0.0
        %4236 = vmatpush1.msra.mxu0 0.0
        %4237 = vmatprep.subr.mxu0 0.0
        %4238 = vmatpush1.msra.mxu0 0.0
        %4239 = vmatprep.subr.mxu0 0.0
        %4240 = vmatpush1.msra.mxu0 0.0
        %4241 = vmatprep.subr.mxu0 0.0
        %4242 = vmatpush1.msra.mxu0 0.0
        %4243 = vmatprep.subr.mxu0 0.0
        %4244 = vmatpush1.msra.mxu0 0.0
        %4245 = vmatprep.subr.mxu0 0.0
        %4246 = vmatpush1.msra.mxu0 0.0
        %4247 = vmatprep.subr.mxu0 0.0
        %4248 = vmatpush1.msra.mxu0 0.0
        %4249 = vmatprep.subr.mxu0 0.0
        %4250 = vmatpush1.msra.mxu0 0.0
        %4251 = vmatprep.subr.mxu0 0.0
        %4252 = vmatpush1.msra.mxu0 0.0
        %4253 = vmatprep.subr.mxu0 0.0
        %4254 = vmatpush1.msra.mxu0 0.0
        %4255 = vmatprep.subr.mxu0 0.0
        %4256 = vmatpush1.msra.mxu0 0.0
        %4257 = vmatprep.subr.mxu0 0.0
        %4258 = vmatpush1.msra.mxu0 0.0
        %4259 = vmatprep.subr.mxu0 0.0
        %4260 = vmatpush1.msra.mxu0 0.0
        %4261 = vmatprep.subr.mxu0 0.0
        %4262 = vmatpush1.msra.mxu0 0.0
        %4263 = vmatprep.subr.mxu0 0.0
        %4264 = vmatpush1.msra.mxu0 0.0
        %4265 = vmatprep.subr.mxu0 0.0
        %4266 = vmatpush1.msra.mxu0 0.0
        %4267 = vmatprep.subr.mxu0 0.0
        %4268 = vmatpush1.msra.mxu0 0.0
        %4269 = vmatprep.subr.mxu0 0.0
        %4270 = vmatpush1.msra.mxu0 0.0
        %4271 = vmatprep.subr.mxu0 0.0
        %4272 = vmatpush1.msra.mxu0 0.0
        %4273 = vmatprep.mubr.f32.mxu0 0.0
        %4274 = vmatmul.mubr.f32.gmra.mrb[0].mxu0 %v4207
        %v4275 = vpop.f32.mrb[0].mxu0
        %v4276 = vadd.f32 0.0, %v4275
        %v4277 = vpop.f32.mrb[0].mxu0
        %4278 = vdwg.mxu0
        %v4279 = vld [vmem:[#allocation7 + $0x3c0] sm:$0xff]
        %v4281 = vsel %vm437, %v4276, 0
        %4283 = vmatprep.subr.mxu0 0.0
        %4284 = vmatpush1.msra.mxu0 %v4279
        %4285 = vmatprep.subr.mxu0 0.0
        %4286 = vmatpush1.msra.mxu0 0.0
        %4287 = vmatprep.subr.mxu0 0.0
        %4288 = vmatpush1.msra.mxu0 0.0
        %4289 = vmatprep.subr.mxu0 0.0
        %4290 = vmatpush1.msra.mxu0 0.0
        %4291 = vmatprep.subr.mxu0 0.0
        %4292 = vmatpush1.msra.mxu0 0.0
        %4293 = vmatprep.subr.mxu0 0.0
        %4294 = vmatpush1.msra.mxu0 0.0
        %4295 = vmatprep.subr.mxu0 0.0
        %4296 = vmatpush1.msra.mxu0 0.0
        %4297 = vmatprep.subr.mxu0 0.0
        %4298 = vmatpush1.msra.mxu0 0.0
        %4299 = vmatprep.subr.mxu0 0.0
        %4300 = vmatpush1.msra.mxu0 0.0
        %4301 = vmatprep.subr.mxu0 0.0
        %4302 = vmatpush1.msra.mxu0 0.0
        %4303 = vmatprep.subr.mxu0 0.0
        %4304 = vmatpush1.msra.mxu0 0.0
        %4305 = vmatprep.subr.mxu0 0.0
        %4306 = vmatpush1.msra.mxu0 0.0
        %4307 = vmatprep.subr.mxu0 0.0
        %4308 = vmatpush1.msra.mxu0 0.0
        %4309 = vmatprep.subr.mxu0 0.0
        %4310 = vmatpush1.msra.mxu0 0.0
        %4311 = vmatprep.subr.mxu0 0.0
        %4312 = vmatpush1.msra.mxu0 0.0
        %4313 = vmatprep.subr.mxu0 0.0
        %4314 = vmatpush1.msra.mxu0 0.0
        %4315 = vmatprep.subr.mxu0 0.0
        %4316 = vmatpush1.msra.mxu0 0.0
        %4317 = vmatprep.subr.mxu0 0.0
        %4318 = vmatpush1.msra.mxu0 0.0
        %4319 = vmatprep.subr.mxu0 0.0
        %4320 = vmatpush1.msra.mxu0 0.0
        %4321 = vmatprep.subr.mxu0 0.0
        %4322 = vmatpush1.msra.mxu0 0.0
        %4323 = vmatprep.subr.mxu0 0.0
        %4324 = vmatpush1.msra.mxu0 0.0
        %4325 = vmatprep.subr.mxu0 0.0
        %4326 = vmatpush1.msra.mxu0 0.0
        %4327 = vmatprep.subr.mxu0 0.0
        %4328 = vmatpush1.msra.mxu0 0.0
        %4329 = vmatprep.subr.mxu0 0.0
        %4330 = vmatpush1.msra.mxu0 0.0
        %4331 = vmatprep.subr.mxu0 0.0
        %4332 = vmatpush1.msra.mxu0 0.0
        %4333 = vmatprep.subr.mxu0 0.0
        %4334 = vmatpush1.msra.mxu0 0.0
        %4335 = vmatprep.subr.mxu0 0.0
        %4336 = vmatpush1.msra.mxu0 0.0
        %4337 = vmatprep.subr.mxu0 0.0
        %4338 = vmatpush1.msra.mxu0 0.0
        %4339 = vmatprep.subr.mxu0 0.0
        %4340 = vmatpush1.msra.mxu0 0.0
        %4341 = vmatprep.subr.mxu0 0.0
        %4342 = vmatpush1.msra.mxu0 0.0
        %4343 = vmatprep.subr.mxu0 0.0
        %4344 = vmatpush1.msra.mxu0 0.0
        %4345 = vmatprep.subr.mxu0 0.0
        %4346 = vmatpush1.msra.mxu0 0.0
        %4347 = vmatprep.mubr.f32.mxu0 0.0
        %4348 = vmatmul.mubr.f32.gmra.mrb[0].mxu0 %v4281
        %v4349 = vpop.f32.mrb[0].mxu0
        %v4350 = vadd.f32 0.0, %v4349
        %v4351 = vpop.f32.mrb[0].mxu0
        %4352 = vdwg.mxu0
        %v4353 = vadd.f32 %v4111, %v4350
        %4354 = vrot.lane.b32.xlu0 %v3634, 104
        %v4355 = vpop.permute.xlu0 %4354
        %4356 = vrot.lane.b32.xlu0 %v3634, 72
        %v4357 = vpop.permute.xlu0 %4356
        %v4358 = vsel %vm437, %v4355, 0
        %v4360 = vsel %vm437, %v4357, 0
        %4362 = vmatprep.subr.mxu0 0.0
        %4363 = vmatpush1.xpose.msra.mxu0 %v4360
        %4364 = vmatprep.subr.mxu0 0.0
        %4365 = vmatpush1.xpose.msra.mxu0 0.0
        %4366 = vmatprep.subr.mxu0 0.0
        %4367 = vmatpush1.xpose.msra.mxu0 0.0
        %4368 = vmatprep.subr.mxu0 0.0
        %4369 = vmatpush1.xpose.msra.mxu0 0.0
        %4370 = vmatprep.subr.mxu0 0.0
        %4371 = vmatpush1.xpose.msra.mxu0 0.0
        %4372 = vmatprep.subr.mxu0 0.0
        %4373 = vmatpush1.xpose.msra.mxu0 0.0
        %4374 = vmatprep.subr.mxu0 0.0
        %4375 = vmatpush1.xpose.msra.mxu0 0.0
        %4376 = vmatprep.subr.mxu0 0.0
        %4377 = vmatpush1.xpose.msra.mxu0 0.0
        %4378 = vmatprep.subr.mxu0 0.0
        %4379 = vmatpush1.xpose.msra.mxu0 0.0
        %4380 = vmatprep.subr.mxu0 0.0
        %4381 = vmatpush1.xpose.msra.mxu0 0.0
        %4382 = vmatprep.subr.mxu0 0.0
        %4383 = vmatpush1.xpose.msra.mxu0 0.0
        %4384 = vmatprep.subr.mxu0 0.0
        %4385 = vmatpush1.xpose.msra.mxu0 0.0
        %4386 = vmatprep.subr.mxu0 0.0
        %4387 = vmatpush1.xpose.msra.mxu0 0.0
        %4388 = vmatprep.subr.mxu0 0.0
        %4389 = vmatpush1.xpose.msra.mxu0 0.0
        %4390 = vmatprep.subr.mxu0 0.0
        %4391 = vmatpush1.xpose.msra.mxu0 0.0
        %4392 = vmatprep.subr.mxu0 0.0
        %4393 = vmatpush1.xpose.msra.mxu0 0.0
        %4394 = vmatprep.subr.mxu0 0.0
        %4395 = vmatpush1.xpose.msra.mxu0 0.0
        %4396 = vmatprep.subr.mxu0 0.0
        %4397 = vmatpush1.xpose.msra.mxu0 0.0
        %4398 = vmatprep.subr.mxu0 0.0
        %4399 = vmatpush1.xpose.msra.mxu0 0.0
        %4400 = vmatprep.subr.mxu0 0.0
        %4401 = vmatpush1.xpose.msra.mxu0 0.0
        %4402 = vmatprep.subr.mxu0 0.0
        %4403 = vmatpush1.xpose.msra.mxu0 0.0
        %4404 = vmatprep.subr.mxu0 0.0
        %4405 = vmatpush1.xpose.msra.mxu0 0.0
        %4406 = vmatprep.subr.mxu0 0.0
        %4407 = vmatpush1.xpose.msra.mxu0 0.0
        %4408 = vmatprep.subr.mxu0 0.0
        %4409 = vmatpush1.xpose.msra.mxu0 0.0
        %4410 = vmatprep.subr.mxu0 0.0
        %4411 = vmatpush1.xpose.msra.mxu0 0.0
        %4412 = vmatprep.subr.mxu0 0.0
        %4413 = vmatpush1.xpose.msra.mxu0 0.0
        %4414 = vmatprep.subr.mxu0 0.0
        %4415 = vmatpush1.xpose.msra.mxu0 0.0
        %4416 = vmatprep.subr.mxu0 0.0
        %4417 = vmatpush1.xpose.msra.mxu0 0.0
        %4418 = vmatprep.subr.mxu0 0.0
        %4419 = vmatpush1.xpose.msra.mxu0 0.0
        %4420 = vmatprep.subr.mxu0 0.0
        %4421 = vmatpush1.xpose.msra.mxu0 0.0
        %4422 = vmatprep.subr.mxu0 0.0
        %4423 = vmatpush1.xpose.msra.mxu0 0.0
        %4424 = vmatprep.subr.mxu0 0.0
        %4425 = vmatpush1.xpose.msra.mxu0 0.0
        %4426 = vmatprep.mubr.f32.mxu0 0.0
        %4427 = vmatmul.mubr.f32.gmra.mrb[0].mxu0 %v4358
        %v4428 = vpop.f32.mrb[0].mxu0
        %v4429 = vadd.f32 %v435, %v4428
        %v4430 = vpop.f32.mrb[0].mxu0
        %4431 = vdwg.mxu0
        %v4432 = vsel %vm437, %v4429, -inf
        %4433 = vmax.xlane.f32.xlu0 %v4432
        %v4434 = vpop.xlane.xlu0 %4433
        %v4435 = vsub.f32 %v4429, %v4434
        %v4436 = vmul.f32 %v4435, 1.442695
        %v4437 = vpow.pop %v4436
        %v4438 = vsel %vm437, %v4437, 0.0
        %4439 = vadd.xlane.f32.xlu0 %v4438
        %v4440 = vpop.xlane.xlu0 %4439
        %v4441 = vrcp.pop %v4440
        %v4442 = vmul.f32 %v4437, %v4441
        %4443 = vrot.lane.b32.xlu0 %v3634, 40
        %v4444 = vpop.permute.xlu0 %4443
        %v4447 = vsel %vm437, %v4442, 0
        %4449 = vmatprep.subr.mxu0 0.0
        %4450 = vmatpush1.msra.mxu0 %v4444
        %4451 = vmatprep.subr.mxu0 0.0
        %4452 = vmatpush1.msra.mxu0 0.0
        %4453 = vmatprep.subr.mxu0 0.0
        %4454 = vmatpush1.msra.mxu0 0.0
        %4455 = vmatprep.subr.mxu0 0.0
        %4456 = vmatpush1.msra.mxu0 0.0
        %4457 = vmatprep.subr.mxu0 0.0
        %4458 = vmatpush1.msra.mxu0 0.0
        %4459 = vmatprep.subr.mxu0 0.0
        %4460 = vmatpush1.msra.mxu0 0.0
        %4461 = vmatprep.subr.mxu0 0.0
        %4462 = vmatpush1.msra.mxu0 0.0
        %4463 = vmatprep.subr.mxu0 0.0
        %4464 = vmatpush1.msra.mxu0 0.0
        %4465 = vmatprep.subr.mxu0 0.0
        %4466 = vmatpush1.msra.mxu0 0.0
        %4467 = vmatprep.subr.mxu0 0.0
        %4468 = vmatpush1.msra.mxu0 0.0
        %4469 = vmatprep.subr.mxu0 0.0
        %4470 = vmatpush1.msra.mxu0 0.0
        %4471 = vmatprep.subr.mxu0 0.0
        %4472 = vmatpush1.msra.mxu0 0.0
        %4473 = vmatprep.subr.mxu0 0.0
        %4474 = vmatpush1.msra.mxu0 0.0
        %4475 = vmatprep.subr.mxu0 0.0
        %4476 = vmatpush1.msra.mxu0 0.0
        %4477 = vmatprep.subr.mxu0 0.0
        %4478 = vmatpush1.msra.mxu0 0.0
        %4479 = vmatprep.subr.mxu0 0.0
        %4480 = vmatpush1.msra.mxu0 0.0
        %4481 = vmatprep.subr.mxu0 0.0
        %4482 = vmatpush1.msra.mxu0 0.0
        %4483 = vmatprep.subr.mxu0 0.0
        %4484 = vmatpush1.msra.mxu0 0.0
        %4485 = vmatprep.subr.mxu0 0.0
        %4486 = vmatpush1.msra.mxu0 0.0
        %4487 = vmatprep.subr.mxu0 0.0
        %4488 = vmatpush1.msra.mxu0 0.0
        %4489 = vmatprep.subr.mxu0 0.0
        %4490 = vmatpush1.msra.mxu0 0.0
        %4491 = vmatprep.subr.mxu0 0.0
        %4492 = vmatpush1.msra.mxu0 0.0
        %4493 = vmatprep.subr.mxu0 0.0
        %4494 = vmatpush1.msra.mxu0 0.0
        %4495 = vmatprep.subr.mxu0 0.0
        %4496 = vmatpush1.msra.mxu0 0.0
        %4497 = vmatprep.subr.mxu0 0.0
        %4498 = vmatpush1.msra.mxu0 0.0
        %4499 = vmatprep.subr.mxu0 0.0
        %4500 = vmatpush1.msra.mxu0 0.0
        %4501 = vmatprep.subr.mxu0 0.0
        %4502 = vmatpush1.msra.mxu0 0.0
        %4503 = vmatprep.subr.mxu0 0.0
        %4504 = vmatpush1.msra.mxu0 0.0
        %4505 = vmatprep.subr.mxu0 0.0
        %4506 = vmatpush1.msra.mxu0 0.0
        %4507 = vmatprep.subr.mxu0 0.0
        %4508 = vmatpush1.msra.mxu0 0.0
        %4509 = vmatprep.subr.mxu0 0.0
        %4510 = vmatpush1.msra.mxu0 0.0
        %4511 = vmatprep.subr.mxu0 0.0
        %4512 = vmatpush1.msra.mxu0 0.0
        %4513 = vmatprep.mubr.f32.mxu0 0.0
        %4514 = vmatmul.mubr.f32.gmra.mrb[0].mxu0 %v4447
        %v4515 = vpop.f32.mrb[0].mxu0
        %v4516 = vadd.f32 0.0, %v4515
        %v4517 = vpop.f32.mrb[0].mxu0
        %4518 = vdwg.mxu0
        %v4519 = vld [vmem:[#allocation7 + $0x3c8] sm:$0xff]
        %v4521 = vsel %vm437, %v4516, 0
        %4523 = vmatprep.subr.mxu0 0.0
        %4524 = vmatpush1.msra.mxu0 %v4519
        %4525 = vmatprep.subr.mxu0 0.0
        %4526 = vmatpush1.msra.mxu0 0.0
        %4527 = vmatprep.subr.mxu0 0.0
        %4528 = vmatpush1.msra.mxu0 0.0
        %4529 = vmatprep.subr.mxu0 0.0
        %4530 = vmatpush1.msra.mxu0 0.0
        %4531 = vmatprep.subr.mxu0 0.0
        %4532 = vmatpush1.msra.mxu0 0.0
        %4533 = vmatprep.subr.mxu0 0.0
        %4534 = vmatpush1.msra.mxu0 0.0
        %4535 = vmatprep.subr.mxu0 0.0
        %4536 = vmatpush1.msra.mxu0 0.0
        %4537 = vmatprep.subr.mxu0 0.0
        %4538 = vmatpush1.msra.mxu0 0.0
        %4539 = vmatprep.subr.mxu0 0.0
        %4540 = vmatpush1.msra.mxu0 0.0
        %4541 = vmatprep.subr.mxu0 0.0
        %4542 = vmatpush1.msra.mxu0 0.0
        %4543 = vmatprep.subr.mxu0 0.0
        %4544 = vmatpush1.msra.mxu0 0.0
        %4545 = vmatprep.subr.mxu0 0.0
        %4546 = vmatpush1.msra.mxu0 0.0
        %4547 = vmatprep.subr.mxu0 0.0
        %4548 = vmatpush1.msra.mxu0 0.0
        %4549 = vmatprep.subr.mxu0 0.0
        %4550 = vmatpush1.msra.mxu0 0.0
        %4551 = vmatprep.subr.mxu0 0.0
        %4552 = vmatpush1.msra.mxu0 0.0
        %4553 = vmatprep.subr.mxu0 0.0
        %4554 = vmatpush1.msra.mxu0 0.0
        %4555 = vmatprep.subr.mxu0 0.0
        %4556 = vmatpush1.msra.mxu0 0.0
        %4557 = vmatprep.subr.mxu0 0.0
        %4558 = vmatpush1.msra.mxu0 0.0
        %4559 = vmatprep.subr.mxu0 0.0
        %4560 = vmatpush1.msra.mxu0 0.0
        %4561 = vmatprep.subr.mxu0 0.0
        %4562 = vmatpush1.msra.mxu0 0.0
        %4563 = vmatprep.subr.mxu0 0.0
        %4564 = vmatpush1.msra.mxu0 0.0
        %4565 = vmatprep.subr.mxu0 0.0
        %4566 = vmatpush1.msra.mxu0 0.0
        %4567 = vmatprep.subr.mxu0 0.0
        %4568 = vmatpush1.msra.mxu0 0.0
        %4569 = vmatprep.subr.mxu0 0.0
        %4570 = vmatpush1.msra.mxu0 0.0
        %4571 = vmatprep.subr.mxu0 0.0
        %4572 = vmatpush1.msra.mxu0 0.0
        %4573 = vmatprep.subr.mxu0 0.0
        %4574 = vmatpush1.msra.mxu0 0.0
        %4575 = vmatprep.subr.mxu0 0.0
        %4576 = vmatpush1.msra.mxu0 0.0
        %4577 = vmatprep.subr.mxu0 0.0
        %4578 = vmatpush1.msra.mxu0 0.0
        %4579 = vmatprep.subr.mxu0 0.0
        %4580 = vmatpush1.msra.mxu0 0.0
        %4581 = vmatprep.subr.mxu0 0.0
        %4582 = vmatpush1.msra.mxu0 0.0
        %4583 = vmatprep.subr.mxu0 0.0
        %4584 = vmatpush1.msra.mxu0 0.0
        %4585 = vmatprep.subr.mxu0 0.0
        %4586 = vmatpush1.msra.mxu0 0.0
        %4587 = vmatprep.mubr.f32.mxu0 0.0
        %4588 = vmatmul.mubr.f32.gmra.mrb[0].mxu0 %v4521
        %v4589 = vpop.f32.mrb[0].mxu0
        %v4590 = vadd.f32 0.0, %v4589
        %v4591 = vpop.f32.mrb[0].mxu0
        %4592 = vdwg.mxu0
        %v4593 = vadd.f32 %v4353, %v4590
        %v4594 = vadd.f32 %v3527, %v4593
        %v4595 = vld [vmem:[#allocation7 + $0x3d0] sm:$0x1]
        %v4596 = vld [vmem:[#allocation7 + $0x3d1] sm:$0x1]
        %v4597 = vsel %vm246, %v4594, 0.0
        %4598 = vadd.xlane.f32.xlu0 %v4597
        %v4599 = vpop.xlane.xlu0 %4598
        %v4600 = vmul.f32 %v4599, %v325
        %v4601 = vsub.f32 %v4594, %v4600
        %v4602 = vmul.f32 %v4601, %v4601
        %v4603 = vsel %vm246, %v4602, 0.0
        %4604 = vadd.xlane.f32.xlu0 %v4603
        %v4605 = vpop.xlane.xlu0 %4604
        %v4606 = vmul.f32 %v4605, %v332
        %v4607 = vlaneseq
        %v4608 = vshrl.u32 %v4607, 7
        %v4609 = vsub.s32 0, %v4608
        %v4610 = vrot.slane %v4595, %v4609
        %v4611 = vmul.f32 %v4610, %v4601
        %v4612 = vrsqrt.pop %v4606
        %v4613 = vmul.f32 %v4606, %v4612
        %vm4614 = vcmp.eq.f32.partialorder %v4606, inf
        %v4615 = vsel %vm4614, %v4606, %v4613
        %vm4616 = vcmp.eq.f32.partialorder %v4606, 0.0
        %v4617 = vand.u32 %v4606, 2147483648
        %v4618 = vsel %vm4616, %v4617, %v4615
        %v4619 = vadd.f32 %v4618, 1e-06
        %v4620 = vrcp.pop %v4619
        %v4621 = vmul.f32 %v4611, %v4620
        %v4622 = vlaneseq
        %v4623 = vshrl.u32 %v4622, 7
        %v4624 = vsub.s32 0, %v4623
        %v4625 = vrot.slane %v4596, %v4624
        %v4626 = vadd.f32 %v4621, %v4625
        %v4627 = vld [vmem:[#allocation7 + $0x3d8] sm:$0xff]
        %v4628 = vld [vmem:[#allocation7 + $0x3e0] sm:$0xff]
        %v4629 = vld [vmem:[#allocation7 + $0x3e8] sm:$0xff]
        %v4630 = vld [vmem:[#allocation7 + $0x3f0] sm:$0xff]
        %v4632 = vsel %vm246, %v4626, 0
        %4634 = vmatprep.subr.mxu0 0.0
        %4635 = vmatpush1.msra.mxu0 %v4627
        %4636 = vmatprep.subr.mxu0 0.0
        %4637 = vmatpush1.msra.mxu0 %v4628
        %4638 = vmatprep.subr.mxu0 0.0
        %4639 = vmatpush1.msra.mxu0 %v4629
        %4640 = vmatprep.subr.mxu0 0.0
        %4641 = vmatpush1.msra.mxu0 %v4630
        %4642 = vmatprep.subr.mxu0 0.0
        %4643 = vmatpush1.msra.mxu0 0.0
        %4644 = vmatprep.subr.mxu0 0.0
        %4645 = vmatpush1.msra.mxu0 0.0
        %4646 = vmatprep.subr.mxu0 0.0
        %4647 = vmatpush1.msra.mxu0 0.0
        %4648 = vmatprep.subr.mxu0 0.0
        %4649 = vmatpush1.msra.mxu0 0.0
        %4650 = vmatprep.subr.mxu0 0.0
        %4651 = vmatpush1.msra.mxu0 0.0
        %4652 = vmatprep.subr.mxu0 0.0
        %4653 = vmatpush1.msra.mxu0 0.0
        %4654 = vmatprep.subr.mxu0 0.0
        %4655 = vmatpush1.msra.mxu0 0.0
        %4656 = vmatprep.subr.mxu0 0.0
        %4657 = vmatpush1.msra.mxu0 0.0
        %4658 = vmatprep.subr.mxu0 0.0
        %4659 = vmatpush1.msra.mxu0 0.0
        %4660 = vmatprep.subr.mxu0 0.0
        %4661 = vmatpush1.msra.mxu0 0.0
        %4662 = vmatprep.subr.mxu0 0.0
        %4663 = vmatpush1.msra.mxu0 0.0
        %4664 = vmatprep.subr.mxu0 0.0
        %4665 = vmatpush1.msra.mxu0 0.0
        %4666 = vmatprep.subr.mxu0 0.0
        %4667 = vmatpush1.msra.mxu0 0.0
        %4668 = vmatprep.subr.mxu0 0.0
        %4669 = vmatpush1.msra.mxu0 0.0
        %4670 = vmatprep.subr.mxu0 0.0
        %4671 = vmatpush1.msra.mxu0 0.0
        %4672 = vmatprep.subr.mxu0 0.0
        %4673 = vmatpush1.msra.mxu0 0.0
        %4674 = vmatprep.subr.mxu0 0.0
        %4675 = vmatpush1.msra.mxu0 0.0
        %4676 = vmatprep.subr.mxu0 0.0
        %4677 = vmatpush1.msra.mxu0 0.0
        %4678 = vmatprep.subr.mxu0 0.0
        %4679 = vmatpush1.msra.mxu0 0.0
        %4680 = vmatprep.subr.mxu0 0.0
        %4681 = vmatpush1.msra.mxu0 0.0
        %4682 = vmatprep.subr.mxu0 0.0
        %4683 = vmatpush1.msra.mxu0 0.0
        %4684 = vmatprep.subr.mxu0 0.0
        %4685 = vmatpush1.msra.mxu0 0.0
        %4686 = vmatprep.subr.mxu0 0.0
        %4687 = vmatpush1.msra.mxu0 0.0
        %4688 = vmatprep.subr.mxu0 0.0
        %4689 = vmatpush1.msra.mxu0 0.0
        %4690 = vmatprep.subr.mxu0 0.0
        %4691 = vmatpush1.msra.mxu0 0.0
        %4692 = vmatprep.subr.mxu0 0.0
        %4693 = vmatpush1.msra.mxu0 0.0
        %4694 = vmatprep.subr.mxu0 0.0
        %4695 = vmatpush1.msra.mxu0 0.0
        %4696 = vmatprep.subr.mxu0 0.0
        %4697 = vmatpush1.msra.mxu0 0.0
        %4698 = vmatprep.mubr.f32.mxu0 0.0
        %4699 = vmatmul.mubr.f32.gmra.mrb[0].mxu0 %v4632
        %v4700 = vpop.f32.mrb[0].mxu0
        %v4701 = vadd.f32 0.0, %v4700
        %v4702 = vpop.f32.mrb[0].mxu0
        %4703 = vdwg.mxu0
        %v4704 = vld [vmem:[#allocation7 + $0x3f8] sm:$0xff]
        %v4705 = vld [vmem:[#allocation7 + $0x400] sm:$0xff]
        %v4706 = vld [vmem:[#allocation7 + $0x408] sm:$0xff]
        %v4707 = vld [vmem:[#allocation7 + $0x410] sm:$0xff]
        %4708 = vmatprep.subr.mxu0 0.0
        %4709 = vmatpush1.msra.mxu0 %v4704
        %4710 = vmatprep.subr.mxu0 0.0
        %4711 = vmatpush1.msra.mxu0 %v4705
        %4712 = vmatprep.subr.mxu0 0.0
        %4713 = vmatpush1.msra.mxu0 %v4706
        %4714 = vmatprep.subr.mxu0 0.0
        %4715 = vmatpush1.msra.mxu0 %v4707
        %4716 = vmatprep.subr.mxu0 0.0
        %4717 = vmatpush1.msra.mxu0 0.0
        %4718 = vmatprep.subr.mxu0 0.0
        %4719 = vmatpush1.msra.mxu0 0.0
        %4720 = vmatprep.subr.mxu0 0.0
        %4721 = vmatpush1.msra.mxu0 0.0
        %4722 = vmatprep.subr.mxu0 0.0
        %4723 = vmatpush1.msra.mxu0 0.0
        %4724 = vmatprep.subr.mxu0 0.0
        %4725 = vmatpush1.msra.mxu0 0.0
        %4726 = vmatprep.subr.mxu0 0.0
        %4727 = vmatpush1.msra.mxu0 0.0
        %4728 = vmatprep.subr.mxu0 0.0
        %4729 = vmatpush1.msra.mxu0 0.0
        %4730 = vmatprep.subr.mxu0 0.0
        %4731 = vmatpush1.msra.mxu0 0.0
        %4732 = vmatprep.subr.mxu0 0.0
        %4733 = vmatpush1.msra.mxu0 0.0
        %4734 = vmatprep.subr.mxu0 0.0
        %4735 = vmatpush1.msra.mxu0 0.0
        %4736 = vmatprep.subr.mxu0 0.0
        %4737 = vmatpush1.msra.mxu0 0.0
        %4738 = vmatprep.subr.mxu0 0.0
        %4739 = vmatpush1.msra.mxu0 0.0
        %4740 = vmatprep.subr.mxu0 0.0
        %4741 = vmatpush1.msra.mxu0 0.0
        %4742 = vmatprep.subr.mxu0 0.0
        %4743 = vmatpush1.msra.mxu0 0.0
        %4744 = vmatprep.subr.mxu0 0.0
        %4745 = vmatpush1.msra.mxu0 0.0
        %4746 = vmatprep.subr.mxu0 0.0
        %4747 = vmatpush1.msra.mxu0 0.0
        %4748 = vmatprep.subr.mxu0 0.0
        %4749 = vmatpush1.msra.mxu0 0.0
        %4750 = vmatprep.subr.mxu0 0.0
        %4751 = vmatpush1.msra.mxu0 0.0
        %4752 = vmatprep.subr.mxu0 0.0
        %4753 = vmatpush1.msra.mxu0 0.0
        %4754 = vmatprep.subr.mxu0 0.0
        %4755 = vmatpush1.msra.mxu0 0.0
        %4756 = vmatprep.subr.mxu0 0.0
        %4757 = vmatpush1.msra.mxu0 0.0
        %4758 = vmatprep.subr.mxu0 0.0
        %4759 = vmatpush1.msra.mxu0 0.0
        %4760 = vmatprep.subr.mxu0 0.0
        %4761 = vmatpush1.msra.mxu0 0.0
        %4762 = vmatprep.subr.mxu0 0.0
        %4763 = vmatpush1.msra.mxu0 0.0
        %4764 = vmatprep.subr.mxu0 0.0
        %4765 = vmatpush1.msra.mxu0 0.0
        %4766 = vmatprep.subr.mxu0 0.0
        %4767 = vmatpush1.msra.mxu0 0.0
        %4768 = vmatprep.subr.mxu0 0.0
        %4769 = vmatpush1.msra.mxu0 0.0
        %4770 = vmatprep.subr.mxu0 0.0
        %4771 = vmatpush1.msra.mxu0 0.0
        %4772 = vmatprep.mubr.f32.mxu0 0.0
        %4773 = vmatmul.mubr.f32.gmra.mrb[0].mxu0 %v1507
        %v4774 = vpop.f32.mrb[0].mxu0
        %v4775 = vadd.f32 0.0, %v4774
        %v4776 = vpop.f32.mrb[0].mxu0
        %4777 = vdwg.mxu0
        %v4779 = vsel %vm437, %v4701, 0
        %v4782 = vsel %vm437, %v4775, 0
        %4784 = vmatprep.subr.mxu0 0.0
        %4785 = vmatpush1.xpose.msra.mxu0 %v4782
        %4786 = vmatprep.subr.mxu0 0.0
        %4787 = vmatpush1.xpose.msra.mxu0 0.0
        %4788 = vmatprep.subr.mxu0 0.0
        %4789 = vmatpush1.xpose.msra.mxu0 0.0
        %4790 = vmatprep.subr.mxu0 0.0
        %4791 = vmatpush1.xpose.msra.mxu0 0.0
        %4792 = vmatprep.subr.mxu0 0.0
        %4793 = vmatpush1.xpose.msra.mxu0 0.0
        %4794 = vmatprep.subr.mxu0 0.0
        %4795 = vmatpush1.xpose.msra.mxu0 0.0
        %4796 = vmatprep.subr.mxu0 0.0
        %4797 = vmatpush1.xpose.msra.mxu0 0.0
        %4798 = vmatprep.subr.mxu0 0.0
        %4799 = vmatpush1.xpose.msra.mxu0 0.0
        %4800 = vmatprep.subr.mxu0 0.0
        %4801 = vmatpush1.xpose.msra.mxu0 0.0
        %4802 = vmatprep.subr.mxu0 0.0
        %4803 = vmatpush1.xpose.msra.mxu0 0.0
        %4804 = vmatprep.subr.mxu0 0.0
        %4805 = vmatpush1.xpose.msra.mxu0 0.0
        %4806 = vmatprep.subr.mxu0 0.0
        %4807 = vmatpush1.xpose.msra.mxu0 0.0
        %4808 = vmatprep.subr.mxu0 0.0
        %4809 = vmatpush1.xpose.msra.mxu0 0.0
        %4810 = vmatprep.subr.mxu0 0.0
        %4811 = vmatpush1.xpose.msra.mxu0 0.0
        %4812 = vmatprep.subr.mxu0 0.0
        %4813 = vmatpush1.xpose.msra.mxu0 0.0
        %4814 = vmatprep.subr.mxu0 0.0
        %4815 = vmatpush1.xpose.msra.mxu0 0.0
        %4816 = vmatprep.subr.mxu0 0.0
        %4817 = vmatpush1.xpose.msra.mxu0 0.0
        %4818 = vmatprep.subr.mxu0 0.0
        %4819 = vmatpush1.xpose.msra.mxu0 0.0
        %4820 = vmatprep.subr.mxu0 0.0
        %4821 = vmatpush1.xpose.msra.mxu0 0.0
        %4822 = vmatprep.subr.mxu0 0.0
        %4823 = vmatpush1.xpose.msra.mxu0 0.0
        %4824 = vmatprep.subr.mxu0 0.0
        %4825 = vmatpush1.xpose.msra.mxu0 0.0
        %4826 = vmatprep.subr.mxu0 0.0
        %4827 = vmatpush1.xpose.msra.mxu0 0.0
        %4828 = vmatprep.subr.mxu0 0.0
        %4829 = vmatpush1.xpose.msra.mxu0 0.0
        %4830 = vmatprep.subr.mxu0 0.0
        %4831 = vmatpush1.xpose.msra.mxu0 0.0
        %4832 = vmatprep.subr.mxu0 0.0
        %4833 = vmatpush1.xpose.msra.mxu0 0.0
        %4834 = vmatprep.subr.mxu0 0.0
        %4835 = vmatpush1.xpose.msra.mxu0 0.0
        %4836 = vmatprep.subr.mxu0 0.0
        %4837 = vmatpush1.xpose.msra.mxu0 0.0
        %4838 = vmatprep.subr.mxu0 0.0
        %4839 = vmatpush1.xpose.msra.mxu0 0.0
        %4840 = vmatprep.subr.mxu0 0.0
        %4841 = vmatpush1.xpose.msra.mxu0 0.0
        %4842 = vmatprep.subr.mxu0 0.0
        %4843 = vmatpush1.xpose.msra.mxu0 0.0
        %4844 = vmatprep.subr.mxu0 0.0
        %4845 = vmatpush1.xpose.msra.mxu0 0.0
        %4846 = vmatprep.subr.mxu0 0.0
        %4847 = vmatpush1.xpose.msra.mxu0 0.0
        %4848 = vmatprep.mubr.f32.mxu0 0.0
        %4849 = vmatmul.mubr.f32.gmra.mrb[0].mxu0 %v4779
        %v4850 = vpop.f32.mrb[0].mxu0
        %v4851 = vadd.f32 %v1580, %v4850
        %v4852 = vpop.f32.mrb[0].mxu0
        %4853 = vdwg.mxu0
        %v4854 = vsel %vm437, %v4851, -inf
        %4855 = vmax.xlane.f32.xlu0 %v4854
        %v4856 = vpop.xlane.xlu0 %4855
        %v4857 = vsub.f32 %v4851, %v4856
        %v4858 = vmul.f32 %v4857, 1.442695
        %v4859 = vpow.pop %v4858
        %v4860 = vsel %vm437, %v4859, 0.0
        %4861 = vadd.xlane.f32.xlu0 %v4860
        %v4862 = vpop.xlane.xlu0 %4861
        %v4863 = vrcp.pop %v4862
        %v4864 = vmul.f32 %v4859, %v4863
        %4865 = vrot.lane.b32.xlu0 %v4775, 96
        %v4866 = vpop.permute.xlu0 %4865
        %v4869 = vsel %vm437, %v4864, 0
        %4871 = vmatprep.subr.mxu0 0.0
        %4872 = vmatpush1.msra.mxu0 %v4866
        %4873 = vmatprep.subr.mxu0 0.0
        %4874 = vmatpush1.msra.mxu0 0.0
        %4875 = vmatprep.subr.mxu0 0.0
        %4876 = vmatpush1.msra.mxu0 0.0
        %4877 = vmatprep.subr.mxu0 0.0
        %4878 = vmatpush1.msra.mxu0 0.0
        %4879 = vmatprep.subr.mxu0 0.0
        %4880 = vmatpush1.msra.mxu0 0.0
        %4881 = vmatprep.subr.mxu0 0.0
        %4882 = vmatpush1.msra.mxu0 0.0
        %4883 = vmatprep.subr.mxu0 0.0
        %4884 = vmatpush1.msra.mxu0 0.0
        %4885 = vmatprep.subr.mxu0 0.0
        %4886 = vmatpush1.msra.mxu0 0.0
        %4887 = vmatprep.subr.mxu0 0.0
        %4888 = vmatpush1.msra.mxu0 0.0
        %4889 = vmatprep.subr.mxu0 0.0
        %4890 = vmatpush1.msra.mxu0 0.0
        %4891 = vmatprep.subr.mxu0 0.0
        %4892 = vmatpush1.msra.mxu0 0.0
        %4893 = vmatprep.subr.mxu0 0.0
        %4894 = vmatpush1.msra.mxu0 0.0
        %4895 = vmatprep.subr.mxu0 0.0
        %4896 = vmatpush1.msra.mxu0 0.0
        %4897 = vmatprep.subr.mxu0 0.0
        %4898 = vmatpush1.msra.mxu0 0.0
        %4899 = vmatprep.subr.mxu0 0.0
        %4900 = vmatpush1.msra.mxu0 0.0
        %4901 = vmatprep.subr.mxu0 0.0
        %4902 = vmatpush1.msra.mxu0 0.0
        %4903 = vmatprep.subr.mxu0 0.0
        %4904 = vmatpush1.msra.mxu0 0.0
        %4905 = vmatprep.subr.mxu0 0.0
        %4906 = vmatpush1.msra.mxu0 0.0
        %4907 = vmatprep.subr.mxu0 0.0
        %4908 = vmatpush1.msra.mxu0 0.0
        %4909 = vmatprep.subr.mxu0 0.0
        %4910 = vmatpush1.msra.mxu0 0.0
        %4911 = vmatprep.subr.mxu0 0.0
        %4912 = vmatpush1.msra.mxu0 0.0
        %4913 = vmatprep.subr.mxu0 0.0
        %4914 = vmatpush1.msra.mxu0 0.0
        %4915 = vmatprep.subr.mxu0 0.0
        %4916 = vmatpush1.msra.mxu0 0.0
        %4917 = vmatprep.subr.mxu0 0.0
        %4918 = vmatpush1.msra.mxu0 0.0
        %4919 = vmatprep.subr.mxu0 0.0
        %4920 = vmatpush1.msra.mxu0 0.0
        %4921 = vmatprep.subr.mxu0 0.0
        %4922 = vmatpush1.msra.mxu0 0.0
        %4923 = vmatprep.subr.mxu0 0.0
        %4924 = vmatpush1.msra.mxu0 0.0
        %4925 = vmatprep.subr.mxu0 0.0
        %4926 = vmatpush1.msra.mxu0 0.0
        %4927 = vmatprep.subr.mxu0 0.0
        %4928 = vmatpush1.msra.mxu0 0.0
        %4929 = vmatprep.subr.mxu0 0.0
        %4930 = vmatpush1.msra.mxu0 0.0
        %4931 = vmatprep.subr.mxu0 0.0
        %4932 = vmatpush1.msra.mxu0 0.0
        %4933 = vmatprep.subr.mxu0 0.0
        %4934 = vmatpush1.msra.mxu0 0.0
        %4935 = vmatprep.mubr.f32.mxu0 0.0
        %4936 = vmatmul.mubr.f32.gmra.mrb[0].mxu0 %v4869
        %v4937 = vpop.f32.mrb[0].mxu0
        %v4938 = vadd.f32 0.0, %v4937
        %v4939 = vpop.f32.mrb[0].mxu0
        %4940 = vdwg.mxu0
        %v4941 = vld [vmem:[#allocation7 + $0x418] sm:$0xff]
        %4942 = vrot.lane.b32.xlu0 %v4701, 120
        %v4943 = vpop.permute.xlu0 %4942
        %4944 = vrot.lane.b32.xlu0 %v4775, 120
        %v4945 = vpop.permute.xlu0 %4944
        %v4946 = vsel %vm437, %v4943, 0
        %v4948 = vsel %vm437, %v4945, 0
        %4950 = vmatprep.subr.mxu0 0.0
        %4951 = vmatpush1.xpose.msra.mxu0 %v4948
        %4952 = vmatprep.subr.mxu0 0.0
        %4953 = vmatpush1.xpose.msra.mxu0 0.0
        %4954 = vmatprep.subr.mxu0 0.0
        %4955 = vmatpush1.xpose.msra.mxu0 0.0
        %4956 = vmatprep.subr.mxu0 0.0
        %4957 = vmatpush1.xpose.msra.mxu0 0.0
        %4958 = vmatprep.subr.mxu0 0.0
        %4959 = vmatpush1.xpose.msra.mxu0 0.0
        %4960 = vmatprep.subr.mxu0 0.0
        %4961 = vmatpush1.xpose.msra.mxu0 0.0
        %4962 = vmatprep.subr.mxu0 0.0
        %4963 = vmatpush1.xpose.msra.mxu0 0.0
        %4964 = vmatprep.subr.mxu0 0.0
        %4965 = vmatpush1.xpose.msra.mxu0 0.0
        %4966 = vmatprep.subr.mxu0 0.0
        %4967 = vmatpush1.xpose.msra.mxu0 0.0
        %4968 = vmatprep.subr.mxu0 0.0
        %4969 = vmatpush1.xpose.msra.mxu0 0.0
        %4970 = vmatprep.subr.mxu0 0.0
        %4971 = vmatpush1.xpose.msra.mxu0 0.0
        %4972 = vmatprep.subr.mxu0 0.0
        %4973 = vmatpush1.xpose.msra.mxu0 0.0
        %4974 = vmatprep.subr.mxu0 0.0
        %4975 = vmatpush1.xpose.msra.mxu0 0.0
        %4976 = vmatprep.subr.mxu0 0.0
        %4977 = vmatpush1.xpose.msra.mxu0 0.0
        %4978 = vmatprep.subr.mxu0 0.0
        %4979 = vmatpush1.xpose.msra.mxu0 0.0
        %4980 = vmatprep.subr.mxu0 0.0
        %4981 = vmatpush1.xpose.msra.mxu0 0.0
        %4982 = vmatprep.subr.mxu0 0.0
        %4983 = vmatpush1.xpose.msra.mxu0 0.0
        %4984 = vmatprep.subr.mxu0 0.0
        %4985 = vmatpush1.xpose.msra.mxu0 0.0
        %4986 = vmatprep.subr.mxu0 0.0
        %4987 = vmatpush1.xpose.msra.mxu0 0.0
        %4988 = vmatprep.subr.mxu0 0.0
        %4989 = vmatpush1.xpose.msra.mxu0 0.0
        %4990 = vmatprep.subr.mxu0 0.0
        %4991 = vmatpush1.xpose.msra.mxu0 0.0
        %4992 = vmatprep.subr.mxu0 0.0
        %4993 = vmatpush1.xpose.msra.mxu0 0.0
        %4994 = vmatprep.subr.mxu0 0.0
        %4995 = vmatpush1.xpose.msra.mxu0 0.0
        %4996 = vmatprep.subr.mxu0 0.0
        %4997 = vmatpush1.xpose.msra.mxu0 0.0
        %4998 = vmatprep.subr.mxu0 0.0
        %4999 = vmatpush1.xpose.msra.mxu0 0.0
        %5000 = vmatprep.subr.mxu0 0.0
        %5001 = vmatpush1.xpose.msra.mxu0 0.0
        %5002 = vmatprep.subr.mxu0 0.0
        %5003 = vmatpush1.xpose.msra.mxu0 0.0
        %5004 = vmatprep.subr.mxu0 0.0
        %5005 = vmatpush1.xpose.msra.mxu0 0.0
        %5006 = vmatprep.subr.mxu0 0.0
        %5007 = vmatpush1.xpose.msra.mxu0 0.0
        %5008 = vmatprep.subr.mxu0 0.0
        %5009 = vmatpush1.xpose.msra.mxu0 0.0
        %5010 = vmatprep.subr.mxu0 0.0
        %5011 = vmatpush1.xpose.msra.mxu0 0.0
        %5012 = vmatprep.subr.mxu0 0.0
        %5013 = vmatpush1.xpose.msra.mxu0 0.0
        %5014 = vmatprep.mubr.f32.mxu0 0.0
        %5015 = vmatmul.mubr.f32.gmra.mrb[0].mxu0 %v4946
        %v5016 = vpop.f32.mrb[0].mxu0
        %v5017 = vadd.f32 %v1580, %v5016
        %v5018 = vpop.f32.mrb[0].mxu0
        %5019 = vdwg.mxu0
        %v5020 = vadd.f32 %v4851, %v5017
        %v5021 = vsel %vm437, %v5017, -inf
        %5022 = vmax.xlane.f32.xlu0 %v5021
        %v5023 = vpop.xlane.xlu0 %5022
        %v5024 = vsub.f32 %v5017, %v5023
        %v5025 = vmul.f32 %v5024, 1.442695
        %v5026 = vpow.pop %v5025
        %v5027 = vsel %vm437, %v5026, 0.0
        %5028 = vadd.xlane.f32.xlu0 %v5027
        %v5029 = vpop.xlane.xlu0 %5028
        %v5030 = vrcp.pop %v5029
        %v5031 = vmul.f32 %v5026, %v5030
        %5032 = vrot.lane.b32.xlu0 %v4775, 88
        %v5033 = vpop.permute.xlu0 %5032
        %v5036 = vsel %vm437, %v5031, 0
        %5038 = vmatprep.subr.mxu0 0.0
        %5039 = vmatpush1.msra.mxu0 %v5033
        %5040 = vmatprep.subr.mxu0 0.0
        %5041 = vmatpush1.msra.mxu0 0.0
        %5042 = vmatprep.subr.mxu0 0.0
        %5043 = vmatpush1.msra.mxu0 0.0
        %5044 = vmatprep.subr.mxu0 0.0
        %5045 = vmatpush1.msra.mxu0 0.0
        %5046 = vmatprep.subr.mxu0 0.0
        %5047 = vmatpush1.msra.mxu0 0.0
        %5048 = vmatprep.subr.mxu0 0.0
        %5049 = vmatpush1.msra.mxu0 0.0
        %5050 = vmatprep.subr.mxu0 0.0
        %5051 = vmatpush1.msra.mxu0 0.0
        %5052 = vmatprep.subr.mxu0 0.0
        %5053 = vmatpush1.msra.mxu0 0.0
        %5054 = vmatprep.subr.mxu0 0.0
        %5055 = vmatpush1.msra.mxu0 0.0
        %5056 = vmatprep.subr.mxu0 0.0
        %5057 = vmatpush1.msra.mxu0 0.0
        %5058 = vmatprep.subr.mxu0 0.0
        %5059 = vmatpush1.msra.mxu0 0.0
        %5060 = vmatprep.subr.mxu0 0.0
        %5061 = vmatpush1.msra.mxu0 0.0
        %5062 = vmatprep.subr.mxu0 0.0
        %5063 = vmatpush1.msra.mxu0 0.0
        %5064 = vmatprep.subr.mxu0 0.0
        %5065 = vmatpush1.msra.mxu0 0.0
        %5066 = vmatprep.subr.mxu0 0.0
        %5067 = vmatpush1.msra.mxu0 0.0
        %5068 = vmatprep.subr.mxu0 0.0
        %5069 = vmatpush1.msra.mxu0 0.0
        %5070 = vmatprep.subr.mxu0 0.0
        %5071 = vmatpush1.msra.mxu0 0.0
        %5072 = vmatprep.subr.mxu0 0.0
        %5073 = vmatpush1.msra.mxu0 0.0
        %5074 = vmatprep.subr.mxu0 0.0
        %5075 = vmatpush1.msra.mxu0 0.0
        %5076 = vmatprep.subr.mxu0 0.0
        %5077 = vmatpush1.msra.mxu0 0.0
        %5078 = vmatprep.subr.mxu0 0.0
        %5079 = vmatpush1.msra.mxu0 0.0
        %5080 = vmatprep.subr.mxu0 0.0
        %5081 = vmatpush1.msra.mxu0 0.0
        %5082 = vmatprep.subr.mxu0 0.0
        %5083 = vmatpush1.msra.mxu0 0.0
        %5084 = vmatprep.subr.mxu0 0.0
        %5085 = vmatpush1.msra.mxu0 0.0
        %5086 = vmatprep.subr.mxu0 0.0
        %5087 = vmatpush1.msra.mxu0 0.0
        %5088 = vmatprep.subr.mxu0 0.0
        %5089 = vmatpush1.msra.mxu0 0.0
        %5090 = vmatprep.subr.mxu0 0.0
        %5091 = vmatpush1.msra.mxu0 0.0
        %5092 = vmatprep.subr.mxu0 0.0
        %5093 = vmatpush1.msra.mxu0 0.0
        %5094 = vmatprep.subr.mxu0 0.0
        %5095 = vmatpush1.msra.mxu0 0.0
        %5096 = vmatprep.subr.mxu0 0.0
        %5097 = vmatpush1.msra.mxu0 0.0
        %5098 = vmatprep.subr.mxu0 0.0
        %5099 = vmatpush1.msra.mxu0 0.0
        %5100 = vmatprep.subr.mxu0 0.0
        %5101 = vmatpush1.msra.mxu0 0.0
        %5102 = vmatprep.mubr.f32.mxu0 0.0
        %5103 = vmatmul.mubr.f32.gmra.mrb[0].mxu0 %v5036
        %v5104 = vpop.f32.mrb[0].mxu0
        %v5105 = vadd.f32 0.0, %v5104
        %v5106 = vpop.f32.mrb[0].mxu0
        %5107 = vdwg.mxu0
        %v5108 = vld [vmem:[#allocation7 + $0x420] sm:$0xff]
        %v5110 = vsel %vm437, %v5105, 0
        %5112 = vmatprep.subr.mxu0 0.0
        %5113 = vmatpush1.msra.mxu0 %v5108
        %5114 = vmatprep.subr.mxu0 0.0
        %5115 = vmatpush1.msra.mxu0 0.0
        %5116 = vmatprep.subr.mxu0 0.0
        %5117 = vmatpush1.msra.mxu0 0.0
        %5118 = vmatprep.subr.mxu0 0.0
        %5119 = vmatpush1.msra.mxu0 0.0
        %5120 = vmatprep.subr.mxu0 0.0
        %5121 = vmatpush1.msra.mxu0 0.0
        %5122 = vmatprep.subr.mxu0 0.0
        %5123 = vmatpush1.msra.mxu0 0.0
        %5124 = vmatprep.subr.mxu0 0.0
        %5125 = vmatpush1.msra.mxu0 0.0
        %5126 = vmatprep.subr.mxu0 0.0
        %5127 = vmatpush1.msra.mxu0 0.0
        %5128 = vmatprep.subr.mxu0 0.0
        %5129 = vmatpush1.msra.mxu0 0.0
        %5130 = vmatprep.subr.mxu0 0.0
        %5131 = vmatpush1.msra.mxu0 0.0
        %5132 = vmatprep.subr.mxu0 0.0
        %5133 = vmatpush1.msra.mxu0 0.0
        %5134 = vmatprep.subr.mxu0 0.0
        %5135 = vmatpush1.msra.mxu0 0.0
        %5136 = vmatprep.subr.mxu0 0.0
        %5137 = vmatpush1.msra.mxu0 0.0
        %5138 = vmatprep.subr.mxu0 0.0
        %5139 = vmatpush1.msra.mxu0 0.0
        %5140 = vmatprep.subr.mxu0 0.0
        %5141 = vmatpush1.msra.mxu0 0.0
        %5142 = vmatprep.subr.mxu0 0.0
        %5143 = vmatpush1.msra.mxu0 0.0
        %5144 = vmatprep.subr.mxu0 0.0
        %5145 = vmatpush1.msra.mxu0 0.0
        %5146 = vmatprep.subr.mxu0 0.0
        %5147 = vmatpush1.msra.mxu0 0.0
        %5148 = vmatprep.subr.mxu0 0.0
        %5149 = vmatpush1.msra.mxu0 0.0
        %5150 = vmatprep.subr.mxu0 0.0
        %5151 = vmatpush1.msra.mxu0 0.0
        %5152 = vmatprep.subr.mxu0 0.0
        %5153 = vmatpush1.msra.mxu0 0.0
        %5154 = vmatprep.subr.mxu0 0.0
        %5155 = vmatpush1.msra.mxu0 0.0
        %5156 = vmatprep.subr.mxu0 0.0
        %5157 = vmatpush1.msra.mxu0 0.0
        %5158 = vmatprep.subr.mxu0 0.0
        %5159 = vmatpush1.msra.mxu0 0.0
        %5160 = vmatprep.subr.mxu0 0.0
        %5161 = vmatpush1.msra.mxu0 0.0
        %5162 = vmatprep.subr.mxu0 0.0
        %5163 = vmatpush1.msra.mxu0 0.0
        %5164 = vmatprep.subr.mxu0 0.0
        %5165 = vmatpush1.msra.mxu0 0.0
        %5166 = vmatprep.subr.mxu0 0.0
        %5167 = vmatpush1.msra.mxu0 0.0
        %5168 = vmatprep.subr.mxu0 0.0
        %5169 = vmatpush1.msra.mxu0 0.0
        %5170 = vmatprep.subr.mxu0 0.0
        %5171 = vmatpush1.msra.mxu0 0.0
        %5172 = vmatprep.subr.mxu0 0.0
        %5173 = vmatpush1.msra.mxu0 0.0
        %5174 = vmatprep.subr.mxu0 0.0
        %5175 = vmatpush1.msra.mxu0 0.0
        %5176 = vmatprep.mubr.f32.mxu0 0.0
        %5177 = vmatmul.mubr.f32.gmra.mrb[0].mxu0 %v5110
        %v5178 = vpop.f32.mrb[0].mxu0
        %v5179 = vadd.f32 0.0, %v5178
        %v5180 = vpop.f32.mrb[0].mxu0
        %5181 = vdwg.mxu0
        %v5183 = vsel %vm437, %v4938, 0
        %5185 = vmatprep.subr.mxu0 0.0
        %5186 = vmatpush1.msra.mxu0 %v4941
        %5187 = vmatprep.subr.mxu0 0.0
        %5188 = vmatpush1.msra.mxu0 0.0
        %5189 = vmatprep.subr.mxu0 0.0
        %5190 = vmatpush1.msra.mxu0 0.0
        %5191 = vmatprep.subr.mxu0 0.0
        %5192 = vmatpush1.msra.mxu0 0.0
        %5193 = vmatprep.subr.mxu0 0.0
        %5194 = vmatpush1.msra.mxu0 0.0
        %5195 = vmatprep.subr.mxu0 0.0
        %5196 = vmatpush1.msra.mxu0 0.0
        %5197 = vmatprep.subr.mxu0 0.0
        %5198 = vmatpush1.msra.mxu0 0.0
        %5199 = vmatprep.subr.mxu0 0.0
        %5200 = vmatpush1.msra.mxu0 0.0
        %5201 = vmatprep.subr.mxu0 0.0
        %5202 = vmatpush1.msra.mxu0 0.0
        %5203 = vmatprep.subr.mxu0 0.0
        %5204 = vmatpush1.msra.mxu0 0.0
        %5205 = vmatprep.subr.mxu0 0.0
        %5206 = vmatpush1.msra.mxu0 0.0
        %5207 = vmatprep.subr.mxu0 0.0
        %5208 = vmatpush1.msra.mxu0 0.0
        %5209 = vmatprep.subr.mxu0 0.0
        %5210 = vmatpush1.msra.mxu0 0.0
        %5211 = vmatprep.subr.mxu0 0.0
        %5212 = vmatpush1.msra.mxu0 0.0
        %5213 = vmatprep.subr.mxu0 0.0
        %5214 = vmatpush1.msra.mxu0 0.0
        %5215 = vmatprep.subr.mxu0 0.0
        %5216 = vmatpush1.msra.mxu0 0.0
        %5217 = vmatprep.subr.mxu0 0.0
        %5218 = vmatpush1.msra.mxu0 0.0
        %5219 = vmatprep.subr.mxu0 0.0
        %5220 = vmatpush1.msra.mxu0 0.0
        %5221 = vmatprep.subr.mxu0 0.0
        %5222 = vmatpush1.msra.mxu0 0.0
        %5223 = vmatprep.subr.mxu0 0.0
        %5224 = vmatpush1.msra.mxu0 0.0
        %5225 = vmatprep.subr.mxu0 0.0
        %5226 = vmatpush1.msra.mxu0 0.0
        %5227 = vmatprep.subr.mxu0 0.0
        %5228 = vmatpush1.msra.mxu0 0.0
        %5229 = vmatprep.subr.mxu0 0.0
        %5230 = vmatpush1.msra.mxu0 0.0
        %5231 = vmatprep.subr.mxu0 0.0
        %5232 = vmatpush1.msra.mxu0 0.0
        %5233 = vmatprep.subr.mxu0 0.0
        %5234 = vmatpush1.msra.mxu0 0.0
        %5235 = vmatprep.subr.mxu0 0.0
        %5236 = vmatpush1.msra.mxu0 0.0
        %5237 = vmatprep.subr.mxu0 0.0
        %5238 = vmatpush1.msra.mxu0 0.0
        %5239 = vmatprep.subr.mxu0 0.0
        %5240 = vmatpush1.msra.mxu0 0.0
        %5241 = vmatprep.subr.mxu0 0.0
        %5242 = vmatpush1.msra.mxu0 0.0
        %5243 = vmatprep.subr.mxu0 0.0
        %5244 = vmatpush1.msra.mxu0 0.0
        %5245 = vmatprep.subr.mxu0 0.0
        %5246 = vmatpush1.msra.mxu0 0.0
        %5247 = vmatprep.subr.mxu0 0.0
        %5248 = vmatpush1.msra.mxu0 0.0
        %5249 = vmatprep.mubr.f32.mxu0 0.0
        %5250 = vmatmul.mubr.f32.gmra.mrb[0].mxu0 %v5183
        %v5251 = vpop.f32.mrb[0].mxu0
        %v5252 = vadd.f32 %v5179, %v5251
        %v5253 = vpop.f32.mrb[0].mxu0
        %5254 = vdwg.mxu0
        %5255 = vrot.lane.b32.xlu0 %v4701, 112
        %v5256 = vpop.permute.xlu0 %5255
        %5257 = vrot.lane.b32.xlu0 %v4775, 112
        %v5258 = vpop.permute.xlu0 %5257
        %v5259 = vsel %vm437, %v5256, 0
        %v5261 = vsel %vm437, %v5258, 0
        %5263 = vmatprep.subr.mxu0 0.0
        %5264 = vmatpush1.xpose.msra.mxu0 %v5261
        %5265 = vmatprep.subr.mxu0 0.0
        %5266 = vmatpush1.xpose.msra.mxu0 0.0
        %5267 = vmatprep.subr.mxu0 0.0
        %5268 = vmatpush1.xpose.msra.mxu0 0.0
        %5269 = vmatprep.subr.mxu0 0.0
        %5270 = vmatpush1.xpose.msra.mxu0 0.0
        %5271 = vmatprep.subr.mxu0 0.0
        %5272 = vmatpush1.xpose.msra.mxu0 0.0
        %5273 = vmatprep.subr.mxu0 0.0
        %5274 = vmatpush1.xpose.msra.mxu0 0.0
        %5275 = vmatprep.subr.mxu0 0.0
        %5276 = vmatpush1.xpose.msra.mxu0 0.0
        %5277 = vmatprep.subr.mxu0 0.0
        %5278 = vmatpush1.xpose.msra.mxu0 0.0
        %5279 = vmatprep.subr.mxu0 0.0
        %5280 = vmatpush1.xpose.msra.mxu0 0.0
        %5281 = vmatprep.subr.mxu0 0.0
        %5282 = vmatpush1.xpose.msra.mxu0 0.0
        %5283 = vmatprep.subr.mxu0 0.0
        %5284 = vmatpush1.xpose.msra.mxu0 0.0
        %5285 = vmatprep.subr.mxu0 0.0
        %5286 = vmatpush1.xpose.msra.mxu0 0.0
        %5287 = vmatprep.subr.mxu0 0.0
        %5288 = vmatpush1.xpose.msra.mxu0 0.0
        %5289 = vmatprep.subr.mxu0 0.0
        %5290 = vmatpush1.xpose.msra.mxu0 0.0
        %5291 = vmatprep.subr.mxu0 0.0
        %5292 = vmatpush1.xpose.msra.mxu0 0.0
        %5293 = vmatprep.subr.mxu0 0.0
        %5294 = vmatpush1.xpose.msra.mxu0 0.0
        %5295 = vmatprep.subr.mxu0 0.0
        %5296 = vmatpush1.xpose.msra.mxu0 0.0
        %5297 = vmatprep.subr.mxu0 0.0
        %5298 = vmatpush1.xpose.msra.mxu0 0.0
        %5299 = vmatprep.subr.mxu0 0.0
        %5300 = vmatpush1.xpose.msra.mxu0 0.0
        %5301 = vmatprep.subr.mxu0 0.0
        %5302 = vmatpush1.xpose.msra.mxu0 0.0
        %5303 = vmatprep.subr.mxu0 0.0
        %5304 = vmatpush1.xpose.msra.mxu0 0.0
        %5305 = vmatprep.subr.mxu0 0.0
        %5306 = vmatpush1.xpose.msra.mxu0 0.0
        %5307 = vmatprep.subr.mxu0 0.0
        %5308 = vmatpush1.xpose.msra.mxu0 0.0
        %5309 = vmatprep.subr.mxu0 0.0
        %5310 = vmatpush1.xpose.msra.mxu0 0.0
        %5311 = vmatprep.subr.mxu0 0.0
        %5312 = vmatpush1.xpose.msra.mxu0 0.0
        %5313 = vmatprep.subr.mxu0 0.0
        %5314 = vmatpush1.xpose.msra.mxu0 0.0
        %5315 = vmatprep.subr.mxu0 0.0
        %5316 = vmatpush1.xpose.msra.mxu0 0.0
        %5317 = vmatprep.subr.mxu0 0.0
        %5318 = vmatpush1.xpose.msra.mxu0 0.0
        %5319 = vmatprep.subr.mxu0 0.0
        %5320 = vmatpush1.xpose.msra.mxu0 0.0
        %5321 = vmatprep.subr.mxu0 0.0
        %5322 = vmatpush1.xpose.msra.mxu0 0.0
        %5323 = vmatprep.subr.mxu0 0.0
        %5324 = vmatpush1.xpose.msra.mxu0 0.0
        %5325 = vmatprep.subr.mxu0 0.0
        %5326 = vmatpush1.xpose.msra.mxu0 0.0
        %5327 = vmatprep.mubr.f32.mxu0 0.0
        %5328 = vmatmul.mubr.f32.gmra.mrb[0].mxu0 %v5259
        %v5329 = vpop.f32.mrb[0].mxu0
        %v5330 = vadd.f32 %v1580, %v5329
        %v5331 = vpop.f32.mrb[0].mxu0
        %5332 = vdwg.mxu0
        %v5333 = vadd.f32 %v5020, %v5330
        %v5334 = vsel %vm437, %v5330, -inf
        %5335 = vmax.xlane.f32.xlu0 %v5334
        %v5336 = vpop.xlane.xlu0 %5335
        %v5337 = vsub.f32 %v5330, %v5336
        %v5338 = vmul.f32 %v5337, 1.442695
        %v5339 = vpow.pop %v5338
        %v5340 = vsel %vm437, %v5339, 0.0
        %5341 = vadd.xlane.f32.xlu0 %v5340
        %v5342 = vpop.xlane.xlu0 %5341
        %v5343 = vrcp.pop %v5342
        %v5344 = vmul.f32 %v5339, %v5343
        %5345 = vrot.lane.b32.xlu0 %v4775, 80
        %v5346 = vpop.permute.xlu0 %5345
        %v5349 = vsel %vm437, %v5344, 0
        %5351 = vmatprep.subr.mxu0 0.0
        %5352 = vmatpush1.msra.mxu0 %v5346
        %5353 = vmatprep.subr.mxu0 0.0
        %5354 = vmatpush1.msra.mxu0 0.0
        %5355 = vmatprep.subr.mxu0 0.0
        %5356 = vmatpush1.msra.mxu0 0.0
        %5357 = vmatprep.subr.mxu0 0.0
        %5358 = vmatpush1.msra.mxu0 0.0
        %5359 = vmatprep.subr.mxu0 0.0
        %5360 = vmatpush1.msra.mxu0 0.0
        %5361 = vmatprep.subr.mxu0 0.0
        %5362 = vmatpush1.msra.mxu0 0.0
        %5363 = vmatprep.subr.mxu0 0.0
        %5364 = vmatpush1.msra.mxu0 0.0
        %5365 = vmatprep.subr.mxu0 0.0
        %5366 = vmatpush1.msra.mxu0 0.0
        %5367 = vmatprep.subr.mxu0 0.0
        %5368 = vmatpush1.msra.mxu0 0.0
        %5369 = vmatprep.subr.mxu0 0.0
        %5370 = vmatpush1.msra.mxu0 0.0
        %5371 = vmatprep.subr.mxu0 0.0
        %5372 = vmatpush1.msra.mxu0 0.0
        %5373 = vmatprep.subr.mxu0 0.0
        %5374 = vmatpush1.msra.mxu0 0.0
        %5375 = vmatprep.subr.mxu0 0.0
        %5376 = vmatpush1.msra.mxu0 0.0
        %5377 = vmatprep.subr.mxu0 0.0
        %5378 = vmatpush1.msra.mxu0 0.0
        %5379 = vmatprep.subr.mxu0 0.0
        %5380 = vmatpush1.msra.mxu0 0.0
        %5381 = vmatprep.subr.mxu0 0.0
        %5382 = vmatpush1.msra.mxu0 0.0
        %5383 = vmatprep.subr.mxu0 0.0
        %5384 = vmatpush1.msra.mxu0 0.0
        %5385 = vmatprep.subr.mxu0 0.0
        %5386 = vmatpush1.msra.mxu0 0.0
        %5387 = vmatprep.subr.mxu0 0.0
        %5388 = vmatpush1.msra.mxu0 0.0
        %5389 = vmatprep.subr.mxu0 0.0
        %5390 = vmatpush1.msra.mxu0 0.0
        %5391 = vmatprep.subr.mxu0 0.0
        %5392 = vmatpush1.msra.mxu0 0.0
        %5393 = vmatprep.subr.mxu0 0.0
        %5394 = vmatpush1.msra.mxu0 0.0
        %5395 = vmatprep.subr.mxu0 0.0
        %5396 = vmatpush1.msra.mxu0 0.0
        %5397 = vmatprep.subr.mxu0 0.0
        %5398 = vmatpush1.msra.mxu0 0.0
        %5399 = vmatprep.subr.mxu0 0.0
        %5400 = vmatpush1.msra.mxu0 0.0
        %5401 = vmatprep.subr.mxu0 0.0
        %5402 = vmatpush1.msra.mxu0 0.0
        %5403 = vmatprep.subr.mxu0 0.0
        %5404 = vmatpush1.msra.mxu0 0.0
        %5405 = vmatprep.subr.mxu0 0.0
        %5406 = vmatpush1.msra.mxu0 0.0
        %5407 = vmatprep.subr.mxu0 0.0
        %5408 = vmatpush1.msra.mxu0 0.0
        %5409 = vmatprep.subr.mxu0 0.0
        %5410 = vmatpush1.msra.mxu0 0.0
        %5411 = vmatprep.subr.mxu0 0.0
        %5412 = vmatpush1.msra.mxu0 0.0
        %5413 = vmatprep.subr.mxu0 0.0
        %5414 = vmatpush1.msra.mxu0 0.0
        %5415 = vmatprep.mubr.f32.mxu0 0.0
        %5416 = vmatmul.mubr.f32.gmra.mrb[0].mxu0 %v5349
        %v5417 = vpop.f32.mrb[0].mxu0
        %v5418 = vadd.f32 0.0, %v5417
        %v5419 = vpop.f32.mrb[0].mxu0
        %5420 = vdwg.mxu0
        %v5421 = vld [vmem:[#allocation7 + $0x428] sm:$0xff]
        %v5423 = vsel %vm437, %v5418, 0
        %5425 = vmatprep.subr.mxu0 0.0
        %5426 = vmatpush1.msra.mxu0 %v5421
        %5427 = vmatprep.subr.mxu0 0.0
        %5428 = vmatpush1.msra.mxu0 0.0
        %5429 = vmatprep.subr.mxu0 0.0
        %5430 = vmatpush1.msra.mxu0 0.0
        %5431 = vmatprep.subr.mxu0 0.0
        %5432 = vmatpush1.msra.mxu0 0.0
        %5433 = vmatprep.subr.mxu0 0.0
        %5434 = vmatpush1.msra.mxu0 0.0
        %5435 = vmatprep.subr.mxu0 0.0
        %5436 = vmatpush1.msra.mxu0 0.0
        %5437 = vmatprep.subr.mxu0 0.0
        %5438 = vmatpush1.msra.mxu0 0.0
        %5439 = vmatprep.subr.mxu0 0.0
        %5440 = vmatpush1.msra.mxu0 0.0
        %5441 = vmatprep.subr.mxu0 0.0
        %5442 = vmatpush1.msra.mxu0 0.0
        %5443 = vmatprep.subr.mxu0 0.0
        %5444 = vmatpush1.msra.mxu0 0.0
        %5445 = vmatprep.subr.mxu0 0.0
        %5446 = vmatpush1.msra.mxu0 0.0
        %5447 = vmatprep.subr.mxu0 0.0
        %5448 = vmatpush1.msra.mxu0 0.0
        %5449 = vmatprep.subr.mxu0 0.0
        %5450 = vmatpush1.msra.mxu0 0.0
        %5451 = vmatprep.subr.mxu0 0.0
        %5452 = vmatpush1.msra.mxu0 0.0
        %5453 = vmatprep.subr.mxu0 0.0
        %5454 = vmatpush1.msra.mxu0 0.0
        %5455 = vmatprep.subr.mxu0 0.0
        %5456 = vmatpush1.msra.mxu0 0.0
        %5457 = vmatprep.subr.mxu0 0.0
        %5458 = vmatpush1.msra.mxu0 0.0
        %5459 = vmatprep.subr.mxu0 0.0
        %5460 = vmatpush1.msra.mxu0 0.0
        %5461 = vmatprep.subr.mxu0 0.0
        %5462 = vmatpush1.msra.mxu0 0.0
        %5463 = vmatprep.subr.mxu0 0.0
        %5464 = vmatpush1.msra.mxu0 0.0
        %5465 = vmatprep.subr.mxu0 0.0
        %5466 = vmatpush1.msra.mxu0 0.0
        %5467 = vmatprep.subr.mxu0 0.0
        %5468 = vmatpush1.msra.mxu0 0.0
        %5469 = vmatprep.subr.mxu0 0.0
        %5470 = vmatpush1.msra.mxu0 0.0
        %5471 = vmatprep.subr.mxu0 0.0
        %5472 = vmatpush1.msra.mxu0 0.0
        %5473 = vmatprep.subr.mxu0 0.0
        %5474 = vmatpush1.msra.mxu0 0.0
        %5475 = vmatprep.subr.mxu0 0.0
        %5476 = vmatpush1.msra.mxu0 0.0
        %5477 = vmatprep.subr.mxu0 0.0
        %5478 = vmatpush1.msra.mxu0 0.0
        %5479 = vmatprep.subr.mxu0 0.0
        %5480 = vmatpush1.msra.mxu0 0.0
        %5481 = vmatprep.subr.mxu0 0.0
        %5482 = vmatpush1.msra.mxu0 0.0
        %5483 = vmatprep.subr.mxu0 0.0
        %5484 = vmatpush1.msra.mxu0 0.0
        %5485 = vmatprep.subr.mxu0 0.0
        %5486 = vmatpush1.msra.mxu0 0.0
        %5487 = vmatprep.subr.mxu0 0.0
        %5488 = vmatpush1.msra.mxu0 0.0
        %5489 = vmatprep.mubr.f32.mxu0 0.0
        %5490 = vmatmul.mubr.f32.gmra.mrb[0].mxu0 %v5423
        %v5491 = vpop.f32.mrb[0].mxu0
        %v5492 = vadd.f32 0.0, %v5491
        %v5493 = vpop.f32.mrb[0].mxu0
        %5494 = vdwg.mxu0
        %v5495 = vadd.f32 %v5252, %v5492
        %5496 = vrot.lane.b32.xlu0 %v4701, 104
        %v5497 = vpop.permute.xlu0 %5496
        %5498 = vrot.lane.b32.xlu0 %v4775, 104
        %v5499 = vpop.permute.xlu0 %5498
        %v5500 = vsel %vm437, %v5497, 0
        %v5502 = vsel %vm437, %v5499, 0
        %5504 = vmatprep.subr.mxu0 0.0
        %5505 = vmatpush1.xpose.msra.mxu0 %v5502
        %5506 = vmatprep.subr.mxu0 0.0
        %5507 = vmatpush1.xpose.msra.mxu0 0.0
        %5508 = vmatprep.subr.mxu0 0.0
        %5509 = vmatpush1.xpose.msra.mxu0 0.0
        %5510 = vmatprep.subr.mxu0 0.0
        %5511 = vmatpush1.xpose.msra.mxu0 0.0
        %5512 = vmatprep.subr.mxu0 0.0
        %5513 = vmatpush1.xpose.msra.mxu0 0.0
        %5514 = vmatprep.subr.mxu0 0.0
        %5515 = vmatpush1.xpose.msra.mxu0 0.0
        %5516 = vmatprep.subr.mxu0 0.0
        %5517 = vmatpush1.xpose.msra.mxu0 0.0
        %5518 = vmatprep.subr.mxu0 0.0
        %5519 = vmatpush1.xpose.msra.mxu0 0.0
        %5520 = vmatprep.subr.mxu0 0.0
        %5521 = vmatpush1.xpose.msra.mxu0 0.0
        %5522 = vmatprep.subr.mxu0 0.0
        %5523 = vmatpush1.xpose.msra.mxu0 0.0
        %5524 = vmatprep.subr.mxu0 0.0
        %5525 = vmatpush1.xpose.msra.mxu0 0.0
        %5526 = vmatprep.subr.mxu0 0.0
        %5527 = vmatpush1.xpose.msra.mxu0 0.0
        %5528 = vmatprep.subr.mxu0 0.0
        %5529 = vmatpush1.xpose.msra.mxu0 0.0
        %5530 = vmatprep.subr.mxu0 0.0
        %5531 = vmatpush1.xpose.msra.mxu0 0.0
        %5532 = vmatprep.subr.mxu0 0.0
        %5533 = vmatpush1.xpose.msra.mxu0 0.0
        %5534 = vmatprep.subr.mxu0 0.0
        %5535 = vmatpush1.xpose.msra.mxu0 0.0
        %5536 = vmatprep.subr.mxu0 0.0
        %5537 = vmatpush1.xpose.msra.mxu0 0.0
        %5538 = vmatprep.subr.mxu0 0.0
        %5539 = vmatpush1.xpose.msra.mxu0 0.0
        %5540 = vmatprep.subr.mxu0 0.0
        %5541 = vmatpush1.xpose.msra.mxu0 0.0
        %5542 = vmatprep.subr.mxu0 0.0
        %5543 = vmatpush1.xpose.msra.mxu0 0.0
        %5544 = vmatprep.subr.mxu0 0.0
        %5545 = vmatpush1.xpose.msra.mxu0 0.0
        %5546 = vmatprep.subr.mxu0 0.0
        %5547 = vmatpush1.xpose.msra.mxu0 0.0
        %5548 = vmatprep.subr.mxu0 0.0
        %5549 = vmatpush1.xpose.msra.mxu0 0.0
        %5550 = vmatprep.subr.mxu0 0.0
        %5551 = vmatpush1.xpose.msra.mxu0 0.0
        %5552 = vmatprep.subr.mxu0 0.0
        %5553 = vmatpush1.xpose.msra.mxu0 0.0
        %5554 = vmatprep.subr.mxu0 0.0
        %5555 = vmatpush1.xpose.msra.mxu0 0.0
        %5556 = vmatprep.subr.mxu0 0.0
        %5557 = vmatpush1.xpose.msra.mxu0 0.0
        %5558 = vmatprep.subr.mxu0 0.0
        %5559 = vmatpush1.xpose.msra.mxu0 0.0
        %5560 = vmatprep.subr.mxu0 0.0
        %5561 = vmatpush1.xpose.msra.mxu0 0.0
        %5562 = vmatprep.subr.mxu0 0.0
        %5563 = vmatpush1.xpose.msra.mxu0 0.0
        %5564 = vmatprep.subr.mxu0 0.0
        %5565 = vmatpush1.xpose.msra.mxu0 0.0
        %5566 = vmatprep.subr.mxu0 0.0
        %5567 = vmatpush1.xpose.msra.mxu0 0.0
        %5568 = vmatprep.mubr.f32.mxu0 0.0
        %5569 = vmatmul.mubr.f32.gmra.mrb[0].mxu0 %v5500
        %v5570 = vpop.f32.mrb[0].mxu0
        %v5571 = vadd.f32 %v1580, %v5570
        %v5572 = vpop.f32.mrb[0].mxu0
        %5573 = vdwg.mxu0
        %v5574 = vadd.f32 %v5333, %v5571
        %v5575 = vsel %vm437, %v5571, -inf
        %5576 = vmax.xlane.f32.xlu0 %v5575
        %v5577 = vpop.xlane.xlu0 %5576
        %v5578 = vsub.f32 %v5571, %v5577
        %v5579 = vmul.f32 %v5578, 1.442695
        %v5580 = vpow.pop %v5579
        %v5581 = vsel %vm437, %v5580, 0.0
        %5582 = vadd.xlane.f32.xlu0 %v5581
        %v5583 = vpop.xlane.xlu0 %5582
        %v5584 = vrcp.pop %v5583
        %v5585 = vmul.f32 %v5580, %v5584
        %5586 = vrot.lane.b32.xlu0 %v4775, 72
        %v5587 = vpop.permute.xlu0 %5586
        %v5590 = vsel %vm437, %v5585, 0
        %5592 = vmatprep.subr.mxu0 0.0
        %5593 = vmatpush1.msra.mxu0 %v5587
        %5594 = vmatprep.subr.mxu0 0.0
        %5595 = vmatpush1.msra.mxu0 0.0
        %5596 = vmatprep.subr.mxu0 0.0
        %5597 = vmatpush1.msra.mxu0 0.0
        %5598 = vmatprep.subr.mxu0 0.0
        %5599 = vmatpush1.msra.mxu0 0.0
        %5600 = vmatprep.subr.mxu0 0.0
        %5601 = vmatpush1.msra.mxu0 0.0
        %5602 = vmatprep.subr.mxu0 0.0
        %5603 = vmatpush1.msra.mxu0 0.0
        %5604 = vmatprep.subr.mxu0 0.0
        %5605 = vmatpush1.msra.mxu0 0.0
        %5606 = vmatprep.subr.mxu0 0.0
        %5607 = vmatpush1.msra.mxu0 0.0
        %5608 = vmatprep.subr.mxu0 0.0
        %5609 = vmatpush1.msra.mxu0 0.0
        %5610 = vmatprep.subr.mxu0 0.0
        %5611 = vmatpush1.msra.mxu0 0.0
        %5612 = vmatprep.subr.mxu0 0.0
        %5613 = vmatpush1.msra.mxu0 0.0
        %5614 = vmatprep.subr.mxu0 0.0
        %5615 = vmatpush1.msra.mxu0 0.0
        %5616 = vmatprep.subr.mxu0 0.0
        %5617 = vmatpush1.msra.mxu0 0.0
        %5618 = vmatprep.subr.mxu0 0.0
        %5619 = vmatpush1.msra.mxu0 0.0
        %5620 = vmatprep.subr.mxu0 0.0
        %5621 = vmatpush1.msra.mxu0 0.0
        %5622 = vmatprep.subr.mxu0 0.0
        %5623 = vmatpush1.msra.mxu0 0.0
        %5624 = vmatprep.subr.mxu0 0.0
        %5625 = vmatpush1.msra.mxu0 0.0
        %5626 = vmatprep.subr.mxu0 0.0
        %5627 = vmatpush1.msra.mxu0 0.0
        %5628 = vmatprep.subr.mxu0 0.0
        %5629 = vmatpush1.msra.mxu0 0.0
        %5630 = vmatprep.subr.mxu0 0.0
        %5631 = vmatpush1.msra.mxu0 0.0
        %5632 = vmatprep.subr.mxu0 0.0
        %5633 = vmatpush1.msra.mxu0 0.0
        %5634 = vmatprep.subr.mxu0 0.0
        %5635 = vmatpush1.msra.mxu0 0.0
        %5636 = vmatprep.subr.mxu0 0.0
        %5637 = vmatpush1.msra.mxu0 0.0
        %5638 = vmatprep.subr.mxu0 0.0
        %5639 = vmatpush1.msra.mxu0 0.0
        %5640 = vmatprep.subr.mxu0 0.0
        %5641 = vmatpush1.msra.mxu0 0.0
        %5642 = vmatprep.subr.mxu0 0.0
        %5643 = vmatpush1.msra.mxu0 0.0
        %5644 = vmatprep.subr.mxu0 0.0
        %5645 = vmatpush1.msra.mxu0 0.0
        %5646 = vmatprep.subr.mxu0 0.0
        %5647 = vmatpush1.msra.mxu0 0.0
        %5648 = vmatprep.subr.mxu0 0.0
        %5649 = vmatpush1.msra.mxu0 0.0
        %5650 = vmatprep.subr.mxu0 0.0
        %5651 = vmatpush1.msra.mxu0 0.0
        %5652 = vmatprep.subr.mxu0 0.0
        %5653 = vmatpush1.msra.mxu0 0.0
        %5654 = vmatprep.subr.mxu0 0.0
        %5655 = vmatpush1.msra.mxu0 0.0
        %5656 = vmatprep.mubr.f32.mxu0 0.0
        %5657 = vmatmul.mubr.f32.gmra.mrb[0].mxu0 %v5590
        %v5658 = vpop.f32.mrb[0].mxu0
        %v5659 = vadd.f32 0.0, %v5658
        %v5660 = vpop.f32.mrb[0].mxu0
        %5661 = vdwg.mxu0
        %v5662 = vld [vmem:[#allocation7 + $0x430] sm:$0xff]
        %v5664 = vsel %vm437, %v5659, 0
        %5666 = vmatprep.subr.mxu0 0.0
        %5667 = vmatpush1.msra.mxu0 %v5662
        %5668 = vmatprep.subr.mxu0 0.0
        %5669 = vmatpush1.msra.mxu0 0.0
        %5670 = vmatprep.subr.mxu0 0.0
        %5671 = vmatpush1.msra.mxu0 0.0
        %5672 = vmatprep.subr.mxu0 0.0
        %5673 = vmatpush1.msra.mxu0 0.0
        %5674 = vmatprep.subr.mxu0 0.0
        %5675 = vmatpush1.msra.mxu0 0.0
        %5676 = vmatprep.subr.mxu0 0.0
        %5677 = vmatpush1.msra.mxu0 0.0
        %5678 = vmatprep.subr.mxu0 0.0
        %5679 = vmatpush1.msra.mxu0 0.0
        %5680 = vmatprep.subr.mxu0 0.0
        %5681 = vmatpush1.msra.mxu0 0.0
        %5682 = vmatprep.subr.mxu0 0.0
        %5683 = vmatpush1.msra.mxu0 0.0
        %5684 = vmatprep.subr.mxu0 0.0
        %5685 = vmatpush1.msra.mxu0 0.0
        %5686 = vmatprep.subr.mxu0 0.0
        %5687 = vmatpush1.msra.mxu0 0.0
        %5688 = vmatprep.subr.mxu0 0.0
        %5689 = vmatpush1.msra.mxu0 0.0
        %5690 = vmatprep.subr.mxu0 0.0
        %5691 = vmatpush1.msra.mxu0 0.0
        %5692 = vmatprep.subr.mxu0 0.0
        %5693 = vmatpush1.msra.mxu0 0.0
        %5694 = vmatprep.subr.mxu0 0.0
        %5695 = vmatpush1.msra.mxu0 0.0
        %5696 = vmatprep.subr.mxu0 0.0
        %5697 = vmatpush1.msra.mxu0 0.0
        %5698 = vmatprep.subr.mxu0 0.0
        %5699 = vmatpush1.msra.mxu0 0.0
        %5700 = vmatprep.subr.mxu0 0.0
        %5701 = vmatpush1.msra.mxu0 0.0
        %5702 = vmatprep.subr.mxu0 0.0
        %5703 = vmatpush1.msra.mxu0 0.0
        %5704 = vmatprep.subr.mxu0 0.0
        %5705 = vmatpush1.msra.mxu0 0.0
        %5706 = vmatprep.subr.mxu0 0.0
        %5707 = vmatpush1.msra.mxu0 0.0
        %5708 = vmatprep.subr.mxu0 0.0
        %5709 = vmatpush1.msra.mxu0 0.0
        %5710 = vmatprep.subr.mxu0 0.0
        %5711 = vmatpush1.msra.mxu0 0.0
        %5712 = vmatprep.subr.mxu0 0.0
        %5713 = vmatpush1.msra.mxu0 0.0
        %5714 = vmatprep.subr.mxu0 0.0
        %5715 = vmatpush1.msra.mxu0 0.0
        %5716 = vmatprep.subr.mxu0 0.0
        %5717 = vmatpush1.msra.mxu0 0.0
        %5718 = vmatprep.subr.mxu0 0.0
        %5719 = vmatpush1.msra.mxu0 0.0
        %5720 = vmatprep.subr.mxu0 0.0
        %5721 = vmatpush1.msra.mxu0 0.0
        %5722 = vmatprep.subr.mxu0 0.0
        %5723 = vmatpush1.msra.mxu0 0.0
        %5724 = vmatprep.subr.mxu0 0.0
        %5725 = vmatpush1.msra.mxu0 0.0
        %5726 = vmatprep.subr.mxu0 0.0
        %5727 = vmatpush1.msra.mxu0 0.0
        %5728 = vmatprep.subr.mxu0 0.0
        %5729 = vmatpush1.msra.mxu0 0.0
        %5730 = vmatprep.mubr.f32.mxu0 0.0
        %5731 = vmatmul.mubr.f32.gmra.mrb[0].mxu0 %v5664
        %v5732 = vpop.f32.mrb[0].mxu0
        %v5733 = vadd.f32 0.0, %v5732
        %v5734 = vpop.f32.mrb[0].mxu0
        %5735 = vdwg.mxu0
        %v5736 = vadd.f32 %v5495, %v5733
        %v5737 = vmul.f32 %v5574, 0.25
        %v5738 = vadd.f32 %v4594, %v5736
        %v5739 = vld [vmem:[#allocation7 + $0x438] sm:$0x1]
        %v5740 = vld [vmem:[#allocation7 + $0x439] sm:$0x1]
        %v5741 = vsel %vm246, %v5738, 0.0
        %5742 = vadd.xlane.f32.xlu0 %v5741
        %v5743 = vpop.xlane.xlu0 %5742
        %v5744 = vmul.f32 %v5743, %v325
        %v5745 = vsub.f32 %v5738, %v5744
        %v5746 = vmul.f32 %v5745, %v5745
        %v5747 = vsel %vm246, %v5746, 0.0
        %5748 = vadd.xlane.f32.xlu0 %v5747
        %v5749 = vpop.xlane.xlu0 %5748
        %v5750 = vmul.f32 %v5749, %v332
        %v5751 = vlaneseq
        %v5752 = vshrl.u32 %v5751, 7
        %v5753 = vsub.s32 0, %v5752
        %v5754 = vrot.slane %v5739, %v5753
        %v5755 = vmul.f32 %v5754, %v5745
        %v5756 = vrsqrt.pop %v5750
        %v5757 = vmul.f32 %v5750, %v5756
        %vm5758 = vcmp.eq.f32.partialorder %v5750, inf
        %v5759 = vsel %vm5758, %v5750, %v5757
        %vm5760 = vcmp.eq.f32.partialorder %v5750, 0.0
        %v5761 = vand.u32 %v5750, 2147483648
        %v5762 = vsel %vm5760, %v5761, %v5759
        %v5763 = vadd.f32 %v5762, 1e-06
        %v5764 = vrcp.pop %v5763
        %v5765 = vmul.f32 %v5755, %v5764
        %v5766 = vlaneseq
        %v5767 = vshrl.u32 %v5766, 7
        %v5768 = vsub.s32 0, %v5767
        %v5769 = vrot.slane %v5740, %v5768
        %v5770 = vadd.f32 %v5765, %v5769
        %v5771 = vrot.slane %v5770, 7
        %v5772 = vmul.f32 %v5771, %v2992
        %v5773 = vrot.slane %v5770, 6
        %v5774 = vmul.f32 %v5773, %v2998
        %v5775 = vld [vmem:[#allocation7 + $0x440] sm:$0xff]
        %v5776 = vld [vmem:[#allocation7 + $0x448] sm:$0xff]
        %v5777 = vld [vmem:[#allocation7 + $0x450] sm:$0xff]
        %v5778 = vld [vmem:[#allocation7 + $0x458] sm:$0xff]
        %v5779 = vld [vmem:[#allocation7 + $0x460] sm:$0xff]
        %v5780 = vld [vmem:[#allocation7 + $0x468] sm:$0xff]
        %v5781 = vld [vmem:[#allocation7 + $0x470] sm:$0xff]
        %v5782 = vld [vmem:[#allocation7 + $0x478] sm:$0xff]
        %v5784 = vsel %vm246, %v5772, 0
        %5786 = vmatprep.subr.mxu0 0.0
        %5787 = vmatpush1.msra.mxu0 %v5779
        %5788 = vmatprep.subr.mxu0 0.0
        %5789 = vmatpush1.msra.mxu0 %v5780
        %5790 = vmatprep.subr.mxu0 0.0
        %5791 = vmatpush1.msra.mxu0 %v5781
        %5792 = vmatprep.subr.mxu0 0.0
        %5793 = vmatpush1.msra.mxu0 %v5782
        %5794 = vmatprep.subr.mxu0 0.0
        %5795 = vmatpush1.msra.mxu0 0.0
        %5796 = vmatprep.subr.mxu0 0.0
        %5797 = vmatpush1.msra.mxu0 0.0
        %5798 = vmatprep.subr.mxu0 0.0
        %5799 = vmatpush1.msra.mxu0 0.0
        %5800 = vmatprep.subr.mxu0 0.0
        %5801 = vmatpush1.msra.mxu0 0.0
        %5802 = vmatprep.subr.mxu0 0.0
        %5803 = vmatpush1.msra.mxu0 0.0
        %5804 = vmatprep.subr.mxu0 0.0
        %5805 = vmatpush1.msra.mxu0 0.0
        %5806 = vmatprep.subr.mxu0 0.0
        %5807 = vmatpush1.msra.mxu0 0.0
        %5808 = vmatprep.subr.mxu0 0.0
        %5809 = vmatpush1.msra.mxu0 0.0
        %5810 = vmatprep.subr.mxu0 0.0
        %5811 = vmatpush1.msra.mxu0 0.0
        %5812 = vmatprep.subr.mxu0 0.0
        %5813 = vmatpush1.msra.mxu0 0.0
        %5814 = vmatprep.subr.mxu0 0.0
        %5815 = vmatpush1.msra.mxu0 0.0
        %5816 = vmatprep.subr.mxu0 0.0
        %5817 = vmatpush1.msra.mxu0 0.0
        %5818 = vmatprep.subr.mxu0 0.0
        %5819 = vmatpush1.msra.mxu0 0.0
        %5820 = vmatprep.subr.mxu0 0.0
        %5821 = vmatpush1.msra.mxu0 0.0
        %5822 = vmatprep.subr.mxu0 0.0
        %5823 = vmatpush1.msra.mxu0 0.0
        %5824 = vmatprep.subr.mxu0 0.0
        %5825 = vmatpush1.msra.mxu0 0.0
        %5826 = vmatprep.subr.mxu0 0.0
        %5827 = vmatpush1.msra.mxu0 0.0
        %5828 = vmatprep.subr.mxu0 0.0
        %5829 = vmatpush1.msra.mxu0 0.0
        %5830 = vmatprep.subr.mxu0 0.0
        %5831 = vmatpush1.msra.mxu0 0.0
        %5832 = vmatprep.subr.mxu0 0.0
        %5833 = vmatpush1.msra.mxu0 0.0
        %5834 = vmatprep.subr.mxu0 0.0
        %5835 = vmatpush1.msra.mxu0 0.0
        %5836 = vmatprep.subr.mxu0 0.0
        %5837 = vmatpush1.msra.mxu0 0.0
        %5838 = vmatprep.subr.mxu0 0.0
        %5839 = vmatpush1.msra.mxu0 0.0
        %5840 = vmatprep.subr.mxu0 0.0
        %5841 = vmatpush1.msra.mxu0 0.0
        %5842 = vmatprep.subr.mxu0 0.0
        %5843 = vmatpush1.msra.mxu0 0.0
        %5844 = vmatprep.subr.mxu0 0.0
        %5845 = vmatpush1.msra.mxu0 0.0
        %5846 = vmatprep.subr.mxu0 0.0
        %5847 = vmatpush1.msra.mxu0 0.0
        %5848 = vmatprep.subr.mxu0 0.0
        %5849 = vmatpush1.msra.mxu0 0.0
        %5850 = vmatprep.mubr.f32.mxu0 0.0
        %5851 = vmatmul.mubr.f32.gmra.mrb[0].mxu0 %v5784
        %v5852 = vpop.f32.mrb[0].mxu0
        %v5853 = vadd.f32 0.0, %v5852
        %v5854 = vpop.f32.mrb[0].mxu0
        %5855 = vdwg.mxu0
        %v5857 = vsel %vm246, %v5774, 0
        %5859 = vmatprep.subr.mxu0 0.0
        %5860 = vmatpush1.msra.mxu0 %v5775
        %5861 = vmatprep.subr.mxu0 0.0
        %5862 = vmatpush1.msra.mxu0 %v5776
        %5863 = vmatprep.subr.mxu0 0.0
        %5864 = vmatpush1.msra.mxu0 %v5777
        %5865 = vmatprep.subr.mxu0 0.0
        %5866 = vmatpush1.msra.mxu0 %v5778
        %5867 = vmatprep.subr.mxu0 0.0
        %5868 = vmatpush1.msra.mxu0 0.0
        %5869 = vmatprep.subr.mxu0 0.0
        %5870 = vmatpush1.msra.mxu0 0.0
        %5871 = vmatprep.subr.mxu0 0.0
        %5872 = vmatpush1.msra.mxu0 0.0
        %5873 = vmatprep.subr.mxu0 0.0
        %5874 = vmatpush1.msra.mxu0 0.0
        %5875 = vmatprep.subr.mxu0 0.0
        %5876 = vmatpush1.msra.mxu0 0.0
        %5877 = vmatprep.subr.mxu0 0.0
        %5878 = vmatpush1.msra.mxu0 0.0
        %5879 = vmatprep.subr.mxu0 0.0
        %5880 = vmatpush1.msra.mxu0 0.0
        %5881 = vmatprep.subr.mxu0 0.0
        %5882 = vmatpush1.msra.mxu0 0.0
        %5883 = vmatprep.subr.mxu0 0.0
        %5884 = vmatpush1.msra.mxu0 0.0
        %5885 = vmatprep.subr.mxu0 0.0
        %5886 = vmatpush1.msra.mxu0 0.0
        %5887 = vmatprep.subr.mxu0 0.0
        %5888 = vmatpush1.msra.mxu0 0.0
        %5889 = vmatprep.subr.mxu0 0.0
        %5890 = vmatpush1.msra.mxu0 0.0
        %5891 = vmatprep.subr.mxu0 0.0
        %5892 = vmatpush1.msra.mxu0 0.0
        %5893 = vmatprep.subr.mxu0 0.0
        %5894 = vmatpush1.msra.mxu0 0.0
        %5895 = vmatprep.subr.mxu0 0.0
        %5896 = vmatpush1.msra.mxu0 0.0
        %5897 = vmatprep.subr.mxu0 0.0
        %5898 = vmatpush1.msra.mxu0 0.0
        %5899 = vmatprep.subr.mxu0 0.0
        %5900 = vmatpush1.msra.mxu0 0.0
        %5901 = vmatprep.subr.mxu0 0.0
        %5902 = vmatpush1.msra.mxu0 0.0
        %5903 = vmatprep.subr.mxu0 0.0
        %5904 = vmatpush1.msra.mxu0 0.0
        %5905 = vmatprep.subr.mxu0 0.0
        %5906 = vmatpush1.msra.mxu0 0.0
        %5907 = vmatprep.subr.mxu0 0.0
        %5908 = vmatpush1.msra.mxu0 0.0
        %5909 = vmatprep.subr.mxu0 0.0
        %5910 = vmatpush1.msra.mxu0 0.0
        %5911 = vmatprep.subr.mxu0 0.0
        %5912 = vmatpush1.msra.mxu0 0.0
        %5913 = vmatprep.subr.mxu0 0.0
        %5914 = vmatpush1.msra.mxu0 0.0
        %5915 = vmatprep.subr.mxu0 0.0
        %5916 = vmatpush1.msra.mxu0 0.0
        %5917 = vmatprep.subr.mxu0 0.0
        %5918 = vmatpush1.msra.mxu0 0.0
        %5919 = vmatprep.subr.mxu0 0.0
        %5920 = vmatpush1.msra.mxu0 0.0
        %5921 = vmatprep.subr.mxu0 0.0
        %5922 = vmatpush1.msra.mxu0 0.0
        %5923 = vmatprep.mubr.f32.mxu0 0.0
        %5924 = vmatmul.mubr.f32.gmra.mrb[0].mxu0 %v5857
        %v5925 = vpop.f32.mrb[0].mxu0
        %v5926 = vadd.f32 %v5853, %v5925
        %v5927 = vpop.f32.mrb[0].mxu0
        %5928 = vdwg.mxu0
        %v5929 = vld [vmem:[#allocation7 + $0x480] sm:$0xff]
        %v5930 = vld [vmem:[#allocation7 + $0x488] sm:$0xff]
        %v5931 = vld [vmem:[#allocation7 + $0x490] sm:$0xff]
        %v5932 = vld [vmem:[#allocation7 + $0x498] sm:$0xff]
        %v5934 = vsel %vm246, %v5770, 0
        %5936 = vmatprep.subr.mxu0 0.0
        %5937 = vmatpush1.msra.mxu0 %v5929
        %5938 = vmatprep.subr.mxu0 0.0
        %5939 = vmatpush1.msra.mxu0 %v5930
        %5940 = vmatprep.subr.mxu0 0.0
        %5941 = vmatpush1.msra.mxu0 %v5931
        %5942 = vmatprep.subr.mxu0 0.0
        %5943 = vmatpush1.msra.mxu0 %v5932
        %5944 = vmatprep.subr.mxu0 0.0
        %5945 = vmatpush1.msra.mxu0 0.0
        %5946 = vmatprep.subr.mxu0 0.0
        %5947 = vmatpush1.msra.mxu0 0.0
        %5948 = vmatprep.subr.mxu0 0.0
        %5949 = vmatpush1.msra.mxu0 0.0
        %5950 = vmatprep.subr.mxu0 0.0
        %5951 = vmatpush1.msra.mxu0 0.0
        %5952 = vmatprep.subr.mxu0 0.0
        %5953 = vmatpush1.msra.mxu0 0.0
        %5954 = vmatprep.subr.mxu0 0.0
        %5955 = vmatpush1.msra.mxu0 0.0
        %5956 = vmatprep.subr.mxu0 0.0
        %5957 = vmatpush1.msra.mxu0 0.0
        %5958 = vmatprep.subr.mxu0 0.0
        %5959 = vmatpush1.msra.mxu0 0.0
        %5960 = vmatprep.subr.mxu0 0.0
        %5961 = vmatpush1.msra.mxu0 0.0
        %5962 = vmatprep.subr.mxu0 0.0
        %5963 = vmatpush1.msra.mxu0 0.0
        %5964 = vmatprep.subr.mxu0 0.0
        %5965 = vmatpush1.msra.mxu0 0.0
        %5966 = vmatprep.subr.mxu0 0.0
        %5967 = vmatpush1.msra.mxu0 0.0
        %5968 = vmatprep.subr.mxu0 0.0
        %5969 = vmatpush1.msra.mxu0 0.0
        %5970 = vmatprep.subr.mxu0 0.0
        %5971 = vmatpush1.msra.mxu0 0.0
        %5972 = vmatprep.subr.mxu0 0.0
        %5973 = vmatpush1.msra.mxu0 0.0
        %5974 = vmatprep.subr.mxu0 0.0
        %5975 = vmatpush1.msra.mxu0 0.0
        %5976 = vmatprep.subr.mxu0 0.0
        %5977 = vmatpush1.msra.mxu0 0.0
        %5978 = vmatprep.subr.mxu0 0.0
        %5979 = vmatpush1.msra.mxu0 0.0
        %5980 = vmatprep.subr.mxu0 0.0
        %5981 = vmatpush1.msra.mxu0 0.0
        %5982 = vmatprep.subr.mxu0 0.0
        %5983 = vmatpush1.msra.mxu0 0.0
        %5984 = vmatprep.subr.mxu0 0.0
        %5985 = vmatpush1.msra.mxu0 0.0
        %5986 = vmatprep.subr.mxu0 0.0
        %5987 = vmatpush1.msra.mxu0 0.0
        %5988 = vmatprep.subr.mxu0 0.0
        %5989 = vmatpush1.msra.mxu0 0.0
        %5990 = vmatprep.subr.mxu0 0.0
        %5991 = vmatpush1.msra.mxu0 0.0
        %5992 = vmatprep.subr.mxu0 0.0
        %5993 = vmatpush1.msra.mxu0 0.0
        %5994 = vmatprep.subr.mxu0 0.0
        %5995 = vmatpush1.msra.mxu0 0.0
        %5996 = vmatprep.subr.mxu0 0.0
        %5997 = vmatpush1.msra.mxu0 0.0
        %5998 = vmatprep.subr.mxu0 0.0
        %5999 = vmatpush1.msra.mxu0 0.0
        %6000 = vmatprep.mubr.f32.mxu0 0.0
        %6001 = vmatmul.mubr.f32.gmra.mrb[0].mxu0 %v5934
        %v6002 = vpop.f32.mrb[0].mxu0
        %v6003 = vadd.f32 0.0, %v6002
        %v6004 = vpop.f32.mrb[0].mxu0
        %6005 = vdwg.mxu0
        %v6006 = vadd.f32 %v5926, %v6003
        %v6007 = vld [vmem:[#allocation7 + $0x4a0] sm:$0x1]
        %v6008 = vlaneseq
        %v6009 = vshrl.u32 %v6008, 7
        %v6010 = vsub.s32 0, %v6009
        %v6011 = vrot.slane %v6007, %v6010
        %v6012 = vadd.f32 %v6006, %v6011
        %v6013 = vmax.f32 %v6012, 0.0
        %v6014 = vrot.slane %v6013, 7
        %v6015 = vmul.f32 %v6014, %v2992
        %v6016 = vrot.slane %v6013, 6
        %v6017 = vmul.f32 %v6016, %v2998
        %v6018 = vld [vmem:[#allocation7 + $0x4a8] sm:$0xff]
        %v6019 = vld [vmem:[#allocation7 + $0x4b0] sm:$0xff]
        %v6020 = vld [vmem:[#allocation7 + $0x4b8] sm:$0xff]
        %v6021 = vld [vmem:[#allocation7 + $0x4c0] sm:$0xff]
        %v6022 = vld [vmem:[#allocation7 + $0x4c8] sm:$0xff]
        %v6023 = vld [vmem:[#allocation7 + $0x4d0] sm:$0xff]
        %v6024 = vld [vmem:[#allocation7 + $0x4d8] sm:$0xff]
        %v6025 = vld [vmem:[#allocation7 + $0x4e0] sm:$0xff]
        %v6026 = vld [vmem:[#allocation7 + $0x4e8] sm:$0xff]
        %v6027 = vld [vmem:[#allocation7 + $0x4f0] sm:$0xff]
        %v6028 = vld [vmem:[#allocation7 + $0x4f8] sm:$0xff]
        %v6029 = vld [vmem:[#allocation7 + $0x500] sm:$0xff]
        %v6030 = vld [vmem:[#allocation7 + $0x508] sm:$0xff]
        %v6031 = vld [vmem:[#allocation7 + $0x510] sm:$0xff]
        %v6032 = vld [vmem:[#allocation7 + $0x518] sm:$0xff]
        %v6033 = vld [vmem:[#allocation7 + $0x520] sm:$0xff]
        %v6035 = vsel %vm3260, %v6015, 0
        %6037 = vmatprep.subr.mxu0 0.0
        %6038 = vmatpush1.msra.mxu0 %v6026
        %6039 = vmatprep.subr.mxu0 0.0
        %6040 = vmatpush1.msra.mxu0 %v6027
        %6041 = vmatprep.subr.mxu0 0.0
        %6042 = vmatpush1.msra.mxu0 %v6028
        %6043 = vmatprep.subr.mxu0 0.0
        %6044 = vmatpush1.msra.mxu0 %v6029
        %6045 = vmatprep.subr.mxu0 0.0
        %6046 = vmatpush1.msra.mxu0 %v6030
        %6047 = vmatprep.subr.mxu0 0.0
        %6048 = vmatpush1.msra.mxu0 %v6031
        %6049 = vmatprep.subr.mxu0 0.0
        %6050 = vmatpush1.msra.mxu0 %v6032
        %6051 = vmatprep.subr.mxu0 0.0
        %6052 = vmatpush1.msra.mxu0 %v6033
        %6053 = vmatprep.subr.mxu0 0.0
        %6054 = vmatpush1.msra.mxu0 0.0
        %6055 = vmatprep.subr.mxu0 0.0
        %6056 = vmatpush1.msra.mxu0 0.0
        %6057 = vmatprep.subr.mxu0 0.0
        %6058 = vmatpush1.msra.mxu0 0.0
        %6059 = vmatprep.subr.mxu0 0.0
        %6060 = vmatpush1.msra.mxu0 0.0
        %6061 = vmatprep.subr.mxu0 0.0
        %6062 = vmatpush1.msra.mxu0 0.0
        %6063 = vmatprep.subr.mxu0 0.0
        %6064 = vmatpush1.msra.mxu0 0.0
        %6065 = vmatprep.subr.mxu0 0.0
        %6066 = vmatpush1.msra.mxu0 0.0
        %6067 = vmatprep.subr.mxu0 0.0
        %6068 = vmatpush1.msra.mxu0 0.0
        %6069 = vmatprep.subr.mxu0 0.0
        %6070 = vmatpush1.msra.mxu0 0.0
        %6071 = vmatprep.subr.mxu0 0.0
        %6072 = vmatpush1.msra.mxu0 0.0
        %6073 = vmatprep.subr.mxu0 0.0
        %6074 = vmatpush1.msra.mxu0 0.0
        %6075 = vmatprep.subr.mxu0 0.0
        %6076 = vmatpush1.msra.mxu0 0.0
        %6077 = vmatprep.subr.mxu0 0.0
        %6078 = vmatpush1.msra.mxu0 0.0
        %6079 = vmatprep.subr.mxu0 0.0
        %6080 = vmatpush1.msra.mxu0 0.0
        %6081 = vmatprep.subr.mxu0 0.0
        %6082 = vmatpush1.msra.mxu0 0.0
        %6083 = vmatprep.subr.mxu0 0.0
        %6084 = vmatpush1.msra.mxu0 0.0
        %6085 = vmatprep.subr.mxu0 0.0
        %6086 = vmatpush1.msra.mxu0 0.0
        %6087 = vmatprep.subr.mxu0 0.0
        %6088 = vmatpush1.msra.mxu0 0.0
        %6089 = vmatprep.subr.mxu0 0.0
        %6090 = vmatpush1.msra.mxu0 0.0
        %6091 = vmatprep.subr.mxu0 0.0
        %6092 = vmatpush1.msra.mxu0 0.0
        %6093 = vmatprep.subr.mxu0 0.0
        %6094 = vmatpush1.msra.mxu0 0.0
        %6095 = vmatprep.subr.mxu0 0.0
        %6096 = vmatpush1.msra.mxu0 0.0
        %6097 = vmatprep.subr.mxu0 0.0
        %6098 = vmatpush1.msra.mxu0 0.0
        %6099 = vmatprep.subr.mxu0 0.0
        %6100 = vmatpush1.msra.mxu0 0.0
        %6101 = vmatprep.mubr.f32.mxu0 0.0
        %6102 = vmatmul.mubr.f32.gmra.mrb[0].mxu0 %v6035
        %v6103 = vpop.f32.mrb[0].mxu0
        %v6104 = vadd.f32 0.0, %v6103
        %v6105 = vpop.f32.mrb[0].mxu0
        %6106 = vdwg.mxu0
        %v6108 = vsel %vm3260, %v6017, 0
        %6110 = vmatprep.subr.mxu0 0.0
        %6111 = vmatpush1.msra.mxu0 %v6018
        %6112 = vmatprep.subr.mxu0 0.0
        %6113 = vmatpush1.msra.mxu0 %v6019
        %6114 = vmatprep.subr.mxu0 0.0
        %6115 = vmatpush1.msra.mxu0 %v6020
        %6116 = vmatprep.subr.mxu0 0.0
        %6117 = vmatpush1.msra.mxu0 %v6021
        %6118 = vmatprep.subr.mxu0 0.0
        %6119 = vmatpush1.msra.mxu0 %v6022
        %6120 = vmatprep.subr.mxu0 0.0
        %6121 = vmatpush1.msra.mxu0 %v6023
        %6122 = vmatprep.subr.mxu0 0.0
        %6123 = vmatpush1.msra.mxu0 %v6024
        %6124 = vmatprep.subr.mxu0 0.0
        %6125 = vmatpush1.msra.mxu0 %v6025
        %6126 = vmatprep.subr.mxu0 0.0
        %6127 = vmatpush1.msra.mxu0 0.0
        %6128 = vmatprep.subr.mxu0 0.0
        %6129 = vmatpush1.msra.mxu0 0.0
        %6130 = vmatprep.subr.mxu0 0.0
        %6131 = vmatpush1.msra.mxu0 0.0
        %6132 = vmatprep.subr.mxu0 0.0
        %6133 = vmatpush1.msra.mxu0 0.0
        %6134 = vmatprep.subr.mxu0 0.0
        %6135 = vmatpush1.msra.mxu0 0.0
        %6136 = vmatprep.subr.mxu0 0.0
        %6137 = vmatpush1.msra.mxu0 0.0
        %6138 = vmatprep.subr.mxu0 0.0
        %6139 = vmatpush1.msra.mxu0 0.0
        %6140 = vmatprep.subr.mxu0 0.0
        %6141 = vmatpush1.msra.mxu0 0.0
        %6142 = vmatprep.subr.mxu0 0.0
        %6143 = vmatpush1.msra.mxu0 0.0
        %6144 = vmatprep.subr.mxu0 0.0
        %6145 = vmatpush1.msra.mxu0 0.0
        %6146 = vmatprep.subr.mxu0 0.0
        %6147 = vmatpush1.msra.mxu0 0.0
        %6148 = vmatprep.subr.mxu0 0.0
        %6149 = vmatpush1.msra.mxu0 0.0
        %6150 = vmatprep.subr.mxu0 0.0
        %6151 = vmatpush1.msra.mxu0 0.0
        %6152 = vmatprep.subr.mxu0 0.0
        %6153 = vmatpush1.msra.mxu0 0.0
        %6154 = vmatprep.subr.mxu0 0.0
        %6155 = vmatpush1.msra.mxu0 0.0
        %6156 = vmatprep.subr.mxu0 0.0
        %6157 = vmatpush1.msra.mxu0 0.0
        %6158 = vmatprep.subr.mxu0 0.0
        %6159 = vmatpush1.msra.mxu0 0.0
        %6160 = vmatprep.subr.mxu0 0.0
        %6161 = vmatpush1.msra.mxu0 0.0
        %6162 = vmatprep.subr.mxu0 0.0
        %6163 = vmatpush1.msra.mxu0 0.0
        %6164 = vmatprep.subr.mxu0 0.0
        %6165 = vmatpush1.msra.mxu0 0.0
        %6166 = vmatprep.subr.mxu0 0.0
        %6167 = vmatpush1.msra.mxu0 0.0
        %6168 = vmatprep.subr.mxu0 0.0
        %6169 = vmatpush1.msra.mxu0 0.0
        %6170 = vmatprep.subr.mxu0 0.0
        %6171 = vmatpush1.msra.mxu0 0.0
        %6172 = vmatprep.subr.mxu0 0.0
        %6173 = vmatpush1.msra.mxu0 0.0
        %6174 = vmatprep.mubr.f32.mxu0 0.0
        %6175 = vmatmul.mubr.f32.gmra.mrb[0].mxu0 %v6108
        %v6176 = vpop.f32.mrb[0].mxu0
        %v6177 = vadd.f32 %v6104, %v6176
        %v6178 = vpop.f32.mrb[0].mxu0
        %6179 = vdwg.mxu0
        %v6180 = vld [vmem:[#allocation7 + $0x528] sm:$0xff]
        %v6181 = vld [vmem:[#allocation7 + $0x530] sm:$0xff]
        %v6182 = vld [vmem:[#allocation7 + $0x538] sm:$0xff]
        %v6183 = vld [vmem:[#allocation7 + $0x540] sm:$0xff]
        %v6184 = vld [vmem:[#allocation7 + $0x548] sm:$0xff]
        %v6185 = vld [vmem:[#allocation7 + $0x550] sm:$0xff]
        %v6186 = vld [vmem:[#allocation7 + $0x558] sm:$0xff]
        %v6187 = vld [vmem:[#allocation7 + $0x560] sm:$0xff]
        %v6189 = vsel %vm3260, %v6013, 0
        %6191 = vmatprep.subr.mxu0 0.0
        %6192 = vmatpush1.msra.mxu0 %v6180
        %6193 = vmatprep.subr.mxu0 0.0
        %6194 = vmatpush1.msra.mxu0 %v6181
        %6195 = vmatprep.subr.mxu0 0.0
        %6196 = vmatpush1.msra.mxu0 %v6182
        %6197 = vmatprep.subr.mxu0 0.0
        %6198 = vmatpush1.msra.mxu0 %v6183
        %6199 = vmatprep.subr.mxu0 0.0
        %6200 = vmatpush1.msra.mxu0 %v6184
        %6201 = vmatprep.subr.mxu0 0.0
        %6202 = vmatpush1.msra.mxu0 %v6185
        %6203 = vmatprep.subr.mxu0 0.0
        %6204 = vmatpush1.msra.mxu0 %v6186
        %6205 = vmatprep.subr.mxu0 0.0
        %6206 = vmatpush1.msra.mxu0 %v6187
        %6207 = vmatprep.subr.mxu0 0.0
        %6208 = vmatpush1.msra.mxu0 0.0
        %6209 = vmatprep.subr.mxu0 0.0
        %6210 = vmatpush1.msra.mxu0 0.0
        %6211 = vmatprep.subr.mxu0 0.0
        %6212 = vmatpush1.msra.mxu0 0.0
        %6213 = vmatprep.subr.mxu0 0.0
        %6214 = vmatpush1.msra.mxu0 0.0
        %6215 = vmatprep.subr.mxu0 0.0
        %6216 = vmatpush1.msra.mxu0 0.0
        %6217 = vmatprep.subr.mxu0 0.0
        %6218 = vmatpush1.msra.mxu0 0.0
        %6219 = vmatprep.subr.mxu0 0.0
        %6220 = vmatpush1.msra.mxu0 0.0
        %6221 = vmatprep.subr.mxu0 0.0
        %6222 = vmatpush1.msra.mxu0 0.0
        %6223 = vmatprep.subr.mxu0 0.0
        %6224 = vmatpush1.msra.mxu0 0.0
        %6225 = vmatprep.subr.mxu0 0.0
        %6226 = vmatpush1.msra.mxu0 0.0
        %6227 = vmatprep.subr.mxu0 0.0
        %6228 = vmatpush1.msra.mxu0 0.0
        %6229 = vmatprep.subr.mxu0 0.0
        %6230 = vmatpush1.msra.mxu0 0.0
        %6231 = vmatprep.subr.mxu0 0.0
        %6232 = vmatpush1.msra.mxu0 0.0
        %6233 = vmatprep.subr.mxu0 0.0
        %6234 = vmatpush1.msra.mxu0 0.0
        %6235 = vmatprep.subr.mxu0 0.0
        %6236 = vmatpush1.msra.mxu0 0.0
        %6237 = vmatprep.subr.mxu0 0.0
        %6238 = vmatpush1.msra.mxu0 0.0
        %6239 = vmatprep.subr.mxu0 0.0
        %6240 = vmatpush1.msra.mxu0 0.0
        %6241 = vmatprep.subr.mxu0 0.0
        %6242 = vmatpush1.msra.mxu0 0.0
        %6243 = vmatprep.subr.mxu0 0.0
        %6244 = vmatpush1.msra.mxu0 0.0
        %6245 = vmatprep.subr.mxu0 0.0
        %6246 = vmatpush1.msra.mxu0 0.0
        %6247 = vmatprep.subr.mxu0 0.0
        %6248 = vmatpush1.msra.mxu0 0.0
        %6249 = vmatprep.subr.mxu0 0.0
        %6250 = vmatpush1.msra.mxu0 0.0
        %6251 = vmatprep.subr.mxu0 0.0
        %6252 = vmatpush1.msra.mxu0 0.0
        %6253 = vmatprep.subr.mxu0 0.0
        %6254 = vmatpush1.msra.mxu0 0.0
        %6255 = vmatprep.mubr.f32.mxu0 0.0
        %6256 = vmatmul.mubr.f32.gmra.mrb[0].mxu0 %v6189
        %v6257 = vpop.f32.mrb[0].mxu0
        %v6258 = vadd.f32 0.0, %v6257
        %v6259 = vpop.f32.mrb[0].mxu0
        %6260 = vdwg.mxu0
        %v6261 = vadd.f32 %v6177, %v6258
        %v6262 = vld [vmem:[#allocation7 + $0x568] sm:$0x1]
        %v6263 = vlaneseq
        %v6264 = vshrl.u32 %v6263, 7
        %v6265 = vsub.s32 0, %v6264
        %v6266 = vrot.slane %v6262, %v6265
        %v6267 = vadd.f32 %v6261, %v6266
        %v6268 = vadd.f32 %v5738, %v6267
        %v6269 = vld [vmem:[#allocation7 + $0x30] sm:$0x1]
        %v6270 = vld [vmem:[#allocation7 + $0x31] sm:$0x1]
        %v6271 = vsel %vm246, %v6268, 0.0
        %6272 = vadd.xlane.f32.xlu0 %v6271
        %v6273 = vpop.xlane.xlu0 %6272
        %v6274 = vmul.f32 %v6273, %v325
        %v6275 = vsub.f32 %v6268, %v6274
        %v6276 = vmul.f32 %v6275, %v6275
        %v6277 = vsel %vm246, %v6276, 0.0
        %6278 = vadd.xlane.f32.xlu0 %v6277
        %v6279 = vpop.xlane.xlu0 %6278
        %v6280 = vmul.f32 %v6279, %v332
        %v6281 = vlaneseq
        %v6282 = vshrl.u32 %v6281, 7
        %v6283 = vsub.s32 0, %v6282
        %v6284 = vrot.slane %v6269, %v6283
        %v6285 = vmul.f32 %v6284, %v6275
        %v6286 = vrsqrt.pop %v6280
        %v6287 = vmul.f32 %v6280, %v6286
        %vm6288 = vcmp.eq.f32.partialorder %v6280, inf
        %v6289 = vsel %vm6288, %v6280, %v6287
        %vm6290 = vcmp.eq.f32.partialorder %v6280, 0.0
        %v6291 = vand.u32 %v6280, 2147483648
        %v6292 = vsel %vm6290, %v6291, %v6289
        %v6293 = vadd.f32 %v6292, 1e-06
        %v6294 = vrcp.pop %v6293
        %v6295 = vmul.f32 %v6285, %v6294
        %v6296 = vlaneseq
        %v6297 = vshrl.u32 %v6296, 7
        %v6298 = vsub.s32 0, %v6297
        %v6299 = vrot.slane %v6270, %v6298
        %v6300 = vadd.f32 %v6295, %v6299
        %6301 = vst.msk [vmem:[%s236] sm:$0xff] %vm246, %v6300
        %6303 = vrot.lane.b32.xlu0 %v5737, 32
        %v6304 = vpop.permute.xlu0 %6303
        %vm6306 = vcmask 326912
        %6307 = vst.msk [vmem:[%s236] sm:$0xff] %vm6306, %v6304
        %s6308 = sand.u32 %s104, 1
        %s6309 = scalar_lea.sflag [#allocation4], %s6308
        %s6310 = sand.u32 %s104, 1
        %s6311 = smul.addr %s6310, 16
        %s6312 = scalar_lea.vmem [#allocation8], %s6311
        // Predicated region
        $region45: #{tpu_custom_call.1} parent=31 // pred_check
          %p6313 = pneg %p114
        $region46: #{tpu_custom_call.1} parent=31 // pred_check_branch
          %6315 = sbr.rel (%p6313) target = $region48
        $region47: #{tpu_custom_call.1} parent=31 // pred_region
          %s6317 = ssub.s32 256, 256
          %6318 = vsyncadd %s6309, %s6317
          %s6319 = smul.addr %s23, 2
          %s6320 = smul.addr %s6319, 128
          %s6321 = scalar_lea.hbm %s3, %s6320
          %s6323 = sshll.u32 %s6312, 4
          %s6324 = int_to_ptr.vmem [resolvable:$true] %s6323
          %6326 = dma.vmem_to_hbm [thread:$0]  %s6324, 256, %s6321, %s6309
        $region48: #{tpu_custom_call.1} parent=31 // pred_fallthru
          _
      $region32: #{tpu_custom_call.1} parent=5 // pred_fallthru
        _
      %p6327 = scmp.le.s32.totalorder 2, %s18
      // Predicated region
      $region49: #{tpu_custom_call.1} parent=5 // pred_check
        %p6328 = pneg %p6327
      $region50: #{tpu_custom_call.1} parent=5 // pred_check_branch
        %6330 = sbr.rel (%p6328) target = $region52
      $region51: #{tpu_custom_call.1} parent=5 // pred_region
        %s6331 = ssub.s32 %s18, 2
        // Predicated region
        $region53: #{tpu_custom_call.1} parent=51 // pred_check
          %p6332 = pneg %p120
        $region54: #{tpu_custom_call.1} parent=51 // pred_check_branch
          %6334 = sbr.rel (%p6332) target = $region56
        $region55: #{tpu_custom_call.1} parent=51 // pred_region
          %s6335 = sand.u32 %s105, 1
          %s6336 = scalar_lea.sflag [#allocation4], %s6335
          %s6337 = sand.u32 %s105, 1
          %s6338 = smul.addr %s6337, 16
          %s6339 = scalar_lea.vmem [#allocation8], %s6338
          %6340 = dma.done %s6336, 256
        $region56: #{tpu_custom_call.1} parent=51 // pred_fallthru
          _
      $region52: #{tpu_custom_call.1} parent=5 // pred_fallthru
        _
    $region6: #{tpu_custom_call.1} parent=1 // loop_footer
      %s22 = sadd.s32 1, %s18
    $region7: #{tpu_custom_call.1} parent=1 // loop_footer_branch
      %17 = sbr.rel target = $region3
    $region8: #{tpu_custom_call.1} parent=1 // loop_exit
      _
    %6341 = vsyncpa [#allocation3], 1
    %s6342 = scalar_lea.sflag [#allocation3], 1
    %6343 = vsyncpa %s6342, 1
    %6344 = vsyncpa [#allocation6], 1
    %s6345 = scalar_lea.sflag [#allocation6], 1
    %6346 = vsyncpa %s6345, 1
    %6347 = vsyncpa [#allocation4], 1
    %s6348 = scalar_lea.sflag [#allocation4], 1
    %6349 = vsyncpa %s6348, 1

</llo_original>
